<compile_context>
chip_gen: v7x
topology: tpu7x:2x2x1
jax: 0.10.0
libtpu: 0.0.40
codegen_flags: <defaults>
</compile_context>

<pallas_src>
import functools
import math

import jax
import jax.numpy as jnp
from jax.experimental import pallas as pl
from jax.experimental.pallas import tpu as pltpu

NUM_HEADS = 2


# --------------------------------------------------------------------------
# Fused kernel: all transformer layers + 3x3 conv for `imgs_per_block` images.
# x_ref / o_ref: (rows, C) with rows = imgs_per_block * H * W.
# --------------------------------------------------------------------------
def _fused_group_kernel(x_ref, wqkv_ref, bqkv_ref, wo_ref, bo_ref,
                        w1_ref, b1_ref, w2_ref, b2_ref, cw_ref, cb_ref,
                        o_ref, *, img_h, img_w, imgs_per_block, num_heads,
                        approx_recip):
    x = x_ref[...]                                   # (rows, C) f32, VMEM-resident
    rows, c = x.shape
    n_tok = img_h * img_w
    assert rows == imgs_per_block * n_tok
    num_layers = wqkv_ref.shape[0]
    hd = c // num_heads
    scale = float(1.0 / math.sqrt(hd))
    mm = wqkv_ref.dtype                              # matmul operand dtype (bf16/f32)

    # ---------------- transformer layers (unrolled; fine at L=2) -------------
    for l in range(num_layers):
        xb = x.astype(mm)
        # ONE fused qkv matmul per layer: (rows, C) @ (C, 3C) -> (rows, 3C)
        qkv = jnp.dot(xb, wqkv_ref[l],
                      preferred_element_type=jnp.float32) + bqkv_ref[l]

        img_outs = []
        for i in range(imgs_per_block):              # softmax mixes tokens only
            qkv_i = qkv[i * n_tok:(i + 1) * n_tok]   # within one image
            head_outs = []
            for h in range(num_heads):
                # static 16-lane slices of the 96-lane qkv result (inside vreg)
                q = qkv_i[:, h * hd:(h + 1) * hd].astype(mm)
                k = qkv_i[:, c + h * hd:c + (h + 1) * hd].astype(mm)
                v = qkv_i[:, 2 * c + h * hd:2 * c + (h + 1) * hd].astype(mm)
                # s[n, m] = <q_n, k_m> * scale (contract last dims; no transpose)
                s = jax.lax.dot_general(
                    q, k, (((1,), (1,)), ((), ())),
                    preferred_element_type=jnp.float32) * scale
                s = s - jnp.max(s, axis=-1, keepdims=True)
                e = jnp.exp(s)
                denom = jnp.sum(e, axis=-1, keepdims=True)
                if approx_recip:
                    p = e * pl.reciprocal(denom, approx=True)   # EUP slot
                else:
                    p = e / denom
                head_outs.append(jnp.dot(p.astype(mm), v,
                                         preferred_element_type=jnp.float32))
            # lane-concat heads (stays within one vreg): (n_tok, C)
            img_outs.append(jnp.concatenate(head_outs, axis=-1))
        o_attn = img_outs[0] if imgs_per_block == 1 else \
            jnp.concatenate(img_outs, axis=0)                    # (rows, C)

        # single output projection over ALL rows (was one dot per head)
        x = x + jnp.dot(o_attn.astype(mm), wo_ref[l],
                        preferred_element_type=jnp.float32) + bo_ref[l]

        # MLP with residual
        xb = x.astype(mm)
        h1 = jnp.dot(xb, w1_ref[l],
                     preferred_element_type=jnp.float32) + b1_ref[l]
        h1 = jax.nn.gelu(h1, approximate=True)                   # f32 elementwise
        x = x + jnp.dot(h1.astype(mm), w2_ref[l],
                        preferred_element_type=jnp.float32) + b2_ref[l]

    # ---------------- 3x3 conv: ONE (rows,C)@(C,9C) matmul + roll/mask taps ---
    xb = x.astype(mm)
    taps = jnp.dot(xb, cw_ref[...], preferred_element_type=jnp.float32)  # (rows, 9C)

    row_ids = jax.lax.broadcasted_iota(jnp.int32, (rows, c), 0)
    r_img = row_ids % n_tok            # token index within its image
    w_idx = row_ids % img_w            # column index within the image row

    acc = jnp.zeros((rows, c), jnp.float32)
    for kh in range(3):
        for kw in range(3):
            tap = kh * 3 + kw
            dh, dw = kh - 1, kw - 1
            off = dh * img_w + dw                       # token-index offset
            yk = taps[:, tap * c:(tap + 1) * c]         # 32-lane slice (in-vreg)
            if off != 0:
                # out[r] <- yk[r + off]: XLU sublane rotate (np.roll semantics)
                yk = pltpu.roll(yk, shift=(-off) % rows, axis=0)
            conds = []
            if off > 0:
                conds.append(r_img < n_tok - off)        # stay inside own image
            elif off < 0:
                conds.append(r_img >= -off)
            if dw == 1:
                conds.append(w_idx < img_w - 1)          # no right neighbor wrap
            elif dw == -1:
                conds.append(w_idx >= 1)                 # no left neighbor wrap
            if conds:
                m = conds[0]
                for extra in conds[1:]:
                    m = jnp.logical_and(m, extra)
                yk = jnp.where(m, yk, 0.0)
            acc = acc + yk

    o_ref[...] = acc + cb_ref[...]


# --------------------------------------------------------------------------
# pallas_call wrapper
# --------------------------------------------------------------------------
def _const_spec(shape):
    rank = len(shape)
    return pl.BlockSpec(shape, lambda g: (0,) * rank)   # resident across grid


def _default_imgs_per_block(batch):
    """Fold the batch into tokens on single-TC chips (v5e/v6e); one image per
    grid step on v7x so its two TensorCores each get a batch element."""
    try:
        kind = jax.devices()[0].device_kind.lower()
    except Exception:
        kind = ""
    return 1 if "v7" in kind else batch


def transformer_group_forward(x_nchw, kp, *, num_heads=NUM_HEADS,
                              imgs_per_block=None, approx_recip=True):
    """x_nchw: (B, C, H, W) float32 -> (B, C, H, W). kp: prepared kernel params."""
    B, C, H, W = x_nchw.shape
    N = H * W
    if imgs_per_block is None:
        imgs_per_block = _default_imgs_per_block(B)
    assert B % imgs_per_block == 0
    G = B // imgs_per_block
    rows = imgs_per_block * N

    # (B, C, H, W) -> (B*N, C) token-major layout (wrapper-side, trace time)
    x_tok = jnp.transpose(x_nchw, (0, 2, 3, 1)).reshape(B * N, C)

    kern = functools.partial(_fused_group_kernel, img_h=H, img_w=W,
                             imgs_per_block=imgs_per_block,
                             num_heads=num_heads, approx_recip=approx_recip)

    out = pl.pallas_call(
        kern,
        out_shape=jax.ShapeDtypeStruct((B * N, C), jnp.float32),
        grid=(G,),
        in_specs=[
            pl.BlockSpec((rows, C), lambda g: (g, 0)),   # x (activation)
            _const_spec(kp["wqkv"].shape),               # (L, C, 3C)
            _const_spec(kp["bqkv"].shape),               # (L, 1, 3C)
            _const_spec(kp["wo"].shape),                 # (L, C, C)
            _const_spec(kp["bo"].shape),                 # (L, 1, C)
            _const_spec(kp["w1"].shape),                 # (L, C, Hm)
            _const_spec(kp["b1"].shape),                 # (L, 1, Hm)
            _const_spec(kp["w2"].shape),                 # (L, Hm, C)
            _const_spec(kp["b2"].shape),                 # (L, 1, C)
            _const_spec(kp["conv_w"].shape),             # (C, 9C) fused conv weight
            _const_spec(kp["conv_b"].shape),             # (1, C)
        ],
        out_specs=pl.BlockSpec((rows, C), lambda g: (g, 0)),
        compiler_params=pltpu.CompilerParams(
            dimension_semantics=("parallel",)),
    )(x_tok, kp["wqkv"], kp["bqkv"], kp["wo"], kp["bo"],
      kp["w1"], kp["b1"], kp["w2"], kp["b2"], kp["conv_w"], kp["conv_b"])

    return jnp.transpose(out.reshape(B, H, W, C), (0, 3, 1, 2))


# --------------------------------------------------------------------------
# Parameter prep (trace-time): stack layers, fuse conv weight to (C, 9C),
# cast matmul weights to the requested MXU operand dtype (biases stay f32).
# --------------------------------------------------------------------------
def prepare_kernel_params(params, dtype=jnp.bfloat16):
    layers = params["layers"]
    wqkv = jnp.stack([l["wqkv"] for l in layers])        # (L, C, 3C)  (q|k|v cols)
    bqkv = jnp.stack([l["bqkv"] for l in layers])        # (L, 1, 3C)
    wo = jnp.stack([l["wo"] for l in layers])            # (L, C, C)
    bo = jnp.stack([l["bo"] for l in layers])            # (L, 1, C)
    w1 = jnp.stack([l["w1"] for l in layers])            # (L, C, Hm)
    b1 = jnp.stack([l["b1"] for l in layers])            # (L, 1, Hm)
    w2 = jnp.stack([l["w2"] for l in layers])            # (L, Hm, C)
    b2 = jnp.stack([l["b2"] for l in layers])            # (L, 1, C)
    C = wqkv.shape[1]
    # (9C, C) tap-major rows -> (C, 9C) tap-major column blocks for one matmul
    conv_w = params["conv_w"].reshape(9, C, C).transpose(1, 0, 2).reshape(C, 9 * C)
    cast = lambda a: a.astype(dtype)
    return dict(wqkv=cast(wqkv), bqkv=bqkv, wo=cast(wo), bo=bo,
                w1=cast(w1), b1=b1, w2=cast(w2), b2=b2,
                conv_w=cast(conv_w), conv_b=params["conv_b"])


# --------------------------------------------------------------------------
# Pure-JAX f32 reference (torch-like weight layout) for correctness checking.
# --------------------------------------------------------------------------
def reference_forward(x_nchw, params):
    B, C, H, W = x_nchw.shape
    hd = C // NUM_HEADS
    x = jnp.transpose(x_nchw, (0, 2, 3, 1)).reshape(B, H * W, C)
    for layer in params["layers"]:
        qkv = jnp.einsum("bnc,cd->bnd", x, layer["wqkv"]) + layer["bqkv"][0]
        q, k, v = jnp.split(qkv, 3, axis=-1)
        q = q.reshape(B, -1, NUM_HEADS, hd).transpose(0, 2, 1, 3)
        k = k.reshape(B, -1, NUM_HEADS, hd).transpose(0, 2, 1, 3)
        v = v.reshape(B, -1, NUM_HEADS, hd).transpose(0, 2, 1, 3)
        s = jnp.einsum("bhqd,bhkd->bhqk", q, k) / math.sqrt(hd)
        p = jax.nn.softmax(s, axis=-1)
        o = jnp.einsum("bhqk,bhkd->bhqd", p, v).transpose(0, 2, 1, 3)
        o = o.reshape(B, -1, C)
        x = x + (jnp.einsum("bnc,cd->bnd", o, layer["wo"]) + layer["bo"][0])
        h = jax.nn.gelu(
            jnp.einsum("bnc,ch->bnh", x, layer["w1"]) + layer["b1"][0],
            approximate=True)
        x = x + (jnp.einsum("bnh,hc->bnc", h, layer["w2"]) + layer["b2"][0])
    x_img = x.reshape(B, H, W, C)
    x_pad = jnp.pad(x_img, ((0, 0), (1, 1), (1, 1), (0, 0)))
    patches = []
    for kh in range(3):
        for kw in range(3):
            patches.append(x_pad[:, kh:kh + H, kw:kw + W, :])
    p = jnp.stack(patches, axis=3).reshape(B, H * W, 9 * C)
    out = jnp.einsum("bnk,kc->bnc", p, params["conv_w"]) + params["conv_b"][0]
    return jnp.transpose(out.reshape(B, H, W, C), (0, 3, 1, 2))


def init_params(key, C, num_layers, mlp_ratio=2):
    Hm = mlp_ratio * C
    layers = []
    for i in range(num_layers):
        ks = jax.random.split(jax.random.fold_in(key, i), 8)
        layers.append(dict(
            wqkv=jax.random.normal(ks[0], (C, 3 * C), jnp.float32) / math.sqrt(C),
            bqkv=jax.random.normal(ks[1], (1, 3 * C), jnp.float32) * 0.02,
            wo=jax.random.normal(ks[2], (C, C), jnp.float32) / math.sqrt(C),
            bo=jax.random.normal(ks[3], (1, C), jnp.float32) * 0.02,
            w1=jax.random.normal(ks[4], (C, Hm), jnp.float32) / math.sqrt(C),
            b1=jax.random.normal(ks[5], (1, Hm), jnp.float32) * 0.02,
            w2=jax.random.normal(ks[6], (Hm, C), jnp.float32) / math.sqrt(Hm),
            b2=jax.random.normal(ks[7], (1, C), jnp.float32) * 0.02,
        ))
    kc = jax.random.split(jax.random.fold_in(key, 1000), 2)
    conv_w = jax.random.normal(kc[0], (9 * C, C), jnp.float32) / math.sqrt(9 * C)
    conv_b = jax.random.normal(kc[1], (1, C), jnp.float32) * 0.02
    return dict(layers=layers, conv_w=conv_w, conv_b=conv_b)


if __name__ == "__main__":
    B, C, Himg, Wimg = 2, 32, 8, 8          # N = 64 tokens, 2 heads of dim 16
    NUM_LAYERS = 2

    key = jax.random.PRNGKey(0)
    kx, kp_key = jax.random.split(key)
    x = jax.random.normal(kx, (B, C, Himg, Wimg), jnp.float32)
    params = init_params(kp_key, C, NUM_LAYERS)

    imgs_per_block = _default_imgs_per_block(B)
    ref = jax.block_until_ready(reference_forward(x, params))

    # --- validation pass: f32 MXU operands + exact softmax normalization ----
    # (addresses the review's concern that the loose bf16 tolerance could hide
    #  shift/mask or head-split bugs; structural bugs give O(1) errors here).
    kp_f32 = prepare_kernel_params(params, dtype=jnp.float32)
    fwd_precise = jax.jit(functools.partial(
        transformer_group_forward, num_heads=NUM_HEADS,
        imgs_per_block=imgs_per_block, approx_recip=False))
    out_precise = jax.block_until_ready(fwd_precise(x, kp_f32))
    assert out_precise.shape == (B, C, Himg, Wimg)
    err_p = jnp.max(jnp.abs(out_precise - ref))
    assert jnp.allclose(out_precise, ref, rtol=2e-2, atol=2e-2), \
        f"precise-path max abs err {err_p}"

    # --- fast path: bf16 MXU operands, approx reciprocal softmax -------------
    kp_bf16 = prepare_kernel_params(params, dtype=jnp.bfloat16)
    fwd = jax.jit(functools.partial(
        transformer_group_forward, num_heads=NUM_HEADS,
        imgs_per_block=imgs_per_block, approx_recip=True))
    out = jax.block_until_ready(fwd(x, kp_bf16))
    assert out.shape == (B, C, Himg, Wimg)
    err_f = jnp.max(jnp.abs(out - ref))
    # bf16 MXU operands + approx reciprocal vs. the f32 reference.
    assert jnp.allclose(out, ref, rtol=5e-2, atol=1e-1), \
        f"fast-path max abs err {err_f}"

    print("KERNEL_OK")
</pallas_src>

<mosaic_0001>
module attributes {stable_mosaic.version = 11 : i64} {
  func.func @_fused_group_kernel(%arg0: i32, %arg1: memref<128x32xf32, #tpu.memory_space<vmem>>, %arg2: memref<2x32x96xf32, #tpu.memory_space<vmem>>, %arg3: memref<2x1x96xf32, #tpu.memory_space<vmem>>, %arg4: memref<2x32x32xf32, #tpu.memory_space<vmem>>, %arg5: memref<2x1x32xf32, #tpu.memory_space<vmem>>, %arg6: memref<2x32x64xf32, #tpu.memory_space<vmem>>, %arg7: memref<2x1x64xf32, #tpu.memory_space<vmem>>, %arg8: memref<2x64x32xf32, #tpu.memory_space<vmem>>, %arg9: memref<2x1x32xf32, #tpu.memory_space<vmem>>, %arg10: memref<32x288xf32, #tpu.memory_space<vmem>>, %arg11: memref<1x32xf32, #tpu.memory_space<vmem>>, %arg12: memref<128x32xf32, #tpu.memory_space<vmem>>) attributes {dimension_semantics = [#tpu.dimension_semantics<parallel>], iteration_bounds = array<i64: 1>, scalar_prefetch = 0 : i64, scratch_operands = 0 : i64, tpu.core_type = #tpu.core_type<tc>, window_params = [{transform_indices = @transform_0, window_bounds = array<i64: 128, 32>}, {pipeline_mode = #tpu.pipeline_mode<synchronous>, transform_indices = @transform_1, window_bounds = array<i64: 2, 32, 96>}, {pipeline_mode = #tpu.pipeline_mode<synchronous>, transform_indices = @transform_2, window_bounds = array<i64: 2, 1, 96>}, {pipeline_mode = #tpu.pipeline_mode<synchronous>, transform_indices = @transform_3, window_bounds = array<i64: 2, 32, 32>}, {pipeline_mode = #tpu.pipeline_mode<synchronous>, transform_indices = @transform_4, window_bounds = array<i64: 2, 1, 32>}, {pipeline_mode = #tpu.pipeline_mode<synchronous>, transform_indices = @transform_5, window_bounds = array<i64: 2, 32, 64>}, {pipeline_mode = #tpu.pipeline_mode<synchronous>, transform_indices = @transform_6, window_bounds = array<i64: 2, 1, 64>}, {pipeline_mode = #tpu.pipeline_mode<synchronous>, transform_indices = @transform_7, window_bounds = array<i64: 2, 64, 32>}, {pipeline_mode = #tpu.pipeline_mode<synchronous>, transform_indices = @transform_8, window_bounds = array<i64: 2, 1, 32>}, {pipeline_mode = #tpu.pipeline_mode<synchronous>, transform_indices = @transform_9, window_bounds = array<i64: 32, 288>}, {pipeline_mode = #tpu.pipeline_mode<synchronous>, transform_indices = @transform_10, window_bounds = array<i64: 1, 32>}, {transform_indices = @transform_11, window_bounds = array<i64: 128, 32>}]} {
    %c0 = arith.constant 0 : index
    %c0_0 = arith.constant 0 : index
    %0 = vector.load %arg1[%c0, %c0_0] : memref<128x32xf32, #tpu.memory_space<vmem>>, vector<128x32xf32>
    %c0_1 = arith.constant 0 : index
    %c0_2 = arith.constant 0 : index
    %c0_3 = arith.constant 0 : index
    %1 = vector.load %arg2[%c0_1, %c0_2, %c0_3] : memref<2x32x96xf32, #tpu.memory_space<vmem>>, vector<1x32x96xf32>
    %2 = vector.shape_cast %1 : vector<1x32x96xf32> to vector<32x96xf32>
    %cst = arith.constant dense<0.000000e+00> : vector<128x96xf32>
    %3 = tpu.matmul %0, %2, %cst {dimension_numbers = #tpu.dot_dimension_numbers<[1], [0], [0], [1], [0, 0, 1, 1], [], []>} : vector<128x32xf32>, vector<32x96xf32>, vector<128x96xf32> -> vector<128x96xf32>
    %c0_4 = arith.constant 0 : index
    %c0_5 = arith.constant 0 : index
    %c0_6 = arith.constant 0 : index
    %4 = vector.load %arg3[%c0_4, %c0_5, %c0_6] : memref<2x1x96xf32, #tpu.memory_space<vmem>>, vector<1x1x96xf32>
    %5 = vector.shape_cast %4 : vector<1x1x96xf32> to vector<1x96xf32>
    %6 = vector.broadcast %5 : vector<1x96xf32> to vector<128x96xf32>
    %7 = arith.addf %3, %6 : vector<128x96xf32>
    %8 = vector.extract_strided_slice %7 {offsets = [0, 0], sizes = [64, 96], strides = [1, 1]} : vector<128x96xf32> to vector<64x96xf32>
    %9 = vector.extract_strided_slice %8 {offsets = [0, 0], sizes = [64, 16], strides = [1, 1]} : vector<64x96xf32> to vector<64x16xf32>
    %10 = vector.extract_strided_slice %8 {offsets = [0, 32], sizes = [64, 16], strides = [1, 1]} : vector<64x96xf32> to vector<64x16xf32>
    %11 = vector.extract_strided_slice %8 {offsets = [0, 64], sizes = [64, 16], strides = [1, 1]} : vector<64x96xf32> to vector<64x16xf32>
    %cst_7 = arith.constant dense<0.000000e+00> : vector<64x64xf32>
    %12 = tpu.matmul %9, %10, %cst_7 {dimension_numbers = #tpu.dot_dimension_numbers<[1], [1], [0], [0], [0, 0, 1, 0], [], []>} : vector<64x16xf32>, vector<64x16xf32>, vector<64x64xf32> -> vector<64x64xf32>
    %cst_8 = arith.constant 2.500000e-01 : f32
    %13 = vector.broadcast %cst_8 : f32 to vector<64x64xf32>
    %14 = arith.mulf %12, %13 : vector<64x64xf32>
    %cst_9 = arith.constant dense<0xFF800000> : vector<64xf32>
    %15 = vector.multi_reduction <maximumf>, %14, %cst_9 [1] : vector<64x64xf32> to vector<64xf32>
    %16 = vector.shape_cast %15 : vector<64xf32> to vector<64x1xf32>
    %17 = vector.broadcast %16 : vector<64x1xf32> to vector<64x64xf32>
    %18 = arith.subf %14, %17 : vector<64x64xf32>
    %19 = math.exp %18 : vector<64x64xf32>
    %cst_10 = arith.constant dense<0.000000e+00> : vector<64xf32>
    %20 = vector.multi_reduction <add>, %19, %cst_10 [1] : vector<64x64xf32> to vector<64xf32>
    %21 = vector.shape_cast %20 : vector<64xf32> to vector<64x1xf32>
    %22 = vector.broadcast %21 : vector<64x1xf32> to vector<64x64xf32>
    %23 = arith.divf %19, %22 : vector<64x64xf32>
    %cst_11 = arith.constant dense<0.000000e+00> : vector<64x16xf32>
    %24 = tpu.matmul %23, %11, %cst_11 {dimension_numbers = #tpu.dot_dimension_numbers<[1], [0], [0], [1], [0, 0, 1, 1], [], []>} : vector<64x64xf32>, vector<64x16xf32>, vector<64x16xf32> -> vector<64x16xf32>
    %25 = vector.extract_strided_slice %8 {offsets = [0, 16], sizes = [64, 16], strides = [1, 1]} : vector<64x96xf32> to vector<64x16xf32>
    %26 = vector.extract_strided_slice %8 {offsets = [0, 48], sizes = [64, 16], strides = [1, 1]} : vector<64x96xf32> to vector<64x16xf32>
    %27 = vector.extract_strided_slice %8 {offsets = [0, 80], sizes = [64, 16], strides = [1, 1]} : vector<64x96xf32> to vector<64x16xf32>
    %cst_12 = arith.constant dense<0.000000e+00> : vector<64x64xf32>
    %28 = tpu.matmul %25, %26, %cst_12 {dimension_numbers = #tpu.dot_dimension_numbers<[1], [1], [0], [0], [0, 0, 1, 0], [], []>} : vector<64x16xf32>, vector<64x16xf32>, vector<64x64xf32> -> vector<64x64xf32>
    %cst_13 = arith.constant 2.500000e-01 : f32
    %29 = vector.broadcast %cst_13 : f32 to vector<64x64xf32>
    %30 = arith.mulf %28, %29 : vector<64x64xf32>
    %cst_14 = arith.constant dense<0xFF800000> : vector<64xf32>
    %31 = vector.multi_reduction <maximumf>, %30, %cst_14 [1] : vector<64x64xf32> to vector<64xf32>
    %32 = vector.shape_cast %31 : vector<64xf32> to vector<64x1xf32>
    %33 = vector.broadcast %32 : vector<64x1xf32> to vector<64x64xf32>
    %34 = arith.subf %30, %33 : vector<64x64xf32>
    %35 = math.exp %34 : vector<64x64xf32>
    %cst_15 = arith.constant dense<0.000000e+00> : vector<64xf32>
    %36 = vector.multi_reduction <add>, %35, %cst_15 [1] : vector<64x64xf32> to vector<64xf32>
    %37 = vector.shape_cast %36 : vector<64xf32> to vector<64x1xf32>
    %38 = vector.broadcast %37 : vector<64x1xf32> to vector<64x64xf32>
    %39 = arith.divf %35, %38 : vector<64x64xf32>
    %cst_16 = arith.constant dense<0.000000e+00> : vector<64x16xf32>
    %40 = tpu.matmul %39, %27, %cst_16 {dimension_numbers = #tpu.dot_dimension_numbers<[1], [0], [0], [1], [0, 0, 1, 1], [], []>} : vector<64x64xf32>, vector<64x16xf32>, vector<64x16xf32> -> vector<64x16xf32>
    %41 = tpu.concatenate %24, %40 in 1 : vector<64x16xf32>, vector<64x16xf32> -> vector<64x32xf32>
    %42 = vector.extract_strided_slice %7 {offsets = [64, 0], sizes = [64, 96], strides = [1, 1]} : vector<128x96xf32> to vector<64x96xf32>
    %43 = vector.extract_strided_slice %42 {offsets = [0, 0], sizes = [64, 16], strides = [1, 1]} : vector<64x96xf32> to vector<64x16xf32>
    %44 = vector.extract_strided_slice %42 {offsets = [0, 32], sizes = [64, 16], strides = [1, 1]} : vector<64x96xf32> to vector<64x16xf32>
    %45 = vector.extract_strided_slice %42 {offsets = [0, 64], sizes = [64, 16], strides = [1, 1]} : vector<64x96xf32> to vector<64x16xf32>
    %cst_17 = arith.constant dense<0.000000e+00> : vector<64x64xf32>
    %46 = tpu.matmul %43, %44, %cst_17 {dimension_numbers = #tpu.dot_dimension_numbers<[1], [1], [0], [0], [0, 0, 1, 0], [], []>} : vector<64x16xf32>, vector<64x16xf32>, vector<64x64xf32> -> vector<64x64xf32>
    %cst_18 = arith.constant 2.500000e-01 : f32
    %47 = vector.broadcast %cst_18 : f32 to vector<64x64xf32>
    %48 = arith.mulf %46, %47 : vector<64x64xf32>
    %cst_19 = arith.constant dense<0xFF800000> : vector<64xf32>
    %49 = vector.multi_reduction <maximumf>, %48, %cst_19 [1] : vector<64x64xf32> to vector<64xf32>
    %50 = vector.shape_cast %49 : vector<64xf32> to vector<64x1xf32>
    %51 = vector.broadcast %50 : vector<64x1xf32> to vector<64x64xf32>
    %52 = arith.subf %48, %51 : vector<64x64xf32>
    %53 = math.exp %52 : vector<64x64xf32>
    %cst_20 = arith.constant dense<0.000000e+00> : vector<64xf32>
    %54 = vector.multi_reduction <add>, %53, %cst_20 [1] : vector<64x64xf32> to vector<64xf32>
    %55 = vector.shape_cast %54 : vector<64xf32> to vector<64x1xf32>
    %56 = vector.broadcast %55 : vector<64x1xf32> to vector<64x64xf32>
    %57 = arith.divf %53, %56 : vector<64x64xf32>
    %cst_21 = arith.constant dense<0.000000e+00> : vector<64x16xf32>
    %58 = tpu.matmul %57, %45, %cst_21 {dimension_numbers = #tpu.dot_dimension_numbers<[1], [0], [0], [1], [0, 0, 1, 1], [], []>} : vector<64x64xf32>, vector<64x16xf32>, vector<64x16xf32> -> vector<64x16xf32>
    %59 = vector.extract_strided_slice %42 {offsets = [0, 16], sizes = [64, 16], strides = [1, 1]} : vector<64x96xf32> to vector<64x16xf32>
    %60 = vector.extract_strided_slice %42 {offsets = [0, 48], sizes = [64, 16], strides = [1, 1]} : vector<64x96xf32> to vector<64x16xf32>
    %61 = vector.extract_strided_slice %42 {offsets = [0, 80], sizes = [64, 16], strides = [1, 1]} : vector<64x96xf32> to vector<64x16xf32>
    %cst_22 = arith.constant dense<0.000000e+00> : vector<64x64xf32>
    %62 = tpu.matmul %59, %60, %cst_22 {dimension_numbers = #tpu.dot_dimension_numbers<[1], [1], [0], [0], [0, 0, 1, 0], [], []>} : vector<64x16xf32>, vector<64x16xf32>, vector<64x64xf32> -> vector<64x64xf32>
    %cst_23 = arith.constant 2.500000e-01 : f32
    %63 = vector.broadcast %cst_23 : f32 to vector<64x64xf32>
    %64 = arith.mulf %62, %63 : vector<64x64xf32>
    %cst_24 = arith.constant dense<0xFF800000> : vector<64xf32>
    %65 = vector.multi_reduction <maximumf>, %64, %cst_24 [1] : vector<64x64xf32> to vector<64xf32>
    %66 = vector.shape_cast %65 : vector<64xf32> to vector<64x1xf32>
    %67 = vector.broadcast %66 : vector<64x1xf32> to vector<64x64xf32>
    %68 = arith.subf %64, %67 : vector<64x64xf32>
    %69 = math.exp %68 : vector<64x64xf32>
    %cst_25 = arith.constant dense<0.000000e+00> : vector<64xf32>
    %70 = vector.multi_reduction <add>, %69, %cst_25 [1] : vector<64x64xf32> to vector<64xf32>
    %71 = vector.shape_cast %70 : vector<64xf32> to vector<64x1xf32>
    %72 = vector.broadcast %71 : vector<64x1xf32> to vector<64x64xf32>
    %73 = arith.divf %69, %72 : vector<64x64xf32>
    %cst_26 = arith.constant dense<0.000000e+00> : vector<64x16xf32>
    %74 = tpu.matmul %73, %61, %cst_26 {dimension_numbers = #tpu.dot_dimension_numbers<[1], [0], [0], [1], [0, 0, 1, 1], [], []>} : vector<64x64xf32>, vector<64x16xf32>, vector<64x16xf32> -> vector<64x16xf32>
    %75 = tpu.concatenate %58, %74 in 1 : vector<64x16xf32>, vector<64x16xf32> -> vector<64x32xf32>
    %76 = tpu.concatenate %41, %75 in 0 : vector<64x32xf32>, vector<64x32xf32> -> vector<128x32xf32>
    %c0_27 = arith.constant 0 : index
    %c0_28 = arith.constant 0 : index
    %c0_29 = arith.constant 0 : index
    %77 = vector.load %arg4[%c0_27, %c0_28, %c0_29] : memref<2x32x32xf32, #tpu.memory_space<vmem>>, vector<1x32x32xf32>
    %78 = vector.shape_cast %77 : vector<1x32x32xf32> to vector<32x32xf32>
    %cst_30 = arith.constant dense<0.000000e+00> : vector<128x32xf32>
    %79 = tpu.matmul %76, %78, %cst_30 {dimension_numbers = #tpu.dot_dimension_numbers<[1], [0], [0], [1], [0, 0, 1, 1], [], []>} : vector<128x32xf32>, vector<32x32xf32>, vector<128x32xf32> -> vector<128x32xf32>
    %80 = arith.addf %0, %79 : vector<128x32xf32>
    %c0_31 = arith.constant 0 : index
    %c0_32 = arith.constant 0 : index
    %c0_33 = arith.constant 0 : index
    %81 = vector.load %arg5[%c0_31, %c0_32, %c0_33] : memref<2x1x32xf32, #tpu.memory_space<vmem>>, vector<1x1x32xf32>
    %82 = vector.shape_cast %81 : vector<1x1x32xf32> to vector<1x32xf32>
    %83 = vector.broadcast %82 : vector<1x32xf32> to vector<128x32xf32>
    %84 = arith.addf %80, %83 : vector<128x32xf32>
    %c0_34 = arith.constant 0 : index
    %c0_35 = arith.constant 0 : index
    %c0_36 = arith.constant 0 : index
    %85 = vector.load %arg6[%c0_34, %c0_35, %c0_36] : memref<2x32x64xf32, #tpu.memory_space<vmem>>, vector<1x32x64xf32>
    %86 = vector.shape_cast %85 : vector<1x32x64xf32> to vector<32x64xf32>
    %cst_37 = arith.constant dense<0.000000e+00> : vector<128x64xf32>
    %87 = tpu.matmul %84, %86, %cst_37 {dimension_numbers = #tpu.dot_dimension_numbers<[1], [0], [0], [1], [0, 0, 1, 1], [], []>} : vector<128x32xf32>, vector<32x64xf32>, vector<128x64xf32> -> vector<128x64xf32>
    %c0_38 = arith.constant 0 : index
    %c0_39 = arith.constant 0 : index
    %c0_40 = arith.constant 0 : index
    %88 = vector.load %arg7[%c0_38, %c0_39, %c0_40] : memref<2x1x64xf32, #tpu.memory_space<vmem>>, vector<1x1x64xf32>
    %89 = vector.shape_cast %88 : vector<1x1x64xf32> to vector<1x64xf32>
    %90 = vector.broadcast %89 : vector<1x64xf32> to vector<128x64xf32>
    %91 = arith.addf %87, %90 : vector<128x64xf32>
    %92 = arith.mulf %91, %91 : vector<128x64xf32>
    %93 = arith.mulf %91, %92 : vector<128x64xf32>
    %cst_41 = arith.constant 4.471500e-02 : f32
    %94 = vector.broadcast %cst_41 : f32 to vector<128x64xf32>
    %95 = arith.mulf %94, %93 : vector<128x64xf32>
    %96 = arith.addf %91, %95 : vector<128x64xf32>
    %cst_42 = arith.constant 0.797884583 : f32
    %97 = vector.broadcast %cst_42 : f32 to vector<128x64xf32>
    %98 = arith.mulf %97, %96 : vector<128x64xf32>
    %99 = math.tanh %98 : vector<128x64xf32>
    %cst_43 = arith.constant 1.000000e+00 : f32
    %100 = vector.broadcast %cst_43 : f32 to vector<128x64xf32>
    %101 = arith.addf %100, %99 : vector<128x64xf32>
    %cst_44 = arith.constant 5.000000e-01 : f32
    %102 = vector.broadcast %cst_44 : f32 to vector<128x64xf32>
    %103 = arith.mulf %102, %101 : vector<128x64xf32>
    %104 = arith.mulf %91, %103 : vector<128x64xf32>
    %c0_45 = arith.constant 0 : index
    %c0_46 = arith.constant 0 : index
    %c0_47 = arith.constant 0 : index
    %105 = vector.load %arg8[%c0_45, %c0_46, %c0_47] : memref<2x64x32xf32, #tpu.memory_space<vmem>>, vector<1x64x32xf32>
    %106 = vector.shape_cast %105 : vector<1x64x32xf32> to vector<64x32xf32>
    %cst_48 = arith.constant dense<0.000000e+00> : vector<128x32xf32>
    %107 = tpu.matmul %104, %106, %cst_48 {dimension_numbers = #tpu.dot_dimension_numbers<[1], [0], [0], [1], [0, 0, 1, 1], [], []>} : vector<128x64xf32>, vector<64x32xf32>, vector<128x32xf32> -> vector<128x32xf32>
    %108 = arith.addf %84, %107 : vector<128x32xf32>
    %c0_49 = arith.constant 0 : index
    %c0_50 = arith.constant 0 : index
    %c0_51 = arith.constant 0 : index
    %109 = vector.load %arg9[%c0_49, %c0_50, %c0_51] : memref<2x1x32xf32, #tpu.memory_space<vmem>>, vector<1x1x32xf32>
    %110 = vector.shape_cast %109 : vector<1x1x32xf32> to vector<1x32xf32>
    %111 = vector.broadcast %110 : vector<1x32xf32> to vector<128x32xf32>
    %112 = arith.addf %108, %111 : vector<128x32xf32>
    %c1 = arith.constant 1 : index
    %c0_52 = arith.constant 0 : index
    %c0_53 = arith.constant 0 : index
    %113 = vector.load %arg2[%c1, %c0_52, %c0_53] : memref<2x32x96xf32, #tpu.memory_space<vmem>>, vector<1x32x96xf32>
    %114 = vector.shape_cast %113 : vector<1x32x96xf32> to vector<32x96xf32>
    %cst_54 = arith.constant dense<0.000000e+00> : vector<128x96xf32>
    %115 = tpu.matmul %112, %114, %cst_54 {dimension_numbers = #tpu.dot_dimension_numbers<[1], [0], [0], [1], [0, 0, 1, 1], [], []>} : vector<128x32xf32>, vector<32x96xf32>, vector<128x96xf32> -> vector<128x96xf32>
    %c1_55 = arith.constant 1 : index
    %c0_56 = arith.constant 0 : index
    %c0_57 = arith.constant 0 : index
    %116 = vector.load %arg3[%c1_55, %c0_56, %c0_57] : memref<2x1x96xf32, #tpu.memory_space<vmem>>, vector<1x1x96xf32>
    %117 = vector.shape_cast %116 : vector<1x1x96xf32> to vector<1x96xf32>
    %118 = vector.broadcast %117 : vector<1x96xf32> to vector<128x96xf32>
    %119 = arith.addf %115, %118 : vector<128x96xf32>
    %120 = vector.extract_strided_slice %119 {offsets = [0, 0], sizes = [64, 96], strides = [1, 1]} : vector<128x96xf32> to vector<64x96xf32>
    %121 = vector.extract_strided_slice %120 {offsets = [0, 0], sizes = [64, 16], strides = [1, 1]} : vector<64x96xf32> to vector<64x16xf32>
    %122 = vector.extract_strided_slice %120 {offsets = [0, 32], sizes = [64, 16], strides = [1, 1]} : vector<64x96xf32> to vector<64x16xf32>
    %123 = vector.extract_strided_slice %120 {offsets = [0, 64], sizes = [64, 16], strides = [1, 1]} : vector<64x96xf32> to vector<64x16xf32>
    %cst_58 = arith.constant dense<0.000000e+00> : vector<64x64xf32>
    %124 = tpu.matmul %121, %122, %cst_58 {dimension_numbers = #tpu.dot_dimension_numbers<[1], [1], [0], [0], [0, 0, 1, 0], [], []>} : vector<64x16xf32>, vector<64x16xf32>, vector<64x64xf32> -> vector<64x64xf32>
    %cst_59 = arith.constant 2.500000e-01 : f32
    %125 = vector.broadcast %cst_59 : f32 to vector<64x64xf32>
    %126 = arith.mulf %124, %125 : vector<64x64xf32>
    %cst_60 = arith.constant dense<0xFF800000> : vector<64xf32>
    %127 = vector.multi_reduction <maximumf>, %126, %cst_60 [1] : vector<64x64xf32> to vector<64xf32>
    %128 = vector.shape_cast %127 : vector<64xf32> to vector<64x1xf32>
    %129 = vector.broadcast %128 : vector<64x1xf32> to vector<64x64xf32>
    %130 = arith.subf %126, %129 : vector<64x64xf32>
    %131 = math.exp %130 : vector<64x64xf32>
    %cst_61 = arith.constant dense<0.000000e+00> : vector<64xf32>
    %132 = vector.multi_reduction <add>, %131, %cst_61 [1] : vector<64x64xf32> to vector<64xf32>
    %133 = vector.shape_cast %132 : vector<64xf32> to vector<64x1xf32>
    %134 = vector.broadcast %133 : vector<64x1xf32> to vector<64x64xf32>
    %135 = arith.divf %131, %134 : vector<64x64xf32>
    %cst_62 = arith.constant dense<0.000000e+00> : vector<64x16xf32>
    %136 = tpu.matmul %135, %123, %cst_62 {dimension_numbers = #tpu.dot_dimension_numbers<[1], [0], [0], [1], [0, 0, 1, 1], [], []>} : vector<64x64xf32>, vector<64x16xf32>, vector<64x16xf32> -> vector<64x16xf32>
    %137 = vector.extract_strided_slice %120 {offsets = [0, 16], sizes = [64, 16], strides = [1, 1]} : vector<64x96xf32> to vector<64x16xf32>
    %138 = vector.extract_strided_slice %120 {offsets = [0, 48], sizes = [64, 16], strides = [1, 1]} : vector<64x96xf32> to vector<64x16xf32>
    %139 = vector.extract_strided_slice %120 {offsets = [0, 80], sizes = [64, 16], strides = [1, 1]} : vector<64x96xf32> to vector<64x16xf32>
    %cst_63 = arith.constant dense<0.000000e+00> : vector<64x64xf32>
    %140 = tpu.matmul %137, %138, %cst_63 {dimension_numbers = #tpu.dot_dimension_numbers<[1], [1], [0], [0], [0, 0, 1, 0], [], []>} : vector<64x16xf32>, vector<64x16xf32>, vector<64x64xf32> -> vector<64x64xf32>
    %cst_64 = arith.constant 2.500000e-01 : f32
    %141 = vector.broadcast %cst_64 : f32 to vector<64x64xf32>
    %142 = arith.mulf %140, %141 : vector<64x64xf32>
    %cst_65 = arith.constant dense<0xFF800000> : vector<64xf32>
    %143 = vector.multi_reduction <maximumf>, %142, %cst_65 [1] : vector<64x64xf32> to vector<64xf32>
    %144 = vector.shape_cast %143 : vector<64xf32> to vector<64x1xf32>
    %145 = vector.broadcast %144 : vector<64x1xf32> to vector<64x64xf32>
    %146 = arith.subf %142, %145 : vector<64x64xf32>
    %147 = math.exp %146 : vector<64x64xf32>
    %cst_66 = arith.constant dense<0.000000e+00> : vector<64xf32>
    %148 = vector.multi_reduction <add>, %147, %cst_66 [1] : vector<64x64xf32> to vector<64xf32>
    %149 = vector.shape_cast %148 : vector<64xf32> to vector<64x1xf32>
    %150 = vector.broadcast %149 : vector<64x1xf32> to vector<64x64xf32>
    %151 = arith.divf %147, %150 : vector<64x64xf32>
    %cst_67 = arith.constant dense<0.000000e+00> : vector<64x16xf32>
    %152 = tpu.matmul %151, %139, %cst_67 {dimension_numbers = #tpu.dot_dimension_numbers<[1], [0], [0], [1], [0, 0, 1, 1], [], []>} : vector<64x64xf32>, vector<64x16xf32>, vector<64x16xf32> -> vector<64x16xf32>
    %153 = tpu.concatenate %136, %152 in 1 : vector<64x16xf32>, vector<64x16xf32> -> vector<64x32xf32>
    %154 = vector.extract_strided_slice %119 {offsets = [64, 0], sizes = [64, 96], strides = [1, 1]} : vector<128x96xf32> to vector<64x96xf32>
    %155 = vector.extract_strided_slice %154 {offsets = [0, 0], sizes = [64, 16], strides = [1, 1]} : vector<64x96xf32> to vector<64x16xf32>
    %156 = vector.extract_strided_slice %154 {offsets = [0, 32], sizes = [64, 16], strides = [1, 1]} : vector<64x96xf32> to vector<64x16xf32>
    %157 = vector.extract_strided_slice %154 {offsets = [0, 64], sizes = [64, 16], strides = [1, 1]} : vector<64x96xf32> to vector<64x16xf32>
    %cst_68 = arith.constant dense<0.000000e+00> : vector<64x64xf32>
    %158 = tpu.matmul %155, %156, %cst_68 {dimension_numbers = #tpu.dot_dimension_numbers<[1], [1], [0], [0], [0, 0, 1, 0], [], []>} : vector<64x16xf32>, vector<64x16xf32>, vector<64x64xf32> -> vector<64x64xf32>
    %cst_69 = arith.constant 2.500000e-01 : f32
    %159 = vector.broadcast %cst_69 : f32 to vector<64x64xf32>
    %160 = arith.mulf %158, %159 : vector<64x64xf32>
    %cst_70 = arith.constant dense<0xFF800000> : vector<64xf32>
    %161 = vector.multi_reduction <maximumf>, %160, %cst_70 [1] : vector<64x64xf32> to vector<64xf32>
    %162 = vector.shape_cast %161 : vector<64xf32> to vector<64x1xf32>
    %163 = vector.broadcast %162 : vector<64x1xf32> to vector<64x64xf32>
    %164 = arith.subf %160, %163 : vector<64x64xf32>
    %165 = math.exp %164 : vector<64x64xf32>
    %cst_71 = arith.constant dense<0.000000e+00> : vector<64xf32>
    %166 = vector.multi_reduction <add>, %165, %cst_71 [1] : vector<64x64xf32> to vector<64xf32>
    %167 = vector.shape_cast %166 : vector<64xf32> to vector<64x1xf32>
    %168 = vector.broadcast %167 : vector<64x1xf32> to vector<64x64xf32>
    %169 = arith.divf %165, %168 : vector<64x64xf32>
    %cst_72 = arith.constant dense<0.000000e+00> : vector<64x16xf32>
    %170 = tpu.matmul %169, %157, %cst_72 {dimension_numbers = #tpu.dot_dimension_numbers<[1], [0], [0], [1], [0, 0, 1, 1], [], []>} : vector<64x64xf32>, vector<64x16xf32>, vector<64x16xf32> -> vector<64x16xf32>
    %171 = vector.extract_strided_slice %154 {offsets = [0, 16], sizes = [64, 16], strides = [1, 1]} : vector<64x96xf32> to vector<64x16xf32>
    %172 = vector.extract_strided_slice %154 {offsets = [0, 48], sizes = [64, 16], strides = [1, 1]} : vector<64x96xf32> to vector<64x16xf32>
    %173 = vector.extract_strided_slice %154 {offsets = [0, 80], sizes = [64, 16], strides = [1, 1]} : vector<64x96xf32> to vector<64x16xf32>
    %cst_73 = arith.constant dense<0.000000e+00> : vector<64x64xf32>
    %174 = tpu.matmul %171, %172, %cst_73 {dimension_numbers = #tpu.dot_dimension_numbers<[1], [1], [0], [0], [0, 0, 1, 0], [], []>} : vector<64x16xf32>, vector<64x16xf32>, vector<64x64xf32> -> vector<64x64xf32>
    %cst_74 = arith.constant 2.500000e-01 : f32
    %175 = vector.broadcast %cst_74 : f32 to vector<64x64xf32>
    %176 = arith.mulf %174, %175 : vector<64x64xf32>
    %cst_75 = arith.constant dense<0xFF800000> : vector<64xf32>
    %177 = vector.multi_reduction <maximumf>, %176, %cst_75 [1] : vector<64x64xf32> to vector<64xf32>
    %178 = vector.shape_cast %177 : vector<64xf32> to vector<64x1xf32>
    %179 = vector.broadcast %178 : vector<64x1xf32> to vector<64x64xf32>
    %180 = arith.subf %176, %179 : vector<64x64xf32>
    %181 = math.exp %180 : vector<64x64xf32>
    %cst_76 = arith.constant dense<0.000000e+00> : vector<64xf32>
    %182 = vector.multi_reduction <add>, %181, %cst_76 [1] : vector<64x64xf32> to vector<64xf32>
    %183 = vector.shape_cast %182 : vector<64xf32> to vector<64x1xf32>
    %184 = vector.broadcast %183 : vector<64x1xf32> to vector<64x64xf32>
    %185 = arith.divf %181, %184 : vector<64x64xf32>
    %cst_77 = arith.constant dense<0.000000e+00> : vector<64x16xf32>
    %186 = tpu.matmul %185, %173, %cst_77 {dimension_numbers = #tpu.dot_dimension_numbers<[1], [0], [0], [1], [0, 0, 1, 1], [], []>} : vector<64x64xf32>, vector<64x16xf32>, vector<64x16xf32> -> vector<64x16xf32>
    %187 = tpu.concatenate %170, %186 in 1 : vector<64x16xf32>, vector<64x16xf32> -> vector<64x32xf32>
    %188 = tpu.concatenate %153, %187 in 0 : vector<64x32xf32>, vector<64x32xf32> -> vector<128x32xf32>
    %c1_78 = arith.constant 1 : index
    %c0_79 = arith.constant 0 : index
    %c0_80 = arith.constant 0 : index
    %189 = vector.load %arg4[%c1_78, %c0_79, %c0_80] : memref<2x32x32xf32, #tpu.memory_space<vmem>>, vector<1x32x32xf32>
    %190 = vector.shape_cast %189 : vector<1x32x32xf32> to vector<32x32xf32>
    %cst_81 = arith.constant dense<0.000000e+00> : vector<128x32xf32>
    %191 = tpu.matmul %188, %190, %cst_81 {dimension_numbers = #tpu.dot_dimension_numbers<[1], [0], [0], [1], [0, 0, 1, 1], [], []>} : vector<128x32xf32>, vector<32x32xf32>, vector<128x32xf32> -> vector<128x32xf32>
    %192 = arith.addf %112, %191 : vector<128x32xf32>
    %c1_82 = arith.constant 1 : index
    %c0_83 = arith.constant 0 : index
    %c0_84 = arith.constant 0 : index
    %193 = vector.load %arg5[%c1_82, %c0_83, %c0_84] : memref<2x1x32xf32, #tpu.memory_space<vmem>>, vector<1x1x32xf32>
    %194 = vector.shape_cast %193 : vector<1x1x32xf32> to vector<1x32xf32>
    %195 = vector.broadcast %194 : vector<1x32xf32> to vector<128x32xf32>
    %196 = arith.addf %192, %195 : vector<128x32xf32>
    %c1_85 = arith.constant 1 : index
    %c0_86 = arith.constant 0 : index
    %c0_87 = arith.constant 0 : index
    %197 = vector.load %arg6[%c1_85, %c0_86, %c0_87] : memref<2x32x64xf32, #tpu.memory_space<vmem>>, vector<1x32x64xf32>
    %198 = vector.shape_cast %197 : vector<1x32x64xf32> to vector<32x64xf32>
    %cst_88 = arith.constant dense<0.000000e+00> : vector<128x64xf32>
    %199 = tpu.matmul %196, %198, %cst_88 {dimension_numbers = #tpu.dot_dimension_numbers<[1], [0], [0], [1], [0, 0, 1, 1], [], []>} : vector<128x32xf32>, vector<32x64xf32>, vector<128x64xf32> -> vector<128x64xf32>
    %c1_89 = arith.constant 1 : index
    %c0_90 = arith.constant 0 : index
    %c0_91 = arith.constant 0 : index
    %200 = vector.load %arg7[%c1_89, %c0_90, %c0_91] : memref<2x1x64xf32, #tpu.memory_space<vmem>>, vector<1x1x64xf32>
    %201 = vector.shape_cast %200 : vector<1x1x64xf32> to vector<1x64xf32>
    %202 = vector.broadcast %201 : vector<1x64xf32> to vector<128x64xf32>
    %203 = arith.addf %199, %202 : vector<128x64xf32>
    %204 = arith.mulf %203, %203 : vector<128x64xf32>
    %205 = arith.mulf %203, %204 : vector<128x64xf32>
    %cst_92 = arith.constant 4.471500e-02 : f32
    %206 = vector.broadcast %cst_92 : f32 to vector<128x64xf32>
    %207 = arith.mulf %206, %205 : vector<128x64xf32>
    %208 = arith.addf %203, %207 : vector<128x64xf32>
    %cst_93 = arith.constant 0.797884583 : f32
    %209 = vector.broadcast %cst_93 : f32 to vector<128x64xf32>
    %210 = arith.mulf %209, %208 : vector<128x64xf32>
    %211 = math.tanh %210 : vector<128x64xf32>
    %cst_94 = arith.constant 1.000000e+00 : f32
    %212 = vector.broadcast %cst_94 : f32 to vector<128x64xf32>
    %213 = arith.addf %212, %211 : vector<128x64xf32>
    %cst_95 = arith.constant 5.000000e-01 : f32
    %214 = vector.broadcast %cst_95 : f32 to vector<128x64xf32>
    %215 = arith.mulf %214, %213 : vector<128x64xf32>
    %216 = arith.mulf %203, %215 : vector<128x64xf32>
    %c1_96 = arith.constant 1 : index
    %c0_97 = arith.constant 0 : index
    %c0_98 = arith.constant 0 : index
    %217 = vector.load %arg8[%c1_96, %c0_97, %c0_98] : memref<2x64x32xf32, #tpu.memory_space<vmem>>, vector<1x64x32xf32>
    %218 = vector.shape_cast %217 : vector<1x64x32xf32> to vector<64x32xf32>
    %cst_99 = arith.constant dense<0.000000e+00> : vector<128x32xf32>
    %219 = tpu.matmul %216, %218, %cst_99 {dimension_numbers = #tpu.dot_dimension_numbers<[1], [0], [0], [1], [0, 0, 1, 1], [], []>} : vector<128x64xf32>, vector<64x32xf32>, vector<128x32xf32> -> vector<128x32xf32>
    %220 = arith.addf %196, %219 : vector<128x32xf32>
    %c1_100 = arith.constant 1 : index
    %c0_101 = arith.constant 0 : index
    %c0_102 = arith.constant 0 : index
    %221 = vector.load %arg9[%c1_100, %c0_101, %c0_102] : memref<2x1x32xf32, #tpu.memory_space<vmem>>, vector<1x1x32xf32>
    %222 = vector.shape_cast %221 : vector<1x1x32xf32> to vector<1x32xf32>
    %223 = vector.broadcast %222 : vector<1x32xf32> to vector<128x32xf32>
    %224 = arith.addf %220, %223 : vector<128x32xf32>
    %c0_103 = arith.constant 0 : index
    %c0_104 = arith.constant 0 : index
    %225 = vector.load %arg10[%c0_103, %c0_104] : memref<32x288xf32, #tpu.memory_space<vmem>>, vector<32x288xf32>
    %cst_105 = arith.constant dense<0.000000e+00> : vector<128x288xf32>
    %226 = tpu.matmul %224, %225, %cst_105 {dimension_numbers = #tpu.dot_dimension_numbers<[1], [0], [0], [1], [0, 0, 1, 1], [], []>} : vector<128x32xf32>, vector<32x288xf32>, vector<128x288xf32> -> vector<128x288xf32>
    %227 = tpu.iota {dimensions = array<i32: 0>} : vector<128x32xi32>
    %c64_i32 = arith.constant 64 : i32
    %c0_i32 = arith.constant 0 : i32
    %228 = arith.cmpi eq, %c64_i32, %c0_i32 : i32
    %c1_i32 = arith.constant 1 : i32
    %229 = arith.select %228, %c1_i32, %c64_i32 : i32
    %230 = vector.broadcast %229 : i32 to vector<128x32xi32>
    %231 = arith.remsi %227, %230 : vector<128x32xi32>
    %c0_i32_106 = arith.constant 0 : i32
    %232 = vector.broadcast %c0_i32_106 : i32 to vector<128x32xi32>
    %233 = arith.cmpi ne, %231, %232 : vector<128x32xi32>
    %c0_i32_107 = arith.constant 0 : i32
    %234 = vector.broadcast %c0_i32_107 : i32 to vector<128x32xi32>
    %235 = arith.cmpi slt, %231, %234 : vector<128x32xi32>
    %c0_i32_108 = arith.constant 0 : i32
    %236 = arith.cmpi slt, %229, %c0_i32_108 : i32
    %237 = vector.broadcast %236 : i1 to vector<128x32xi1>
    %238 = vector.broadcast %237 : vector<128x32xi1> to vector<128x32xi1>
    %239 = arith.xori %235, %238 : vector<128x32xi1>
    %240 = arith.andi %239, %233 : vector<128x32xi1>
    %241 = vector.broadcast %229 : i32 to vector<128x32xi32>
    %242 = arith.addi %231, %241 : vector<128x32xi32>
    %243 = arith.select %240, %242, %231 : vector<128x32xi1>, vector<128x32xi32>
    %c8_i32 = arith.constant 8 : i32
    %c0_i32_109 = arith.constant 0 : i32
    %244 = arith.cmpi eq, %c8_i32, %c0_i32_109 : i32
    %c1_i32_110 = arith.constant 1 : i32
    %245 = arith.select %244, %c1_i32_110, %c8_i32 : i32
    %246 = vector.broadcast %245 : i32 to vector<128x32xi32>
    %247 = arith.remsi %227, %246 : vector<128x32xi32>
    %c0_i32_111 = arith.constant 0 : i32
    %248 = vector.broadcast %c0_i32_111 : i32 to vector<128x32xi32>
    %249 = arith.cmpi ne, %247, %248 : vector<128x32xi32>
    %c0_i32_112 = arith.constant 0 : i32
    %250 = vector.broadcast %c0_i32_112 : i32 to vector<128x32xi32>
    %251 = arith.cmpi slt, %247, %250 : vector<128x32xi32>
    %c0_i32_113 = arith.constant 0 : i32
    %252 = arith.cmpi slt, %245, %c0_i32_113 : i32
    %253 = vector.broadcast %252 : i1 to vector<128x32xi1>
    %254 = vector.broadcast %253 : vector<128x32xi1> to vector<128x32xi1>
    %255 = arith.xori %251, %254 : vector<128x32xi1>
    %256 = arith.andi %255, %249 : vector<128x32xi1>
    %257 = vector.broadcast %245 : i32 to vector<128x32xi32>
    %258 = arith.addi %247, %257 : vector<128x32xi32>
    %259 = arith.select %256, %258, %247 : vector<128x32xi1>, vector<128x32xi32>
    %cst_114 = arith.constant 0.000000e+00 : f32
    %260 = vector.broadcast %cst_114 : f32 to vector<128x32xf32>
    %261 = vector.extract_strided_slice %226 {offsets = [0, 0], sizes = [128, 32], strides = [1, 1]} : vector<128x288xf32> to vector<128x32xf32>
    %c9_i32 = arith.constant 9 : i32
    %262 = tpu.dynamic_rotate %261 by %c9_i32 dim 0 : vector<128x32xf32>, i32 -> vector<128x32xf32>
    %c9_i32_115 = arith.constant 9 : i32
    %263 = vector.broadcast %c9_i32_115 : i32 to vector<128x32xi32>
    %264 = arith.cmpi sge, %243, %263 : vector<128x32xi32>
    %c1_i32_116 = arith.constant 1 : i32
    %265 = vector.broadcast %c1_i32_116 : i32 to vector<128x32xi32>
    %266 = arith.cmpi sge, %259, %265 : vector<128x32xi32>
    %267 = arith.andi %264, %266 : vector<128x32xi1>
    %cst_117 = arith.constant 0.000000e+00 : f32
    %268 = vector.broadcast %cst_117 : f32 to vector<128x32xf32>
    %269 = arith.select %267, %262, %268 : vector<128x32xi1>, vector<128x32xf32>
    %270 = arith.addf %260, %269 : vector<128x32xf32>
    %271 = vector.extract_strided_slice %226 {offsets = [0, 32], sizes = [128, 32], strides = [1, 1]} : vector<128x288xf32> to vector<128x32xf32>
    %c8_i32_118 = arith.constant 8 : i32
    %272 = tpu.dynamic_rotate %271 by %c8_i32_118 dim 0 : vector<128x32xf32>, i32 -> vector<128x32xf32>
    %c8_i32_119 = arith.constant 8 : i32
    %273 = vector.broadcast %c8_i32_119 : i32 to vector<128x32xi32>
    %274 = arith.cmpi sge, %243, %273 : vector<128x32xi32>
    %cst_120 = arith.constant 0.000000e+00 : f32
    %275 = vector.broadcast %cst_120 : f32 to vector<128x32xf32>
    %276 = arith.select %274, %272, %275 : vector<128x32xi1>, vector<128x32xf32>
    %277 = arith.addf %270, %276 : vector<128x32xf32>
    %278 = vector.extract_strided_slice %226 {offsets = [0, 64], sizes = [128, 32], strides = [1, 1]} : vector<128x288xf32> to vector<128x32xf32>
    %c7_i32 = arith.constant 7 : i32
    %279 = tpu.dynamic_rotate %278 by %c7_i32 dim 0 : vector<128x32xf32>, i32 -> vector<128x32xf32>
    %c7_i32_121 = arith.constant 7 : i32
    %280 = vector.broadcast %c7_i32_121 : i32 to vector<128x32xi32>
    %281 = arith.cmpi sge, %243, %280 : vector<128x32xi32>
    %c7_i32_122 = arith.constant 7 : i32
    %282 = vector.broadcast %c7_i32_122 : i32 to vector<128x32xi32>
    %283 = arith.cmpi slt, %259, %282 : vector<128x32xi32>
    %284 = arith.andi %281, %283 : vector<128x32xi1>
    %cst_123 = arith.constant 0.000000e+00 : f32
    %285 = vector.broadcast %cst_123 : f32 to vector<128x32xf32>
    %286 = arith.select %284, %279, %285 : vector<128x32xi1>, vector<128x32xf32>
    %287 = arith.addf %277, %286 : vector<128x32xf32>
    %288 = vector.extract_strided_slice %226 {offsets = [0, 96], sizes = [128, 32], strides = [1, 1]} : vector<128x288xf32> to vector<128x32xf32>
    %c1_i32_124 = arith.constant 1 : i32
    %289 = tpu.dynamic_rotate %288 by %c1_i32_124 dim 0 : vector<128x32xf32>, i32 -> vector<128x32xf32>
    %c1_i32_125 = arith.constant 1 : i32
    %290 = vector.broadcast %c1_i32_125 : i32 to vector<128x32xi32>
    %291 = arith.cmpi sge, %243, %290 : vector<128x32xi32>
    %c1_i32_126 = arith.constant 1 : i32
    %292 = vector.broadcast %c1_i32_126 : i32 to vector<128x32xi32>
    %293 = arith.cmpi sge, %259, %292 : vector<128x32xi32>
    %294 = arith.andi %291, %293 : vector<128x32xi1>
    %cst_127 = arith.constant 0.000000e+00 : f32
    %295 = vector.broadcast %cst_127 : f32 to vector<128x32xf32>
    %296 = arith.select %294, %289, %295 : vector<128x32xi1>, vector<128x32xf32>
    %297 = arith.addf %287, %296 : vector<128x32xf32>
    %298 = vector.extract_strided_slice %226 {offsets = [0, 128], sizes = [128, 32], strides = [1, 1]} : vector<128x288xf32> to vector<128x32xf32>
    %299 = arith.addf %297, %298 : vector<128x32xf32>
    %300 = vector.extract_strided_slice %226 {offsets = [0, 160], sizes = [128, 32], strides = [1, 1]} : vector<128x288xf32> to vector<128x32xf32>
    %c127_i32 = arith.constant 127 : i32
    %301 = tpu.dynamic_rotate %300 by %c127_i32 dim 0 : vector<128x32xf32>, i32 -> vector<128x32xf32>
    %c63_i32 = arith.constant 63 : i32
    %302 = vector.broadcast %c63_i32 : i32 to vector<128x32xi32>
    %303 = arith.cmpi slt, %243, %302 : vector<128x32xi32>
    %c7_i32_128 = arith.constant 7 : i32
    %304 = vector.broadcast %c7_i32_128 : i32 to vector<128x32xi32>
    %305 = arith.cmpi slt, %259, %304 : vector<128x32xi32>
    %306 = arith.andi %303, %305 : vector<128x32xi1>
    %cst_129 = arith.constant 0.000000e+00 : f32
    %307 = vector.broadcast %cst_129 : f32 to vector<128x32xf32>
    %308 = arith.select %306, %301, %307 : vector<128x32xi1>, vector<128x32xf32>
    %309 = arith.addf %299, %308 : vector<128x32xf32>
    %310 = vector.extract_strided_slice %226 {offsets = [0, 192], sizes = [128, 32], strides = [1, 1]} : vector<128x288xf32> to vector<128x32xf32>
    %c121_i32 = arith.constant 121 : i32
    %311 = tpu.dynamic_rotate %310 by %c121_i32 dim 0 : vector<128x32xf32>, i32 -> vector<128x32xf32>
    %c57_i32 = arith.constant 57 : i32
    %312 = vector.broadcast %c57_i32 : i32 to vector<128x32xi32>
    %313 = arith.cmpi slt, %243, %312 : vector<128x32xi32>
    %c1_i32_130 = arith.constant 1 : i32
    %314 = vector.broadcast %c1_i32_130 : i32 to vector<128x32xi32>
    %315 = arith.cmpi sge, %259, %314 : vector<128x32xi32>
    %316 = arith.andi %313, %315 : vector<128x32xi1>
    %cst_131 = arith.constant 0.000000e+00 : f32
    %317 = vector.broadcast %cst_131 : f32 to vector<128x32xf32>
    %318 = arith.select %316, %311, %317 : vector<128x32xi1>, vector<128x32xf32>
    %319 = arith.addf %309, %318 : vector<128x32xf32>
    %320 = vector.extract_strided_slice %226 {offsets = [0, 224], sizes = [128, 32], strides = [1, 1]} : vector<128x288xf32> to vector<128x32xf32>
    %c120_i32 = arith.constant 120 : i32
    %321 = tpu.dynamic_rotate %320 by %c120_i32 dim 0 : vector<128x32xf32>, i32 -> vector<128x32xf32>
    %c56_i32 = arith.constant 56 : i32
    %322 = vector.broadcast %c56_i32 : i32 to vector<128x32xi32>
    %323 = arith.cmpi slt, %243, %322 : vector<128x32xi32>
    %cst_132 = arith.constant 0.000000e+00 : f32
    %324 = vector.broadcast %cst_132 : f32 to vector<128x32xf32>
    %325 = arith.select %323, %321, %324 : vector<128x32xi1>, vector<128x32xf32>
    %326 = arith.addf %319, %325 : vector<128x32xf32>
    %327 = vector.extract_strided_slice %226 {offsets = [0, 256], sizes = [128, 32], strides = [1, 1]} : vector<128x288xf32> to vector<128x32xf32>
    %c119_i32 = arith.constant 119 : i32
    %328 = tpu.dynamic_rotate %327 by %c119_i32 dim 0 : vector<128x32xf32>, i32 -> vector<128x32xf32>
    %c55_i32 = arith.constant 55 : i32
    %329 = vector.broadcast %c55_i32 : i32 to vector<128x32xi32>
    %330 = arith.cmpi slt, %243, %329 : vector<128x32xi32>
    %c7_i32_133 = arith.constant 7 : i32
    %331 = vector.broadcast %c7_i32_133 : i32 to vector<128x32xi32>
    %332 = arith.cmpi slt, %259, %331 : vector<128x32xi32>
    %333 = arith.andi %330, %332 : vector<128x32xi1>
    %cst_134 = arith.constant 0.000000e+00 : f32
    %334 = vector.broadcast %cst_134 : f32 to vector<128x32xf32>
    %335 = arith.select %333, %328, %334 : vector<128x32xi1>, vector<128x32xf32>
    %336 = arith.addf %326, %335 : vector<128x32xf32>
    %c0_135 = arith.constant 0 : index
    %c0_136 = arith.constant 0 : index
    %337 = vector.load %arg11[%c0_135, %c0_136] : memref<1x32xf32, #tpu.memory_space<vmem>>, vector<1x32xf32>
    %338 = vector.broadcast %337 : vector<1x32xf32> to vector<128x32xf32>
    %339 = arith.addf %336, %338 : vector<128x32xf32>
    %c0_137 = arith.constant 0 : index
    %c0_138 = arith.constant 0 : index
    %340 = vector.load %arg12[%c0_137, %c0_138] : memref<128x32xf32, #tpu.memory_space<vmem>>, vector<128x32xf32>
    tpu.vector_store %arg12[%c0_137, %c0_138], %339 {strides = array<i32>} : memref<128x32xf32, #tpu.memory_space<vmem>>, vector<128x32xf32>,
    return
  }
  func.func @transform_0(%arg0: i32) -> (i32, i32) {
    %c0_i32 = arith.constant 0 : i32
    %c0_i32_0 = arith.constant 0 : i32
    return %arg0, %c0_i32 : i32, i32
  }
  func.func @transform_1(%arg0: i32) -> (i32, i32, i32) {
    %c0_i32 = arith.constant 0 : i32
    %c0_i32_0 = arith.constant 0 : i32
    %c0_i32_1 = arith.constant 0 : i32
    %c0_i32_2 = arith.constant 0 : i32
    return %c0_i32, %c0_i32_0, %c0_i32_1 : i32, i32, i32
  }
  func.func @transform_2(%arg0: i32) -> (i32, i32, i32) {
    %c0_i32 = arith.constant 0 : i32
    %c0_i32_0 = arith.constant 0 : i32
    %c0_i32_1 = arith.constant 0 : i32
    %c0_i32_2 = arith.constant 0 : i32
    return %c0_i32, %c0_i32_0, %c0_i32_1 : i32, i32, i32
  }
  func.func @transform_3(%arg0: i32) -> (i32, i32, i32) {
    %c0_i32 = arith.constant 0 : i32
    %c0_i32_0 = arith.constant 0 : i32
    %c0_i32_1 = arith.constant 0 : i32
    %c0_i32_2 = arith.constant 0 : i32
    return %c0_i32, %c0_i32_0, %c0_i32_1 : i32, i32, i32
  }
  func.func @transform_4(%arg0: i32) -> (i32, i32, i32) {
    %c0_i32 = arith.constant 0 : i32
    %c0_i32_0 = arith.constant 0 : i32
    %c0_i32_1 = arith.constant 0 : i32
    %c0_i32_2 = arith.constant 0 : i32
    return %c0_i32, %c0_i32_0, %c0_i32_1 : i32, i32, i32
  }
  func.func @transform_5(%arg0: i32) -> (i32, i32, i32) {
    %c0_i32 = arith.constant 0 : i32
    %c0_i32_0 = arith.constant 0 : i32
    %c0_i32_1 = arith.constant 0 : i32
    %c0_i32_2 = arith.constant 0 : i32
    return %c0_i32, %c0_i32_0, %c0_i32_1 : i32, i32, i32
  }
  func.func @transform_6(%arg0: i32) -> (i32, i32, i32) {
    %c0_i32 = arith.constant 0 : i32
    %c0_i32_0 = arith.constant 0 : i32
    %c0_i32_1 = arith.constant 0 : i32
    %c0_i32_2 = arith.constant 0 : i32
    return %c0_i32, %c0_i32_0, %c0_i32_1 : i32, i32, i32
  }
  func.func @transform_7(%arg0: i32) -> (i32, i32, i32) {
    %c0_i32 = arith.constant 0 : i32
    %c0_i32_0 = arith.constant 0 : i32
    %c0_i32_1 = arith.constant 0 : i32
    %c0_i32_2 = arith.constant 0 : i32
    return %c0_i32, %c0_i32_0, %c0_i32_1 : i32, i32, i32
  }
  func.func @transform_8(%arg0: i32) -> (i32, i32, i32) {
    %c0_i32 = arith.constant 0 : i32
    %c0_i32_0 = arith.constant 0 : i32
    %c0_i32_1 = arith.constant 0 : i32
    %c0_i32_2 = arith.constant 0 : i32
    return %c0_i32, %c0_i32_0, %c0_i32_1 : i32, i32, i32
  }
  func.func @transform_9(%arg0: i32) -> (i32, i32) {
    %c0_i32 = arith.constant 0 : i32
    %c0_i32_0 = arith.constant 0 : i32
    %c0_i32_1 = arith.constant 0 : i32
    return %c0_i32, %c0_i32_0 : i32, i32
  }
  func.func @transform_10(%arg0: i32) -> (i32, i32) {
    %c0_i32 = arith.constant 0 : i32
    %c0_i32_0 = arith.constant 0 : i32
    %c0_i32_1 = arith.constant 0 : i32
    return %c0_i32, %c0_i32_0 : i32, i32
  }
  func.func @transform_11(%arg0: i32) -> (i32, i32) {
    %c0_i32 = arith.constant 0 : i32
    %c0_i32_0 = arith.constant 0 : i32
    return %arg0, %c0_i32 : i32, i32
  }
}

</mosaic_0001>

<llo_original>
// kernel: transformer_group_forward.1
$region0: #{transformer_group_forward.1}
  #allocation0 [shape = 'u32[]', space=smem, size = 0x4, offset = 0x4, fixed_abs, tag = 'smem constant byte address 0x4 - core index']
  #allocation1 [shape = 'u32[144,128]{1,0:T(1,128)}', space=vmem, size = 0x12000, scoped, tag = 'internal scratch']
  %s0 = inlined_call_operand.vmem [shape: f32[128,32], index: 0, kind: input, shape index: {}]
  %s1 = inlined_call_operand.vmem [shape: f32[2,32,96], index: 1, kind: input, shape index: {}]
  %s2 = inlined_call_operand.vmem [shape: f32[2,1,96], index: 2, kind: input, shape index: {}]
  %s3 = inlined_call_operand.hbm [shape: f32[2,32,32], index: 3, kind: input, shape index: {}]
  %s4 = inlined_call_operand.vmem [shape: f32[2,1,32], index: 4, kind: input, shape index: {}]
  %s5 = inlined_call_operand.hbm [shape: f32[2,32,64], index: 5, kind: input, shape index: {}]
  %s6 = inlined_call_operand.vmem [shape: f32[2,1,64], index: 6, kind: input, shape index: {}]
  %s7 = inlined_call_operand.vmem [shape: f32[2,64,32], index: 7, kind: input, shape index: {}]
  %s8 = inlined_call_operand.vmem [shape: f32[2,1,32], index: 8, kind: input, shape index: {}]
  %s9 = inlined_call_operand.hbm [shape: f32[32,288], index: 9, kind: input, shape index: {}]
  %s10 = inlined_call_operand.vmem [shape: f32[1,32], index: 10, kind: input, shape index: {}]
  %s11 = inlined_call_operand.hbm [shape: f32[128,32], index: 11, kind: output, shape index: {}]
  %s12 = sld [smem:[#allocation0]]
  $region66: #{transformer_group_forward.1} parent=0
    _
  %s14 = ssub.s32 1, %s12
  %s15 = scalar_select 0, %s14, %s12
  $region1: #{transformer_group_forward.1} parent=0
    #allocation2 [shape = 'u8[32768]{0}', space=vmem, size = 0x8000, scoped, tag = 'input window, operand 3, single buffered']
    #allocation3 [shape = 's32[1]{0}', space=sflag, size = 0x4, scoped, tag = 'scoped memory for transformer_group_forward.1']
    #allocation4 [shape = 's32[1]{0}', space=sflag, size = 0x4, scoped, tag = 'scoped memory for transformer_group_forward.1']
    #allocation5 [shape = 'u8[32768]{0}', space=vmem, size = 0x8000, scoped, tag = 'input window, operand 5, single buffered']
    #allocation6 [shape = 's32[1]{0}', space=sflag, size = 0x4, scoped, tag = 'scoped memory for transformer_group_forward.1']
    #allocation7 [shape = 'u8[49152]{0}', space=vmem, size = 0xc000, scoped, tag = 'input window, operand 9, single buffered']
    #allocation8 [shape = 'u8[65536]{0}', space=vmem, size = 0x10000, scoped, tag = 'output window, operand 0, single buffered']
    %16 = vsyncpa [#allocation3], 0
    %17 = vsyncpa [#allocation6], 0
    %18 = vsyncpa [#allocation4], 0
    // Predicated region
    $region2: #{transformer_group_forward.1} parent=1 // pred_check
      _
    $region3: #{transformer_group_forward.1} parent=1 // pred_check_branch
      %20 = sbr.rel (0) target = $region5
    $region4: #{transformer_group_forward.1} parent=1 // pred_region
      _
    $region5: #{transformer_group_forward.1} parent=1 // pred_fallthru
      _
    // Predicated region
    $region6: #{transformer_group_forward.1} parent=1 // pred_check
      _
    $region7: #{transformer_group_forward.1} parent=1 // pred_check_branch
      %22 = sbr.rel (0) target = $region9
    $region8: #{transformer_group_forward.1} parent=1 // pred_region
      _
    $region9: #{transformer_group_forward.1} parent=1 // pred_fallthru
      _
    // Predicated region
    $region10: #{transformer_group_forward.1} parent=1 // pred_check
      _
    $region11: #{transformer_group_forward.1} parent=1 // pred_check_branch
      %24 = sbr.rel (0) target = $region13
    $region12: #{transformer_group_forward.1} parent=1 // pred_region
      _
    $region13: #{transformer_group_forward.1} parent=1 // pred_fallthru
      _
    // Predicated region
    $region14: #{transformer_group_forward.1} parent=1 // pred_check
      _
    $region15: #{transformer_group_forward.1} parent=1 // pred_check_branch
      %26 = sbr.rel (0) target = $region17
    $region16: #{transformer_group_forward.1} parent=1 // pred_region
      %s28 = ssub.s32 1024, 1024
      %29 = vsyncadd [#allocation3], %s28
      %s30 = sshll.u32 [#allocation2], 4
      %s31 = int_to_ptr.vmem [resolvable:$true] %s30
      %36 = dma.hbm_to_vmem [thread:$0]  %s3, 1024, %s31, [#allocation3], 128, 128, 8
    $region17: #{transformer_group_forward.1} parent=1 // pred_fallthru
      _
    // Predicated region
    $region18: #{transformer_group_forward.1} parent=1 // pred_check
      _
    $region19: #{transformer_group_forward.1} parent=1 // pred_check_branch
      %38 = sbr.rel (0) target = $region21
    $region20: #{transformer_group_forward.1} parent=1 // pred_region
      _
    $region21: #{transformer_group_forward.1} parent=1 // pred_fallthru
      _
    // Predicated region
    $region22: #{transformer_group_forward.1} parent=1 // pred_check
      _
    $region23: #{transformer_group_forward.1} parent=1 // pred_check_branch
      %40 = sbr.rel (0) target = $region25
    $region24: #{transformer_group_forward.1} parent=1 // pred_region
      %s42 = ssub.s32 1024, 1024
      %43 = vsyncadd [#allocation6], %s42
      %s44 = sshll.u32 [#allocation5], 4
      %s45 = int_to_ptr.vmem [resolvable:$true] %s44
      %50 = dma.hbm_to_vmem [thread:$0]  %s5, 1024, %s45, [#allocation6], 128, 128, 8
    $region25: #{transformer_group_forward.1} parent=1 // pred_fallthru
      _
    // Predicated region
    $region26: #{transformer_group_forward.1} parent=1 // pred_check
      _
    $region27: #{transformer_group_forward.1} parent=1 // pred_check_branch
      %52 = sbr.rel (0) target = $region29
    $region28: #{transformer_group_forward.1} parent=1 // pred_region
      _
    $region29: #{transformer_group_forward.1} parent=1 // pred_fallthru
      _
    // Predicated region
    $region30: #{transformer_group_forward.1} parent=1 // pred_check
      _
    $region31: #{transformer_group_forward.1} parent=1 // pred_check_branch
      %54 = sbr.rel (0) target = $region33
    $region32: #{transformer_group_forward.1} parent=1 // pred_region
      _
    $region33: #{transformer_group_forward.1} parent=1 // pred_fallthru
      _
    // Predicated region
    $region34: #{transformer_group_forward.1} parent=1 // pred_check
      _
    $region35: #{transformer_group_forward.1} parent=1 // pred_check_branch
      %56 = sbr.rel (0) target = $region37
    $region36: #{transformer_group_forward.1} parent=1 // pred_region
      _
    $region37: #{transformer_group_forward.1} parent=1 // pred_fallthru
      _
    // Predicated region
    $region38: #{transformer_group_forward.1} parent=1 // pred_check
      _
    $region39: #{transformer_group_forward.1} parent=1 // pred_check_branch
      %58 = sbr.rel (0) target = $region41
    $region40: #{transformer_group_forward.1} parent=1 // pred_region
      %s60 = ssub.s32 1536, 1536
      %61 = vsyncadd [#allocation6], %s60
      %s62 = sshll.u32 [#allocation7], 4
      %s63 = int_to_ptr.vmem [resolvable:$true] %s62
      %68 = dma.hbm_to_vmem [thread:$0]  %s9, 1536, %s63, [#allocation6], 384, 384, 24
    $region41: #{transformer_group_forward.1} parent=1 // pred_fallthru
      _
    // Predicated region
    $region42: #{transformer_group_forward.1} parent=1 // pred_check
      _
    $region43: #{transformer_group_forward.1} parent=1 // pred_check_branch
      %70 = sbr.rel (0) target = $region45
    $region44: #{transformer_group_forward.1} parent=1 // pred_region
      _
    $region45: #{transformer_group_forward.1} parent=1 // pred_fallthru
      _
    // Predicated region
    $region46: #{transformer_group_forward.1} parent=1 // pred_check
      _
    $region47: #{transformer_group_forward.1} parent=1 // pred_check_branch
      %72 = sbr.rel (0) target = $region49
    $region48: #{transformer_group_forward.1} parent=1 // pred_region
      %73 = dma.done [#allocation3], 1024
    $region49: #{transformer_group_forward.1} parent=1 // pred_fallthru
      _
    // Predicated region
    $region50: #{transformer_group_forward.1} parent=1 // pred_check
      _
    $region51: #{transformer_group_forward.1} parent=1 // pred_check_branch
      %75 = sbr.rel (0) target = $region53
    $region52: #{transformer_group_forward.1} parent=1 // pred_region
      %76 = dma.done [#allocation6], 1024
    $region53: #{transformer_group_forward.1} parent=1 // pred_fallthru
      _
    // Predicated region
    $region54: #{transformer_group_forward.1} parent=1 // pred_check
      _
    $region55: #{transformer_group_forward.1} parent=1 // pred_check_branch
      %78 = sbr.rel (0) target = $region57
    $region56: #{transformer_group_forward.1} parent=1 // pred_region
      %79 = dma.done [#allocation6], 1536
    $region57: #{transformer_group_forward.1} parent=1 // pred_fallthru
      _
    %v80 = vld [vmem:[%s0] sm:$0xff]
    %v81 = vld [vmem:[%s0 + $0x8] sm:$0xff]
    %v82 = vld [vmem:[%s0 + $0x10] sm:$0xff]
    %v83 = vld [vmem:[%s0 + $0x18] sm:$0xff]
    %v84 = vld [vmem:[%s0 + $0x20] sm:$0xff]
    %v85 = vld [vmem:[%s0 + $0x28] sm:$0xff]
    %v86 = vld [vmem:[%s0 + $0x30] sm:$0xff]
    %v87 = vld [vmem:[%s0 + $0x38] sm:$0xff]
    %v88 = vld [vmem:[%s0 + $0x40] sm:$0xff]
    %v89 = vld [vmem:[%s0 + $0x48] sm:$0xff]
    %v90 = vld [vmem:[%s0 + $0x50] sm:$0xff]
    %v91 = vld [vmem:[%s0 + $0x58] sm:$0xff]
    %v92 = vld [vmem:[%s0 + $0x60] sm:$0xff]
    %v93 = vld [vmem:[%s0 + $0x68] sm:$0xff]
    %v94 = vld [vmem:[%s0 + $0x70] sm:$0xff]
    %v95 = vld [vmem:[%s0 + $0x78] sm:$0xff]
    %v96 = vld [vmem:[%s1] sm:$0xff]
    %v97 = vld [vmem:[%s1 + $0x8] sm:$0xff]
    %v98 = vld [vmem:[%s1 + $0x10] sm:$0xff]
    %v99 = vld [vmem:[%s1 + $0x18] sm:$0xff]
    %v100 = vld [vmem:[%s2] sm:$0x1]
    %v102 = vlaneseq
    %v103 = vshrl.u32 %v102, 7
    %v104 = vsub.s32 0, %v103
    %v105 = vrot.slane %v100, %v104
    %vm107 = vcmask 261120
    %v109 = vsel %vm107, %v80, 0
    %v112 = vsel %vm107, %v81, 0
    %v115 = vsel %vm107, %v82, 0
    %v118 = vsel %vm107, %v83, 0
    %v121 = vsel %vm107, %v84, 0
    %v124 = vsel %vm107, %v85, 0
    %v127 = vsel %vm107, %v86, 0
    %v130 = vsel %vm107, %v87, 0
    %v133 = vsel %vm107, %v88, 0
    %v136 = vsel %vm107, %v89, 0
    %v139 = vsel %vm107, %v90, 0
    %v142 = vsel %vm107, %v91, 0
    %v145 = vsel %vm107, %v92, 0
    %v148 = vsel %vm107, %v93, 0
    %v151 = vsel %vm107, %v94, 0
    %v154 = vsel %vm107, %v95, 0
    %156 = vmatprep.subr.mxu0 0.0
    %157 = vmatpush1.msra.mxu0 %v96
    %158 = vmatprep.subr.mxu0 0.0
    %159 = vmatpush1.msra.mxu0 %v97
    %160 = vmatprep.subr.mxu0 0.0
    %161 = vmatpush1.msra.mxu0 %v98
    %162 = vmatprep.subr.mxu0 0.0
    %163 = vmatpush1.msra.mxu0 %v99
    %164 = vmatprep.subr.mxu0 0.0
    %165 = vmatpush1.msra.mxu0 0.0
    %166 = vmatprep.subr.mxu0 0.0
    %167 = vmatpush1.msra.mxu0 0.0
    %168 = vmatprep.subr.mxu0 0.0
    %169 = vmatpush1.msra.mxu0 0.0
    %170 = vmatprep.subr.mxu0 0.0
    %171 = vmatpush1.msra.mxu0 0.0
    %172 = vmatprep.subr.mxu0 0.0
    %173 = vmatpush1.msra.mxu0 0.0
    %174 = vmatprep.subr.mxu0 0.0
    %175 = vmatpush1.msra.mxu0 0.0
    %176 = vmatprep.subr.mxu0 0.0
    %177 = vmatpush1.msra.mxu0 0.0
    %178 = vmatprep.subr.mxu0 0.0
    %179 = vmatpush1.msra.mxu0 0.0
    %180 = vmatprep.subr.mxu0 0.0
    %181 = vmatpush1.msra.mxu0 0.0
    %182 = vmatprep.subr.mxu0 0.0
    %183 = vmatpush1.msra.mxu0 0.0
    %184 = vmatprep.subr.mxu0 0.0
    %185 = vmatpush1.msra.mxu0 0.0
    %186 = vmatprep.subr.mxu0 0.0
    %187 = vmatpush1.msra.mxu0 0.0
    %188 = vmatprep.subr.mxu0 0.0
    %189 = vmatpush1.msra.mxu0 0.0
    %190 = vmatprep.subr.mxu0 0.0
    %191 = vmatpush1.msra.mxu0 0.0
    %192 = vmatprep.subr.mxu0 0.0
    %193 = vmatpush1.msra.mxu0 0.0
    %194 = vmatprep.subr.mxu0 0.0
    %195 = vmatpush1.msra.mxu0 0.0
    %196 = vmatprep.subr.mxu0 0.0
    %197 = vmatpush1.msra.mxu0 0.0
    %198 = vmatprep.subr.mxu0 0.0
    %199 = vmatpush1.msra.mxu0 0.0
    %200 = vmatprep.subr.mxu0 0.0
    %201 = vmatpush1.msra.mxu0 0.0
    %202 = vmatprep.subr.mxu0 0.0
    %203 = vmatpush1.msra.mxu0 0.0
    %204 = vmatprep.subr.mxu0 0.0
    %205 = vmatpush1.msra.mxu0 0.0
    %206 = vmatprep.subr.mxu0 0.0
    %207 = vmatpush1.msra.mxu0 0.0
    %208 = vmatprep.subr.mxu0 0.0
    %209 = vmatpush1.msra.mxu0 0.0
    %210 = vmatprep.subr.mxu0 0.0
    %211 = vmatpush1.msra.mxu0 0.0
    %212 = vmatprep.subr.mxu0 0.0
    %213 = vmatpush1.msra.mxu0 0.0
    %214 = vmatprep.subr.mxu0 0.0
    %215 = vmatpush1.msra.mxu0 0.0
    %216 = vmatprep.subr.mxu0 0.0
    %217 = vmatpush1.msra.mxu0 0.0
    %218 = vmatprep.subr.mxu0 0.0
    %219 = vmatpush1.msra.mxu0 0.0
    %220 = vmatprep.mubr.f32.mxu0 0.0
    %221 = vmatmul.mubr.f32.gmra.mrb[0].mxu0 %v109
    %v222 = vpop.f32.mrb[0].mxu0
    %v223 = vadd.f32 %v105, %v222
    %v224 = vpop.f32.mrb[0].mxu0
    %225 = vmatprep.mubr.f32.mxu0 0.0
    %226 = vmatmul.mubr.f32.gmra.mrb[0].mxu0 %v112
    %v227 = vpop.f32.mrb[0].mxu0
    %v228 = vadd.f32 %v105, %v227
    %v229 = vpop.f32.mrb[0].mxu0
    %230 = vmatprep.mubr.f32.mxu0 0.0
    %231 = vmatmul.mubr.f32.gmra.mrb[0].mxu0 %v115
    %v232 = vpop.f32.mrb[0].mxu0
    %v233 = vadd.f32 %v105, %v232
    %v234 = vpop.f32.mrb[0].mxu0
    %235 = vmatprep.mubr.f32.mxu0 0.0
    %236 = vmatmul.mubr.f32.gmra.mrb[0].mxu0 %v118
    %v237 = vpop.f32.mrb[0].mxu0
    %v238 = vadd.f32 %v105, %v237
    %v239 = vpop.f32.mrb[0].mxu0
    %240 = vmatprep.mubr.f32.mxu0 0.0
    %241 = vmatmul.mubr.f32.gmra.mrb[0].mxu0 %v121
    %v242 = vpop.f32.mrb[0].mxu0
    %v243 = vadd.f32 %v105, %v242
    %v244 = vpop.f32.mrb[0].mxu0
    %245 = vmatprep.mubr.f32.mxu0 0.0
    %246 = vmatmul.mubr.f32.gmra.mrb[0].mxu0 %v124
    %v247 = vpop.f32.mrb[0].mxu0
    %v248 = vadd.f32 %v105, %v247
    %v249 = vpop.f32.mrb[0].mxu0
    %250 = vmatprep.mubr.f32.mxu0 0.0
    %251 = vmatmul.mubr.f32.gmra.mrb[0].mxu0 %v127
    %v252 = vpop.f32.mrb[0].mxu0
    %v253 = vadd.f32 %v105, %v252
    %v254 = vpop.f32.mrb[0].mxu0
    %255 = vmatprep.mubr.f32.mxu0 0.0
    %256 = vmatmul.mubr.f32.gmra.mrb[0].mxu0 %v130
    %v257 = vpop.f32.mrb[0].mxu0
    %v258 = vadd.f32 %v105, %v257
    %v259 = vpop.f32.mrb[0].mxu0
    %260 = vmatprep.mubr.f32.mxu0 0.0
    %261 = vmatmul.mubr.f32.gmra.mrb[0].mxu0 %v133
    %v262 = vpop.f32.mrb[0].mxu0
    %v263 = vadd.f32 %v105, %v262
    %v264 = vpop.f32.mrb[0].mxu0
    %265 = vmatprep.mubr.f32.mxu0 0.0
    %266 = vmatmul.mubr.f32.gmra.mrb[0].mxu0 %v136
    %v267 = vpop.f32.mrb[0].mxu0
    %v268 = vadd.f32 %v105, %v267
    %v269 = vpop.f32.mrb[0].mxu0
    %270 = vmatprep.mubr.f32.mxu0 0.0
    %271 = vmatmul.mubr.f32.gmra.mrb[0].mxu0 %v139
    %v272 = vpop.f32.mrb[0].mxu0
    %v273 = vadd.f32 %v105, %v272
    %v274 = vpop.f32.mrb[0].mxu0
    %275 = vmatprep.mubr.f32.mxu0 0.0
    %276 = vmatmul.mubr.f32.gmra.mrb[0].mxu0 %v142
    %v277 = vpop.f32.mrb[0].mxu0
    %v278 = vadd.f32 %v105, %v277
    %v279 = vpop.f32.mrb[0].mxu0
    %280 = vmatprep.mubr.f32.mxu0 0.0
    %281 = vmatmul.mubr.f32.gmra.mrb[0].mxu0 %v145
    %v282 = vpop.f32.mrb[0].mxu0
    %v283 = vadd.f32 %v105, %v282
    %v284 = vpop.f32.mrb[0].mxu0
    %285 = vmatprep.mubr.f32.mxu0 0.0
    %286 = vmatmul.mubr.f32.gmra.mrb[0].mxu0 %v148
    %v287 = vpop.f32.mrb[0].mxu0
    %v288 = vadd.f32 %v105, %v287
    %v289 = vpop.f32.mrb[0].mxu0
    %290 = vmatprep.mubr.f32.mxu0 0.0
    %291 = vmatmul.mubr.f32.gmra.mrb[0].mxu0 %v151
    %v292 = vpop.f32.mrb[0].mxu0
    %v293 = vadd.f32 %v105, %v292
    %v294 = vpop.f32.mrb[0].mxu0
    %295 = vmatprep.mubr.f32.mxu0 0.0
    %296 = vmatmul.mubr.f32.gmra.mrb[0].mxu0 %v154
    %v297 = vpop.f32.mrb[0].mxu0
    %v298 = vadd.f32 %v105, %v297
    %v299 = vpop.f32.mrb[0].mxu0
    %300 = vdwg.mxu0
    %309 = vrot.lane.b32.xlu0 %v223, 96
    %v310 = vpop.permute.xlu0 %309
    %311 = vrot.lane.b32.xlu0 %v228, 96
    %v312 = vpop.permute.xlu0 %311
    %313 = vrot.lane.b32.xlu0 %v233, 96
    %v314 = vpop.permute.xlu0 %313
    %315 = vrot.lane.b32.xlu0 %v238, 96
    %v316 = vpop.permute.xlu0 %315
    %317 = vrot.lane.b32.xlu0 %v243, 96
    %v318 = vpop.permute.xlu0 %317
    %319 = vrot.lane.b32.xlu0 %v248, 96
    %v320 = vpop.permute.xlu0 %319
    %321 = vrot.lane.b32.xlu0 %v253, 96
    %v322 = vpop.permute.xlu0 %321
    %323 = vrot.lane.b32.xlu0 %v258, 96
    %v324 = vpop.permute.xlu0 %323
    %vm325 = vcmask 130048
    %v326 = vsel %vm325, %v223, 0
    %v328 = vsel %vm325, %v228, 0
    %v330 = vsel %vm325, %v233, 0
    %v332 = vsel %vm325, %v238, 0
    %v334 = vsel %vm325, %v243, 0
    %v336 = vsel %vm325, %v248, 0
    %v338 = vsel %vm325, %v253, 0
    %v340 = vsel %vm325, %v258, 0
    %v342 = vsel %vm325, %v310, 0
    %v344 = vsel %vm325, %v312, 0
    %v346 = vsel %vm325, %v314, 0
    %v348 = vsel %vm325, %v316, 0
    %v350 = vsel %vm325, %v318, 0
    %v352 = vsel %vm325, %v320, 0
    %v354 = vsel %vm325, %v322, 0
    %v356 = vsel %vm325, %v324, 0
    %358 = vmatprep.subr.mxu0 0.0
    %359 = vmatpush1.xpose.msra.mxu0 %v342
    %360 = vmatprep.subr.mxu0 0.0
    %361 = vmatpush1.xpose.msra.mxu0 %v344
    %362 = vmatprep.subr.mxu0 0.0
    %363 = vmatpush1.xpose.msra.mxu0 %v346
    %364 = vmatprep.subr.mxu0 0.0
    %365 = vmatpush1.xpose.msra.mxu0 %v348
    %366 = vmatprep.subr.mxu0 0.0
    %367 = vmatpush1.xpose.msra.mxu0 %v350
    %368 = vmatprep.subr.mxu0 0.0
    %369 = vmatpush1.xpose.msra.mxu0 %v352
    %370 = vmatprep.subr.mxu0 0.0
    %371 = vmatpush1.xpose.msra.mxu0 %v354
    %372 = vmatprep.subr.mxu0 0.0
    %373 = vmatpush1.xpose.msra.mxu0 %v356
    %374 = vmatprep.subr.mxu0 0.0
    %375 = vmatpush1.xpose.msra.mxu0 0.0
    %376 = vmatprep.subr.mxu0 0.0
    %377 = vmatpush1.xpose.msra.mxu0 0.0
    %378 = vmatprep.subr.mxu0 0.0
    %379 = vmatpush1.xpose.msra.mxu0 0.0
    %380 = vmatprep.subr.mxu0 0.0
    %381 = vmatpush1.xpose.msra.mxu0 0.0
    %382 = vmatprep.subr.mxu0 0.0
    %383 = vmatpush1.xpose.msra.mxu0 0.0
    %384 = vmatprep.subr.mxu0 0.0
    %385 = vmatpush1.xpose.msra.mxu0 0.0
    %386 = vmatprep.subr.mxu0 0.0
    %387 = vmatpush1.xpose.msra.mxu0 0.0
    %388 = vmatprep.subr.mxu0 0.0
    %389 = vmatpush1.xpose.msra.mxu0 0.0
    %390 = vmatprep.subr.mxu0 0.0
    %391 = vmatpush1.xpose.msra.mxu0 0.0
    %392 = vmatprep.subr.mxu0 0.0
    %393 = vmatpush1.xpose.msra.mxu0 0.0
    %394 = vmatprep.subr.mxu0 0.0
    %395 = vmatpush1.xpose.msra.mxu0 0.0
    %396 = vmatprep.subr.mxu0 0.0
    %397 = vmatpush1.xpose.msra.mxu0 0.0
    %398 = vmatprep.subr.mxu0 0.0
    %399 = vmatpush1.xpose.msra.mxu0 0.0
    %400 = vmatprep.subr.mxu0 0.0
    %401 = vmatpush1.xpose.msra.mxu0 0.0
    %402 = vmatprep.subr.mxu0 0.0
    %403 = vmatpush1.xpose.msra.mxu0 0.0
    %404 = vmatprep.subr.mxu0 0.0
    %405 = vmatpush1.xpose.msra.mxu0 0.0
    %406 = vmatprep.subr.mxu0 0.0
    %407 = vmatpush1.xpose.msra.mxu0 0.0
    %408 = vmatprep.subr.mxu0 0.0
    %409 = vmatpush1.xpose.msra.mxu0 0.0
    %410 = vmatprep.subr.mxu0 0.0
    %411 = vmatpush1.xpose.msra.mxu0 0.0
    %412 = vmatprep.subr.mxu0 0.0
    %413 = vmatpush1.xpose.msra.mxu0 0.0
    %414 = vmatprep.subr.mxu0 0.0
    %415 = vmatpush1.xpose.msra.mxu0 0.0
    %416 = vmatprep.subr.mxu0 0.0
    %417 = vmatpush1.xpose.msra.mxu0 0.0
    %418 = vmatprep.subr.mxu0 0.0
    %419 = vmatpush1.xpose.msra.mxu0 0.0
    %420 = vmatprep.subr.mxu0 0.0
    %421 = vmatpush1.xpose.msra.mxu0 0.0
    %422 = vmatprep.mubr.f32.mxu0 0.0
    %423 = vmatmul.mubr.f32.gmra.mrb[0].mxu0 %v326
    %v424 = vpop.f32.mrb[0].mxu0
    %v425 = vadd.f32 0.0, %v424
    %v426 = vpop.f32.mrb[0].mxu0
    %427 = vmatprep.mubr.f32.mxu0 0.0
    %428 = vmatmul.mubr.f32.gmra.mrb[0].mxu0 %v328
    %v429 = vpop.f32.mrb[0].mxu0
    %v430 = vadd.f32 0.0, %v429
    %v431 = vpop.f32.mrb[0].mxu0
    %432 = vmatprep.mubr.f32.mxu0 0.0
    %433 = vmatmul.mubr.f32.gmra.mrb[0].mxu0 %v330
    %v434 = vpop.f32.mrb[0].mxu0
    %v435 = vadd.f32 0.0, %v434
    %v436 = vpop.f32.mrb[0].mxu0
    %437 = vmatprep.mubr.f32.mxu0 0.0
    %438 = vmatmul.mubr.f32.gmra.mrb[0].mxu0 %v332
    %v439 = vpop.f32.mrb[0].mxu0
    %v440 = vadd.f32 0.0, %v439
    %v441 = vpop.f32.mrb[0].mxu0
    %442 = vmatprep.mubr.f32.mxu0 0.0
    %443 = vmatmul.mubr.f32.gmra.mrb[0].mxu0 %v334
    %v444 = vpop.f32.mrb[0].mxu0
    %v445 = vadd.f32 0.0, %v444
    %v446 = vpop.f32.mrb[0].mxu0
    %447 = vmatprep.mubr.f32.mxu0 0.0
    %448 = vmatmul.mubr.f32.gmra.mrb[0].mxu0 %v336
    %v449 = vpop.f32.mrb[0].mxu0
    %v450 = vadd.f32 0.0, %v449
    %v451 = vpop.f32.mrb[0].mxu0
    %452 = vmatprep.mubr.f32.mxu0 0.0
    %453 = vmatmul.mubr.f32.gmra.mrb[0].mxu0 %v338
    %v454 = vpop.f32.mrb[0].mxu0
    %v455 = vadd.f32 0.0, %v454
    %v456 = vpop.f32.mrb[0].mxu0
    %457 = vmatprep.mubr.f32.mxu0 0.0
    %458 = vmatmul.mubr.f32.gmra.mrb[0].mxu0 %v340
    %v459 = vpop.f32.mrb[0].mxu0
    %v460 = vadd.f32 0.0, %v459
    %v461 = vpop.f32.mrb[0].mxu0
    %462 = vdwg.mxu0
    %v463 = vmul.f32 %v425, 0.25
    %v464 = vmul.f32 %v430, 0.25
    %v465 = vmul.f32 %v435, 0.25
    %v466 = vmul.f32 %v440, 0.25
    %v467 = vmul.f32 %v445, 0.25
    %v468 = vmul.f32 %v450, 0.25
    %v469 = vmul.f32 %v455, 0.25
    %v470 = vmul.f32 %v460, 0.25
    %vm471 = vcmask 523264
    %v472 = vsel %vm471, %v463, -inf
    %473 = vmax.xlane.f32.xlu0 %v472
    %v474 = vpop.xlane.xlu0 %473
    %v475 = vsel %vm471, %v464, -inf
    %476 = vmax.xlane.f32.xlu0 %v475
    %v477 = vpop.xlane.xlu0 %476
    %v478 = vsel %vm471, %v465, -inf
    %479 = vmax.xlane.f32.xlu0 %v478
    %v480 = vpop.xlane.xlu0 %479
    %v481 = vsel %vm471, %v466, -inf
    %482 = vmax.xlane.f32.xlu0 %v481
    %v483 = vpop.xlane.xlu0 %482
    %v484 = vsel %vm471, %v467, -inf
    %485 = vmax.xlane.f32.xlu0 %v484
    %v486 = vpop.xlane.xlu0 %485
    %v487 = vsel %vm471, %v468, -inf
    %488 = vmax.xlane.f32.xlu0 %v487
    %v489 = vpop.xlane.xlu0 %488
    %v490 = vsel %vm471, %v469, -inf
    %491 = vmax.xlane.f32.xlu0 %v490
    %v492 = vpop.xlane.xlu0 %491
    %v493 = vsel %vm471, %v470, -inf
    %494 = vmax.xlane.f32.xlu0 %v493
    %v495 = vpop.xlane.xlu0 %494
    %v496 = vsub.f32 %v463, %v474
    %v497 = vsub.f32 %v464, %v477
    %v498 = vsub.f32 %v465, %v480
    %v499 = vsub.f32 %v466, %v483
    %v500 = vsub.f32 %v467, %v486
    %v501 = vsub.f32 %v468, %v489
    %v502 = vsub.f32 %v469, %v492
    %v503 = vsub.f32 %v470, %v495
    %v504 = vmul.f32 %v496, 1.442695
    %v505 = vpow.pop %v504
    %v506 = vmul.f32 %v497, 1.442695
    %v507 = vpow.pop %v506
    %v508 = vmul.f32 %v498, 1.442695
    %v509 = vpow.pop %v508
    %v510 = vmul.f32 %v499, 1.442695
    %v511 = vpow.pop %v510
    %v512 = vmul.f32 %v500, 1.442695
    %v513 = vpow.pop %v512
    %v514 = vmul.f32 %v501, 1.442695
    %v515 = vpow.pop %v514
    %v516 = vmul.f32 %v502, 1.442695
    %v517 = vpow.pop %v516
    %v518 = vmul.f32 %v503, 1.442695
    %v519 = vpow.pop %v518
    %v520 = vsel %vm471, %v505, 0.0
    %521 = vadd.xlane.f32.xlu0 %v520
    %v522 = vpop.xlane.xlu0 %521
    %v523 = vsel %vm471, %v507, 0.0
    %524 = vadd.xlane.f32.xlu0 %v523
    %v525 = vpop.xlane.xlu0 %524
    %v526 = vsel %vm471, %v509, 0.0
    %527 = vadd.xlane.f32.xlu0 %v526
    %v528 = vpop.xlane.xlu0 %527
    %v529 = vsel %vm471, %v511, 0.0
    %530 = vadd.xlane.f32.xlu0 %v529
    %v531 = vpop.xlane.xlu0 %530
    %v532 = vsel %vm471, %v513, 0.0
    %533 = vadd.xlane.f32.xlu0 %v532
    %v534 = vpop.xlane.xlu0 %533
    %v535 = vsel %vm471, %v515, 0.0
    %536 = vadd.xlane.f32.xlu0 %v535
    %v537 = vpop.xlane.xlu0 %536
    %v538 = vsel %vm471, %v517, 0.0
    %539 = vadd.xlane.f32.xlu0 %v538
    %v540 = vpop.xlane.xlu0 %539
    %v541 = vsel %vm471, %v519, 0.0
    %542 = vadd.xlane.f32.xlu0 %v541
    %v543 = vpop.xlane.xlu0 %542
    %v544 = vrcp.pop %v522
    %v545 = vmul.f32 %v505, %v544
    %v546 = vrcp.pop %v525
    %v547 = vmul.f32 %v507, %v546
    %v548 = vrcp.pop %v528
    %v549 = vmul.f32 %v509, %v548
    %v550 = vrcp.pop %v531
    %v551 = vmul.f32 %v511, %v550
    %v552 = vrcp.pop %v534
    %v553 = vmul.f32 %v513, %v552
    %v554 = vrcp.pop %v537
    %v555 = vmul.f32 %v515, %v554
    %v556 = vrcp.pop %v540
    %v557 = vmul.f32 %v517, %v556
    %v558 = vrcp.pop %v543
    %v559 = vmul.f32 %v519, %v558
    %560 = vrot.lane.b32.xlu0 %v223, 64
    %v561 = vpop.permute.xlu0 %560
    %562 = vrot.lane.b32.xlu0 %v228, 64
    %v563 = vpop.permute.xlu0 %562
    %564 = vrot.lane.b32.xlu0 %v233, 64
    %v565 = vpop.permute.xlu0 %564
    %566 = vrot.lane.b32.xlu0 %v238, 64
    %v567 = vpop.permute.xlu0 %566
    %568 = vrot.lane.b32.xlu0 %v243, 64
    %v569 = vpop.permute.xlu0 %568
    %570 = vrot.lane.b32.xlu0 %v248, 64
    %v571 = vpop.permute.xlu0 %570
    %572 = vrot.lane.b32.xlu0 %v253, 64
    %v573 = vpop.permute.xlu0 %572
    %574 = vrot.lane.b32.xlu0 %v258, 64
    %v575 = vpop.permute.xlu0 %574
    %v585 = vsel %vm471, %v545, 0
    %v588 = vsel %vm471, %v547, 0
    %v591 = vsel %vm471, %v549, 0
    %v594 = vsel %vm471, %v551, 0
    %v597 = vsel %vm471, %v553, 0
    %v600 = vsel %vm471, %v555, 0
    %v603 = vsel %vm471, %v557, 0
    %v606 = vsel %vm471, %v559, 0
    %608 = vmatprep.subr.mxu0 0.0
    %609 = vmatpush1.msra.mxu0 %v561
    %610 = vmatprep.subr.mxu0 0.0
    %611 = vmatpush1.msra.mxu0 %v563
    %612 = vmatprep.subr.mxu0 0.0
    %613 = vmatpush1.msra.mxu0 %v565
    %614 = vmatprep.subr.mxu0 0.0
    %615 = vmatpush1.msra.mxu0 %v567
    %616 = vmatprep.subr.mxu0 0.0
    %617 = vmatpush1.msra.mxu0 %v569
    %618 = vmatprep.subr.mxu0 0.0
    %619 = vmatpush1.msra.mxu0 %v571
    %620 = vmatprep.subr.mxu0 0.0
    %621 = vmatpush1.msra.mxu0 %v573
    %622 = vmatprep.subr.mxu0 0.0
    %623 = vmatpush1.msra.mxu0 %v575
    %624 = vmatprep.subr.mxu0 0.0
    %625 = vmatpush1.msra.mxu0 0.0
    %626 = vmatprep.subr.mxu0 0.0
    %627 = vmatpush1.msra.mxu0 0.0
    %628 = vmatprep.subr.mxu0 0.0
    %629 = vmatpush1.msra.mxu0 0.0
    %630 = vmatprep.subr.mxu0 0.0
    %631 = vmatpush1.msra.mxu0 0.0
    %632 = vmatprep.subr.mxu0 0.0
    %633 = vmatpush1.msra.mxu0 0.0
    %634 = vmatprep.subr.mxu0 0.0
    %635 = vmatpush1.msra.mxu0 0.0
    %636 = vmatprep.subr.mxu0 0.0
    %637 = vmatpush1.msra.mxu0 0.0
    %638 = vmatprep.subr.mxu0 0.0
    %639 = vmatpush1.msra.mxu0 0.0
    %640 = vmatprep.subr.mxu0 0.0
    %641 = vmatpush1.msra.mxu0 0.0
    %642 = vmatprep.subr.mxu0 0.0
    %643 = vmatpush1.msra.mxu0 0.0
    %644 = vmatprep.subr.mxu0 0.0
    %645 = vmatpush1.msra.mxu0 0.0
    %646 = vmatprep.subr.mxu0 0.0
    %647 = vmatpush1.msra.mxu0 0.0
    %648 = vmatprep.subr.mxu0 0.0
    %649 = vmatpush1.msra.mxu0 0.0
    %650 = vmatprep.subr.mxu0 0.0
    %651 = vmatpush1.msra.mxu0 0.0
    %652 = vmatprep.subr.mxu0 0.0
    %653 = vmatpush1.msra.mxu0 0.0
    %654 = vmatprep.subr.mxu0 0.0
    %655 = vmatpush1.msra.mxu0 0.0
    %656 = vmatprep.subr.mxu0 0.0
    %657 = vmatpush1.msra.mxu0 0.0
    %658 = vmatprep.subr.mxu0 0.0
    %659 = vmatpush1.msra.mxu0 0.0
    %660 = vmatprep.subr.mxu0 0.0
    %661 = vmatpush1.msra.mxu0 0.0
    %662 = vmatprep.subr.mxu0 0.0
    %663 = vmatpush1.msra.mxu0 0.0
    %664 = vmatprep.subr.mxu0 0.0
    %665 = vmatpush1.msra.mxu0 0.0
    %666 = vmatprep.subr.mxu0 0.0
    %667 = vmatpush1.msra.mxu0 0.0
    %668 = vmatprep.subr.mxu0 0.0
    %669 = vmatpush1.msra.mxu0 0.0
    %670 = vmatprep.subr.mxu0 0.0
    %671 = vmatpush1.msra.mxu0 0.0
    %672 = vmatprep.mubr.f32.mxu0 0.0
    %673 = vmatmul.mubr.f32.gmra.mrb[0].mxu0 %v585
    %v674 = vpop.f32.mrb[0].mxu0
    %v675 = vadd.f32 0.0, %v674
    %v676 = vpop.f32.mrb[0].mxu0
    %677 = vmatprep.mubr.f32.mxu0 0.0
    %678 = vmatmul.mubr.f32.gmra.mrb[0].mxu0 %v588
    %v679 = vpop.f32.mrb[0].mxu0
    %v680 = vadd.f32 0.0, %v679
    %v681 = vpop.f32.mrb[0].mxu0
    %682 = vmatprep.mubr.f32.mxu0 0.0
    %683 = vmatmul.mubr.f32.gmra.mrb[0].mxu0 %v591
    %v684 = vpop.f32.mrb[0].mxu0
    %v685 = vadd.f32 0.0, %v684
    %v686 = vpop.f32.mrb[0].mxu0
    %687 = vmatprep.mubr.f32.mxu0 0.0
    %688 = vmatmul.mubr.f32.gmra.mrb[0].mxu0 %v594
    %v689 = vpop.f32.mrb[0].mxu0
    %v690 = vadd.f32 0.0, %v689
    %v691 = vpop.f32.mrb[0].mxu0
    %692 = vmatprep.mubr.f32.mxu0 0.0
    %693 = vmatmul.mubr.f32.gmra.mrb[0].mxu0 %v597
    %v694 = vpop.f32.mrb[0].mxu0
    %v695 = vadd.f32 0.0, %v694
    %v696 = vpop.f32.mrb[0].mxu0
    %697 = vmatprep.mubr.f32.mxu0 0.0
    %698 = vmatmul.mubr.f32.gmra.mrb[0].mxu0 %v600
    %v699 = vpop.f32.mrb[0].mxu0
    %v700 = vadd.f32 0.0, %v699
    %v701 = vpop.f32.mrb[0].mxu0
    %702 = vmatprep.mubr.f32.mxu0 0.0
    %703 = vmatmul.mubr.f32.gmra.mrb[0].mxu0 %v603
    %v704 = vpop.f32.mrb[0].mxu0
    %v705 = vadd.f32 0.0, %v704
    %v706 = vpop.f32.mrb[0].mxu0
    %707 = vmatprep.mubr.f32.mxu0 0.0
    %708 = vmatmul.mubr.f32.gmra.mrb[0].mxu0 %v606
    %v709 = vpop.f32.mrb[0].mxu0
    %v710 = vadd.f32 0.0, %v709
    %v711 = vpop.f32.mrb[0].mxu0
    %712 = vdwg.mxu0
    %713 = vrot.lane.b32.xlu0 %v223, 112
    %v714 = vpop.permute.xlu0 %713
    %715 = vrot.lane.b32.xlu0 %v228, 112
    %v716 = vpop.permute.xlu0 %715
    %717 = vrot.lane.b32.xlu0 %v233, 112
    %v718 = vpop.permute.xlu0 %717
    %719 = vrot.lane.b32.xlu0 %v238, 112
    %v720 = vpop.permute.xlu0 %719
    %721 = vrot.lane.b32.xlu0 %v243, 112
    %v722 = vpop.permute.xlu0 %721
    %723 = vrot.lane.b32.xlu0 %v248, 112
    %v724 = vpop.permute.xlu0 %723
    %725 = vrot.lane.b32.xlu0 %v253, 112
    %v726 = vpop.permute.xlu0 %725
    %727 = vrot.lane.b32.xlu0 %v258, 112
    %v728 = vpop.permute.xlu0 %727
    %729 = vrot.lane.b32.xlu0 %v223, 80
    %v730 = vpop.permute.xlu0 %729
    %731 = vrot.lane.b32.xlu0 %v228, 80
    %v732 = vpop.permute.xlu0 %731
    %733 = vrot.lane.b32.xlu0 %v233, 80
    %v734 = vpop.permute.xlu0 %733
    %735 = vrot.lane.b32.xlu0 %v238, 80
    %v736 = vpop.permute.xlu0 %735
    %737 = vrot.lane.b32.xlu0 %v243, 80
    %v738 = vpop.permute.xlu0 %737
    %739 = vrot.lane.b32.xlu0 %v248, 80
    %v740 = vpop.permute.xlu0 %739
    %741 = vrot.lane.b32.xlu0 %v253, 80
    %v742 = vpop.permute.xlu0 %741
    %743 = vrot.lane.b32.xlu0 %v258, 80
    %v744 = vpop.permute.xlu0 %743
    %v745 = vsel %vm325, %v714, 0
    %v747 = vsel %vm325, %v716, 0
    %v749 = vsel %vm325, %v718, 0
    %v751 = vsel %vm325, %v720, 0
    %v753 = vsel %vm325, %v722, 0
    %v755 = vsel %vm325, %v724, 0
    %v757 = vsel %vm325, %v726, 0
    %v759 = vsel %vm325, %v728, 0
    %v761 = vsel %vm325, %v730, 0
    %v763 = vsel %vm325, %v732, 0
    %v765 = vsel %vm325, %v734, 0
    %v767 = vsel %vm325, %v736, 0
    %v769 = vsel %vm325, %v738, 0
    %v771 = vsel %vm325, %v740, 0
    %v773 = vsel %vm325, %v742, 0
    %v775 = vsel %vm325, %v744, 0
    %777 = vmatprep.subr.mxu0 0.0
    %778 = vmatpush1.xpose.msra.mxu0 %v761
    %779 = vmatprep.subr.mxu0 0.0
    %780 = vmatpush1.xpose.msra.mxu0 %v763
    %781 = vmatprep.subr.mxu0 0.0
    %782 = vmatpush1.xpose.msra.mxu0 %v765
    %783 = vmatprep.subr.mxu0 0.0
    %784 = vmatpush1.xpose.msra.mxu0 %v767
    %785 = vmatprep.subr.mxu0 0.0
    %786 = vmatpush1.xpose.msra.mxu0 %v769
    %787 = vmatprep.subr.mxu0 0.0
    %788 = vmatpush1.xpose.msra.mxu0 %v771
    %789 = vmatprep.subr.mxu0 0.0
    %790 = vmatpush1.xpose.msra.mxu0 %v773
    %791 = vmatprep.subr.mxu0 0.0
    %792 = vmatpush1.xpose.msra.mxu0 %v775
    %793 = vmatprep.subr.mxu0 0.0
    %794 = vmatpush1.xpose.msra.mxu0 0.0
    %795 = vmatprep.subr.mxu0 0.0
    %796 = vmatpush1.xpose.msra.mxu0 0.0
    %797 = vmatprep.subr.mxu0 0.0
    %798 = vmatpush1.xpose.msra.mxu0 0.0
    %799 = vmatprep.subr.mxu0 0.0
    %800 = vmatpush1.xpose.msra.mxu0 0.0
    %801 = vmatprep.subr.mxu0 0.0
    %802 = vmatpush1.xpose.msra.mxu0 0.0
    %803 = vmatprep.subr.mxu0 0.0
    %804 = vmatpush1.xpose.msra.mxu0 0.0
    %805 = vmatprep.subr.mxu0 0.0
    %806 = vmatpush1.xpose.msra.mxu0 0.0
    %807 = vmatprep.subr.mxu0 0.0
    %808 = vmatpush1.xpose.msra.mxu0 0.0
    %809 = vmatprep.subr.mxu0 0.0
    %810 = vmatpush1.xpose.msra.mxu0 0.0
    %811 = vmatprep.subr.mxu0 0.0
    %812 = vmatpush1.xpose.msra.mxu0 0.0
    %813 = vmatprep.subr.mxu0 0.0
    %814 = vmatpush1.xpose.msra.mxu0 0.0
    %815 = vmatprep.subr.mxu0 0.0
    %816 = vmatpush1.xpose.msra.mxu0 0.0
    %817 = vmatprep.subr.mxu0 0.0
    %818 = vmatpush1.xpose.msra.mxu0 0.0
    %819 = vmatprep.subr.mxu0 0.0
    %820 = vmatpush1.xpose.msra.mxu0 0.0
    %821 = vmatprep.subr.mxu0 0.0
    %822 = vmatpush1.xpose.msra.mxu0 0.0
    %823 = vmatprep.subr.mxu0 0.0
    %824 = vmatpush1.xpose.msra.mxu0 0.0
    %825 = vmatprep.subr.mxu0 0.0
    %826 = vmatpush1.xpose.msra.mxu0 0.0
    %827 = vmatprep.subr.mxu0 0.0
    %828 = vmatpush1.xpose.msra.mxu0 0.0
    %829 = vmatprep.subr.mxu0 0.0
    %830 = vmatpush1.xpose.msra.mxu0 0.0
    %831 = vmatprep.subr.mxu0 0.0
    %832 = vmatpush1.xpose.msra.mxu0 0.0
    %833 = vmatprep.subr.mxu0 0.0
    %834 = vmatpush1.xpose.msra.mxu0 0.0
    %835 = vmatprep.subr.mxu0 0.0
    %836 = vmatpush1.xpose.msra.mxu0 0.0
    %837 = vmatprep.subr.mxu0 0.0
    %838 = vmatpush1.xpose.msra.mxu0 0.0
    %839 = vmatprep.subr.mxu0 0.0
    %840 = vmatpush1.xpose.msra.mxu0 0.0
    %841 = vmatprep.mubr.f32.mxu0 0.0
    %842 = vmatmul.mubr.f32.gmra.mrb[0].mxu0 %v745
    %v843 = vpop.f32.mrb[0].mxu0
    %v844 = vadd.f32 0.0, %v843
    %v845 = vpop.f32.mrb[0].mxu0
    %846 = vmatprep.mubr.f32.mxu0 0.0
    %847 = vmatmul.mubr.f32.gmra.mrb[0].mxu0 %v747
    %v848 = vpop.f32.mrb[0].mxu0
    %v849 = vadd.f32 0.0, %v848
    %v850 = vpop.f32.mrb[0].mxu0
    %851 = vmatprep.mubr.f32.mxu0 0.0
    %852 = vmatmul.mubr.f32.gmra.mrb[0].mxu0 %v749
    %v853 = vpop.f32.mrb[0].mxu0
    %v854 = vadd.f32 0.0, %v853
    %v855 = vpop.f32.mrb[0].mxu0
    %856 = vmatprep.mubr.f32.mxu0 0.0
    %857 = vmatmul.mubr.f32.gmra.mrb[0].mxu0 %v751
    %v858 = vpop.f32.mrb[0].mxu0
    %v859 = vadd.f32 0.0, %v858
    %v860 = vpop.f32.mrb[0].mxu0
    %861 = vmatprep.mubr.f32.mxu0 0.0
    %862 = vmatmul.mubr.f32.gmra.mrb[0].mxu0 %v753
    %v863 = vpop.f32.mrb[0].mxu0
    %v864 = vadd.f32 0.0, %v863
    %v865 = vpop.f32.mrb[0].mxu0
    %866 = vmatprep.mubr.f32.mxu0 0.0
    %867 = vmatmul.mubr.f32.gmra.mrb[0].mxu0 %v755
    %v868 = vpop.f32.mrb[0].mxu0
    %v869 = vadd.f32 0.0, %v868
    %v870 = vpop.f32.mrb[0].mxu0
    %871 = vmatprep.mubr.f32.mxu0 0.0
    %872 = vmatmul.mubr.f32.gmra.mrb[0].mxu0 %v757
    %v873 = vpop.f32.mrb[0].mxu0
    %v874 = vadd.f32 0.0, %v873
    %v875 = vpop.f32.mrb[0].mxu0
    %876 = vmatprep.mubr.f32.mxu0 0.0
    %877 = vmatmul.mubr.f32.gmra.mrb[0].mxu0 %v759
    %v878 = vpop.f32.mrb[0].mxu0
    %v879 = vadd.f32 0.0, %v878
    %v880 = vpop.f32.mrb[0].mxu0
    %881 = vdwg.mxu0
    %v882 = vmul.f32 %v844, 0.25
    %v883 = vmul.f32 %v849, 0.25
    %v884 = vmul.f32 %v854, 0.25
    %v885 = vmul.f32 %v859, 0.25
    %v886 = vmul.f32 %v864, 0.25
    %v887 = vmul.f32 %v869, 0.25
    %v888 = vmul.f32 %v874, 0.25
    %v889 = vmul.f32 %v879, 0.25
    %v890 = vsel %vm471, %v882, -inf
    %891 = vmax.xlane.f32.xlu0 %v890
    %v892 = vpop.xlane.xlu0 %891
    %v893 = vsel %vm471, %v883, -inf
    %894 = vmax.xlane.f32.xlu0 %v893
    %v895 = vpop.xlane.xlu0 %894
    %v896 = vsel %vm471, %v884, -inf
    %897 = vmax.xlane.f32.xlu0 %v896
    %v898 = vpop.xlane.xlu0 %897
    %v899 = vsel %vm471, %v885, -inf
    %900 = vmax.xlane.f32.xlu0 %v899
    %v901 = vpop.xlane.xlu0 %900
    %v902 = vsel %vm471, %v886, -inf
    %903 = vmax.xlane.f32.xlu0 %v902
    %v904 = vpop.xlane.xlu0 %903
    %v905 = vsel %vm471, %v887, -inf
    %906 = vmax.xlane.f32.xlu0 %v905
    %v907 = vpop.xlane.xlu0 %906
    %v908 = vsel %vm471, %v888, -inf
    %909 = vmax.xlane.f32.xlu0 %v908
    %v910 = vpop.xlane.xlu0 %909
    %v911 = vsel %vm471, %v889, -inf
    %912 = vmax.xlane.f32.xlu0 %v911
    %v913 = vpop.xlane.xlu0 %912
    %v914 = vsub.f32 %v882, %v892
    %v915 = vsub.f32 %v883, %v895
    %v916 = vsub.f32 %v884, %v898
    %v917 = vsub.f32 %v885, %v901
    %v918 = vsub.f32 %v886, %v904
    %v919 = vsub.f32 %v887, %v907
    %v920 = vsub.f32 %v888, %v910
    %v921 = vsub.f32 %v889, %v913
    %v922 = vmul.f32 %v914, 1.442695
    %v923 = vpow.pop %v922
    %v924 = vmul.f32 %v915, 1.442695
    %v925 = vpow.pop %v924
    %v926 = vmul.f32 %v916, 1.442695
    %v927 = vpow.pop %v926
    %v928 = vmul.f32 %v917, 1.442695
    %v929 = vpow.pop %v928
    %v930 = vmul.f32 %v918, 1.442695
    %v931 = vpow.pop %v930
    %v932 = vmul.f32 %v919, 1.442695
    %v933 = vpow.pop %v932
    %v934 = vmul.f32 %v920, 1.442695
    %v935 = vpow.pop %v934
    %v936 = vmul.f32 %v921, 1.442695
    %v937 = vpow.pop %v936
    %v938 = vsel %vm471, %v923, 0.0
    %939 = vadd.xlane.f32.xlu0 %v938
    %v940 = vpop.xlane.xlu0 %939
    %v941 = vsel %vm471, %v925, 0.0
    %942 = vadd.xlane.f32.xlu0 %v941
    %v943 = vpop.xlane.xlu0 %942
    %v944 = vsel %vm471, %v927, 0.0
    %945 = vadd.xlane.f32.xlu0 %v944
    %v946 = vpop.xlane.xlu0 %945
    %v947 = vsel %vm471, %v929, 0.0
    %948 = vadd.xlane.f32.xlu0 %v947
    %v949 = vpop.xlane.xlu0 %948
    %v950 = vsel %vm471, %v931, 0.0
    %951 = vadd.xlane.f32.xlu0 %v950
    %v952 = vpop.xlane.xlu0 %951
    %v953 = vsel %vm471, %v933, 0.0
    %954 = vadd.xlane.f32.xlu0 %v953
    %v955 = vpop.xlane.xlu0 %954
    %v956 = vsel %vm471, %v935, 0.0
    %957 = vadd.xlane.f32.xlu0 %v956
    %v958 = vpop.xlane.xlu0 %957
    %v959 = vsel %vm471, %v937, 0.0
    %960 = vadd.xlane.f32.xlu0 %v959
    %v961 = vpop.xlane.xlu0 %960
    %v962 = vrcp.pop %v940
    %v963 = vmul.f32 %v923, %v962
    %v964 = vrcp.pop %v943
    %v965 = vmul.f32 %v925, %v964
    %v966 = vrcp.pop %v946
    %v967 = vmul.f32 %v927, %v966
    %v968 = vrcp.pop %v949
    %v969 = vmul.f32 %v929, %v968
    %v970 = vrcp.pop %v952
    %v971 = vmul.f32 %v931, %v970
    %v972 = vrcp.pop %v955
    %v973 = vmul.f32 %v933, %v972
    %v974 = vrcp.pop %v958
    %v975 = vmul.f32 %v935, %v974
    %v976 = vrcp.pop %v961
    %v977 = vmul.f32 %v937, %v976
    %978 = vrot.lane.b32.xlu0 %v223, 48
    %v979 = vpop.permute.xlu0 %978
    %980 = vrot.lane.b32.xlu0 %v228, 48
    %v981 = vpop.permute.xlu0 %980
    %982 = vrot.lane.b32.xlu0 %v233, 48
    %v983 = vpop.permute.xlu0 %982
    %984 = vrot.lane.b32.xlu0 %v238, 48
    %v985 = vpop.permute.xlu0 %984
    %986 = vrot.lane.b32.xlu0 %v243, 48
    %v987 = vpop.permute.xlu0 %986
    %988 = vrot.lane.b32.xlu0 %v248, 48
    %v989 = vpop.permute.xlu0 %988
    %990 = vrot.lane.b32.xlu0 %v253, 48
    %v991 = vpop.permute.xlu0 %990
    %992 = vrot.lane.b32.xlu0 %v258, 48
    %v993 = vpop.permute.xlu0 %992
    %v1003 = vsel %vm471, %v963, 0
    %v1006 = vsel %vm471, %v965, 0
    %v1009 = vsel %vm471, %v967, 0
    %v1012 = vsel %vm471, %v969, 0
    %v1015 = vsel %vm471, %v971, 0
    %v1018 = vsel %vm471, %v973, 0
    %v1021 = vsel %vm471, %v975, 0
    %v1024 = vsel %vm471, %v977, 0
    %1026 = vmatprep.subr.mxu0 0.0
    %1027 = vmatpush1.msra.mxu0 %v979
    %1028 = vmatprep.subr.mxu0 0.0
    %1029 = vmatpush1.msra.mxu0 %v981
    %1030 = vmatprep.subr.mxu0 0.0
    %1031 = vmatpush1.msra.mxu0 %v983
    %1032 = vmatprep.subr.mxu0 0.0
    %1033 = vmatpush1.msra.mxu0 %v985
    %1034 = vmatprep.subr.mxu0 0.0
    %1035 = vmatpush1.msra.mxu0 %v987
    %1036 = vmatprep.subr.mxu0 0.0
    %1037 = vmatpush1.msra.mxu0 %v989
    %1038 = vmatprep.subr.mxu0 0.0
    %1039 = vmatpush1.msra.mxu0 %v991
    %1040 = vmatprep.subr.mxu0 0.0
    %1041 = vmatpush1.msra.mxu0 %v993
    %1042 = vmatprep.subr.mxu0 0.0
    %1043 = vmatpush1.msra.mxu0 0.0
    %1044 = vmatprep.subr.mxu0 0.0
    %1045 = vmatpush1.msra.mxu0 0.0
    %1046 = vmatprep.subr.mxu0 0.0
    %1047 = vmatpush1.msra.mxu0 0.0
    %1048 = vmatprep.subr.mxu0 0.0
    %1049 = vmatpush1.msra.mxu0 0.0
    %1050 = vmatprep.subr.mxu0 0.0
    %1051 = vmatpush1.msra.mxu0 0.0
    %1052 = vmatprep.subr.mxu0 0.0
    %1053 = vmatpush1.msra.mxu0 0.0
    %1054 = vmatprep.subr.mxu0 0.0
    %1055 = vmatpush1.msra.mxu0 0.0
    %1056 = vmatprep.subr.mxu0 0.0
    %1057 = vmatpush1.msra.mxu0 0.0
    %1058 = vmatprep.subr.mxu0 0.0
    %1059 = vmatpush1.msra.mxu0 0.0
    %1060 = vmatprep.subr.mxu0 0.0
    %1061 = vmatpush1.msra.mxu0 0.0
    %1062 = vmatprep.subr.mxu0 0.0
    %1063 = vmatpush1.msra.mxu0 0.0
    %1064 = vmatprep.subr.mxu0 0.0
    %1065 = vmatpush1.msra.mxu0 0.0
    %1066 = vmatprep.subr.mxu0 0.0
    %1067 = vmatpush1.msra.mxu0 0.0
    %1068 = vmatprep.subr.mxu0 0.0
    %1069 = vmatpush1.msra.mxu0 0.0
    %1070 = vmatprep.subr.mxu0 0.0
    %1071 = vmatpush1.msra.mxu0 0.0
    %1072 = vmatprep.subr.mxu0 0.0
    %1073 = vmatpush1.msra.mxu0 0.0
    %1074 = vmatprep.subr.mxu0 0.0
    %1075 = vmatpush1.msra.mxu0 0.0
    %1076 = vmatprep.subr.mxu0 0.0
    %1077 = vmatpush1.msra.mxu0 0.0
    %1078 = vmatprep.subr.mxu0 0.0
    %1079 = vmatpush1.msra.mxu0 0.0
    %1080 = vmatprep.subr.mxu0 0.0
    %1081 = vmatpush1.msra.mxu0 0.0
    %1082 = vmatprep.subr.mxu0 0.0
    %1083 = vmatpush1.msra.mxu0 0.0
    %1084 = vmatprep.subr.mxu0 0.0
    %1085 = vmatpush1.msra.mxu0 0.0
    %1086 = vmatprep.subr.mxu0 0.0
    %1087 = vmatpush1.msra.mxu0 0.0
    %1088 = vmatprep.subr.mxu0 0.0
    %1089 = vmatpush1.msra.mxu0 0.0
    %1090 = vmatprep.mubr.f32.mxu0 0.0
    %1091 = vmatmul.mubr.f32.gmra.mrb[0].mxu0 %v1003
    %v1092 = vpop.f32.mrb[0].mxu0
    %v1093 = vadd.f32 0.0, %v1092
    %v1094 = vpop.f32.mrb[0].mxu0
    %1095 = vmatprep.mubr.f32.mxu0 0.0
    %1096 = vmatmul.mubr.f32.gmra.mrb[0].mxu0 %v1006
    %v1097 = vpop.f32.mrb[0].mxu0
    %v1098 = vadd.f32 0.0, %v1097
    %v1099 = vpop.f32.mrb[0].mxu0
    %1100 = vmatprep.mubr.f32.mxu0 0.0
    %1101 = vmatmul.mubr.f32.gmra.mrb[0].mxu0 %v1009
    %v1102 = vpop.f32.mrb[0].mxu0
    %v1103 = vadd.f32 0.0, %v1102
    %v1104 = vpop.f32.mrb[0].mxu0
    %1105 = vmatprep.mubr.f32.mxu0 0.0
    %1106 = vmatmul.mubr.f32.gmra.mrb[0].mxu0 %v1012
    %v1107 = vpop.f32.mrb[0].mxu0
    %v1108 = vadd.f32 0.0, %v1107
    %v1109 = vpop.f32.mrb[0].mxu0
    %1110 = vmatprep.mubr.f32.mxu0 0.0
    %1111 = vmatmul.mubr.f32.gmra.mrb[0].mxu0 %v1015
    %v1112 = vpop.f32.mrb[0].mxu0
    %v1113 = vadd.f32 0.0, %v1112
    %v1114 = vpop.f32.mrb[0].mxu0
    %1115 = vmatprep.mubr.f32.mxu0 0.0
    %1116 = vmatmul.mubr.f32.gmra.mrb[0].mxu0 %v1018
    %v1117 = vpop.f32.mrb[0].mxu0
    %v1118 = vadd.f32 0.0, %v1117
    %v1119 = vpop.f32.mrb[0].mxu0
    %1120 = vmatprep.mubr.f32.mxu0 0.0
    %1121 = vmatmul.mubr.f32.gmra.mrb[0].mxu0 %v1021
    %v1122 = vpop.f32.mrb[0].mxu0
    %v1123 = vadd.f32 0.0, %v1122
    %v1124 = vpop.f32.mrb[0].mxu0
    %1125 = vmatprep.mubr.f32.mxu0 0.0
    %1126 = vmatmul.mubr.f32.gmra.mrb[0].mxu0 %v1024
    %v1127 = vpop.f32.mrb[0].mxu0
    %v1128 = vadd.f32 0.0, %v1127
    %v1129 = vpop.f32.mrb[0].mxu0
    %1130 = vdwg.mxu0
    %1139 = vrot.lane.b32.xlu0 %v1093, 16
    %v1140 = vpop.permute.xlu0 %1139
    %1141 = vrot.lane.b32.xlu0 %v1098, 16
    %v1142 = vpop.permute.xlu0 %1141
    %1143 = vrot.lane.b32.xlu0 %v1103, 16
    %v1144 = vpop.permute.xlu0 %1143
    %1145 = vrot.lane.b32.xlu0 %v1108, 16
    %v1146 = vpop.permute.xlu0 %1145
    %1147 = vrot.lane.b32.xlu0 %v1113, 16
    %v1148 = vpop.permute.xlu0 %1147
    %1149 = vrot.lane.b32.xlu0 %v1118, 16
    %v1150 = vpop.permute.xlu0 %1149
    %1151 = vrot.lane.b32.xlu0 %v1123, 16
    %v1152 = vpop.permute.xlu0 %1151
    %1153 = vrot.lane.b32.xlu0 %v1128, 16
    %v1154 = vpop.permute.xlu0 %1153
    %v1163 = vsel %vm325, %v675, %v1140
    %v1164 = vsel %vm325, %v680, %v1142
    %v1165 = vsel %vm325, %v685, %v1144
    %v1166 = vsel %vm325, %v690, %v1146
    %v1167 = vsel %vm325, %v695, %v1148
    %v1168 = vsel %vm325, %v700, %v1150
    %v1169 = vsel %vm325, %v705, %v1152
    %v1170 = vsel %vm325, %v710, %v1154
    %1179 = vrot.lane.b32.xlu0 %v263, 96
    %v1180 = vpop.permute.xlu0 %1179
    %1181 = vrot.lane.b32.xlu0 %v268, 96
    %v1182 = vpop.permute.xlu0 %1181
    %1183 = vrot.lane.b32.xlu0 %v273, 96
    %v1184 = vpop.permute.xlu0 %1183
    %1185 = vrot.lane.b32.xlu0 %v278, 96
    %v1186 = vpop.permute.xlu0 %1185
    %1187 = vrot.lane.b32.xlu0 %v283, 96
    %v1188 = vpop.permute.xlu0 %1187
    %1189 = vrot.lane.b32.xlu0 %v288, 96
    %v1190 = vpop.permute.xlu0 %1189
    %1191 = vrot.lane.b32.xlu0 %v293, 96
    %v1192 = vpop.permute.xlu0 %1191
    %1193 = vrot.lane.b32.xlu0 %v298, 96
    %v1194 = vpop.permute.xlu0 %1193
    %v1195 = vsel %vm325, %v263, 0
    %v1197 = vsel %vm325, %v268, 0
    %v1199 = vsel %vm325, %v273, 0
    %v1201 = vsel %vm325, %v278, 0
    %v1203 = vsel %vm325, %v283, 0
    %v1205 = vsel %vm325, %v288, 0
    %v1207 = vsel %vm325, %v293, 0
    %v1209 = vsel %vm325, %v298, 0
    %v1211 = vsel %vm325, %v1180, 0
    %v1213 = vsel %vm325, %v1182, 0
    %v1215 = vsel %vm325, %v1184, 0
    %v1217 = vsel %vm325, %v1186, 0
    %v1219 = vsel %vm325, %v1188, 0
    %v1221 = vsel %vm325, %v1190, 0
    %v1223 = vsel %vm325, %v1192, 0
    %v1225 = vsel %vm325, %v1194, 0
    %1227 = vmatprep.subr.mxu0 0.0
    %1228 = vmatpush1.xpose.msra.mxu0 %v1211
    %1229 = vmatprep.subr.mxu0 0.0
    %1230 = vmatpush1.xpose.msra.mxu0 %v1213
    %1231 = vmatprep.subr.mxu0 0.0
    %1232 = vmatpush1.xpose.msra.mxu0 %v1215
    %1233 = vmatprep.subr.mxu0 0.0
    %1234 = vmatpush1.xpose.msra.mxu0 %v1217
    %1235 = vmatprep.subr.mxu0 0.0
    %1236 = vmatpush1.xpose.msra.mxu0 %v1219
    %1237 = vmatprep.subr.mxu0 0.0
    %1238 = vmatpush1.xpose.msra.mxu0 %v1221
    %1239 = vmatprep.subr.mxu0 0.0
    %1240 = vmatpush1.xpose.msra.mxu0 %v1223
    %1241 = vmatprep.subr.mxu0 0.0
    %1242 = vmatpush1.xpose.msra.mxu0 %v1225
    %1243 = vmatprep.subr.mxu0 0.0
    %1244 = vmatpush1.xpose.msra.mxu0 0.0
    %1245 = vmatprep.subr.mxu0 0.0
    %1246 = vmatpush1.xpose.msra.mxu0 0.0
    %1247 = vmatprep.subr.mxu0 0.0
    %1248 = vmatpush1.xpose.msra.mxu0 0.0
    %1249 = vmatprep.subr.mxu0 0.0
    %1250 = vmatpush1.xpose.msra.mxu0 0.0
    %1251 = vmatprep.subr.mxu0 0.0
    %1252 = vmatpush1.xpose.msra.mxu0 0.0
    %1253 = vmatprep.subr.mxu0 0.0
    %1254 = vmatpush1.xpose.msra.mxu0 0.0
    %1255 = vmatprep.subr.mxu0 0.0
    %1256 = vmatpush1.xpose.msra.mxu0 0.0
    %1257 = vmatprep.subr.mxu0 0.0
    %1258 = vmatpush1.xpose.msra.mxu0 0.0
    %1259 = vmatprep.subr.mxu0 0.0
    %1260 = vmatpush1.xpose.msra.mxu0 0.0
    %1261 = vmatprep.subr.mxu0 0.0
    %1262 = vmatpush1.xpose.msra.mxu0 0.0
    %1263 = vmatprep.subr.mxu0 0.0
    %1264 = vmatpush1.xpose.msra.mxu0 0.0
    %1265 = vmatprep.subr.mxu0 0.0
    %1266 = vmatpush1.xpose.msra.mxu0 0.0
    %1267 = vmatprep.subr.mxu0 0.0
    %1268 = vmatpush1.xpose.msra.mxu0 0.0
    %1269 = vmatprep.subr.mxu0 0.0
    %1270 = vmatpush1.xpose.msra.mxu0 0.0
    %1271 = vmatprep.subr.mxu0 0.0
    %1272 = vmatpush1.xpose.msra.mxu0 0.0
    %1273 = vmatprep.subr.mxu0 0.0
    %1274 = vmatpush1.xpose.msra.mxu0 0.0
    %1275 = vmatprep.subr.mxu0 0.0
    %1276 = vmatpush1.xpose.msra.mxu0 0.0
    %1277 = vmatprep.subr.mxu0 0.0
    %1278 = vmatpush1.xpose.msra.mxu0 0.0
    %1279 = vmatprep.subr.mxu0 0.0
    %1280 = vmatpush1.xpose.msra.mxu0 0.0
    %1281 = vmatprep.subr.mxu0 0.0
    %1282 = vmatpush1.xpose.msra.mxu0 0.0
    %1283 = vmatprep.subr.mxu0 0.0
    %1284 = vmatpush1.xpose.msra.mxu0 0.0
    %1285 = vmatprep.subr.mxu0 0.0
    %1286 = vmatpush1.xpose.msra.mxu0 0.0
    %1287 = vmatprep.subr.mxu0 0.0
    %1288 = vmatpush1.xpose.msra.mxu0 0.0
    %1289 = vmatprep.subr.mxu0 0.0
    %1290 = vmatpush1.xpose.msra.mxu0 0.0
    %1291 = vmatprep.mubr.f32.mxu0 0.0
    %1292 = vmatmul.mubr.f32.gmra.mrb[0].mxu0 %v1195
    %v1293 = vpop.f32.mrb[0].mxu0
    %v1294 = vadd.f32 0.0, %v1293
    %v1295 = vpop.f32.mrb[0].mxu0
    %1296 = vmatprep.mubr.f32.mxu0 0.0
    %1297 = vmatmul.mubr.f32.gmra.mrb[0].mxu0 %v1197
    %v1298 = vpop.f32.mrb[0].mxu0
    %v1299 = vadd.f32 0.0, %v1298
    %v1300 = vpop.f32.mrb[0].mxu0
    %1301 = vmatprep.mubr.f32.mxu0 0.0
    %1302 = vmatmul.mubr.f32.gmra.mrb[0].mxu0 %v1199
    %v1303 = vpop.f32.mrb[0].mxu0
    %v1304 = vadd.f32 0.0, %v1303
    %v1305 = vpop.f32.mrb[0].mxu0
    %1306 = vmatprep.mubr.f32.mxu0 0.0
    %1307 = vmatmul.mubr.f32.gmra.mrb[0].mxu0 %v1201
    %v1308 = vpop.f32.mrb[0].mxu0
    %v1309 = vadd.f32 0.0, %v1308
    %v1310 = vpop.f32.mrb[0].mxu0
    %1311 = vmatprep.mubr.f32.mxu0 0.0
    %1312 = vmatmul.mubr.f32.gmra.mrb[0].mxu0 %v1203
    %v1313 = vpop.f32.mrb[0].mxu0
    %v1314 = vadd.f32 0.0, %v1313
    %v1315 = vpop.f32.mrb[0].mxu0
    %1316 = vmatprep.mubr.f32.mxu0 0.0
    %1317 = vmatmul.mubr.f32.gmra.mrb[0].mxu0 %v1205
    %v1318 = vpop.f32.mrb[0].mxu0
    %v1319 = vadd.f32 0.0, %v1318
    %v1320 = vpop.f32.mrb[0].mxu0
    %1321 = vmatprep.mubr.f32.mxu0 0.0
    %1322 = vmatmul.mubr.f32.gmra.mrb[0].mxu0 %v1207
    %v1323 = vpop.f32.mrb[0].mxu0
    %v1324 = vadd.f32 0.0, %v1323
    %v1325 = vpop.f32.mrb[0].mxu0
    %1326 = vmatprep.mubr.f32.mxu0 0.0
    %1327 = vmatmul.mubr.f32.gmra.mrb[0].mxu0 %v1209
    %v1328 = vpop.f32.mrb[0].mxu0
    %v1329 = vadd.f32 0.0, %v1328
    %v1330 = vpop.f32.mrb[0].mxu0
    %1331 = vdwg.mxu0
    %v1332 = vmul.f32 %v1294, 0.25
    %v1333 = vmul.f32 %v1299, 0.25
    %v1334 = vmul.f32 %v1304, 0.25
    %v1335 = vmul.f32 %v1309, 0.25
    %v1336 = vmul.f32 %v1314, 0.25
    %v1337 = vmul.f32 %v1319, 0.25
    %v1338 = vmul.f32 %v1324, 0.25
    %v1339 = vmul.f32 %v1329, 0.25
    %v1340 = vsel %vm471, %v1332, -inf
    %1341 = vmax.xlane.f32.xlu0 %v1340
    %v1342 = vpop.xlane.xlu0 %1341
    %v1343 = vsel %vm471, %v1333, -inf
    %1344 = vmax.xlane.f32.xlu0 %v1343
    %v1345 = vpop.xlane.xlu0 %1344
    %v1346 = vsel %vm471, %v1334, -inf
    %1347 = vmax.xlane.f32.xlu0 %v1346
    %v1348 = vpop.xlane.xlu0 %1347
    %v1349 = vsel %vm471, %v1335, -inf
    %1350 = vmax.xlane.f32.xlu0 %v1349
    %v1351 = vpop.xlane.xlu0 %1350
    %v1352 = vsel %vm471, %v1336, -inf
    %1353 = vmax.xlane.f32.xlu0 %v1352
    %v1354 = vpop.xlane.xlu0 %1353
    %v1355 = vsel %vm471, %v1337, -inf
    %1356 = vmax.xlane.f32.xlu0 %v1355
    %v1357 = vpop.xlane.xlu0 %1356
    %v1358 = vsel %vm471, %v1338, -inf
    %1359 = vmax.xlane.f32.xlu0 %v1358
    %v1360 = vpop.xlane.xlu0 %1359
    %v1361 = vsel %vm471, %v1339, -inf
    %1362 = vmax.xlane.f32.xlu0 %v1361
    %v1363 = vpop.xlane.xlu0 %1362
    %v1364 = vsub.f32 %v1332, %v1342
    %v1365 = vsub.f32 %v1333, %v1345
    %v1366 = vsub.f32 %v1334, %v1348
    %v1367 = vsub.f32 %v1335, %v1351
    %v1368 = vsub.f32 %v1336, %v1354
    %v1369 = vsub.f32 %v1337, %v1357
    %v1370 = vsub.f32 %v1338, %v1360
    %v1371 = vsub.f32 %v1339, %v1363
    %v1372 = vmul.f32 %v1364, 1.442695
    %v1373 = vpow.pop %v1372
    %v1374 = vmul.f32 %v1365, 1.442695
    %v1375 = vpow.pop %v1374
    %v1376 = vmul.f32 %v1366, 1.442695
    %v1377 = vpow.pop %v1376
    %v1378 = vmul.f32 %v1367, 1.442695
    %v1379 = vpow.pop %v1378
    %v1380 = vmul.f32 %v1368, 1.442695
    %v1381 = vpow.pop %v1380
    %v1382 = vmul.f32 %v1369, 1.442695
    %v1383 = vpow.pop %v1382
    %v1384 = vmul.f32 %v1370, 1.442695
    %v1385 = vpow.pop %v1384
    %v1386 = vmul.f32 %v1371, 1.442695
    %v1387 = vpow.pop %v1386
    %v1388 = vsel %vm471, %v1373, 0.0
    %1389 = vadd.xlane.f32.xlu0 %v1388
    %v1390 = vpop.xlane.xlu0 %1389
    %v1391 = vsel %vm471, %v1375, 0.0
    %1392 = vadd.xlane.f32.xlu0 %v1391
    %v1393 = vpop.xlane.xlu0 %1392
    %v1394 = vsel %vm471, %v1377, 0.0
    %1395 = vadd.xlane.f32.xlu0 %v1394
    %v1396 = vpop.xlane.xlu0 %1395
    %v1397 = vsel %vm471, %v1379, 0.0
    %1398 = vadd.xlane.f32.xlu0 %v1397
    %v1399 = vpop.xlane.xlu0 %1398
    %v1400 = vsel %vm471, %v1381, 0.0
    %1401 = vadd.xlane.f32.xlu0 %v1400
    %v1402 = vpop.xlane.xlu0 %1401
    %v1403 = vsel %vm471, %v1383, 0.0
    %1404 = vadd.xlane.f32.xlu0 %v1403
    %v1405 = vpop.xlane.xlu0 %1404
    %v1406 = vsel %vm471, %v1385, 0.0
    %1407 = vadd.xlane.f32.xlu0 %v1406
    %v1408 = vpop.xlane.xlu0 %1407
    %v1409 = vsel %vm471, %v1387, 0.0
    %1410 = vadd.xlane.f32.xlu0 %v1409
    %v1411 = vpop.xlane.xlu0 %1410
    %v1412 = vrcp.pop %v1390
    %v1413 = vmul.f32 %v1373, %v1412
    %v1414 = vrcp.pop %v1393
    %v1415 = vmul.f32 %v1375, %v1414
    %v1416 = vrcp.pop %v1396
    %v1417 = vmul.f32 %v1377, %v1416
    %v1418 = vrcp.pop %v1399
    %v1419 = vmul.f32 %v1379, %v1418
    %v1420 = vrcp.pop %v1402
    %v1421 = vmul.f32 %v1381, %v1420
    %v1422 = vrcp.pop %v1405
    %v1423 = vmul.f32 %v1383, %v1422
    %v1424 = vrcp.pop %v1408
    %v1425 = vmul.f32 %v1385, %v1424
    %v1426 = vrcp.pop %v1411
    %v1427 = vmul.f32 %v1387, %v1426
    %1428 = vrot.lane.b32.xlu0 %v263, 64
    %v1429 = vpop.permute.xlu0 %1428
    %1430 = vrot.lane.b32.xlu0 %v268, 64
    %v1431 = vpop.permute.xlu0 %1430
    %1432 = vrot.lane.b32.xlu0 %v273, 64
    %v1433 = vpop.permute.xlu0 %1432
    %1434 = vrot.lane.b32.xlu0 %v278, 64
    %v1435 = vpop.permute.xlu0 %1434
    %1436 = vrot.lane.b32.xlu0 %v283, 64
    %v1437 = vpop.permute.xlu0 %1436
    %1438 = vrot.lane.b32.xlu0 %v288, 64
    %v1439 = vpop.permute.xlu0 %1438
    %1440 = vrot.lane.b32.xlu0 %v293, 64
    %v1441 = vpop.permute.xlu0 %1440
    %1442 = vrot.lane.b32.xlu0 %v298, 64
    %v1443 = vpop.permute.xlu0 %1442
    %v1453 = vsel %vm471, %v1413, 0
    %v1456 = vsel %vm471, %v1415, 0
    %v1459 = vsel %vm471, %v1417, 0
    %v1462 = vsel %vm471, %v1419, 0
    %v1465 = vsel %vm471, %v1421, 0
    %v1468 = vsel %vm471, %v1423, 0
    %v1471 = vsel %vm471, %v1425, 0
    %v1474 = vsel %vm471, %v1427, 0
    %1476 = vmatprep.subr.mxu0 0.0
    %1477 = vmatpush1.msra.mxu0 %v1429
    %1478 = vmatprep.subr.mxu0 0.0
    %1479 = vmatpush1.msra.mxu0 %v1431
    %1480 = vmatprep.subr.mxu0 0.0
    %1481 = vmatpush1.msra.mxu0 %v1433
    %1482 = vmatprep.subr.mxu0 0.0
    %1483 = vmatpush1.msra.mxu0 %v1435
    %1484 = vmatprep.subr.mxu0 0.0
    %1485 = vmatpush1.msra.mxu0 %v1437
    %1486 = vmatprep.subr.mxu0 0.0
    %1487 = vmatpush1.msra.mxu0 %v1439
    %1488 = vmatprep.subr.mxu0 0.0
    %1489 = vmatpush1.msra.mxu0 %v1441
    %1490 = vmatprep.subr.mxu0 0.0
    %1491 = vmatpush1.msra.mxu0 %v1443
    %1492 = vmatprep.subr.mxu0 0.0
    %1493 = vmatpush1.msra.mxu0 0.0
    %1494 = vmatprep.subr.mxu0 0.0
    %1495 = vmatpush1.msra.mxu0 0.0
    %1496 = vmatprep.subr.mxu0 0.0
    %1497 = vmatpush1.msra.mxu0 0.0
    %1498 = vmatprep.subr.mxu0 0.0
    %1499 = vmatpush1.msra.mxu0 0.0
    %1500 = vmatprep.subr.mxu0 0.0
    %1501 = vmatpush1.msra.mxu0 0.0
    %1502 = vmatprep.subr.mxu0 0.0
    %1503 = vmatpush1.msra.mxu0 0.0
    %1504 = vmatprep.subr.mxu0 0.0
    %1505 = vmatpush1.msra.mxu0 0.0
    %1506 = vmatprep.subr.mxu0 0.0
    %1507 = vmatpush1.msra.mxu0 0.0
    %1508 = vmatprep.subr.mxu0 0.0
    %1509 = vmatpush1.msra.mxu0 0.0
    %1510 = vmatprep.subr.mxu0 0.0
    %1511 = vmatpush1.msra.mxu0 0.0
    %1512 = vmatprep.subr.mxu0 0.0
    %1513 = vmatpush1.msra.mxu0 0.0
    %1514 = vmatprep.subr.mxu0 0.0
    %1515 = vmatpush1.msra.mxu0 0.0
    %1516 = vmatprep.subr.mxu0 0.0
    %1517 = vmatpush1.msra.mxu0 0.0
    %1518 = vmatprep.subr.mxu0 0.0
    %1519 = vmatpush1.msra.mxu0 0.0
    %1520 = vmatprep.subr.mxu0 0.0
    %1521 = vmatpush1.msra.mxu0 0.0
    %1522 = vmatprep.subr.mxu0 0.0
    %1523 = vmatpush1.msra.mxu0 0.0
    %1524 = vmatprep.subr.mxu0 0.0
    %1525 = vmatpush1.msra.mxu0 0.0
    %1526 = vmatprep.subr.mxu0 0.0
    %1527 = vmatpush1.msra.mxu0 0.0
    %1528 = vmatprep.subr.mxu0 0.0
    %1529 = vmatpush1.msra.mxu0 0.0
    %1530 = vmatprep.subr.mxu0 0.0
    %1531 = vmatpush1.msra.mxu0 0.0
    %1532 = vmatprep.subr.mxu0 0.0
    %1533 = vmatpush1.msra.mxu0 0.0
    %1534 = vmatprep.subr.mxu0 0.0
    %1535 = vmatpush1.msra.mxu0 0.0
    %1536 = vmatprep.subr.mxu0 0.0
    %1537 = vmatpush1.msra.mxu0 0.0
    %1538 = vmatprep.subr.mxu0 0.0
    %1539 = vmatpush1.msra.mxu0 0.0
    %1540 = vmatprep.mubr.f32.mxu0 0.0
    %1541 = vmatmul.mubr.f32.gmra.mrb[0].mxu0 %v1453
    %v1542 = vpop.f32.mrb[0].mxu0
    %v1543 = vadd.f32 0.0, %v1542
    %v1544 = vpop.f32.mrb[0].mxu0
    %1545 = vmatprep.mubr.f32.mxu0 0.0
    %1546 = vmatmul.mubr.f32.gmra.mrb[0].mxu0 %v1456
    %v1547 = vpop.f32.mrb[0].mxu0
    %v1548 = vadd.f32 0.0, %v1547
    %v1549 = vpop.f32.mrb[0].mxu0
    %1550 = vmatprep.mubr.f32.mxu0 0.0
    %1551 = vmatmul.mubr.f32.gmra.mrb[0].mxu0 %v1459
    %v1552 = vpop.f32.mrb[0].mxu0
    %v1553 = vadd.f32 0.0, %v1552
    %v1554 = vpop.f32.mrb[0].mxu0
    %1555 = vmatprep.mubr.f32.mxu0 0.0
    %1556 = vmatmul.mubr.f32.gmra.mrb[0].mxu0 %v1462
    %v1557 = vpop.f32.mrb[0].mxu0
    %v1558 = vadd.f32 0.0, %v1557
    %v1559 = vpop.f32.mrb[0].mxu0
    %1560 = vmatprep.mubr.f32.mxu0 0.0
    %1561 = vmatmul.mubr.f32.gmra.mrb[0].mxu0 %v1465
    %v1562 = vpop.f32.mrb[0].mxu0
    %v1563 = vadd.f32 0.0, %v1562
    %v1564 = vpop.f32.mrb[0].mxu0
    %1565 = vmatprep.mubr.f32.mxu0 0.0
    %1566 = vmatmul.mubr.f32.gmra.mrb[0].mxu0 %v1468
    %v1567 = vpop.f32.mrb[0].mxu0
    %v1568 = vadd.f32 0.0, %v1567
    %v1569 = vpop.f32.mrb[0].mxu0
    %1570 = vmatprep.mubr.f32.mxu0 0.0
    %1571 = vmatmul.mubr.f32.gmra.mrb[0].mxu0 %v1471
    %v1572 = vpop.f32.mrb[0].mxu0
    %v1573 = vadd.f32 0.0, %v1572
    %v1574 = vpop.f32.mrb[0].mxu0
    %1575 = vmatprep.mubr.f32.mxu0 0.0
    %1576 = vmatmul.mubr.f32.gmra.mrb[0].mxu0 %v1474
    %v1577 = vpop.f32.mrb[0].mxu0
    %v1578 = vadd.f32 0.0, %v1577
    %v1579 = vpop.f32.mrb[0].mxu0
    %1580 = vdwg.mxu0
    %1581 = vrot.lane.b32.xlu0 %v263, 112
    %v1582 = vpop.permute.xlu0 %1581
    %1583 = vrot.lane.b32.xlu0 %v268, 112
    %v1584 = vpop.permute.xlu0 %1583
    %1585 = vrot.lane.b32.xlu0 %v273, 112
    %v1586 = vpop.permute.xlu0 %1585
    %1587 = vrot.lane.b32.xlu0 %v278, 112
    %v1588 = vpop.permute.xlu0 %1587
    %1589 = vrot.lane.b32.xlu0 %v283, 112
    %v1590 = vpop.permute.xlu0 %1589
    %1591 = vrot.lane.b32.xlu0 %v288, 112
    %v1592 = vpop.permute.xlu0 %1591
    %1593 = vrot.lane.b32.xlu0 %v293, 112
    %v1594 = vpop.permute.xlu0 %1593
    %1595 = vrot.lane.b32.xlu0 %v298, 112
    %v1596 = vpop.permute.xlu0 %1595
    %1597 = vrot.lane.b32.xlu0 %v263, 80
    %v1598 = vpop.permute.xlu0 %1597
    %1599 = vrot.lane.b32.xlu0 %v268, 80
    %v1600 = vpop.permute.xlu0 %1599
    %1601 = vrot.lane.b32.xlu0 %v273, 80
    %v1602 = vpop.permute.xlu0 %1601
    %1603 = vrot.lane.b32.xlu0 %v278, 80
    %v1604 = vpop.permute.xlu0 %1603
    %1605 = vrot.lane.b32.xlu0 %v283, 80
    %v1606 = vpop.permute.xlu0 %1605
    %1607 = vrot.lane.b32.xlu0 %v288, 80
    %v1608 = vpop.permute.xlu0 %1607
    %1609 = vrot.lane.b32.xlu0 %v293, 80
    %v1610 = vpop.permute.xlu0 %1609
    %1611 = vrot.lane.b32.xlu0 %v298, 80
    %v1612 = vpop.permute.xlu0 %1611
    %v1613 = vsel %vm325, %v1582, 0
    %v1615 = vsel %vm325, %v1584, 0
    %v1617 = vsel %vm325, %v1586, 0
    %v1619 = vsel %vm325, %v1588, 0
    %v1621 = vsel %vm325, %v1590, 0
    %v1623 = vsel %vm325, %v1592, 0
    %v1625 = vsel %vm325, %v1594, 0
    %v1627 = vsel %vm325, %v1596, 0
    %v1629 = vsel %vm325, %v1598, 0
    %v1631 = vsel %vm325, %v1600, 0
    %v1633 = vsel %vm325, %v1602, 0
    %v1635 = vsel %vm325, %v1604, 0
    %v1637 = vsel %vm325, %v1606, 0
    %v1639 = vsel %vm325, %v1608, 0
    %v1641 = vsel %vm325, %v1610, 0
    %v1643 = vsel %vm325, %v1612, 0
    %1645 = vmatprep.subr.mxu0 0.0
    %1646 = vmatpush1.xpose.msra.mxu0 %v1629
    %1647 = vmatprep.subr.mxu0 0.0
    %1648 = vmatpush1.xpose.msra.mxu0 %v1631
    %1649 = vmatprep.subr.mxu0 0.0
    %1650 = vmatpush1.xpose.msra.mxu0 %v1633
    %1651 = vmatprep.subr.mxu0 0.0
    %1652 = vmatpush1.xpose.msra.mxu0 %v1635
    %1653 = vmatprep.subr.mxu0 0.0
    %1654 = vmatpush1.xpose.msra.mxu0 %v1637
    %1655 = vmatprep.subr.mxu0 0.0
    %1656 = vmatpush1.xpose.msra.mxu0 %v1639
    %1657 = vmatprep.subr.mxu0 0.0
    %1658 = vmatpush1.xpose.msra.mxu0 %v1641
    %1659 = vmatprep.subr.mxu0 0.0
    %1660 = vmatpush1.xpose.msra.mxu0 %v1643
    %1661 = vmatprep.subr.mxu0 0.0
    %1662 = vmatpush1.xpose.msra.mxu0 0.0
    %1663 = vmatprep.subr.mxu0 0.0
    %1664 = vmatpush1.xpose.msra.mxu0 0.0
    %1665 = vmatprep.subr.mxu0 0.0
    %1666 = vmatpush1.xpose.msra.mxu0 0.0
    %1667 = vmatprep.subr.mxu0 0.0
    %1668 = vmatpush1.xpose.msra.mxu0 0.0
    %1669 = vmatprep.subr.mxu0 0.0
    %1670 = vmatpush1.xpose.msra.mxu0 0.0
    %1671 = vmatprep.subr.mxu0 0.0
    %1672 = vmatpush1.xpose.msra.mxu0 0.0
    %1673 = vmatprep.subr.mxu0 0.0
    %1674 = vmatpush1.xpose.msra.mxu0 0.0
    %1675 = vmatprep.subr.mxu0 0.0
    %1676 = vmatpush1.xpose.msra.mxu0 0.0
    %1677 = vmatprep.subr.mxu0 0.0
    %1678 = vmatpush1.xpose.msra.mxu0 0.0
    %1679 = vmatprep.subr.mxu0 0.0
    %1680 = vmatpush1.xpose.msra.mxu0 0.0
    %1681 = vmatprep.subr.mxu0 0.0
    %1682 = vmatpush1.xpose.msra.mxu0 0.0
    %1683 = vmatprep.subr.mxu0 0.0
    %1684 = vmatpush1.xpose.msra.mxu0 0.0
    %1685 = vmatprep.subr.mxu0 0.0
    %1686 = vmatpush1.xpose.msra.mxu0 0.0
    %1687 = vmatprep.subr.mxu0 0.0
    %1688 = vmatpush1.xpose.msra.mxu0 0.0
    %1689 = vmatprep.subr.mxu0 0.0
    %1690 = vmatpush1.xpose.msra.mxu0 0.0
    %1691 = vmatprep.subr.mxu0 0.0
    %1692 = vmatpush1.xpose.msra.mxu0 0.0
    %1693 = vmatprep.subr.mxu0 0.0
    %1694 = vmatpush1.xpose.msra.mxu0 0.0
    %1695 = vmatprep.subr.mxu0 0.0
    %1696 = vmatpush1.xpose.msra.mxu0 0.0
    %1697 = vmatprep.subr.mxu0 0.0
    %1698 = vmatpush1.xpose.msra.mxu0 0.0
    %1699 = vmatprep.subr.mxu0 0.0
    %1700 = vmatpush1.xpose.msra.mxu0 0.0
    %1701 = vmatprep.subr.mxu0 0.0
    %1702 = vmatpush1.xpose.msra.mxu0 0.0
    %1703 = vmatprep.subr.mxu0 0.0
    %1704 = vmatpush1.xpose.msra.mxu0 0.0
    %1705 = vmatprep.subr.mxu0 0.0
    %1706 = vmatpush1.xpose.msra.mxu0 0.0
    %1707 = vmatprep.subr.mxu0 0.0
    %1708 = vmatpush1.xpose.msra.mxu0 0.0
    %1709 = vmatprep.mubr.f32.mxu0 0.0
    %1710 = vmatmul.mubr.f32.gmra.mrb[0].mxu0 %v1613
    %v1711 = vpop.f32.mrb[0].mxu0
    %v1712 = vadd.f32 0.0, %v1711
    %v1713 = vpop.f32.mrb[0].mxu0
    %1714 = vmatprep.mubr.f32.mxu0 0.0
    %1715 = vmatmul.mubr.f32.gmra.mrb[0].mxu0 %v1615
    %v1716 = vpop.f32.mrb[0].mxu0
    %v1717 = vadd.f32 0.0, %v1716
    %v1718 = vpop.f32.mrb[0].mxu0
    %1719 = vmatprep.mubr.f32.mxu0 0.0
    %1720 = vmatmul.mubr.f32.gmra.mrb[0].mxu0 %v1617
    %v1721 = vpop.f32.mrb[0].mxu0
    %v1722 = vadd.f32 0.0, %v1721
    %v1723 = vpop.f32.mrb[0].mxu0
    %1724 = vmatprep.mubr.f32.mxu0 0.0
    %1725 = vmatmul.mubr.f32.gmra.mrb[0].mxu0 %v1619
    %v1726 = vpop.f32.mrb[0].mxu0
    %v1727 = vadd.f32 0.0, %v1726
    %v1728 = vpop.f32.mrb[0].mxu0
    %1729 = vmatprep.mubr.f32.mxu0 0.0
    %1730 = vmatmul.mubr.f32.gmra.mrb[0].mxu0 %v1621
    %v1731 = vpop.f32.mrb[0].mxu0
    %v1732 = vadd.f32 0.0, %v1731
    %v1733 = vpop.f32.mrb[0].mxu0
    %1734 = vmatprep.mubr.f32.mxu0 0.0
    %1735 = vmatmul.mubr.f32.gmra.mrb[0].mxu0 %v1623
    %v1736 = vpop.f32.mrb[0].mxu0
    %v1737 = vadd.f32 0.0, %v1736
    %v1738 = vpop.f32.mrb[0].mxu0
    %1739 = vmatprep.mubr.f32.mxu0 0.0
    %1740 = vmatmul.mubr.f32.gmra.mrb[0].mxu0 %v1625
    %v1741 = vpop.f32.mrb[0].mxu0
    %v1742 = vadd.f32 0.0, %v1741
    %v1743 = vpop.f32.mrb[0].mxu0
    %1744 = vmatprep.mubr.f32.mxu0 0.0
    %1745 = vmatmul.mubr.f32.gmra.mrb[0].mxu0 %v1627
    %v1746 = vpop.f32.mrb[0].mxu0
    %v1747 = vadd.f32 0.0, %v1746
    %v1748 = vpop.f32.mrb[0].mxu0
    %1749 = vdwg.mxu0
    %v1750 = vmul.f32 %v1712, 0.25
    %v1751 = vmul.f32 %v1717, 0.25
    %v1752 = vmul.f32 %v1722, 0.25
    %v1753 = vmul.f32 %v1727, 0.25
    %v1754 = vmul.f32 %v1732, 0.25
    %v1755 = vmul.f32 %v1737, 0.25
    %v1756 = vmul.f32 %v1742, 0.25
    %v1757 = vmul.f32 %v1747, 0.25
    %v1758 = vsel %vm471, %v1750, -inf
    %1759 = vmax.xlane.f32.xlu0 %v1758
    %v1760 = vpop.xlane.xlu0 %1759
    %v1761 = vsel %vm471, %v1751, -inf
    %1762 = vmax.xlane.f32.xlu0 %v1761
    %v1763 = vpop.xlane.xlu0 %1762
    %v1764 = vsel %vm471, %v1752, -inf
    %1765 = vmax.xlane.f32.xlu0 %v1764
    %v1766 = vpop.xlane.xlu0 %1765
    %v1767 = vsel %vm471, %v1753, -inf
    %1768 = vmax.xlane.f32.xlu0 %v1767
    %v1769 = vpop.xlane.xlu0 %1768
    %v1770 = vsel %vm471, %v1754, -inf
    %1771 = vmax.xlane.f32.xlu0 %v1770
    %v1772 = vpop.xlane.xlu0 %1771
    %v1773 = vsel %vm471, %v1755, -inf
    %1774 = vmax.xlane.f32.xlu0 %v1773
    %v1775 = vpop.xlane.xlu0 %1774
    %v1776 = vsel %vm471, %v1756, -inf
    %1777 = vmax.xlane.f32.xlu0 %v1776
    %v1778 = vpop.xlane.xlu0 %1777
    %v1779 = vsel %vm471, %v1757, -inf
    %1780 = vmax.xlane.f32.xlu0 %v1779
    %v1781 = vpop.xlane.xlu0 %1780
    %v1782 = vsub.f32 %v1750, %v1760
    %v1783 = vsub.f32 %v1751, %v1763
    %v1784 = vsub.f32 %v1752, %v1766
    %v1785 = vsub.f32 %v1753, %v1769
    %v1786 = vsub.f32 %v1754, %v1772
    %v1787 = vsub.f32 %v1755, %v1775
    %v1788 = vsub.f32 %v1756, %v1778
    %v1789 = vsub.f32 %v1757, %v1781
    %v1790 = vmul.f32 %v1782, 1.442695
    %v1791 = vpow.pop %v1790
    %v1792 = vmul.f32 %v1783, 1.442695
    %v1793 = vpow.pop %v1792
    %v1794 = vmul.f32 %v1784, 1.442695
    %v1795 = vpow.pop %v1794
    %v1796 = vmul.f32 %v1785, 1.442695
    %v1797 = vpow.pop %v1796
    %v1798 = vmul.f32 %v1786, 1.442695
    %v1799 = vpow.pop %v1798
    %v1800 = vmul.f32 %v1787, 1.442695
    %v1801 = vpow.pop %v1800
    %v1802 = vmul.f32 %v1788, 1.442695
    %v1803 = vpow.pop %v1802
    %v1804 = vmul.f32 %v1789, 1.442695
    %v1805 = vpow.pop %v1804
    %v1806 = vsel %vm471, %v1791, 0.0
    %1807 = vadd.xlane.f32.xlu0 %v1806
    %v1808 = vpop.xlane.xlu0 %1807
    %v1809 = vsel %vm471, %v1793, 0.0
    %1810 = vadd.xlane.f32.xlu0 %v1809
    %v1811 = vpop.xlane.xlu0 %1810
    %v1812 = vsel %vm471, %v1795, 0.0
    %1813 = vadd.xlane.f32.xlu0 %v1812
    %v1814 = vpop.xlane.xlu0 %1813
    %v1815 = vsel %vm471, %v1797, 0.0
    %1816 = vadd.xlane.f32.xlu0 %v1815
    %v1817 = vpop.xlane.xlu0 %1816
    %v1818 = vsel %vm471, %v1799, 0.0
    %1819 = vadd.xlane.f32.xlu0 %v1818
    %v1820 = vpop.xlane.xlu0 %1819
    %v1821 = vsel %vm471, %v1801, 0.0
    %1822 = vadd.xlane.f32.xlu0 %v1821
    %v1823 = vpop.xlane.xlu0 %1822
    %v1824 = vsel %vm471, %v1803, 0.0
    %1825 = vadd.xlane.f32.xlu0 %v1824
    %v1826 = vpop.xlane.xlu0 %1825
    %v1827 = vsel %vm471, %v1805, 0.0
    %1828 = vadd.xlane.f32.xlu0 %v1827
    %v1829 = vpop.xlane.xlu0 %1828
    %v1830 = vrcp.pop %v1808
    %v1831 = vmul.f32 %v1791, %v1830
    %v1832 = vrcp.pop %v1811
    %v1833 = vmul.f32 %v1793, %v1832
    %v1834 = vrcp.pop %v1814
    %v1835 = vmul.f32 %v1795, %v1834
    %v1836 = vrcp.pop %v1817
    %v1837 = vmul.f32 %v1797, %v1836
    %v1838 = vrcp.pop %v1820
    %v1839 = vmul.f32 %v1799, %v1838
    %v1840 = vrcp.pop %v1823
    %v1841 = vmul.f32 %v1801, %v1840
    %v1842 = vrcp.pop %v1826
    %v1843 = vmul.f32 %v1803, %v1842
    %v1844 = vrcp.pop %v1829
    %v1845 = vmul.f32 %v1805, %v1844
    %1846 = vrot.lane.b32.xlu0 %v263, 48
    %v1847 = vpop.permute.xlu0 %1846
    %1848 = vrot.lane.b32.xlu0 %v268, 48
    %v1849 = vpop.permute.xlu0 %1848
    %1850 = vrot.lane.b32.xlu0 %v273, 48
    %v1851 = vpop.permute.xlu0 %1850
    %1852 = vrot.lane.b32.xlu0 %v278, 48
    %v1853 = vpop.permute.xlu0 %1852
    %1854 = vrot.lane.b32.xlu0 %v283, 48
    %v1855 = vpop.permute.xlu0 %1854
    %1856 = vrot.lane.b32.xlu0 %v288, 48
    %v1857 = vpop.permute.xlu0 %1856
    %1858 = vrot.lane.b32.xlu0 %v293, 48
    %v1859 = vpop.permute.xlu0 %1858
    %1860 = vrot.lane.b32.xlu0 %v298, 48
    %v1861 = vpop.permute.xlu0 %1860
    %v1871 = vsel %vm471, %v1831, 0
    %v1874 = vsel %vm471, %v1833, 0
    %v1877 = vsel %vm471, %v1835, 0
    %v1880 = vsel %vm471, %v1837, 0
    %v1883 = vsel %vm471, %v1839, 0
    %v1886 = vsel %vm471, %v1841, 0
    %v1889 = vsel %vm471, %v1843, 0
    %v1892 = vsel %vm471, %v1845, 0
    %1894 = vmatprep.subr.mxu0 0.0
    %1895 = vmatpush1.msra.mxu0 %v1847
    %1896 = vmatprep.subr.mxu0 0.0
    %1897 = vmatpush1.msra.mxu0 %v1849
    %1898 = vmatprep.subr.mxu0 0.0
    %1899 = vmatpush1.msra.mxu0 %v1851
    %1900 = vmatprep.subr.mxu0 0.0
    %1901 = vmatpush1.msra.mxu0 %v1853
    %1902 = vmatprep.subr.mxu0 0.0
    %1903 = vmatpush1.msra.mxu0 %v1855
    %1904 = vmatprep.subr.mxu0 0.0
    %1905 = vmatpush1.msra.mxu0 %v1857
    %1906 = vmatprep.subr.mxu0 0.0
    %1907 = vmatpush1.msra.mxu0 %v1859
    %1908 = vmatprep.subr.mxu0 0.0
    %1909 = vmatpush1.msra.mxu0 %v1861
    %1910 = vmatprep.subr.mxu0 0.0
    %1911 = vmatpush1.msra.mxu0 0.0
    %1912 = vmatprep.subr.mxu0 0.0
    %1913 = vmatpush1.msra.mxu0 0.0
    %1914 = vmatprep.subr.mxu0 0.0
    %1915 = vmatpush1.msra.mxu0 0.0
    %1916 = vmatprep.subr.mxu0 0.0
    %1917 = vmatpush1.msra.mxu0 0.0
    %1918 = vmatprep.subr.mxu0 0.0
    %1919 = vmatpush1.msra.mxu0 0.0
    %1920 = vmatprep.subr.mxu0 0.0
    %1921 = vmatpush1.msra.mxu0 0.0
    %1922 = vmatprep.subr.mxu0 0.0
    %1923 = vmatpush1.msra.mxu0 0.0
    %1924 = vmatprep.subr.mxu0 0.0
    %1925 = vmatpush1.msra.mxu0 0.0
    %1926 = vmatprep.subr.mxu0 0.0
    %1927 = vmatpush1.msra.mxu0 0.0
    %1928 = vmatprep.subr.mxu0 0.0
    %1929 = vmatpush1.msra.mxu0 0.0
    %1930 = vmatprep.subr.mxu0 0.0
    %1931 = vmatpush1.msra.mxu0 0.0
    %1932 = vmatprep.subr.mxu0 0.0
    %1933 = vmatpush1.msra.mxu0 0.0
    %1934 = vmatprep.subr.mxu0 0.0
    %1935 = vmatpush1.msra.mxu0 0.0
    %1936 = vmatprep.subr.mxu0 0.0
    %1937 = vmatpush1.msra.mxu0 0.0
    %1938 = vmatprep.subr.mxu0 0.0
    %1939 = vmatpush1.msra.mxu0 0.0
    %1940 = vmatprep.subr.mxu0 0.0
    %1941 = vmatpush1.msra.mxu0 0.0
    %1942 = vmatprep.subr.mxu0 0.0
    %1943 = vmatpush1.msra.mxu0 0.0
    %1944 = vmatprep.subr.mxu0 0.0
    %1945 = vmatpush1.msra.mxu0 0.0
    %1946 = vmatprep.subr.mxu0 0.0
    %1947 = vmatpush1.msra.mxu0 0.0
    %1948 = vmatprep.subr.mxu0 0.0
    %1949 = vmatpush1.msra.mxu0 0.0
    %1950 = vmatprep.subr.mxu0 0.0
    %1951 = vmatpush1.msra.mxu0 0.0
    %1952 = vmatprep.subr.mxu0 0.0
    %1953 = vmatpush1.msra.mxu0 0.0
    %1954 = vmatprep.subr.mxu0 0.0
    %1955 = vmatpush1.msra.mxu0 0.0
    %1956 = vmatprep.subr.mxu0 0.0
    %1957 = vmatpush1.msra.mxu0 0.0
    %1958 = vmatprep.mubr.f32.mxu0 0.0
    %1959 = vmatmul.mubr.f32.gmra.mrb[0].mxu0 %v1871
    %v1960 = vpop.f32.mrb[0].mxu0
    %v1961 = vadd.f32 0.0, %v1960
    %v1962 = vpop.f32.mrb[0].mxu0
    %1963 = vmatprep.mubr.f32.mxu0 0.0
    %1964 = vmatmul.mubr.f32.gmra.mrb[0].mxu0 %v1874
    %v1965 = vpop.f32.mrb[0].mxu0
    %v1966 = vadd.f32 0.0, %v1965
    %v1967 = vpop.f32.mrb[0].mxu0
    %1968 = vmatprep.mubr.f32.mxu0 0.0
    %1969 = vmatmul.mubr.f32.gmra.mrb[0].mxu0 %v1877
    %v1970 = vpop.f32.mrb[0].mxu0
    %v1971 = vadd.f32 0.0, %v1970
    %v1972 = vpop.f32.mrb[0].mxu0
    %1973 = vmatprep.mubr.f32.mxu0 0.0
    %1974 = vmatmul.mubr.f32.gmra.mrb[0].mxu0 %v1880
    %v1975 = vpop.f32.mrb[0].mxu0
    %v1976 = vadd.f32 0.0, %v1975
    %v1977 = vpop.f32.mrb[0].mxu0
    %1978 = vmatprep.mubr.f32.mxu0 0.0
    %1979 = vmatmul.mubr.f32.gmra.mrb[0].mxu0 %v1883
    %v1980 = vpop.f32.mrb[0].mxu0
    %v1981 = vadd.f32 0.0, %v1980
    %v1982 = vpop.f32.mrb[0].mxu0
    %1983 = vmatprep.mubr.f32.mxu0 0.0
    %1984 = vmatmul.mubr.f32.gmra.mrb[0].mxu0 %v1886
    %v1985 = vpop.f32.mrb[0].mxu0
    %v1986 = vadd.f32 0.0, %v1985
    %v1987 = vpop.f32.mrb[0].mxu0
    %1988 = vmatprep.mubr.f32.mxu0 0.0
    %1989 = vmatmul.mubr.f32.gmra.mrb[0].mxu0 %v1889
    %v1990 = vpop.f32.mrb[0].mxu0
    %v1991 = vadd.f32 0.0, %v1990
    %v1992 = vpop.f32.mrb[0].mxu0
    %1993 = vmatprep.mubr.f32.mxu0 0.0
    %1994 = vmatmul.mubr.f32.gmra.mrb[0].mxu0 %v1892
    %v1995 = vpop.f32.mrb[0].mxu0
    %v1996 = vadd.f32 0.0, %v1995
    %v1997 = vpop.f32.mrb[0].mxu0
    %1998 = vdwg.mxu0
    %2007 = vrot.lane.b32.xlu0 %v1961, 16
    %v2008 = vpop.permute.xlu0 %2007
    %2009 = vrot.lane.b32.xlu0 %v1966, 16
    %v2010 = vpop.permute.xlu0 %2009
    %2011 = vrot.lane.b32.xlu0 %v1971, 16
    %v2012 = vpop.permute.xlu0 %2011
    %2013 = vrot.lane.b32.xlu0 %v1976, 16
    %v2014 = vpop.permute.xlu0 %2013
    %2015 = vrot.lane.b32.xlu0 %v1981, 16
    %v2016 = vpop.permute.xlu0 %2015
    %2017 = vrot.lane.b32.xlu0 %v1986, 16
    %v2018 = vpop.permute.xlu0 %2017
    %2019 = vrot.lane.b32.xlu0 %v1991, 16
    %v2020 = vpop.permute.xlu0 %2019
    %2021 = vrot.lane.b32.xlu0 %v1996, 16
    %v2022 = vpop.permute.xlu0 %2021
    %v2031 = vsel %vm325, %v1543, %v2008
    %v2032 = vsel %vm325, %v1548, %v2010
    %v2033 = vsel %vm325, %v1553, %v2012
    %v2034 = vsel %vm325, %v1558, %v2014
    %v2035 = vsel %vm325, %v1563, %v2016
    %v2036 = vsel %vm325, %v1568, %v2018
    %v2037 = vsel %vm325, %v1573, %v2020
    %v2038 = vsel %vm325, %v1578, %v2022
    %v2039 = vld [vmem:[#allocation2] sm:$0xff]
    %v2040 = vld [vmem:[#allocation2 + $0x8] sm:$0xff]
    %v2041 = vld [vmem:[#allocation2 + $0x10] sm:$0xff]
    %v2042 = vld [vmem:[#allocation2 + $0x18] sm:$0xff]
    %v2044 = vsel %vm107, %v1163, 0
    %v2047 = vsel %vm107, %v1164, 0
    %v2050 = vsel %vm107, %v1165, 0
    %v2053 = vsel %vm107, %v1166, 0
    %v2056 = vsel %vm107, %v1167, 0
    %v2059 = vsel %vm107, %v1168, 0
    %v2062 = vsel %vm107, %v1169, 0
    %v2065 = vsel %vm107, %v1170, 0
    %v2068 = vsel %vm107, %v2031, 0
    %v2071 = vsel %vm107, %v2032, 0
    %v2074 = vsel %vm107, %v2033, 0
    %v2077 = vsel %vm107, %v2034, 0
    %v2080 = vsel %vm107, %v2035, 0
    %v2083 = vsel %vm107, %v2036, 0
    %v2086 = vsel %vm107, %v2037, 0
    %v2089 = vsel %vm107, %v2038, 0
    %2091 = vmatprep.subr.mxu0 0.0
    %2092 = vmatpush1.msra.mxu0 %v2039
    %2093 = vmatprep.subr.mxu0 0.0
    %2094 = vmatpush1.msra.mxu0 %v2040
    %2095 = vmatprep.subr.mxu0 0.0
    %2096 = vmatpush1.msra.mxu0 %v2041
    %2097 = vmatprep.subr.mxu0 0.0
    %2098 = vmatpush1.msra.mxu0 %v2042
    %2099 = vmatprep.subr.mxu0 0.0
    %2100 = vmatpush1.msra.mxu0 0.0
    %2101 = vmatprep.subr.mxu0 0.0
    %2102 = vmatpush1.msra.mxu0 0.0
    %2103 = vmatprep.subr.mxu0 0.0
    %2104 = vmatpush1.msra.mxu0 0.0
    %2105 = vmatprep.subr.mxu0 0.0
    %2106 = vmatpush1.msra.mxu0 0.0
    %2107 = vmatprep.subr.mxu0 0.0
    %2108 = vmatpush1.msra.mxu0 0.0
    %2109 = vmatprep.subr.mxu0 0.0
    %2110 = vmatpush1.msra.mxu0 0.0
    %2111 = vmatprep.subr.mxu0 0.0
    %2112 = vmatpush1.msra.mxu0 0.0
    %2113 = vmatprep.subr.mxu0 0.0
    %2114 = vmatpush1.msra.mxu0 0.0
    %2115 = vmatprep.subr.mxu0 0.0
    %2116 = vmatpush1.msra.mxu0 0.0
    %2117 = vmatprep.subr.mxu0 0.0
    %2118 = vmatpush1.msra.mxu0 0.0
    %2119 = vmatprep.subr.mxu0 0.0
    %2120 = vmatpush1.msra.mxu0 0.0
    %2121 = vmatprep.subr.mxu0 0.0
    %2122 = vmatpush1.msra.mxu0 0.0
    %2123 = vmatprep.subr.mxu0 0.0
    %2124 = vmatpush1.msra.mxu0 0.0
    %2125 = vmatprep.subr.mxu0 0.0
    %2126 = vmatpush1.msra.mxu0 0.0
    %2127 = vmatprep.subr.mxu0 0.0
    %2128 = vmatpush1.msra.mxu0 0.0
    %2129 = vmatprep.subr.mxu0 0.0
    %2130 = vmatpush1.msra.mxu0 0.0
    %2131 = vmatprep.subr.mxu0 0.0
    %2132 = vmatpush1.msra.mxu0 0.0
    %2133 = vmatprep.subr.mxu0 0.0
    %2134 = vmatpush1.msra.mxu0 0.0
    %2135 = vmatprep.subr.mxu0 0.0
    %2136 = vmatpush1.msra.mxu0 0.0
    %2137 = vmatprep.subr.mxu0 0.0
    %2138 = vmatpush1.msra.mxu0 0.0
    %2139 = vmatprep.subr.mxu0 0.0
    %2140 = vmatpush1.msra.mxu0 0.0
    %2141 = vmatprep.subr.mxu0 0.0
    %2142 = vmatpush1.msra.mxu0 0.0
    %2143 = vmatprep.subr.mxu0 0.0
    %2144 = vmatpush1.msra.mxu0 0.0
    %2145 = vmatprep.subr.mxu0 0.0
    %2146 = vmatpush1.msra.mxu0 0.0
    %2147 = vmatprep.subr.mxu0 0.0
    %2148 = vmatpush1.msra.mxu0 0.0
    %2149 = vmatprep.subr.mxu0 0.0
    %2150 = vmatpush1.msra.mxu0 0.0
    %2151 = vmatprep.subr.mxu0 0.0
    %2152 = vmatpush1.msra.mxu0 0.0
    %2153 = vmatprep.subr.mxu0 0.0
    %2154 = vmatpush1.msra.mxu0 0.0
    %2155 = vmatprep.mubr.f32.mxu0 0.0
    %2156 = vmatmul.mubr.f32.gmra.mrb[0].mxu0 %v2044
    %v2157 = vpop.f32.mrb[0].mxu0
    %v2158 = vadd.f32 0.0, %v2157
    %v2159 = vpop.f32.mrb[0].mxu0
    %2160 = vmatprep.mubr.f32.mxu0 0.0
    %2161 = vmatmul.mubr.f32.gmra.mrb[0].mxu0 %v2047
    %v2162 = vpop.f32.mrb[0].mxu0
    %v2163 = vadd.f32 0.0, %v2162
    %v2164 = vpop.f32.mrb[0].mxu0
    %2165 = vmatprep.mubr.f32.mxu0 0.0
    %2166 = vmatmul.mubr.f32.gmra.mrb[0].mxu0 %v2050
    %v2167 = vpop.f32.mrb[0].mxu0
    %v2168 = vadd.f32 0.0, %v2167
    %v2169 = vpop.f32.mrb[0].mxu0
    %2170 = vmatprep.mubr.f32.mxu0 0.0
    %2171 = vmatmul.mubr.f32.gmra.mrb[0].mxu0 %v2053
    %v2172 = vpop.f32.mrb[0].mxu0
    %v2173 = vadd.f32 0.0, %v2172
    %v2174 = vpop.f32.mrb[0].mxu0
    %2175 = vmatprep.mubr.f32.mxu0 0.0
    %2176 = vmatmul.mubr.f32.gmra.mrb[0].mxu0 %v2056
    %v2177 = vpop.f32.mrb[0].mxu0
    %v2178 = vadd.f32 0.0, %v2177
    %v2179 = vpop.f32.mrb[0].mxu0
    %2180 = vmatprep.mubr.f32.mxu0 0.0
    %2181 = vmatmul.mubr.f32.gmra.mrb[0].mxu0 %v2059
    %v2182 = vpop.f32.mrb[0].mxu0
    %v2183 = vadd.f32 0.0, %v2182
    %v2184 = vpop.f32.mrb[0].mxu0
    %2185 = vmatprep.mubr.f32.mxu0 0.0
    %2186 = vmatmul.mubr.f32.gmra.mrb[0].mxu0 %v2062
    %v2187 = vpop.f32.mrb[0].mxu0
    %v2188 = vadd.f32 0.0, %v2187
    %v2189 = vpop.f32.mrb[0].mxu0
    %2190 = vmatprep.mubr.f32.mxu0 0.0
    %2191 = vmatmul.mubr.f32.gmra.mrb[0].mxu0 %v2065
    %v2192 = vpop.f32.mrb[0].mxu0
    %v2193 = vadd.f32 0.0, %v2192
    %v2194 = vpop.f32.mrb[0].mxu0
    %2195 = vmatprep.mubr.f32.mxu0 0.0
    %2196 = vmatmul.mubr.f32.gmra.mrb[0].mxu0 %v2068
    %v2197 = vpop.f32.mrb[0].mxu0
    %v2198 = vadd.f32 0.0, %v2197
    %v2199 = vpop.f32.mrb[0].mxu0
    %2200 = vmatprep.mubr.f32.mxu0 0.0
    %2201 = vmatmul.mubr.f32.gmra.mrb[0].mxu0 %v2071
    %v2202 = vpop.f32.mrb[0].mxu0
    %v2203 = vadd.f32 0.0, %v2202
    %v2204 = vpop.f32.mrb[0].mxu0
    %2205 = vmatprep.mubr.f32.mxu0 0.0
    %2206 = vmatmul.mubr.f32.gmra.mrb[0].mxu0 %v2074
    %v2207 = vpop.f32.mrb[0].mxu0
    %v2208 = vadd.f32 0.0, %v2207
    %v2209 = vpop.f32.mrb[0].mxu0
    %2210 = vmatprep.mubr.f32.mxu0 0.0
    %2211 = vmatmul.mubr.f32.gmra.mrb[0].mxu0 %v2077
    %v2212 = vpop.f32.mrb[0].mxu0
    %v2213 = vadd.f32 0.0, %v2212
    %v2214 = vpop.f32.mrb[0].mxu0
    %2215 = vmatprep.mubr.f32.mxu0 0.0
    %2216 = vmatmul.mubr.f32.gmra.mrb[0].mxu0 %v2080
    %v2217 = vpop.f32.mrb[0].mxu0
    %v2218 = vadd.f32 0.0, %v2217
    %v2219 = vpop.f32.mrb[0].mxu0
    %2220 = vmatprep.mubr.f32.mxu0 0.0
    %2221 = vmatmul.mubr.f32.gmra.mrb[0].mxu0 %v2083
    %v2222 = vpop.f32.mrb[0].mxu0
    %v2223 = vadd.f32 0.0, %v2222
    %v2224 = vpop.f32.mrb[0].mxu0
    %2225 = vmatprep.mubr.f32.mxu0 0.0
    %2226 = vmatmul.mubr.f32.gmra.mrb[0].mxu0 %v2086
    %v2227 = vpop.f32.mrb[0].mxu0
    %v2228 = vadd.f32 0.0, %v2227
    %v2229 = vpop.f32.mrb[0].mxu0
    %2230 = vmatprep.mubr.f32.mxu0 0.0
    %2231 = vmatmul.mubr.f32.gmra.mrb[0].mxu0 %v2089
    %v2232 = vpop.f32.mrb[0].mxu0
    %v2233 = vadd.f32 0.0, %v2232
    %v2234 = vpop.f32.mrb[0].mxu0
    %2235 = vdwg.mxu0
    %v2236 = vadd.f32 %v80, %v2158
    %v2237 = vadd.f32 %v81, %v2163
    %v2238 = vadd.f32 %v82, %v2168
    %v2239 = vadd.f32 %v83, %v2173
    %v2240 = vadd.f32 %v84, %v2178
    %v2241 = vadd.f32 %v85, %v2183
    %v2242 = vadd.f32 %v86, %v2188
    %v2243 = vadd.f32 %v87, %v2193
    %v2244 = vadd.f32 %v88, %v2198
    %v2245 = vadd.f32 %v89, %v2203
    %v2246 = vadd.f32 %v90, %v2208
    %v2247 = vadd.f32 %v91, %v2213
    %v2248 = vadd.f32 %v92, %v2218
    %v2249 = vadd.f32 %v93, %v2223
    %v2250 = vadd.f32 %v94, %v2228
    %v2251 = vadd.f32 %v95, %v2233
    %v2252 = vld [vmem:[%s4] sm:$0x1]
    %v2254 = vlaneseq
    %v2255 = vshrl.u32 %v2254, 7
    %v2256 = vsub.s32 0, %v2255
    %v2257 = vrot.slane %v2252, %v2256
    %v2259 = vadd.f32 %v2236, %v2257
    %v2260 = vadd.f32 %v2237, %v2257
    %v2261 = vadd.f32 %v2238, %v2257
    %v2262 = vadd.f32 %v2239, %v2257
    %v2263 = vadd.f32 %v2240, %v2257
    %v2264 = vadd.f32 %v2241, %v2257
    %v2265 = vadd.f32 %v2242, %v2257
    %v2266 = vadd.f32 %v2243, %v2257
    %v2267 = vadd.f32 %v2244, %v2257
    %v2268 = vadd.f32 %v2245, %v2257
    %v2269 = vadd.f32 %v2246, %v2257
    %v2270 = vadd.f32 %v2247, %v2257
    %v2271 = vadd.f32 %v2248, %v2257
    %v2272 = vadd.f32 %v2249, %v2257
    %v2273 = vadd.f32 %v2250, %v2257
    %v2274 = vadd.f32 %v2251, %v2257
    %v2275 = vld [vmem:[#allocation5] sm:$0xff]
    %v2276 = vld [vmem:[#allocation5 + $0x8] sm:$0xff]
    %v2277 = vld [vmem:[#allocation5 + $0x10] sm:$0xff]
    %v2278 = vld [vmem:[#allocation5 + $0x18] sm:$0xff]
    %v2279 = vld [vmem:[%s6] sm:$0x1]
    %v2281 = vlaneseq
    %v2282 = vshrl.u32 %v2281, 7
    %v2283 = vsub.s32 0, %v2282
    %v2284 = vrot.slane %v2279, %v2283
    %v2287 = vsel %vm107, %v2259, 0
    %v2290 = vsel %vm107, %v2260, 0
    %v2293 = vsel %vm107, %v2261, 0
    %v2296 = vsel %vm107, %v2262, 0
    %v2299 = vsel %vm107, %v2263, 0
    %v2302 = vsel %vm107, %v2264, 0
    %v2305 = vsel %vm107, %v2265, 0
    %v2308 = vsel %vm107, %v2266, 0
    %v2311 = vsel %vm107, %v2267, 0
    %v2314 = vsel %vm107, %v2268, 0
    %v2317 = vsel %vm107, %v2269, 0
    %v2320 = vsel %vm107, %v2270, 0
    %v2323 = vsel %vm107, %v2271, 0
    %v2326 = vsel %vm107, %v2272, 0
    %v2329 = vsel %vm107, %v2273, 0
    %v2332 = vsel %vm107, %v2274, 0
    %2334 = vmatprep.subr.mxu0 0.0
    %2335 = vmatpush1.msra.mxu0 %v2275
    %2336 = vmatprep.subr.mxu0 0.0
    %2337 = vmatpush1.msra.mxu0 %v2276
    %2338 = vmatprep.subr.mxu0 0.0
    %2339 = vmatpush1.msra.mxu0 %v2277
    %2340 = vmatprep.subr.mxu0 0.0
    %2341 = vmatpush1.msra.mxu0 %v2278
    %2342 = vmatprep.subr.mxu0 0.0
    %2343 = vmatpush1.msra.mxu0 0.0
    %2344 = vmatprep.subr.mxu0 0.0
    %2345 = vmatpush1.msra.mxu0 0.0
    %2346 = vmatprep.subr.mxu0 0.0
    %2347 = vmatpush1.msra.mxu0 0.0
    %2348 = vmatprep.subr.mxu0 0.0
    %2349 = vmatpush1.msra.mxu0 0.0
    %2350 = vmatprep.subr.mxu0 0.0
    %2351 = vmatpush1.msra.mxu0 0.0
    %2352 = vmatprep.subr.mxu0 0.0
    %2353 = vmatpush1.msra.mxu0 0.0
    %2354 = vmatprep.subr.mxu0 0.0
    %2355 = vmatpush1.msra.mxu0 0.0
    %2356 = vmatprep.subr.mxu0 0.0
    %2357 = vmatpush1.msra.mxu0 0.0
    %2358 = vmatprep.subr.mxu0 0.0
    %2359 = vmatpush1.msra.mxu0 0.0
    %2360 = vmatprep.subr.mxu0 0.0
    %2361 = vmatpush1.msra.mxu0 0.0
    %2362 = vmatprep.subr.mxu0 0.0
    %2363 = vmatpush1.msra.mxu0 0.0
    %2364 = vmatprep.subr.mxu0 0.0
    %2365 = vmatpush1.msra.mxu0 0.0
    %2366 = vmatprep.subr.mxu0 0.0
    %2367 = vmatpush1.msra.mxu0 0.0
    %2368 = vmatprep.subr.mxu0 0.0
    %2369 = vmatpush1.msra.mxu0 0.0
    %2370 = vmatprep.subr.mxu0 0.0
    %2371 = vmatpush1.msra.mxu0 0.0
    %2372 = vmatprep.subr.mxu0 0.0
    %2373 = vmatpush1.msra.mxu0 0.0
    %2374 = vmatprep.subr.mxu0 0.0
    %2375 = vmatpush1.msra.mxu0 0.0
    %2376 = vmatprep.subr.mxu0 0.0
    %2377 = vmatpush1.msra.mxu0 0.0
    %2378 = vmatprep.subr.mxu0 0.0
    %2379 = vmatpush1.msra.mxu0 0.0
    %2380 = vmatprep.subr.mxu0 0.0
    %2381 = vmatpush1.msra.mxu0 0.0
    %2382 = vmatprep.subr.mxu0 0.0
    %2383 = vmatpush1.msra.mxu0 0.0
    %2384 = vmatprep.subr.mxu0 0.0
    %2385 = vmatpush1.msra.mxu0 0.0
    %2386 = vmatprep.subr.mxu0 0.0
    %2387 = vmatpush1.msra.mxu0 0.0
    %2388 = vmatprep.subr.mxu0 0.0
    %2389 = vmatpush1.msra.mxu0 0.0
    %2390 = vmatprep.subr.mxu0 0.0
    %2391 = vmatpush1.msra.mxu0 0.0
    %2392 = vmatprep.subr.mxu0 0.0
    %2393 = vmatpush1.msra.mxu0 0.0
    %2394 = vmatprep.subr.mxu0 0.0
    %2395 = vmatpush1.msra.mxu0 0.0
    %2396 = vmatprep.subr.mxu0 0.0
    %2397 = vmatpush1.msra.mxu0 0.0
    %2398 = vmatprep.mubr.f32.mxu0 0.0
    %2399 = vmatmul.mubr.f32.gmra.mrb[0].mxu0 %v2287
    %v2400 = vpop.f32.mrb[0].mxu0
    %v2401 = vadd.f32 %v2284, %v2400
    %v2402 = vpop.f32.mrb[0].mxu0
    %2403 = vmatprep.mubr.f32.mxu0 0.0
    %2404 = vmatmul.mubr.f32.gmra.mrb[0].mxu0 %v2290
    %v2405 = vpop.f32.mrb[0].mxu0
    %v2406 = vadd.f32 %v2284, %v2405
    %v2407 = vpop.f32.mrb[0].mxu0
    %2408 = vmatprep.mubr.f32.mxu0 0.0
    %2409 = vmatmul.mubr.f32.gmra.mrb[0].mxu0 %v2293
    %v2410 = vpop.f32.mrb[0].mxu0
    %v2411 = vadd.f32 %v2284, %v2410
    %v2412 = vpop.f32.mrb[0].mxu0
    %2413 = vmatprep.mubr.f32.mxu0 0.0
    %2414 = vmatmul.mubr.f32.gmra.mrb[0].mxu0 %v2296
    %v2415 = vpop.f32.mrb[0].mxu0
    %v2416 = vadd.f32 %v2284, %v2415
    %v2417 = vpop.f32.mrb[0].mxu0
    %2418 = vmatprep.mubr.f32.mxu0 0.0
    %2419 = vmatmul.mubr.f32.gmra.mrb[0].mxu0 %v2299
    %v2420 = vpop.f32.mrb[0].mxu0
    %v2421 = vadd.f32 %v2284, %v2420
    %v2422 = vpop.f32.mrb[0].mxu0
    %2423 = vmatprep.mubr.f32.mxu0 0.0
    %2424 = vmatmul.mubr.f32.gmra.mrb[0].mxu0 %v2302
    %v2425 = vpop.f32.mrb[0].mxu0
    %v2426 = vadd.f32 %v2284, %v2425
    %v2427 = vpop.f32.mrb[0].mxu0
    %2428 = vmatprep.mubr.f32.mxu0 0.0
    %2429 = vmatmul.mubr.f32.gmra.mrb[0].mxu0 %v2305
    %v2430 = vpop.f32.mrb[0].mxu0
    %v2431 = vadd.f32 %v2284, %v2430
    %v2432 = vpop.f32.mrb[0].mxu0
    %2433 = vmatprep.mubr.f32.mxu0 0.0
    %2434 = vmatmul.mubr.f32.gmra.mrb[0].mxu0 %v2308
    %v2435 = vpop.f32.mrb[0].mxu0
    %v2436 = vadd.f32 %v2284, %v2435
    %v2437 = vpop.f32.mrb[0].mxu0
    %2438 = vmatprep.mubr.f32.mxu0 0.0
    %2439 = vmatmul.mubr.f32.gmra.mrb[0].mxu0 %v2311
    %v2440 = vpop.f32.mrb[0].mxu0
    %v2441 = vadd.f32 %v2284, %v2440
    %v2442 = vpop.f32.mrb[0].mxu0
    %2443 = vmatprep.mubr.f32.mxu0 0.0
    %2444 = vmatmul.mubr.f32.gmra.mrb[0].mxu0 %v2314
    %v2445 = vpop.f32.mrb[0].mxu0
    %v2446 = vadd.f32 %v2284, %v2445
    %v2447 = vpop.f32.mrb[0].mxu0
    %2448 = vmatprep.mubr.f32.mxu0 0.0
    %2449 = vmatmul.mubr.f32.gmra.mrb[0].mxu0 %v2317
    %v2450 = vpop.f32.mrb[0].mxu0
    %v2451 = vadd.f32 %v2284, %v2450
    %v2452 = vpop.f32.mrb[0].mxu0
    %2453 = vmatprep.mubr.f32.mxu0 0.0
    %2454 = vmatmul.mubr.f32.gmra.mrb[0].mxu0 %v2320
    %v2455 = vpop.f32.mrb[0].mxu0
    %v2456 = vadd.f32 %v2284, %v2455
    %v2457 = vpop.f32.mrb[0].mxu0
    %2458 = vmatprep.mubr.f32.mxu0 0.0
    %2459 = vmatmul.mubr.f32.gmra.mrb[0].mxu0 %v2323
    %v2460 = vpop.f32.mrb[0].mxu0
    %v2461 = vadd.f32 %v2284, %v2460
    %v2462 = vpop.f32.mrb[0].mxu0
    %2463 = vmatprep.mubr.f32.mxu0 0.0
    %2464 = vmatmul.mubr.f32.gmra.mrb[0].mxu0 %v2326
    %v2465 = vpop.f32.mrb[0].mxu0
    %v2466 = vadd.f32 %v2284, %v2465
    %v2467 = vpop.f32.mrb[0].mxu0
    %2468 = vmatprep.mubr.f32.mxu0 0.0
    %2469 = vmatmul.mubr.f32.gmra.mrb[0].mxu0 %v2329
    %v2470 = vpop.f32.mrb[0].mxu0
    %v2471 = vadd.f32 %v2284, %v2470
    %v2472 = vpop.f32.mrb[0].mxu0
    %2473 = vmatprep.mubr.f32.mxu0 0.0
    %2474 = vmatmul.mubr.f32.gmra.mrb[0].mxu0 %v2332
    %v2475 = vpop.f32.mrb[0].mxu0
    %v2476 = vadd.f32 %v2284, %v2475
    %v2477 = vpop.f32.mrb[0].mxu0
    %2478 = vdwg.mxu0
    %v2479 = vmul.f32 %v2401, %v2401
    %v2480 = vmul.f32 %v2406, %v2406
    %v2481 = vmul.f32 %v2411, %v2411
    %v2482 = vmul.f32 %v2416, %v2416
    %v2483 = vmul.f32 %v2421, %v2421
    %v2484 = vmul.f32 %v2426, %v2426
    %v2485 = vmul.f32 %v2431, %v2431
    %v2486 = vmul.f32 %v2436, %v2436
    %v2487 = vmul.f32 %v2441, %v2441
    %v2488 = vmul.f32 %v2446, %v2446
    %v2489 = vmul.f32 %v2451, %v2451
    %v2490 = vmul.f32 %v2456, %v2456
    %v2491 = vmul.f32 %v2461, %v2461
    %v2492 = vmul.f32 %v2466, %v2466
    %v2493 = vmul.f32 %v2471, %v2471
    %v2494 = vmul.f32 %v2476, %v2476
    %v2495 = vmul.f32 %v2401, %v2479
    %v2496 = vmul.f32 %v2406, %v2480
    %v2497 = vmul.f32 %v2411, %v2481
    %v2498 = vmul.f32 %v2416, %v2482
    %v2499 = vmul.f32 %v2421, %v2483
    %v2500 = vmul.f32 %v2426, %v2484
    %v2501 = vmul.f32 %v2431, %v2485
    %v2502 = vmul.f32 %v2436, %v2486
    %v2503 = vmul.f32 %v2441, %v2487
    %v2504 = vmul.f32 %v2446, %v2488
    %v2505 = vmul.f32 %v2451, %v2489
    %v2506 = vmul.f32 %v2456, %v2490
    %v2507 = vmul.f32 %v2461, %v2491
    %v2508 = vmul.f32 %v2466, %v2492
    %v2509 = vmul.f32 %v2471, %v2493
    %v2510 = vmul.f32 %v2476, %v2494
    %v2511 = vmul.f32 %v2495, 0.044715
    %v2512 = vmul.f32 %v2496, 0.044715
    %v2513 = vmul.f32 %v2497, 0.044715
    %v2514 = vmul.f32 %v2498, 0.044715
    %v2515 = vmul.f32 %v2499, 0.044715
    %v2516 = vmul.f32 %v2500, 0.044715
    %v2517 = vmul.f32 %v2501, 0.044715
    %v2518 = vmul.f32 %v2502, 0.044715
    %v2519 = vmul.f32 %v2503, 0.044715
    %v2520 = vmul.f32 %v2504, 0.044715
    %v2521 = vmul.f32 %v2505, 0.044715
    %v2522 = vmul.f32 %v2506, 0.044715
    %v2523 = vmul.f32 %v2507, 0.044715
    %v2524 = vmul.f32 %v2508, 0.044715
    %v2525 = vmul.f32 %v2509, 0.044715
    %v2526 = vmul.f32 %v2510, 0.044715
    %v2527 = vadd.f32 %v2401, %v2511
    %v2528 = vadd.f32 %v2406, %v2512
    %v2529 = vadd.f32 %v2411, %v2513
    %v2530 = vadd.f32 %v2416, %v2514
    %v2531 = vadd.f32 %v2421, %v2515
    %v2532 = vadd.f32 %v2426, %v2516
    %v2533 = vadd.f32 %v2431, %v2517
    %v2534 = vadd.f32 %v2436, %v2518
    %v2535 = vadd.f32 %v2441, %v2519
    %v2536 = vadd.f32 %v2446, %v2520
    %v2537 = vadd.f32 %v2451, %v2521
    %v2538 = vadd.f32 %v2456, %v2522
    %v2539 = vadd.f32 %v2461, %v2523
    %v2540 = vadd.f32 %v2466, %v2524
    %v2541 = vadd.f32 %v2471, %v2525
    %v2542 = vadd.f32 %v2476, %v2526
    %v2543 = vmul.f32 %v2527, 0.7978846
    %v2544 = vmul.f32 %v2528, 0.7978846
    %v2545 = vmul.f32 %v2529, 0.7978846
    %v2546 = vmul.f32 %v2530, 0.7978846
    %v2547 = vmul.f32 %v2531, 0.7978846
    %v2548 = vmul.f32 %v2532, 0.7978846
    %v2549 = vmul.f32 %v2533, 0.7978846
    %v2550 = vmul.f32 %v2534, 0.7978846
    %v2551 = vmul.f32 %v2535, 0.7978846
    %v2552 = vmul.f32 %v2536, 0.7978846
    %v2553 = vmul.f32 %v2537, 0.7978846
    %v2554 = vmul.f32 %v2538, 0.7978846
    %v2555 = vmul.f32 %v2539, 0.7978846
    %v2556 = vmul.f32 %v2540, 0.7978846
    %v2557 = vmul.f32 %v2541, 0.7978846
    %v2558 = vmul.f32 %v2542, 0.7978846
    %v2559 = vtanh.pop %v2543
    %v2560 = vtanh.pop %v2544
    %v2561 = vtanh.pop %v2545
    %v2562 = vtanh.pop %v2546
    %v2563 = vtanh.pop %v2547
    %v2564 = vtanh.pop %v2548
    %v2565 = vtanh.pop %v2549
    %v2566 = vtanh.pop %v2550
    %v2567 = vtanh.pop %v2551
    %v2568 = vtanh.pop %v2552
    %v2569 = vtanh.pop %v2553
    %v2570 = vtanh.pop %v2554
    %v2571 = vtanh.pop %v2555
    %v2572 = vtanh.pop %v2556
    %v2573 = vtanh.pop %v2557
    %v2574 = vtanh.pop %v2558
    %v2575 = vadd.f32 %v2559, 1.0
    %v2576 = vadd.f32 %v2560, 1.0
    %v2577 = vadd.f32 %v2561, 1.0
    %v2578 = vadd.f32 %v2562, 1.0
    %v2579 = vadd.f32 %v2563, 1.0
    %v2580 = vadd.f32 %v2564, 1.0
    %v2581 = vadd.f32 %v2565, 1.0
    %v2582 = vadd.f32 %v2566, 1.0
    %v2583 = vadd.f32 %v2567, 1.0
    %v2584 = vadd.f32 %v2568, 1.0
    %v2585 = vadd.f32 %v2569, 1.0
    %v2586 = vadd.f32 %v2570, 1.0
    %v2587 = vadd.f32 %v2571, 1.0
    %v2588 = vadd.f32 %v2572, 1.0
    %v2589 = vadd.f32 %v2573, 1.0
    %v2590 = vadd.f32 %v2574, 1.0
    %v2591 = vmul.f32 %v2575, 0.5
    %v2592 = vmul.f32 %v2576, 0.5
    %v2593 = vmul.f32 %v2577, 0.5
    %v2594 = vmul.f32 %v2578, 0.5
    %v2595 = vmul.f32 %v2579, 0.5
    %v2596 = vmul.f32 %v2580, 0.5
    %v2597 = vmul.f32 %v2581, 0.5
    %v2598 = vmul.f32 %v2582, 0.5
    %v2599 = vmul.f32 %v2583, 0.5
    %v2600 = vmul.f32 %v2584, 0.5
    %v2601 = vmul.f32 %v2585, 0.5
    %v2602 = vmul.f32 %v2586, 0.5
    %v2603 = vmul.f32 %v2587, 0.5
    %v2604 = vmul.f32 %v2588, 0.5
    %v2605 = vmul.f32 %v2589, 0.5
    %v2606 = vmul.f32 %v2590, 0.5
    %v2607 = vmul.f32 %v2401, %v2591
    %v2608 = vmul.f32 %v2406, %v2592
    %v2609 = vmul.f32 %v2411, %v2593
    %v2610 = vmul.f32 %v2416, %v2594
    %v2611 = vmul.f32 %v2421, %v2595
    %v2612 = vmul.f32 %v2426, %v2596
    %v2613 = vmul.f32 %v2431, %v2597
    %v2614 = vmul.f32 %v2436, %v2598
    %v2615 = vmul.f32 %v2441, %v2599
    %v2616 = vmul.f32 %v2446, %v2600
    %v2617 = vmul.f32 %v2451, %v2601
    %v2618 = vmul.f32 %v2456, %v2602
    %v2619 = vmul.f32 %v2461, %v2603
    %v2620 = vmul.f32 %v2466, %v2604
    %v2621 = vmul.f32 %v2471, %v2605
    %v2622 = vmul.f32 %v2476, %v2606
    %v2623 = vld [vmem:[%s7] sm:$0xff]
    %v2624 = vld [vmem:[%s7 + $0x8] sm:$0xff]
    %v2625 = vld [vmem:[%s7 + $0x10] sm:$0xff]
    %v2626 = vld [vmem:[%s7 + $0x18] sm:$0xff]
    %v2627 = vld [vmem:[%s7 + $0x20] sm:$0xff]
    %v2628 = vld [vmem:[%s7 + $0x28] sm:$0xff]
    %v2629 = vld [vmem:[%s7 + $0x30] sm:$0xff]
    %v2630 = vld [vmem:[%s7 + $0x38] sm:$0xff]
    %v2632 = vsel %vm471, %v2607, 0
    %v2635 = vsel %vm471, %v2608, 0
    %v2638 = vsel %vm471, %v2609, 0
    %v2641 = vsel %vm471, %v2610, 0
    %v2644 = vsel %vm471, %v2611, 0
    %v2647 = vsel %vm471, %v2612, 0
    %v2650 = vsel %vm471, %v2613, 0
    %v2653 = vsel %vm471, %v2614, 0
    %v2656 = vsel %vm471, %v2615, 0
    %v2659 = vsel %vm471, %v2616, 0
    %v2662 = vsel %vm471, %v2617, 0
    %v2665 = vsel %vm471, %v2618, 0
    %v2668 = vsel %vm471, %v2619, 0
    %v2671 = vsel %vm471, %v2620, 0
    %v2674 = vsel %vm471, %v2621, 0
    %v2677 = vsel %vm471, %v2622, 0
    %2679 = vmatprep.subr.mxu0 0.0
    %2680 = vmatpush1.msra.mxu0 %v2623
    %2681 = vmatprep.subr.mxu0 0.0
    %2682 = vmatpush1.msra.mxu0 %v2624
    %2683 = vmatprep.subr.mxu0 0.0
    %2684 = vmatpush1.msra.mxu0 %v2625
    %2685 = vmatprep.subr.mxu0 0.0
    %2686 = vmatpush1.msra.mxu0 %v2626
    %2687 = vmatprep.subr.mxu0 0.0
    %2688 = vmatpush1.msra.mxu0 %v2627
    %2689 = vmatprep.subr.mxu0 0.0
    %2690 = vmatpush1.msra.mxu0 %v2628
    %2691 = vmatprep.subr.mxu0 0.0
    %2692 = vmatpush1.msra.mxu0 %v2629
    %2693 = vmatprep.subr.mxu0 0.0
    %2694 = vmatpush1.msra.mxu0 %v2630
    %2695 = vmatprep.subr.mxu0 0.0
    %2696 = vmatpush1.msra.mxu0 0.0
    %2697 = vmatprep.subr.mxu0 0.0
    %2698 = vmatpush1.msra.mxu0 0.0
    %2699 = vmatprep.subr.mxu0 0.0
    %2700 = vmatpush1.msra.mxu0 0.0
    %2701 = vmatprep.subr.mxu0 0.0
    %2702 = vmatpush1.msra.mxu0 0.0
    %2703 = vmatprep.subr.mxu0 0.0
    %2704 = vmatpush1.msra.mxu0 0.0
    %2705 = vmatprep.subr.mxu0 0.0
    %2706 = vmatpush1.msra.mxu0 0.0
    %2707 = vmatprep.subr.mxu0 0.0
    %2708 = vmatpush1.msra.mxu0 0.0
    %2709 = vmatprep.subr.mxu0 0.0
    %2710 = vmatpush1.msra.mxu0 0.0
    %2711 = vmatprep.subr.mxu0 0.0
    %2712 = vmatpush1.msra.mxu0 0.0
    %2713 = vmatprep.subr.mxu0 0.0
    %2714 = vmatpush1.msra.mxu0 0.0
    %2715 = vmatprep.subr.mxu0 0.0
    %2716 = vmatpush1.msra.mxu0 0.0
    %2717 = vmatprep.subr.mxu0 0.0
    %2718 = vmatpush1.msra.mxu0 0.0
    %2719 = vmatprep.subr.mxu0 0.0
    %2720 = vmatpush1.msra.mxu0 0.0
    %2721 = vmatprep.subr.mxu0 0.0
    %2722 = vmatpush1.msra.mxu0 0.0
    %2723 = vmatprep.subr.mxu0 0.0
    %2724 = vmatpush1.msra.mxu0 0.0
    %2725 = vmatprep.subr.mxu0 0.0
    %2726 = vmatpush1.msra.mxu0 0.0
    %2727 = vmatprep.subr.mxu0 0.0
    %2728 = vmatpush1.msra.mxu0 0.0
    %2729 = vmatprep.subr.mxu0 0.0
    %2730 = vmatpush1.msra.mxu0 0.0
    %2731 = vmatprep.subr.mxu0 0.0
    %2732 = vmatpush1.msra.mxu0 0.0
    %2733 = vmatprep.subr.mxu0 0.0
    %2734 = vmatpush1.msra.mxu0 0.0
    %2735 = vmatprep.subr.mxu0 0.0
    %2736 = vmatpush1.msra.mxu0 0.0
    %2737 = vmatprep.subr.mxu0 0.0
    %2738 = vmatpush1.msra.mxu0 0.0
    %2739 = vmatprep.subr.mxu0 0.0
    %2740 = vmatpush1.msra.mxu0 0.0
    %2741 = vmatprep.subr.mxu0 0.0
    %2742 = vmatpush1.msra.mxu0 0.0
    %2743 = vmatprep.mubr.f32.mxu0 0.0
    %2744 = vmatmul.mubr.f32.gmra.mrb[0].mxu0 %v2632
    %v2745 = vpop.f32.mrb[0].mxu0
    %v2746 = vadd.f32 0.0, %v2745
    %v2747 = vpop.f32.mrb[0].mxu0
    %2748 = vmatprep.mubr.f32.mxu0 0.0
    %2749 = vmatmul.mubr.f32.gmra.mrb[0].mxu0 %v2635
    %v2750 = vpop.f32.mrb[0].mxu0
    %v2751 = vadd.f32 0.0, %v2750
    %v2752 = vpop.f32.mrb[0].mxu0
    %2753 = vmatprep.mubr.f32.mxu0 0.0
    %2754 = vmatmul.mubr.f32.gmra.mrb[0].mxu0 %v2638
    %v2755 = vpop.f32.mrb[0].mxu0
    %v2756 = vadd.f32 0.0, %v2755
    %v2757 = vpop.f32.mrb[0].mxu0
    %2758 = vmatprep.mubr.f32.mxu0 0.0
    %2759 = vmatmul.mubr.f32.gmra.mrb[0].mxu0 %v2641
    %v2760 = vpop.f32.mrb[0].mxu0
    %v2761 = vadd.f32 0.0, %v2760
    %v2762 = vpop.f32.mrb[0].mxu0
    %2763 = vmatprep.mubr.f32.mxu0 0.0
    %2764 = vmatmul.mubr.f32.gmra.mrb[0].mxu0 %v2644
    %v2765 = vpop.f32.mrb[0].mxu0
    %v2766 = vadd.f32 0.0, %v2765
    %v2767 = vpop.f32.mrb[0].mxu0
    %2768 = vmatprep.mubr.f32.mxu0 0.0
    %2769 = vmatmul.mubr.f32.gmra.mrb[0].mxu0 %v2647
    %v2770 = vpop.f32.mrb[0].mxu0
    %v2771 = vadd.f32 0.0, %v2770
    %v2772 = vpop.f32.mrb[0].mxu0
    %2773 = vmatprep.mubr.f32.mxu0 0.0
    %2774 = vmatmul.mubr.f32.gmra.mrb[0].mxu0 %v2650
    %v2775 = vpop.f32.mrb[0].mxu0
    %v2776 = vadd.f32 0.0, %v2775
    %v2777 = vpop.f32.mrb[0].mxu0
    %2778 = vmatprep.mubr.f32.mxu0 0.0
    %2779 = vmatmul.mubr.f32.gmra.mrb[0].mxu0 %v2653
    %v2780 = vpop.f32.mrb[0].mxu0
    %v2781 = vadd.f32 0.0, %v2780
    %v2782 = vpop.f32.mrb[0].mxu0
    %2783 = vmatprep.mubr.f32.mxu0 0.0
    %2784 = vmatmul.mubr.f32.gmra.mrb[0].mxu0 %v2656
    %v2785 = vpop.f32.mrb[0].mxu0
    %v2786 = vadd.f32 0.0, %v2785
    %v2787 = vpop.f32.mrb[0].mxu0
    %2788 = vmatprep.mubr.f32.mxu0 0.0
    %2789 = vmatmul.mubr.f32.gmra.mrb[0].mxu0 %v2659
    %v2790 = vpop.f32.mrb[0].mxu0
    %v2791 = vadd.f32 0.0, %v2790
    %v2792 = vpop.f32.mrb[0].mxu0
    %2793 = vmatprep.mubr.f32.mxu0 0.0
    %2794 = vmatmul.mubr.f32.gmra.mrb[0].mxu0 %v2662
    %v2795 = vpop.f32.mrb[0].mxu0
    %v2796 = vadd.f32 0.0, %v2795
    %v2797 = vpop.f32.mrb[0].mxu0
    %2798 = vmatprep.mubr.f32.mxu0 0.0
    %2799 = vmatmul.mubr.f32.gmra.mrb[0].mxu0 %v2665
    %v2800 = vpop.f32.mrb[0].mxu0
    %v2801 = vadd.f32 0.0, %v2800
    %v2802 = vpop.f32.mrb[0].mxu0
    %2803 = vmatprep.mubr.f32.mxu0 0.0
    %2804 = vmatmul.mubr.f32.gmra.mrb[0].mxu0 %v2668
    %v2805 = vpop.f32.mrb[0].mxu0
    %v2806 = vadd.f32 0.0, %v2805
    %v2807 = vpop.f32.mrb[0].mxu0
    %2808 = vmatprep.mubr.f32.mxu0 0.0
    %2809 = vmatmul.mubr.f32.gmra.mrb[0].mxu0 %v2671
    %v2810 = vpop.f32.mrb[0].mxu0
    %v2811 = vadd.f32 0.0, %v2810
    %v2812 = vpop.f32.mrb[0].mxu0
    %2813 = vmatprep.mubr.f32.mxu0 0.0
    %2814 = vmatmul.mubr.f32.gmra.mrb[0].mxu0 %v2674
    %v2815 = vpop.f32.mrb[0].mxu0
    %v2816 = vadd.f32 0.0, %v2815
    %v2817 = vpop.f32.mrb[0].mxu0
    %2818 = vmatprep.mubr.f32.mxu0 0.0
    %2819 = vmatmul.mubr.f32.gmra.mrb[0].mxu0 %v2677
    %v2820 = vpop.f32.mrb[0].mxu0
    %v2821 = vadd.f32 0.0, %v2820
    %v2822 = vpop.f32.mrb[0].mxu0
    %2823 = vdwg.mxu0
    %v2824 = vadd.f32 %v2259, %v2746
    %v2825 = vadd.f32 %v2260, %v2751
    %v2826 = vadd.f32 %v2261, %v2756
    %v2827 = vadd.f32 %v2262, %v2761
    %v2828 = vadd.f32 %v2263, %v2766
    %v2829 = vadd.f32 %v2264, %v2771
    %v2830 = vadd.f32 %v2265, %v2776
    %v2831 = vadd.f32 %v2266, %v2781
    %v2832 = vadd.f32 %v2267, %v2786
    %v2833 = vadd.f32 %v2268, %v2791
    %v2834 = vadd.f32 %v2269, %v2796
    %v2835 = vadd.f32 %v2270, %v2801
    %v2836 = vadd.f32 %v2271, %v2806
    %v2837 = vadd.f32 %v2272, %v2811
    %v2838 = vadd.f32 %v2273, %v2816
    %v2839 = vadd.f32 %v2274, %v2821
    %v2840 = vld [vmem:[%s8] sm:$0x1]
    %v2842 = vlaneseq
    %v2843 = vshrl.u32 %v2842, 7
    %v2844 = vsub.s32 0, %v2843
    %v2845 = vrot.slane %v2840, %v2844
    %v2847 = vadd.f32 %v2824, %v2845
    %v2848 = vadd.f32 %v2825, %v2845
    %v2849 = vadd.f32 %v2826, %v2845
    %v2850 = vadd.f32 %v2827, %v2845
    %v2851 = vadd.f32 %v2828, %v2845
    %v2852 = vadd.f32 %v2829, %v2845
    %v2853 = vadd.f32 %v2830, %v2845
    %v2854 = vadd.f32 %v2831, %v2845
    %v2855 = vadd.f32 %v2832, %v2845
    %v2856 = vadd.f32 %v2833, %v2845
    %v2857 = vadd.f32 %v2834, %v2845
    %v2858 = vadd.f32 %v2835, %v2845
    %v2859 = vadd.f32 %v2836, %v2845
    %v2860 = vadd.f32 %v2837, %v2845
    %v2861 = vadd.f32 %v2838, %v2845
    %v2862 = vadd.f32 %v2839, %v2845
    %s2863 = scalar_lea.vmem %s1, 32
    %v2864 = vld [vmem:[%s2863] sm:$0xff]
    %v2865 = vld [vmem:[%s2863 + $0x8] sm:$0xff]
    %v2866 = vld [vmem:[%s2863 + $0x10] sm:$0xff]
    %v2867 = vld [vmem:[%s2863 + $0x18] sm:$0xff]
    %s2868 = scalar_lea.vmem %s2, 1
    %v2869 = vld [vmem:[%s2868] sm:$0x1]
    %v2871 = vlaneseq
    %v2872 = vshrl.u32 %v2871, 7
    %v2873 = vsub.s32 0, %v2872
    %v2874 = vrot.slane %v2869, %v2873
    %v2877 = vsel %vm107, %v2847, 0
    %v2880 = vsel %vm107, %v2848, 0
    %v2883 = vsel %vm107, %v2849, 0
    %v2886 = vsel %vm107, %v2850, 0
    %v2889 = vsel %vm107, %v2851, 0
    %v2892 = vsel %vm107, %v2852, 0
    %v2895 = vsel %vm107, %v2853, 0
    %v2898 = vsel %vm107, %v2854, 0
    %v2901 = vsel %vm107, %v2855, 0
    %v2904 = vsel %vm107, %v2856, 0
    %v2907 = vsel %vm107, %v2857, 0
    %v2910 = vsel %vm107, %v2858, 0
    %v2913 = vsel %vm107, %v2859, 0
    %v2916 = vsel %vm107, %v2860, 0
    %v2919 = vsel %vm107, %v2861, 0
    %v2922 = vsel %vm107, %v2862, 0
    %2924 = vmatprep.subr.mxu0 0.0
    %2925 = vmatpush1.msra.mxu0 %v2864
    %2926 = vmatprep.subr.mxu0 0.0
    %2927 = vmatpush1.msra.mxu0 %v2865
    %2928 = vmatprep.subr.mxu0 0.0
    %2929 = vmatpush1.msra.mxu0 %v2866
    %2930 = vmatprep.subr.mxu0 0.0
    %2931 = vmatpush1.msra.mxu0 %v2867
    %2932 = vmatprep.subr.mxu0 0.0
    %2933 = vmatpush1.msra.mxu0 0.0
    %2934 = vmatprep.subr.mxu0 0.0
    %2935 = vmatpush1.msra.mxu0 0.0
    %2936 = vmatprep.subr.mxu0 0.0
    %2937 = vmatpush1.msra.mxu0 0.0
    %2938 = vmatprep.subr.mxu0 0.0
    %2939 = vmatpush1.msra.mxu0 0.0
    %2940 = vmatprep.subr.mxu0 0.0
    %2941 = vmatpush1.msra.mxu0 0.0
    %2942 = vmatprep.subr.mxu0 0.0
    %2943 = vmatpush1.msra.mxu0 0.0
    %2944 = vmatprep.subr.mxu0 0.0
    %2945 = vmatpush1.msra.mxu0 0.0
    %2946 = vmatprep.subr.mxu0 0.0
    %2947 = vmatpush1.msra.mxu0 0.0
    %2948 = vmatprep.subr.mxu0 0.0
    %2949 = vmatpush1.msra.mxu0 0.0
    %2950 = vmatprep.subr.mxu0 0.0
    %2951 = vmatpush1.msra.mxu0 0.0
    %2952 = vmatprep.subr.mxu0 0.0
    %2953 = vmatpush1.msra.mxu0 0.0
    %2954 = vmatprep.subr.mxu0 0.0
    %2955 = vmatpush1.msra.mxu0 0.0
    %2956 = vmatprep.subr.mxu0 0.0
    %2957 = vmatpush1.msra.mxu0 0.0
    %2958 = vmatprep.subr.mxu0 0.0
    %2959 = vmatpush1.msra.mxu0 0.0
    %2960 = vmatprep.subr.mxu0 0.0
    %2961 = vmatpush1.msra.mxu0 0.0
    %2962 = vmatprep.subr.mxu0 0.0
    %2963 = vmatpush1.msra.mxu0 0.0
    %2964 = vmatprep.subr.mxu0 0.0
    %2965 = vmatpush1.msra.mxu0 0.0
    %2966 = vmatprep.subr.mxu0 0.0
    %2967 = vmatpush1.msra.mxu0 0.0
    %2968 = vmatprep.subr.mxu0 0.0
    %2969 = vmatpush1.msra.mxu0 0.0
    %2970 = vmatprep.subr.mxu0 0.0
    %2971 = vmatpush1.msra.mxu0 0.0
    %2972 = vmatprep.subr.mxu0 0.0
    %2973 = vmatpush1.msra.mxu0 0.0
    %2974 = vmatprep.subr.mxu0 0.0
    %2975 = vmatpush1.msra.mxu0 0.0
    %2976 = vmatprep.subr.mxu0 0.0
    %2977 = vmatpush1.msra.mxu0 0.0
    %2978 = vmatprep.subr.mxu0 0.0
    %2979 = vmatpush1.msra.mxu0 0.0
    %2980 = vmatprep.subr.mxu0 0.0
    %2981 = vmatpush1.msra.mxu0 0.0
    %2982 = vmatprep.subr.mxu0 0.0
    %2983 = vmatpush1.msra.mxu0 0.0
    %2984 = vmatprep.subr.mxu0 0.0
    %2985 = vmatpush1.msra.mxu0 0.0
    %2986 = vmatprep.subr.mxu0 0.0
    %2987 = vmatpush1.msra.mxu0 0.0
    %2988 = vmatprep.mubr.f32.mxu0 0.0
    %2989 = vmatmul.mubr.f32.gmra.mrb[0].mxu0 %v2877
    %v2990 = vpop.f32.mrb[0].mxu0
    %v2991 = vadd.f32 %v2874, %v2990
    %v2992 = vpop.f32.mrb[0].mxu0
    %2993 = vmatprep.mubr.f32.mxu0 0.0
    %2994 = vmatmul.mubr.f32.gmra.mrb[0].mxu0 %v2880
    %v2995 = vpop.f32.mrb[0].mxu0
    %v2996 = vadd.f32 %v2874, %v2995
    %v2997 = vpop.f32.mrb[0].mxu0
    %2998 = vmatprep.mubr.f32.mxu0 0.0
    %2999 = vmatmul.mubr.f32.gmra.mrb[0].mxu0 %v2883
    %v3000 = vpop.f32.mrb[0].mxu0
    %v3001 = vadd.f32 %v2874, %v3000
    %v3002 = vpop.f32.mrb[0].mxu0
    %3003 = vmatprep.mubr.f32.mxu0 0.0
    %3004 = vmatmul.mubr.f32.gmra.mrb[0].mxu0 %v2886
    %v3005 = vpop.f32.mrb[0].mxu0
    %v3006 = vadd.f32 %v2874, %v3005
    %v3007 = vpop.f32.mrb[0].mxu0
    %3008 = vmatprep.mubr.f32.mxu0 0.0
    %3009 = vmatmul.mubr.f32.gmra.mrb[0].mxu0 %v2889
    %v3010 = vpop.f32.mrb[0].mxu0
    %v3011 = vadd.f32 %v2874, %v3010
    %v3012 = vpop.f32.mrb[0].mxu0
    %3013 = vmatprep.mubr.f32.mxu0 0.0
    %3014 = vmatmul.mubr.f32.gmra.mrb[0].mxu0 %v2892
    %v3015 = vpop.f32.mrb[0].mxu0
    %v3016 = vadd.f32 %v2874, %v3015
    %v3017 = vpop.f32.mrb[0].mxu0
    %3018 = vmatprep.mubr.f32.mxu0 0.0
    %3019 = vmatmul.mubr.f32.gmra.mrb[0].mxu0 %v2895
    %v3020 = vpop.f32.mrb[0].mxu0
    %v3021 = vadd.f32 %v2874, %v3020
    %v3022 = vpop.f32.mrb[0].mxu0
    %3023 = vmatprep.mubr.f32.mxu0 0.0
    %3024 = vmatmul.mubr.f32.gmra.mrb[0].mxu0 %v2898
    %v3025 = vpop.f32.mrb[0].mxu0
    %v3026 = vadd.f32 %v2874, %v3025
    %v3027 = vpop.f32.mrb[0].mxu0
    %3028 = vmatprep.mubr.f32.mxu0 0.0
    %3029 = vmatmul.mubr.f32.gmra.mrb[0].mxu0 %v2901
    %v3030 = vpop.f32.mrb[0].mxu0
    %v3031 = vadd.f32 %v2874, %v3030
    %v3032 = vpop.f32.mrb[0].mxu0
    %3033 = vmatprep.mubr.f32.mxu0 0.0
    %3034 = vmatmul.mubr.f32.gmra.mrb[0].mxu0 %v2904
    %v3035 = vpop.f32.mrb[0].mxu0
    %v3036 = vadd.f32 %v2874, %v3035
    %v3037 = vpop.f32.mrb[0].mxu0
    %3038 = vmatprep.mubr.f32.mxu0 0.0
    %3039 = vmatmul.mubr.f32.gmra.mrb[0].mxu0 %v2907
    %v3040 = vpop.f32.mrb[0].mxu0
    %v3041 = vadd.f32 %v2874, %v3040
    %v3042 = vpop.f32.mrb[0].mxu0
    %3043 = vmatprep.mubr.f32.mxu0 0.0
    %3044 = vmatmul.mubr.f32.gmra.mrb[0].mxu0 %v2910
    %v3045 = vpop.f32.mrb[0].mxu0
    %v3046 = vadd.f32 %v2874, %v3045
    %v3047 = vpop.f32.mrb[0].mxu0
    %3048 = vmatprep.mubr.f32.mxu0 0.0
    %3049 = vmatmul.mubr.f32.gmra.mrb[0].mxu0 %v2913
    %v3050 = vpop.f32.mrb[0].mxu0
    %v3051 = vadd.f32 %v2874, %v3050
    %v3052 = vpop.f32.mrb[0].mxu0
    %3053 = vmatprep.mubr.f32.mxu0 0.0
    %3054 = vmatmul.mubr.f32.gmra.mrb[0].mxu0 %v2916
    %v3055 = vpop.f32.mrb[0].mxu0
    %v3056 = vadd.f32 %v2874, %v3055
    %v3057 = vpop.f32.mrb[0].mxu0
    %3058 = vmatprep.mubr.f32.mxu0 0.0
    %3059 = vmatmul.mubr.f32.gmra.mrb[0].mxu0 %v2919
    %v3060 = vpop.f32.mrb[0].mxu0
    %v3061 = vadd.f32 %v2874, %v3060
    %v3062 = vpop.f32.mrb[0].mxu0
    %3063 = vmatprep.mubr.f32.mxu0 0.0
    %3064 = vmatmul.mubr.f32.gmra.mrb[0].mxu0 %v2922
    %v3065 = vpop.f32.mrb[0].mxu0
    %v3066 = vadd.f32 %v2874, %v3065
    %v3067 = vpop.f32.mrb[0].mxu0
    %3068 = vdwg.mxu0
    %3077 = vrot.lane.b32.xlu0 %v2991, 96
    %v3078 = vpop.permute.xlu0 %3077
    %3079 = vrot.lane.b32.xlu0 %v2996, 96
    %v3080 = vpop.permute.xlu0 %3079
    %3081 = vrot.lane.b32.xlu0 %v3001, 96
    %v3082 = vpop.permute.xlu0 %3081
    %3083 = vrot.lane.b32.xlu0 %v3006, 96
    %v3084 = vpop.permute.xlu0 %3083
    %3085 = vrot.lane.b32.xlu0 %v3011, 96
    %v3086 = vpop.permute.xlu0 %3085
    %3087 = vrot.lane.b32.xlu0 %v3016, 96
    %v3088 = vpop.permute.xlu0 %3087
    %3089 = vrot.lane.b32.xlu0 %v3021, 96
    %v3090 = vpop.permute.xlu0 %3089
    %3091 = vrot.lane.b32.xlu0 %v3026, 96
    %v3092 = vpop.permute.xlu0 %3091
    %v3093 = vsel %vm325, %v2991, 0
    %v3095 = vsel %vm325, %v2996, 0
    %v3097 = vsel %vm325, %v3001, 0
    %v3099 = vsel %vm325, %v3006, 0
    %v3101 = vsel %vm325, %v3011, 0
    %v3103 = vsel %vm325, %v3016, 0
    %v3105 = vsel %vm325, %v3021, 0
    %v3107 = vsel %vm325, %v3026, 0
    %v3109 = vsel %vm325, %v3078, 0
    %v3111 = vsel %vm325, %v3080, 0
    %v3113 = vsel %vm325, %v3082, 0
    %v3115 = vsel %vm325, %v3084, 0
    %v3117 = vsel %vm325, %v3086, 0
    %v3119 = vsel %vm325, %v3088, 0
    %v3121 = vsel %vm325, %v3090, 0
    %v3123 = vsel %vm325, %v3092, 0
    %3125 = vmatprep.subr.mxu0 0.0
    %3126 = vmatpush1.xpose.msra.mxu0 %v3109
    %3127 = vmatprep.subr.mxu0 0.0
    %3128 = vmatpush1.xpose.msra.mxu0 %v3111
    %3129 = vmatprep.subr.mxu0 0.0
    %3130 = vmatpush1.xpose.msra.mxu0 %v3113
    %3131 = vmatprep.subr.mxu0 0.0
    %3132 = vmatpush1.xpose.msra.mxu0 %v3115
    %3133 = vmatprep.subr.mxu0 0.0
    %3134 = vmatpush1.xpose.msra.mxu0 %v3117
    %3135 = vmatprep.subr.mxu0 0.0
    %3136 = vmatpush1.xpose.msra.mxu0 %v3119
    %3137 = vmatprep.subr.mxu0 0.0
    %3138 = vmatpush1.xpose.msra.mxu0 %v3121
    %3139 = vmatprep.subr.mxu0 0.0
    %3140 = vmatpush1.xpose.msra.mxu0 %v3123
    %3141 = vmatprep.subr.mxu0 0.0
    %3142 = vmatpush1.xpose.msra.mxu0 0.0
    %3143 = vmatprep.subr.mxu0 0.0
    %3144 = vmatpush1.xpose.msra.mxu0 0.0
    %3145 = vmatprep.subr.mxu0 0.0
    %3146 = vmatpush1.xpose.msra.mxu0 0.0
    %3147 = vmatprep.subr.mxu0 0.0
    %3148 = vmatpush1.xpose.msra.mxu0 0.0
    %3149 = vmatprep.subr.mxu0 0.0
    %3150 = vmatpush1.xpose.msra.mxu0 0.0
    %3151 = vmatprep.subr.mxu0 0.0
    %3152 = vmatpush1.xpose.msra.mxu0 0.0
    %3153 = vmatprep.subr.mxu0 0.0
    %3154 = vmatpush1.xpose.msra.mxu0 0.0
    %3155 = vmatprep.subr.mxu0 0.0
    %3156 = vmatpush1.xpose.msra.mxu0 0.0
    %3157 = vmatprep.subr.mxu0 0.0
    %3158 = vmatpush1.xpose.msra.mxu0 0.0
    %3159 = vmatprep.subr.mxu0 0.0
    %3160 = vmatpush1.xpose.msra.mxu0 0.0
    %3161 = vmatprep.subr.mxu0 0.0
    %3162 = vmatpush1.xpose.msra.mxu0 0.0
    %3163 = vmatprep.subr.mxu0 0.0
    %3164 = vmatpush1.xpose.msra.mxu0 0.0
    %3165 = vmatprep.subr.mxu0 0.0
    %3166 = vmatpush1.xpose.msra.mxu0 0.0
    %3167 = vmatprep.subr.mxu0 0.0
    %3168 = vmatpush1.xpose.msra.mxu0 0.0
    %3169 = vmatprep.subr.mxu0 0.0
    %3170 = vmatpush1.xpose.msra.mxu0 0.0
    %3171 = vmatprep.subr.mxu0 0.0
    %3172 = vmatpush1.xpose.msra.mxu0 0.0
    %3173 = vmatprep.subr.mxu0 0.0
    %3174 = vmatpush1.xpose.msra.mxu0 0.0
    %3175 = vmatprep.subr.mxu0 0.0
    %3176 = vmatpush1.xpose.msra.mxu0 0.0
    %3177 = vmatprep.subr.mxu0 0.0
    %3178 = vmatpush1.xpose.msra.mxu0 0.0
    %3179 = vmatprep.subr.mxu0 0.0
    %3180 = vmatpush1.xpose.msra.mxu0 0.0
    %3181 = vmatprep.subr.mxu0 0.0
    %3182 = vmatpush1.xpose.msra.mxu0 0.0
    %3183 = vmatprep.subr.mxu0 0.0
    %3184 = vmatpush1.xpose.msra.mxu0 0.0
    %3185 = vmatprep.subr.mxu0 0.0
    %3186 = vmatpush1.xpose.msra.mxu0 0.0
    %3187 = vmatprep.subr.mxu0 0.0
    %3188 = vmatpush1.xpose.msra.mxu0 0.0
    %3189 = vmatprep.mubr.f32.mxu0 0.0
    %3190 = vmatmul.mubr.f32.gmra.mrb[0].mxu0 %v3093
    %v3191 = vpop.f32.mrb[0].mxu0
    %v3192 = vadd.f32 0.0, %v3191
    %v3193 = vpop.f32.mrb[0].mxu0
    %3194 = vmatprep.mubr.f32.mxu0 0.0
    %3195 = vmatmul.mubr.f32.gmra.mrb[0].mxu0 %v3095
    %v3196 = vpop.f32.mrb[0].mxu0
    %v3197 = vadd.f32 0.0, %v3196
    %v3198 = vpop.f32.mrb[0].mxu0
    %3199 = vmatprep.mubr.f32.mxu0 0.0
    %3200 = vmatmul.mubr.f32.gmra.mrb[0].mxu0 %v3097
    %v3201 = vpop.f32.mrb[0].mxu0
    %v3202 = vadd.f32 0.0, %v3201
    %v3203 = vpop.f32.mrb[0].mxu0
    %3204 = vmatprep.mubr.f32.mxu0 0.0
    %3205 = vmatmul.mubr.f32.gmra.mrb[0].mxu0 %v3099
    %v3206 = vpop.f32.mrb[0].mxu0
    %v3207 = vadd.f32 0.0, %v3206
    %v3208 = vpop.f32.mrb[0].mxu0
    %3209 = vmatprep.mubr.f32.mxu0 0.0
    %3210 = vmatmul.mubr.f32.gmra.mrb[0].mxu0 %v3101
    %v3211 = vpop.f32.mrb[0].mxu0
    %v3212 = vadd.f32 0.0, %v3211
    %v3213 = vpop.f32.mrb[0].mxu0
    %3214 = vmatprep.mubr.f32.mxu0 0.0
    %3215 = vmatmul.mubr.f32.gmra.mrb[0].mxu0 %v3103
    %v3216 = vpop.f32.mrb[0].mxu0
    %v3217 = vadd.f32 0.0, %v3216
    %v3218 = vpop.f32.mrb[0].mxu0
    %3219 = vmatprep.mubr.f32.mxu0 0.0
    %3220 = vmatmul.mubr.f32.gmra.mrb[0].mxu0 %v3105
    %v3221 = vpop.f32.mrb[0].mxu0
    %v3222 = vadd.f32 0.0, %v3221
    %v3223 = vpop.f32.mrb[0].mxu0
    %3224 = vmatprep.mubr.f32.mxu0 0.0
    %3225 = vmatmul.mubr.f32.gmra.mrb[0].mxu0 %v3107
    %v3226 = vpop.f32.mrb[0].mxu0
    %v3227 = vadd.f32 0.0, %v3226
    %v3228 = vpop.f32.mrb[0].mxu0
    %3229 = vdwg.mxu0
    %v3230 = vmul.f32 %v3192, 0.25
    %v3231 = vmul.f32 %v3197, 0.25
    %v3232 = vmul.f32 %v3202, 0.25
    %v3233 = vmul.f32 %v3207, 0.25
    %v3234 = vmul.f32 %v3212, 0.25
    %v3235 = vmul.f32 %v3217, 0.25
    %v3236 = vmul.f32 %v3222, 0.25
    %v3237 = vmul.f32 %v3227, 0.25
    %v3238 = vsel %vm471, %v3230, -inf
    %3239 = vmax.xlane.f32.xlu0 %v3238
    %v3240 = vpop.xlane.xlu0 %3239
    %v3241 = vsel %vm471, %v3231, -inf
    %3242 = vmax.xlane.f32.xlu0 %v3241
    %v3243 = vpop.xlane.xlu0 %3242
    %v3244 = vsel %vm471, %v3232, -inf
    %3245 = vmax.xlane.f32.xlu0 %v3244
    %v3246 = vpop.xlane.xlu0 %3245
    %v3247 = vsel %vm471, %v3233, -inf
    %3248 = vmax.xlane.f32.xlu0 %v3247
    %v3249 = vpop.xlane.xlu0 %3248
    %v3250 = vsel %vm471, %v3234, -inf
    %3251 = vmax.xlane.f32.xlu0 %v3250
    %v3252 = vpop.xlane.xlu0 %3251
    %v3253 = vsel %vm471, %v3235, -inf
    %3254 = vmax.xlane.f32.xlu0 %v3253
    %v3255 = vpop.xlane.xlu0 %3254
    %v3256 = vsel %vm471, %v3236, -inf
    %3257 = vmax.xlane.f32.xlu0 %v3256
    %v3258 = vpop.xlane.xlu0 %3257
    %v3259 = vsel %vm471, %v3237, -inf
    %3260 = vmax.xlane.f32.xlu0 %v3259
    %v3261 = vpop.xlane.xlu0 %3260
    %v3262 = vsub.f32 %v3230, %v3240
    %v3263 = vsub.f32 %v3231, %v3243
    %v3264 = vsub.f32 %v3232, %v3246
    %v3265 = vsub.f32 %v3233, %v3249
    %v3266 = vsub.f32 %v3234, %v3252
    %v3267 = vsub.f32 %v3235, %v3255
    %v3268 = vsub.f32 %v3236, %v3258
    %v3269 = vsub.f32 %v3237, %v3261
    %v3270 = vmul.f32 %v3262, 1.442695
    %v3271 = vpow.pop %v3270
    %v3272 = vmul.f32 %v3263, 1.442695
    %v3273 = vpow.pop %v3272
    %v3274 = vmul.f32 %v3264, 1.442695
    %v3275 = vpow.pop %v3274
    %v3276 = vmul.f32 %v3265, 1.442695
    %v3277 = vpow.pop %v3276
    %v3278 = vmul.f32 %v3266, 1.442695
    %v3279 = vpow.pop %v3278
    %v3280 = vmul.f32 %v3267, 1.442695
    %v3281 = vpow.pop %v3280
    %v3282 = vmul.f32 %v3268, 1.442695
    %v3283 = vpow.pop %v3282
    %v3284 = vmul.f32 %v3269, 1.442695
    %v3285 = vpow.pop %v3284
    %v3286 = vsel %vm471, %v3271, 0.0
    %3287 = vadd.xlane.f32.xlu0 %v3286
    %v3288 = vpop.xlane.xlu0 %3287
    %v3289 = vsel %vm471, %v3273, 0.0
    %3290 = vadd.xlane.f32.xlu0 %v3289
    %v3291 = vpop.xlane.xlu0 %3290
    %v3292 = vsel %vm471, %v3275, 0.0
    %3293 = vadd.xlane.f32.xlu0 %v3292
    %v3294 = vpop.xlane.xlu0 %3293
    %v3295 = vsel %vm471, %v3277, 0.0
    %3296 = vadd.xlane.f32.xlu0 %v3295
    %v3297 = vpop.xlane.xlu0 %3296
    %v3298 = vsel %vm471, %v3279, 0.0
    %3299 = vadd.xlane.f32.xlu0 %v3298
    %v3300 = vpop.xlane.xlu0 %3299
    %v3301 = vsel %vm471, %v3281, 0.0
    %3302 = vadd.xlane.f32.xlu0 %v3301
    %v3303 = vpop.xlane.xlu0 %3302
    %v3304 = vsel %vm471, %v3283, 0.0
    %3305 = vadd.xlane.f32.xlu0 %v3304
    %v3306 = vpop.xlane.xlu0 %3305
    %v3307 = vsel %vm471, %v3285, 0.0
    %3308 = vadd.xlane.f32.xlu0 %v3307
    %v3309 = vpop.xlane.xlu0 %3308
    %v3310 = vrcp.pop %v3288
    %v3311 = vmul.f32 %v3271, %v3310
    %v3312 = vrcp.pop %v3291
    %v3313 = vmul.f32 %v3273, %v3312
    %v3314 = vrcp.pop %v3294
    %v3315 = vmul.f32 %v3275, %v3314
    %v3316 = vrcp.pop %v3297
    %v3317 = vmul.f32 %v3277, %v3316
    %v3318 = vrcp.pop %v3300
    %v3319 = vmul.f32 %v3279, %v3318
    %v3320 = vrcp.pop %v3303
    %v3321 = vmul.f32 %v3281, %v3320
    %v3322 = vrcp.pop %v3306
    %v3323 = vmul.f32 %v3283, %v3322
    %v3324 = vrcp.pop %v3309
    %v3325 = vmul.f32 %v3285, %v3324
    %3326 = vrot.lane.b32.xlu0 %v2991, 64
    %v3327 = vpop.permute.xlu0 %3326
    %3328 = vrot.lane.b32.xlu0 %v2996, 64
    %v3329 = vpop.permute.xlu0 %3328
    %3330 = vrot.lane.b32.xlu0 %v3001, 64
    %v3331 = vpop.permute.xlu0 %3330
    %3332 = vrot.lane.b32.xlu0 %v3006, 64
    %v3333 = vpop.permute.xlu0 %3332
    %3334 = vrot.lane.b32.xlu0 %v3011, 64
    %v3335 = vpop.permute.xlu0 %3334
    %3336 = vrot.lane.b32.xlu0 %v3016, 64
    %v3337 = vpop.permute.xlu0 %3336
    %3338 = vrot.lane.b32.xlu0 %v3021, 64
    %v3339 = vpop.permute.xlu0 %3338
    %3340 = vrot.lane.b32.xlu0 %v3026, 64
    %v3341 = vpop.permute.xlu0 %3340
    %v3351 = vsel %vm471, %v3311, 0
    %v3354 = vsel %vm471, %v3313, 0
    %v3357 = vsel %vm471, %v3315, 0
    %v3360 = vsel %vm471, %v3317, 0
    %v3363 = vsel %vm471, %v3319, 0
    %v3366 = vsel %vm471, %v3321, 0
    %v3369 = vsel %vm471, %v3323, 0
    %v3372 = vsel %vm471, %v3325, 0
    %3374 = vmatprep.subr.mxu0 0.0
    %3375 = vmatpush1.msra.mxu0 %v3327
    %3376 = vmatprep.subr.mxu0 0.0
    %3377 = vmatpush1.msra.mxu0 %v3329
    %3378 = vmatprep.subr.mxu0 0.0
    %3379 = vmatpush1.msra.mxu0 %v3331
    %3380 = vmatprep.subr.mxu0 0.0
    %3381 = vmatpush1.msra.mxu0 %v3333
    %3382 = vmatprep.subr.mxu0 0.0
    %3383 = vmatpush1.msra.mxu0 %v3335
    %3384 = vmatprep.subr.mxu0 0.0
    %3385 = vmatpush1.msra.mxu0 %v3337
    %3386 = vmatprep.subr.mxu0 0.0
    %3387 = vmatpush1.msra.mxu0 %v3339
    %3388 = vmatprep.subr.mxu0 0.0
    %3389 = vmatpush1.msra.mxu0 %v3341
    %3390 = vmatprep.subr.mxu0 0.0
    %3391 = vmatpush1.msra.mxu0 0.0
    %3392 = vmatprep.subr.mxu0 0.0
    %3393 = vmatpush1.msra.mxu0 0.0
    %3394 = vmatprep.subr.mxu0 0.0
    %3395 = vmatpush1.msra.mxu0 0.0
    %3396 = vmatprep.subr.mxu0 0.0
    %3397 = vmatpush1.msra.mxu0 0.0
    %3398 = vmatprep.subr.mxu0 0.0
    %3399 = vmatpush1.msra.mxu0 0.0
    %3400 = vmatprep.subr.mxu0 0.0
    %3401 = vmatpush1.msra.mxu0 0.0
    %3402 = vmatprep.subr.mxu0 0.0
    %3403 = vmatpush1.msra.mxu0 0.0
    %3404 = vmatprep.subr.mxu0 0.0
    %3405 = vmatpush1.msra.mxu0 0.0
    %3406 = vmatprep.subr.mxu0 0.0
    %3407 = vmatpush1.msra.mxu0 0.0
    %3408 = vmatprep.subr.mxu0 0.0
    %3409 = vmatpush1.msra.mxu0 0.0
    %3410 = vmatprep.subr.mxu0 0.0
    %3411 = vmatpush1.msra.mxu0 0.0
    %3412 = vmatprep.subr.mxu0 0.0
    %3413 = vmatpush1.msra.mxu0 0.0
    %3414 = vmatprep.subr.mxu0 0.0
    %3415 = vmatpush1.msra.mxu0 0.0
    %3416 = vmatprep.subr.mxu0 0.0
    %3417 = vmatpush1.msra.mxu0 0.0
    %3418 = vmatprep.subr.mxu0 0.0
    %3419 = vmatpush1.msra.mxu0 0.0
    %3420 = vmatprep.subr.mxu0 0.0
    %3421 = vmatpush1.msra.mxu0 0.0
    %3422 = vmatprep.subr.mxu0 0.0
    %3423 = vmatpush1.msra.mxu0 0.0
    %3424 = vmatprep.subr.mxu0 0.0
    %3425 = vmatpush1.msra.mxu0 0.0
    %3426 = vmatprep.subr.mxu0 0.0
    %3427 = vmatpush1.msra.mxu0 0.0
    %3428 = vmatprep.subr.mxu0 0.0
    %3429 = vmatpush1.msra.mxu0 0.0
    %3430 = vmatprep.subr.mxu0 0.0
    %3431 = vmatpush1.msra.mxu0 0.0
    %3432 = vmatprep.subr.mxu0 0.0
    %3433 = vmatpush1.msra.mxu0 0.0
    %3434 = vmatprep.subr.mxu0 0.0
    %3435 = vmatpush1.msra.mxu0 0.0
    %3436 = vmatprep.subr.mxu0 0.0
    %3437 = vmatpush1.msra.mxu0 0.0
    %3438 = vmatprep.mubr.f32.mxu0 0.0
    %3439 = vmatmul.mubr.f32.gmra.mrb[0].mxu0 %v3351
    %v3440 = vpop.f32.mrb[0].mxu0
    %v3441 = vadd.f32 0.0, %v3440
    %v3442 = vpop.f32.mrb[0].mxu0
    %3443 = vmatprep.mubr.f32.mxu0 0.0
    %3444 = vmatmul.mubr.f32.gmra.mrb[0].mxu0 %v3354
    %v3445 = vpop.f32.mrb[0].mxu0
    %v3446 = vadd.f32 0.0, %v3445
    %v3447 = vpop.f32.mrb[0].mxu0
    %3448 = vmatprep.mubr.f32.mxu0 0.0
    %3449 = vmatmul.mubr.f32.gmra.mrb[0].mxu0 %v3357
    %v3450 = vpop.f32.mrb[0].mxu0
    %v3451 = vadd.f32 0.0, %v3450
    %v3452 = vpop.f32.mrb[0].mxu0
    %3453 = vmatprep.mubr.f32.mxu0 0.0
    %3454 = vmatmul.mubr.f32.gmra.mrb[0].mxu0 %v3360
    %v3455 = vpop.f32.mrb[0].mxu0
    %v3456 = vadd.f32 0.0, %v3455
    %v3457 = vpop.f32.mrb[0].mxu0
    %3458 = vmatprep.mubr.f32.mxu0 0.0
    %3459 = vmatmul.mubr.f32.gmra.mrb[0].mxu0 %v3363
    %v3460 = vpop.f32.mrb[0].mxu0
    %v3461 = vadd.f32 0.0, %v3460
    %v3462 = vpop.f32.mrb[0].mxu0
    %3463 = vmatprep.mubr.f32.mxu0 0.0
    %3464 = vmatmul.mubr.f32.gmra.mrb[0].mxu0 %v3366
    %v3465 = vpop.f32.mrb[0].mxu0
    %v3466 = vadd.f32 0.0, %v3465
    %v3467 = vpop.f32.mrb[0].mxu0
    %3468 = vmatprep.mubr.f32.mxu0 0.0
    %3469 = vmatmul.mubr.f32.gmra.mrb[0].mxu0 %v3369
    %v3470 = vpop.f32.mrb[0].mxu0
    %v3471 = vadd.f32 0.0, %v3470
    %v3472 = vpop.f32.mrb[0].mxu0
    %3473 = vmatprep.mubr.f32.mxu0 0.0
    %3474 = vmatmul.mubr.f32.gmra.mrb[0].mxu0 %v3372
    %v3475 = vpop.f32.mrb[0].mxu0
    %v3476 = vadd.f32 0.0, %v3475
    %v3477 = vpop.f32.mrb[0].mxu0
    %3478 = vdwg.mxu0
    %3479 = vrot.lane.b32.xlu0 %v2991, 112
    %v3480 = vpop.permute.xlu0 %3479
    %3481 = vrot.lane.b32.xlu0 %v2996, 112
    %v3482 = vpop.permute.xlu0 %3481
    %3483 = vrot.lane.b32.xlu0 %v3001, 112
    %v3484 = vpop.permute.xlu0 %3483
    %3485 = vrot.lane.b32.xlu0 %v3006, 112
    %v3486 = vpop.permute.xlu0 %3485
    %3487 = vrot.lane.b32.xlu0 %v3011, 112
    %v3488 = vpop.permute.xlu0 %3487
    %3489 = vrot.lane.b32.xlu0 %v3016, 112
    %v3490 = vpop.permute.xlu0 %3489
    %3491 = vrot.lane.b32.xlu0 %v3021, 112
    %v3492 = vpop.permute.xlu0 %3491
    %3493 = vrot.lane.b32.xlu0 %v3026, 112
    %v3494 = vpop.permute.xlu0 %3493
    %3495 = vrot.lane.b32.xlu0 %v2991, 80
    %v3496 = vpop.permute.xlu0 %3495
    %3497 = vrot.lane.b32.xlu0 %v2996, 80
    %v3498 = vpop.permute.xlu0 %3497
    %3499 = vrot.lane.b32.xlu0 %v3001, 80
    %v3500 = vpop.permute.xlu0 %3499
    %3501 = vrot.lane.b32.xlu0 %v3006, 80
    %v3502 = vpop.permute.xlu0 %3501
    %3503 = vrot.lane.b32.xlu0 %v3011, 80
    %v3504 = vpop.permute.xlu0 %3503
    %3505 = vrot.lane.b32.xlu0 %v3016, 80
    %v3506 = vpop.permute.xlu0 %3505
    %3507 = vrot.lane.b32.xlu0 %v3021, 80
    %v3508 = vpop.permute.xlu0 %3507
    %3509 = vrot.lane.b32.xlu0 %v3026, 80
    %v3510 = vpop.permute.xlu0 %3509
    %v3511 = vsel %vm325, %v3480, 0
    %v3513 = vsel %vm325, %v3482, 0
    %v3515 = vsel %vm325, %v3484, 0
    %v3517 = vsel %vm325, %v3486, 0
    %v3519 = vsel %vm325, %v3488, 0
    %v3521 = vsel %vm325, %v3490, 0
    %v3523 = vsel %vm325, %v3492, 0
    %v3525 = vsel %vm325, %v3494, 0
    %v3527 = vsel %vm325, %v3496, 0
    %v3529 = vsel %vm325, %v3498, 0
    %v3531 = vsel %vm325, %v3500, 0
    %v3533 = vsel %vm325, %v3502, 0
    %v3535 = vsel %vm325, %v3504, 0
    %v3537 = vsel %vm325, %v3506, 0
    %v3539 = vsel %vm325, %v3508, 0
    %v3541 = vsel %vm325, %v3510, 0
    %3543 = vmatprep.subr.mxu0 0.0
    %3544 = vmatpush1.xpose.msra.mxu0 %v3527
    %3545 = vmatprep.subr.mxu0 0.0
    %3546 = vmatpush1.xpose.msra.mxu0 %v3529
    %3547 = vmatprep.subr.mxu0 0.0
    %3548 = vmatpush1.xpose.msra.mxu0 %v3531
    %3549 = vmatprep.subr.mxu0 0.0
    %3550 = vmatpush1.xpose.msra.mxu0 %v3533
    %3551 = vmatprep.subr.mxu0 0.0
    %3552 = vmatpush1.xpose.msra.mxu0 %v3535
    %3553 = vmatprep.subr.mxu0 0.0
    %3554 = vmatpush1.xpose.msra.mxu0 %v3537
    %3555 = vmatprep.subr.mxu0 0.0
    %3556 = vmatpush1.xpose.msra.mxu0 %v3539
    %3557 = vmatprep.subr.mxu0 0.0
    %3558 = vmatpush1.xpose.msra.mxu0 %v3541
    %3559 = vmatprep.subr.mxu0 0.0
    %3560 = vmatpush1.xpose.msra.mxu0 0.0
    %3561 = vmatprep.subr.mxu0 0.0
    %3562 = vmatpush1.xpose.msra.mxu0 0.0
    %3563 = vmatprep.subr.mxu0 0.0
    %3564 = vmatpush1.xpose.msra.mxu0 0.0
    %3565 = vmatprep.subr.mxu0 0.0
    %3566 = vmatpush1.xpose.msra.mxu0 0.0
    %3567 = vmatprep.subr.mxu0 0.0
    %3568 = vmatpush1.xpose.msra.mxu0 0.0
    %3569 = vmatprep.subr.mxu0 0.0
    %3570 = vmatpush1.xpose.msra.mxu0 0.0
    %3571 = vmatprep.subr.mxu0 0.0
    %3572 = vmatpush1.xpose.msra.mxu0 0.0
    %3573 = vmatprep.subr.mxu0 0.0
    %3574 = vmatpush1.xpose.msra.mxu0 0.0
    %3575 = vmatprep.subr.mxu0 0.0
    %3576 = vmatpush1.xpose.msra.mxu0 0.0
    %3577 = vmatprep.subr.mxu0 0.0
    %3578 = vmatpush1.xpose.msra.mxu0 0.0
    %3579 = vmatprep.subr.mxu0 0.0
    %3580 = vmatpush1.xpose.msra.mxu0 0.0
    %3581 = vmatprep.subr.mxu0 0.0
    %3582 = vmatpush1.xpose.msra.mxu0 0.0
    %3583 = vmatprep.subr.mxu0 0.0
    %3584 = vmatpush1.xpose.msra.mxu0 0.0
    %3585 = vmatprep.subr.mxu0 0.0
    %3586 = vmatpush1.xpose.msra.mxu0 0.0
    %3587 = vmatprep.subr.mxu0 0.0
    %3588 = vmatpush1.xpose.msra.mxu0 0.0
    %3589 = vmatprep.subr.mxu0 0.0
    %3590 = vmatpush1.xpose.msra.mxu0 0.0
    %3591 = vmatprep.subr.mxu0 0.0
    %3592 = vmatpush1.xpose.msra.mxu0 0.0
    %3593 = vmatprep.subr.mxu0 0.0
    %3594 = vmatpush1.xpose.msra.mxu0 0.0
    %3595 = vmatprep.subr.mxu0 0.0
    %3596 = vmatpush1.xpose.msra.mxu0 0.0
    %3597 = vmatprep.subr.mxu0 0.0
    %3598 = vmatpush1.xpose.msra.mxu0 0.0
    %3599 = vmatprep.subr.mxu0 0.0
    %3600 = vmatpush1.xpose.msra.mxu0 0.0
    %3601 = vmatprep.subr.mxu0 0.0
    %3602 = vmatpush1.xpose.msra.mxu0 0.0
    %3603 = vmatprep.subr.mxu0 0.0
    %3604 = vmatpush1.xpose.msra.mxu0 0.0
    %3605 = vmatprep.subr.mxu0 0.0
    %3606 = vmatpush1.xpose.msra.mxu0 0.0
    %3607 = vmatprep.mubr.f32.mxu0 0.0
    %3608 = vmatmul.mubr.f32.gmra.mrb[0].mxu0 %v3511
    %v3609 = vpop.f32.mrb[0].mxu0
    %v3610 = vadd.f32 0.0, %v3609
    %v3611 = vpop.f32.mrb[0].mxu0
    %3612 = vmatprep.mubr.f32.mxu0 0.0
    %3613 = vmatmul.mubr.f32.gmra.mrb[0].mxu0 %v3513
    %v3614 = vpop.f32.mrb[0].mxu0
    %v3615 = vadd.f32 0.0, %v3614
    %v3616 = vpop.f32.mrb[0].mxu0
    %3617 = vmatprep.mubr.f32.mxu0 0.0
    %3618 = vmatmul.mubr.f32.gmra.mrb[0].mxu0 %v3515
    %v3619 = vpop.f32.mrb[0].mxu0
    %v3620 = vadd.f32 0.0, %v3619
    %v3621 = vpop.f32.mrb[0].mxu0
    %3622 = vmatprep.mubr.f32.mxu0 0.0
    %3623 = vmatmul.mubr.f32.gmra.mrb[0].mxu0 %v3517
    %v3624 = vpop.f32.mrb[0].mxu0
    %v3625 = vadd.f32 0.0, %v3624
    %v3626 = vpop.f32.mrb[0].mxu0
    %3627 = vmatprep.mubr.f32.mxu0 0.0
    %3628 = vmatmul.mubr.f32.gmra.mrb[0].mxu0 %v3519
    %v3629 = vpop.f32.mrb[0].mxu0
    %v3630 = vadd.f32 0.0, %v3629
    %v3631 = vpop.f32.mrb[0].mxu0
    %3632 = vmatprep.mubr.f32.mxu0 0.0
    %3633 = vmatmul.mubr.f32.gmra.mrb[0].mxu0 %v3521
    %v3634 = vpop.f32.mrb[0].mxu0
    %v3635 = vadd.f32 0.0, %v3634
    %v3636 = vpop.f32.mrb[0].mxu0
    %3637 = vmatprep.mubr.f32.mxu0 0.0
    %3638 = vmatmul.mubr.f32.gmra.mrb[0].mxu0 %v3523
    %v3639 = vpop.f32.mrb[0].mxu0
    %v3640 = vadd.f32 0.0, %v3639
    %v3641 = vpop.f32.mrb[0].mxu0
    %3642 = vmatprep.mubr.f32.mxu0 0.0
    %3643 = vmatmul.mubr.f32.gmra.mrb[0].mxu0 %v3525
    %v3644 = vpop.f32.mrb[0].mxu0
    %v3645 = vadd.f32 0.0, %v3644
    %v3646 = vpop.f32.mrb[0].mxu0
    %3647 = vdwg.mxu0
    %v3648 = vmul.f32 %v3610, 0.25
    %v3649 = vmul.f32 %v3615, 0.25
    %v3650 = vmul.f32 %v3620, 0.25
    %v3651 = vmul.f32 %v3625, 0.25
    %v3652 = vmul.f32 %v3630, 0.25
    %v3653 = vmul.f32 %v3635, 0.25
    %v3654 = vmul.f32 %v3640, 0.25
    %v3655 = vmul.f32 %v3645, 0.25
    %v3656 = vsel %vm471, %v3648, -inf
    %3657 = vmax.xlane.f32.xlu0 %v3656
    %v3658 = vpop.xlane.xlu0 %3657
    %v3659 = vsel %vm471, %v3649, -inf
    %3660 = vmax.xlane.f32.xlu0 %v3659
    %v3661 = vpop.xlane.xlu0 %3660
    %v3662 = vsel %vm471, %v3650, -inf
    %3663 = vmax.xlane.f32.xlu0 %v3662
    %v3664 = vpop.xlane.xlu0 %3663
    %v3665 = vsel %vm471, %v3651, -inf
    %3666 = vmax.xlane.f32.xlu0 %v3665
    %v3667 = vpop.xlane.xlu0 %3666
    %v3668 = vsel %vm471, %v3652, -inf
    %3669 = vmax.xlane.f32.xlu0 %v3668
    %v3670 = vpop.xlane.xlu0 %3669
    %v3671 = vsel %vm471, %v3653, -inf
    %3672 = vmax.xlane.f32.xlu0 %v3671
    %v3673 = vpop.xlane.xlu0 %3672
    %v3674 = vsel %vm471, %v3654, -inf
    %3675 = vmax.xlane.f32.xlu0 %v3674
    %v3676 = vpop.xlane.xlu0 %3675
    %v3677 = vsel %vm471, %v3655, -inf
    %3678 = vmax.xlane.f32.xlu0 %v3677
    %v3679 = vpop.xlane.xlu0 %3678
    %v3680 = vsub.f32 %v3648, %v3658
    %v3681 = vsub.f32 %v3649, %v3661
    %v3682 = vsub.f32 %v3650, %v3664
    %v3683 = vsub.f32 %v3651, %v3667
    %v3684 = vsub.f32 %v3652, %v3670
    %v3685 = vsub.f32 %v3653, %v3673
    %v3686 = vsub.f32 %v3654, %v3676
    %v3687 = vsub.f32 %v3655, %v3679
    %v3688 = vmul.f32 %v3680, 1.442695
    %v3689 = vpow.pop %v3688
    %v3690 = vmul.f32 %v3681, 1.442695
    %v3691 = vpow.pop %v3690
    %v3692 = vmul.f32 %v3682, 1.442695
    %v3693 = vpow.pop %v3692
    %v3694 = vmul.f32 %v3683, 1.442695
    %v3695 = vpow.pop %v3694
    %v3696 = vmul.f32 %v3684, 1.442695
    %v3697 = vpow.pop %v3696
    %v3698 = vmul.f32 %v3685, 1.442695
    %v3699 = vpow.pop %v3698
    %v3700 = vmul.f32 %v3686, 1.442695
    %v3701 = vpow.pop %v3700
    %v3702 = vmul.f32 %v3687, 1.442695
    %v3703 = vpow.pop %v3702
    %v3704 = vsel %vm471, %v3689, 0.0
    %3705 = vadd.xlane.f32.xlu0 %v3704
    %v3706 = vpop.xlane.xlu0 %3705
    %v3707 = vsel %vm471, %v3691, 0.0
    %3708 = vadd.xlane.f32.xlu0 %v3707
    %v3709 = vpop.xlane.xlu0 %3708
    %v3710 = vsel %vm471, %v3693, 0.0
    %3711 = vadd.xlane.f32.xlu0 %v3710
    %v3712 = vpop.xlane.xlu0 %3711
    %v3713 = vsel %vm471, %v3695, 0.0
    %3714 = vadd.xlane.f32.xlu0 %v3713
    %v3715 = vpop.xlane.xlu0 %3714
    %v3716 = vsel %vm471, %v3697, 0.0
    %3717 = vadd.xlane.f32.xlu0 %v3716
    %v3718 = vpop.xlane.xlu0 %3717
    %v3719 = vsel %vm471, %v3699, 0.0
    %3720 = vadd.xlane.f32.xlu0 %v3719
    %v3721 = vpop.xlane.xlu0 %3720
    %v3722 = vsel %vm471, %v3701, 0.0
    %3723 = vadd.xlane.f32.xlu0 %v3722
    %v3724 = vpop.xlane.xlu0 %3723
    %v3725 = vsel %vm471, %v3703, 0.0
    %3726 = vadd.xlane.f32.xlu0 %v3725
    %v3727 = vpop.xlane.xlu0 %3726
    %v3728 = vrcp.pop %v3706
    %v3729 = vmul.f32 %v3689, %v3728
    %v3730 = vrcp.pop %v3709
    %v3731 = vmul.f32 %v3691, %v3730
    %v3732 = vrcp.pop %v3712
    %v3733 = vmul.f32 %v3693, %v3732
    %v3734 = vrcp.pop %v3715
    %v3735 = vmul.f32 %v3695, %v3734
    %v3736 = vrcp.pop %v3718
    %v3737 = vmul.f32 %v3697, %v3736
    %v3738 = vrcp.pop %v3721
    %v3739 = vmul.f32 %v3699, %v3738
    %v3740 = vrcp.pop %v3724
    %v3741 = vmul.f32 %v3701, %v3740
    %v3742 = vrcp.pop %v3727
    %v3743 = vmul.f32 %v3703, %v3742
    %3744 = vrot.lane.b32.xlu0 %v2991, 48
    %v3745 = vpop.permute.xlu0 %3744
    %3746 = vrot.lane.b32.xlu0 %v2996, 48
    %v3747 = vpop.permute.xlu0 %3746
    %3748 = vrot.lane.b32.xlu0 %v3001, 48
    %v3749 = vpop.permute.xlu0 %3748
    %3750 = vrot.lane.b32.xlu0 %v3006, 48
    %v3751 = vpop.permute.xlu0 %3750
    %3752 = vrot.lane.b32.xlu0 %v3011, 48
    %v3753 = vpop.permute.xlu0 %3752
    %3754 = vrot.lane.b32.xlu0 %v3016, 48
    %v3755 = vpop.permute.xlu0 %3754
    %3756 = vrot.lane.b32.xlu0 %v3021, 48
    %v3757 = vpop.permute.xlu0 %3756
    %3758 = vrot.lane.b32.xlu0 %v3026, 48
    %v3759 = vpop.permute.xlu0 %3758
    %v3769 = vsel %vm471, %v3729, 0
    %v3772 = vsel %vm471, %v3731, 0
    %v3775 = vsel %vm471, %v3733, 0
    %v3778 = vsel %vm471, %v3735, 0
    %v3781 = vsel %vm471, %v3737, 0
    %v3784 = vsel %vm471, %v3739, 0
    %v3787 = vsel %vm471, %v3741, 0
    %v3790 = vsel %vm471, %v3743, 0
    %3792 = vmatprep.subr.mxu0 0.0
    %3793 = vmatpush1.msra.mxu0 %v3745
    %3794 = vmatprep.subr.mxu0 0.0
    %3795 = vmatpush1.msra.mxu0 %v3747
    %3796 = vmatprep.subr.mxu0 0.0
    %3797 = vmatpush1.msra.mxu0 %v3749
    %3798 = vmatprep.subr.mxu0 0.0
    %3799 = vmatpush1.msra.mxu0 %v3751
    %3800 = vmatprep.subr.mxu0 0.0
    %3801 = vmatpush1.msra.mxu0 %v3753
    %3802 = vmatprep.subr.mxu0 0.0
    %3803 = vmatpush1.msra.mxu0 %v3755
    %3804 = vmatprep.subr.mxu0 0.0
    %3805 = vmatpush1.msra.mxu0 %v3757
    %3806 = vmatprep.subr.mxu0 0.0
    %3807 = vmatpush1.msra.mxu0 %v3759
    %3808 = vmatprep.subr.mxu0 0.0
    %3809 = vmatpush1.msra.mxu0 0.0
    %3810 = vmatprep.subr.mxu0 0.0
    %3811 = vmatpush1.msra.mxu0 0.0
    %3812 = vmatprep.subr.mxu0 0.0
    %3813 = vmatpush1.msra.mxu0 0.0
    %3814 = vmatprep.subr.mxu0 0.0
    %3815 = vmatpush1.msra.mxu0 0.0
    %3816 = vmatprep.subr.mxu0 0.0
    %3817 = vmatpush1.msra.mxu0 0.0
    %3818 = vmatprep.subr.mxu0 0.0
    %3819 = vmatpush1.msra.mxu0 0.0
    %3820 = vmatprep.subr.mxu0 0.0
    %3821 = vmatpush1.msra.mxu0 0.0
    %3822 = vmatprep.subr.mxu0 0.0
    %3823 = vmatpush1.msra.mxu0 0.0
    %3824 = vmatprep.subr.mxu0 0.0
    %3825 = vmatpush1.msra.mxu0 0.0
    %3826 = vmatprep.subr.mxu0 0.0
    %3827 = vmatpush1.msra.mxu0 0.0
    %3828 = vmatprep.subr.mxu0 0.0
    %3829 = vmatpush1.msra.mxu0 0.0
    %3830 = vmatprep.subr.mxu0 0.0
    %3831 = vmatpush1.msra.mxu0 0.0
    %3832 = vmatprep.subr.mxu0 0.0
    %3833 = vmatpush1.msra.mxu0 0.0
    %3834 = vmatprep.subr.mxu0 0.0
    %3835 = vmatpush1.msra.mxu0 0.0
    %3836 = vmatprep.subr.mxu0 0.0
    %3837 = vmatpush1.msra.mxu0 0.0
    %3838 = vmatprep.subr.mxu0 0.0
    %3839 = vmatpush1.msra.mxu0 0.0
    %3840 = vmatprep.subr.mxu0 0.0
    %3841 = vmatpush1.msra.mxu0 0.0
    %3842 = vmatprep.subr.mxu0 0.0
    %3843 = vmatpush1.msra.mxu0 0.0
    %3844 = vmatprep.subr.mxu0 0.0
    %3845 = vmatpush1.msra.mxu0 0.0
    %3846 = vmatprep.subr.mxu0 0.0
    %3847 = vmatpush1.msra.mxu0 0.0
    %3848 = vmatprep.subr.mxu0 0.0
    %3849 = vmatpush1.msra.mxu0 0.0
    %3850 = vmatprep.subr.mxu0 0.0
    %3851 = vmatpush1.msra.mxu0 0.0
    %3852 = vmatprep.subr.mxu0 0.0
    %3853 = vmatpush1.msra.mxu0 0.0
    %3854 = vmatprep.subr.mxu0 0.0
    %3855 = vmatpush1.msra.mxu0 0.0
    %3856 = vmatprep.mubr.f32.mxu0 0.0
    %3857 = vmatmul.mubr.f32.gmra.mrb[0].mxu0 %v3769
    %v3858 = vpop.f32.mrb[0].mxu0
    %v3859 = vadd.f32 0.0, %v3858
    %v3860 = vpop.f32.mrb[0].mxu0
    %3861 = vmatprep.mubr.f32.mxu0 0.0
    %3862 = vmatmul.mubr.f32.gmra.mrb[0].mxu0 %v3772
    %v3863 = vpop.f32.mrb[0].mxu0
    %v3864 = vadd.f32 0.0, %v3863
    %v3865 = vpop.f32.mrb[0].mxu0
    %3866 = vmatprep.mubr.f32.mxu0 0.0
    %3867 = vmatmul.mubr.f32.gmra.mrb[0].mxu0 %v3775
    %v3868 = vpop.f32.mrb[0].mxu0
    %v3869 = vadd.f32 0.0, %v3868
    %v3870 = vpop.f32.mrb[0].mxu0
    %3871 = vmatprep.mubr.f32.mxu0 0.0
    %3872 = vmatmul.mubr.f32.gmra.mrb[0].mxu0 %v3778
    %v3873 = vpop.f32.mrb[0].mxu0
    %v3874 = vadd.f32 0.0, %v3873
    %v3875 = vpop.f32.mrb[0].mxu0
    %3876 = vmatprep.mubr.f32.mxu0 0.0
    %3877 = vmatmul.mubr.f32.gmra.mrb[0].mxu0 %v3781
    %v3878 = vpop.f32.mrb[0].mxu0
    %v3879 = vadd.f32 0.0, %v3878
    %v3880 = vpop.f32.mrb[0].mxu0
    %3881 = vmatprep.mubr.f32.mxu0 0.0
    %3882 = vmatmul.mubr.f32.gmra.mrb[0].mxu0 %v3784
    %v3883 = vpop.f32.mrb[0].mxu0
    %v3884 = vadd.f32 0.0, %v3883
    %v3885 = vpop.f32.mrb[0].mxu0
    %3886 = vmatprep.mubr.f32.mxu0 0.0
    %3887 = vmatmul.mubr.f32.gmra.mrb[0].mxu0 %v3787
    %v3888 = vpop.f32.mrb[0].mxu0
    %v3889 = vadd.f32 0.0, %v3888
    %v3890 = vpop.f32.mrb[0].mxu0
    %3891 = vmatprep.mubr.f32.mxu0 0.0
    %3892 = vmatmul.mubr.f32.gmra.mrb[0].mxu0 %v3790
    %v3893 = vpop.f32.mrb[0].mxu0
    %v3894 = vadd.f32 0.0, %v3893
    %v3895 = vpop.f32.mrb[0].mxu0
    %3896 = vdwg.mxu0
    %3905 = vrot.lane.b32.xlu0 %v3859, 16
    %v3906 = vpop.permute.xlu0 %3905
    %3907 = vrot.lane.b32.xlu0 %v3864, 16
    %v3908 = vpop.permute.xlu0 %3907
    %3909 = vrot.lane.b32.xlu0 %v3869, 16
    %v3910 = vpop.permute.xlu0 %3909
    %3911 = vrot.lane.b32.xlu0 %v3874, 16
    %v3912 = vpop.permute.xlu0 %3911
    %3913 = vrot.lane.b32.xlu0 %v3879, 16
    %v3914 = vpop.permute.xlu0 %3913
    %3915 = vrot.lane.b32.xlu0 %v3884, 16
    %v3916 = vpop.permute.xlu0 %3915
    %3917 = vrot.lane.b32.xlu0 %v3889, 16
    %v3918 = vpop.permute.xlu0 %3917
    %3919 = vrot.lane.b32.xlu0 %v3894, 16
    %v3920 = vpop.permute.xlu0 %3919
    %v3929 = vsel %vm325, %v3441, %v3906
    %v3930 = vsel %vm325, %v3446, %v3908
    %v3931 = vsel %vm325, %v3451, %v3910
    %v3932 = vsel %vm325, %v3456, %v3912
    %v3933 = vsel %vm325, %v3461, %v3914
    %v3934 = vsel %vm325, %v3466, %v3916
    %v3935 = vsel %vm325, %v3471, %v3918
    %v3936 = vsel %vm325, %v3476, %v3920
    %3945 = vrot.lane.b32.xlu0 %v3031, 96
    %v3946 = vpop.permute.xlu0 %3945
    %3947 = vrot.lane.b32.xlu0 %v3036, 96
    %v3948 = vpop.permute.xlu0 %3947
    %3949 = vrot.lane.b32.xlu0 %v3041, 96
    %v3950 = vpop.permute.xlu0 %3949
    %3951 = vrot.lane.b32.xlu0 %v3046, 96
    %v3952 = vpop.permute.xlu0 %3951
    %3953 = vrot.lane.b32.xlu0 %v3051, 96
    %v3954 = vpop.permute.xlu0 %3953
    %3955 = vrot.lane.b32.xlu0 %v3056, 96
    %v3956 = vpop.permute.xlu0 %3955
    %3957 = vrot.lane.b32.xlu0 %v3061, 96
    %v3958 = vpop.permute.xlu0 %3957
    %3959 = vrot.lane.b32.xlu0 %v3066, 96
    %v3960 = vpop.permute.xlu0 %3959
    %v3961 = vsel %vm325, %v3031, 0
    %v3963 = vsel %vm325, %v3036, 0
    %v3965 = vsel %vm325, %v3041, 0
    %v3967 = vsel %vm325, %v3046, 0
    %v3969 = vsel %vm325, %v3051, 0
    %v3971 = vsel %vm325, %v3056, 0
    %v3973 = vsel %vm325, %v3061, 0
    %v3975 = vsel %vm325, %v3066, 0
    %v3977 = vsel %vm325, %v3946, 0
    %v3979 = vsel %vm325, %v3948, 0
    %v3981 = vsel %vm325, %v3950, 0
    %v3983 = vsel %vm325, %v3952, 0
    %v3985 = vsel %vm325, %v3954, 0
    %v3987 = vsel %vm325, %v3956, 0
    %v3989 = vsel %vm325, %v3958, 0
    %v3991 = vsel %vm325, %v3960, 0
    %3993 = vmatprep.subr.mxu0 0.0
    %3994 = vmatpush1.xpose.msra.mxu0 %v3977
    %3995 = vmatprep.subr.mxu0 0.0
    %3996 = vmatpush1.xpose.msra.mxu0 %v3979
    %3997 = vmatprep.subr.mxu0 0.0
    %3998 = vmatpush1.xpose.msra.mxu0 %v3981
    %3999 = vmatprep.subr.mxu0 0.0
    %4000 = vmatpush1.xpose.msra.mxu0 %v3983
    %4001 = vmatprep.subr.mxu0 0.0
    %4002 = vmatpush1.xpose.msra.mxu0 %v3985
    %4003 = vmatprep.subr.mxu0 0.0
    %4004 = vmatpush1.xpose.msra.mxu0 %v3987
    %4005 = vmatprep.subr.mxu0 0.0
    %4006 = vmatpush1.xpose.msra.mxu0 %v3989
    %4007 = vmatprep.subr.mxu0 0.0
    %4008 = vmatpush1.xpose.msra.mxu0 %v3991
    %4009 = vmatprep.subr.mxu0 0.0
    %4010 = vmatpush1.xpose.msra.mxu0 0.0
    %4011 = vmatprep.subr.mxu0 0.0
    %4012 = vmatpush1.xpose.msra.mxu0 0.0
    %4013 = vmatprep.subr.mxu0 0.0
    %4014 = vmatpush1.xpose.msra.mxu0 0.0
    %4015 = vmatprep.subr.mxu0 0.0
    %4016 = vmatpush1.xpose.msra.mxu0 0.0
    %4017 = vmatprep.subr.mxu0 0.0
    %4018 = vmatpush1.xpose.msra.mxu0 0.0
    %4019 = vmatprep.subr.mxu0 0.0
    %4020 = vmatpush1.xpose.msra.mxu0 0.0
    %4021 = vmatprep.subr.mxu0 0.0
    %4022 = vmatpush1.xpose.msra.mxu0 0.0
    %4023 = vmatprep.subr.mxu0 0.0
    %4024 = vmatpush1.xpose.msra.mxu0 0.0
    %4025 = vmatprep.subr.mxu0 0.0
    %4026 = vmatpush1.xpose.msra.mxu0 0.0
    %4027 = vmatprep.subr.mxu0 0.0
    %4028 = vmatpush1.xpose.msra.mxu0 0.0
    %4029 = vmatprep.subr.mxu0 0.0
    %4030 = vmatpush1.xpose.msra.mxu0 0.0
    %4031 = vmatprep.subr.mxu0 0.0
    %4032 = vmatpush1.xpose.msra.mxu0 0.0
    %4033 = vmatprep.subr.mxu0 0.0
    %4034 = vmatpush1.xpose.msra.mxu0 0.0
    %4035 = vmatprep.subr.mxu0 0.0
    %4036 = vmatpush1.xpose.msra.mxu0 0.0
    %4037 = vmatprep.subr.mxu0 0.0
    %4038 = vmatpush1.xpose.msra.mxu0 0.0
    %4039 = vmatprep.subr.mxu0 0.0
    %4040 = vmatpush1.xpose.msra.mxu0 0.0
    %4041 = vmatprep.subr.mxu0 0.0
    %4042 = vmatpush1.xpose.msra.mxu0 0.0
    %4043 = vmatprep.subr.mxu0 0.0
    %4044 = vmatpush1.xpose.msra.mxu0 0.0
    %4045 = vmatprep.subr.mxu0 0.0
    %4046 = vmatpush1.xpose.msra.mxu0 0.0
    %4047 = vmatprep.subr.mxu0 0.0
    %4048 = vmatpush1.xpose.msra.mxu0 0.0
    %4049 = vmatprep.subr.mxu0 0.0
    %4050 = vmatpush1.xpose.msra.mxu0 0.0
    %4051 = vmatprep.subr.mxu0 0.0
    %4052 = vmatpush1.xpose.msra.mxu0 0.0
    %4053 = vmatprep.subr.mxu0 0.0
    %4054 = vmatpush1.xpose.msra.mxu0 0.0
    %4055 = vmatprep.subr.mxu0 0.0
    %4056 = vmatpush1.xpose.msra.mxu0 0.0
    %4057 = vmatprep.mubr.f32.mxu0 0.0
    %4058 = vmatmul.mubr.f32.gmra.mrb[0].mxu0 %v3961
    %v4059 = vpop.f32.mrb[0].mxu0
    %v4060 = vadd.f32 0.0, %v4059
    %v4061 = vpop.f32.mrb[0].mxu0
    %4062 = vmatprep.mubr.f32.mxu0 0.0
    %4063 = vmatmul.mubr.f32.gmra.mrb[0].mxu0 %v3963
    %v4064 = vpop.f32.mrb[0].mxu0
    %v4065 = vadd.f32 0.0, %v4064
    %v4066 = vpop.f32.mrb[0].mxu0
    %4067 = vmatprep.mubr.f32.mxu0 0.0
    %4068 = vmatmul.mubr.f32.gmra.mrb[0].mxu0 %v3965
    %v4069 = vpop.f32.mrb[0].mxu0
    %v4070 = vadd.f32 0.0, %v4069
    %v4071 = vpop.f32.mrb[0].mxu0
    %4072 = vmatprep.mubr.f32.mxu0 0.0
    %4073 = vmatmul.mubr.f32.gmra.mrb[0].mxu0 %v3967
    %v4074 = vpop.f32.mrb[0].mxu0
    %v4075 = vadd.f32 0.0, %v4074
    %v4076 = vpop.f32.mrb[0].mxu0
    %4077 = vmatprep.mubr.f32.mxu0 0.0
    %4078 = vmatmul.mubr.f32.gmra.mrb[0].mxu0 %v3969
    %v4079 = vpop.f32.mrb[0].mxu0
    %v4080 = vadd.f32 0.0, %v4079
    %v4081 = vpop.f32.mrb[0].mxu0
    %4082 = vmatprep.mubr.f32.mxu0 0.0
    %4083 = vmatmul.mubr.f32.gmra.mrb[0].mxu0 %v3971
    %v4084 = vpop.f32.mrb[0].mxu0
    %v4085 = vadd.f32 0.0, %v4084
    %v4086 = vpop.f32.mrb[0].mxu0
    %4087 = vmatprep.mubr.f32.mxu0 0.0
    %4088 = vmatmul.mubr.f32.gmra.mrb[0].mxu0 %v3973
    %v4089 = vpop.f32.mrb[0].mxu0
    %v4090 = vadd.f32 0.0, %v4089
    %v4091 = vpop.f32.mrb[0].mxu0
    %4092 = vmatprep.mubr.f32.mxu0 0.0
    %4093 = vmatmul.mubr.f32.gmra.mrb[0].mxu0 %v3975
    %v4094 = vpop.f32.mrb[0].mxu0
    %v4095 = vadd.f32 0.0, %v4094
    %v4096 = vpop.f32.mrb[0].mxu0
    %4097 = vdwg.mxu0
    %v4098 = vmul.f32 %v4060, 0.25
    %v4099 = vmul.f32 %v4065, 0.25
    %v4100 = vmul.f32 %v4070, 0.25
    %v4101 = vmul.f32 %v4075, 0.25
    %v4102 = vmul.f32 %v4080, 0.25
    %v4103 = vmul.f32 %v4085, 0.25
    %v4104 = vmul.f32 %v4090, 0.25
    %v4105 = vmul.f32 %v4095, 0.25
    %v4106 = vsel %vm471, %v4098, -inf
    %4107 = vmax.xlane.f32.xlu0 %v4106
    %v4108 = vpop.xlane.xlu0 %4107
    %v4109 = vsel %vm471, %v4099, -inf
    %4110 = vmax.xlane.f32.xlu0 %v4109
    %v4111 = vpop.xlane.xlu0 %4110
    %v4112 = vsel %vm471, %v4100, -inf
    %4113 = vmax.xlane.f32.xlu0 %v4112
    %v4114 = vpop.xlane.xlu0 %4113
    %v4115 = vsel %vm471, %v4101, -inf
    %4116 = vmax.xlane.f32.xlu0 %v4115
    %v4117 = vpop.xlane.xlu0 %4116
    %v4118 = vsel %vm471, %v4102, -inf
    %4119 = vmax.xlane.f32.xlu0 %v4118
    %v4120 = vpop.xlane.xlu0 %4119
    %v4121 = vsel %vm471, %v4103, -inf
    %4122 = vmax.xlane.f32.xlu0 %v4121
    %v4123 = vpop.xlane.xlu0 %4122
    %v4124 = vsel %vm471, %v4104, -inf
    %4125 = vmax.xlane.f32.xlu0 %v4124
    %v4126 = vpop.xlane.xlu0 %4125
    %v4127 = vsel %vm471, %v4105, -inf
    %4128 = vmax.xlane.f32.xlu0 %v4127
    %v4129 = vpop.xlane.xlu0 %4128
    %v4130 = vsub.f32 %v4098, %v4108
    %v4131 = vsub.f32 %v4099, %v4111
    %v4132 = vsub.f32 %v4100, %v4114
    %v4133 = vsub.f32 %v4101, %v4117
    %v4134 = vsub.f32 %v4102, %v4120
    %v4135 = vsub.f32 %v4103, %v4123
    %v4136 = vsub.f32 %v4104, %v4126
    %v4137 = vsub.f32 %v4105, %v4129
    %v4138 = vmul.f32 %v4130, 1.442695
    %v4139 = vpow.pop %v4138
    %v4140 = vmul.f32 %v4131, 1.442695
    %v4141 = vpow.pop %v4140
    %v4142 = vmul.f32 %v4132, 1.442695
    %v4143 = vpow.pop %v4142
    %v4144 = vmul.f32 %v4133, 1.442695
    %v4145 = vpow.pop %v4144
    %v4146 = vmul.f32 %v4134, 1.442695
    %v4147 = vpow.pop %v4146
    %v4148 = vmul.f32 %v4135, 1.442695
    %v4149 = vpow.pop %v4148
    %v4150 = vmul.f32 %v4136, 1.442695
    %v4151 = vpow.pop %v4150
    %v4152 = vmul.f32 %v4137, 1.442695
    %v4153 = vpow.pop %v4152
    %v4154 = vsel %vm471, %v4139, 0.0
    %4155 = vadd.xlane.f32.xlu0 %v4154
    %v4156 = vpop.xlane.xlu0 %4155
    %v4157 = vsel %vm471, %v4141, 0.0
    %4158 = vadd.xlane.f32.xlu0 %v4157
    %v4159 = vpop.xlane.xlu0 %4158
    %v4160 = vsel %vm471, %v4143, 0.0
    %4161 = vadd.xlane.f32.xlu0 %v4160
    %v4162 = vpop.xlane.xlu0 %4161
    %v4163 = vsel %vm471, %v4145, 0.0
    %4164 = vadd.xlane.f32.xlu0 %v4163
    %v4165 = vpop.xlane.xlu0 %4164
    %v4166 = vsel %vm471, %v4147, 0.0
    %4167 = vadd.xlane.f32.xlu0 %v4166
    %v4168 = vpop.xlane.xlu0 %4167
    %v4169 = vsel %vm471, %v4149, 0.0
    %4170 = vadd.xlane.f32.xlu0 %v4169
    %v4171 = vpop.xlane.xlu0 %4170
    %v4172 = vsel %vm471, %v4151, 0.0
    %4173 = vadd.xlane.f32.xlu0 %v4172
    %v4174 = vpop.xlane.xlu0 %4173
    %v4175 = vsel %vm471, %v4153, 0.0
    %4176 = vadd.xlane.f32.xlu0 %v4175
    %v4177 = vpop.xlane.xlu0 %4176
    %v4178 = vrcp.pop %v4156
    %v4179 = vmul.f32 %v4139, %v4178
    %v4180 = vrcp.pop %v4159
    %v4181 = vmul.f32 %v4141, %v4180
    %v4182 = vrcp.pop %v4162
    %v4183 = vmul.f32 %v4143, %v4182
    %v4184 = vrcp.pop %v4165
    %v4185 = vmul.f32 %v4145, %v4184
    %v4186 = vrcp.pop %v4168
    %v4187 = vmul.f32 %v4147, %v4186
    %v4188 = vrcp.pop %v4171
    %v4189 = vmul.f32 %v4149, %v4188
    %v4190 = vrcp.pop %v4174
    %v4191 = vmul.f32 %v4151, %v4190
    %v4192 = vrcp.pop %v4177
    %v4193 = vmul.f32 %v4153, %v4192
    %4194 = vrot.lane.b32.xlu0 %v3031, 64
    %v4195 = vpop.permute.xlu0 %4194
    %4196 = vrot.lane.b32.xlu0 %v3036, 64
    %v4197 = vpop.permute.xlu0 %4196
    %4198 = vrot.lane.b32.xlu0 %v3041, 64
    %v4199 = vpop.permute.xlu0 %4198
    %4200 = vrot.lane.b32.xlu0 %v3046, 64
    %v4201 = vpop.permute.xlu0 %4200
    %4202 = vrot.lane.b32.xlu0 %v3051, 64
    %v4203 = vpop.permute.xlu0 %4202
    %4204 = vrot.lane.b32.xlu0 %v3056, 64
    %v4205 = vpop.permute.xlu0 %4204
    %4206 = vrot.lane.b32.xlu0 %v3061, 64
    %v4207 = vpop.permute.xlu0 %4206
    %4208 = vrot.lane.b32.xlu0 %v3066, 64
    %v4209 = vpop.permute.xlu0 %4208
    %v4219 = vsel %vm471, %v4179, 0
    %v4222 = vsel %vm471, %v4181, 0
    %v4225 = vsel %vm471, %v4183, 0
    %v4228 = vsel %vm471, %v4185, 0
    %v4231 = vsel %vm471, %v4187, 0
    %v4234 = vsel %vm471, %v4189, 0
    %v4237 = vsel %vm471, %v4191, 0
    %v4240 = vsel %vm471, %v4193, 0
    %4242 = vmatprep.subr.mxu0 0.0
    %4243 = vmatpush1.msra.mxu0 %v4195
    %4244 = vmatprep.subr.mxu0 0.0
    %4245 = vmatpush1.msra.mxu0 %v4197
    %4246 = vmatprep.subr.mxu0 0.0
    %4247 = vmatpush1.msra.mxu0 %v4199
    %4248 = vmatprep.subr.mxu0 0.0
    %4249 = vmatpush1.msra.mxu0 %v4201
    %4250 = vmatprep.subr.mxu0 0.0
    %4251 = vmatpush1.msra.mxu0 %v4203
    %4252 = vmatprep.subr.mxu0 0.0
    %4253 = vmatpush1.msra.mxu0 %v4205
    %4254 = vmatprep.subr.mxu0 0.0
    %4255 = vmatpush1.msra.mxu0 %v4207
    %4256 = vmatprep.subr.mxu0 0.0
    %4257 = vmatpush1.msra.mxu0 %v4209
    %4258 = vmatprep.subr.mxu0 0.0
    %4259 = vmatpush1.msra.mxu0 0.0
    %4260 = vmatprep.subr.mxu0 0.0
    %4261 = vmatpush1.msra.mxu0 0.0
    %4262 = vmatprep.subr.mxu0 0.0
    %4263 = vmatpush1.msra.mxu0 0.0
    %4264 = vmatprep.subr.mxu0 0.0
    %4265 = vmatpush1.msra.mxu0 0.0
    %4266 = vmatprep.subr.mxu0 0.0
    %4267 = vmatpush1.msra.mxu0 0.0
    %4268 = vmatprep.subr.mxu0 0.0
    %4269 = vmatpush1.msra.mxu0 0.0
    %4270 = vmatprep.subr.mxu0 0.0
    %4271 = vmatpush1.msra.mxu0 0.0
    %4272 = vmatprep.subr.mxu0 0.0
    %4273 = vmatpush1.msra.mxu0 0.0
    %4274 = vmatprep.subr.mxu0 0.0
    %4275 = vmatpush1.msra.mxu0 0.0
    %4276 = vmatprep.subr.mxu0 0.0
    %4277 = vmatpush1.msra.mxu0 0.0
    %4278 = vmatprep.subr.mxu0 0.0
    %4279 = vmatpush1.msra.mxu0 0.0
    %4280 = vmatprep.subr.mxu0 0.0
    %4281 = vmatpush1.msra.mxu0 0.0
    %4282 = vmatprep.subr.mxu0 0.0
    %4283 = vmatpush1.msra.mxu0 0.0
    %4284 = vmatprep.subr.mxu0 0.0
    %4285 = vmatpush1.msra.mxu0 0.0
    %4286 = vmatprep.subr.mxu0 0.0
    %4287 = vmatpush1.msra.mxu0 0.0
    %4288 = vmatprep.subr.mxu0 0.0
    %4289 = vmatpush1.msra.mxu0 0.0
    %4290 = vmatprep.subr.mxu0 0.0
    %4291 = vmatpush1.msra.mxu0 0.0
    %4292 = vmatprep.subr.mxu0 0.0
    %4293 = vmatpush1.msra.mxu0 0.0
    %4294 = vmatprep.subr.mxu0 0.0
    %4295 = vmatpush1.msra.mxu0 0.0
    %4296 = vmatprep.subr.mxu0 0.0
    %4297 = vmatpush1.msra.mxu0 0.0
    %4298 = vmatprep.subr.mxu0 0.0
    %4299 = vmatpush1.msra.mxu0 0.0
    %4300 = vmatprep.subr.mxu0 0.0
    %4301 = vmatpush1.msra.mxu0 0.0
    %4302 = vmatprep.subr.mxu0 0.0
    %4303 = vmatpush1.msra.mxu0 0.0
    %4304 = vmatprep.subr.mxu0 0.0
    %4305 = vmatpush1.msra.mxu0 0.0
    %4306 = vmatprep.mubr.f32.mxu0 0.0
    %4307 = vmatmul.mubr.f32.gmra.mrb[0].mxu0 %v4219
    %v4308 = vpop.f32.mrb[0].mxu0
    %v4309 = vadd.f32 0.0, %v4308
    %v4310 = vpop.f32.mrb[0].mxu0
    %4311 = vmatprep.mubr.f32.mxu0 0.0
    %4312 = vmatmul.mubr.f32.gmra.mrb[0].mxu0 %v4222
    %v4313 = vpop.f32.mrb[0].mxu0
    %v4314 = vadd.f32 0.0, %v4313
    %v4315 = vpop.f32.mrb[0].mxu0
    %4316 = vmatprep.mubr.f32.mxu0 0.0
    %4317 = vmatmul.mubr.f32.gmra.mrb[0].mxu0 %v4225
    %v4318 = vpop.f32.mrb[0].mxu0
    %v4319 = vadd.f32 0.0, %v4318
    %v4320 = vpop.f32.mrb[0].mxu0
    %4321 = vmatprep.mubr.f32.mxu0 0.0
    %4322 = vmatmul.mubr.f32.gmra.mrb[0].mxu0 %v4228
    %v4323 = vpop.f32.mrb[0].mxu0
    %v4324 = vadd.f32 0.0, %v4323
    %v4325 = vpop.f32.mrb[0].mxu0
    %4326 = vmatprep.mubr.f32.mxu0 0.0
    %4327 = vmatmul.mubr.f32.gmra.mrb[0].mxu0 %v4231
    %v4328 = vpop.f32.mrb[0].mxu0
    %v4329 = vadd.f32 0.0, %v4328
    %v4330 = vpop.f32.mrb[0].mxu0
    %4331 = vmatprep.mubr.f32.mxu0 0.0
    %4332 = vmatmul.mubr.f32.gmra.mrb[0].mxu0 %v4234
    %v4333 = vpop.f32.mrb[0].mxu0
    %v4334 = vadd.f32 0.0, %v4333
    %v4335 = vpop.f32.mrb[0].mxu0
    %4336 = vmatprep.mubr.f32.mxu0 0.0
    %4337 = vmatmul.mubr.f32.gmra.mrb[0].mxu0 %v4237
    %v4338 = vpop.f32.mrb[0].mxu0
    %v4339 = vadd.f32 0.0, %v4338
    %v4340 = vpop.f32.mrb[0].mxu0
    %4341 = vmatprep.mubr.f32.mxu0 0.0
    %4342 = vmatmul.mubr.f32.gmra.mrb[0].mxu0 %v4240
    %v4343 = vpop.f32.mrb[0].mxu0
    %v4344 = vadd.f32 0.0, %v4343
    %v4345 = vpop.f32.mrb[0].mxu0
    %4346 = vdwg.mxu0
    %4347 = vrot.lane.b32.xlu0 %v3031, 112
    %v4348 = vpop.permute.xlu0 %4347
    %4349 = vrot.lane.b32.xlu0 %v3036, 112
    %v4350 = vpop.permute.xlu0 %4349
    %4351 = vrot.lane.b32.xlu0 %v3041, 112
    %v4352 = vpop.permute.xlu0 %4351
    %4353 = vrot.lane.b32.xlu0 %v3046, 112
    %v4354 = vpop.permute.xlu0 %4353
    %4355 = vrot.lane.b32.xlu0 %v3051, 112
    %v4356 = vpop.permute.xlu0 %4355
    %4357 = vrot.lane.b32.xlu0 %v3056, 112
    %v4358 = vpop.permute.xlu0 %4357
    %4359 = vrot.lane.b32.xlu0 %v3061, 112
    %v4360 = vpop.permute.xlu0 %4359
    %4361 = vrot.lane.b32.xlu0 %v3066, 112
    %v4362 = vpop.permute.xlu0 %4361
    %4363 = vrot.lane.b32.xlu0 %v3031, 80
    %v4364 = vpop.permute.xlu0 %4363
    %4365 = vrot.lane.b32.xlu0 %v3036, 80
    %v4366 = vpop.permute.xlu0 %4365
    %4367 = vrot.lane.b32.xlu0 %v3041, 80
    %v4368 = vpop.permute.xlu0 %4367
    %4369 = vrot.lane.b32.xlu0 %v3046, 80
    %v4370 = vpop.permute.xlu0 %4369
    %4371 = vrot.lane.b32.xlu0 %v3051, 80
    %v4372 = vpop.permute.xlu0 %4371
    %4373 = vrot.lane.b32.xlu0 %v3056, 80
    %v4374 = vpop.permute.xlu0 %4373
    %4375 = vrot.lane.b32.xlu0 %v3061, 80
    %v4376 = vpop.permute.xlu0 %4375
    %4377 = vrot.lane.b32.xlu0 %v3066, 80
    %v4378 = vpop.permute.xlu0 %4377
    %v4379 = vsel %vm325, %v4348, 0
    %v4381 = vsel %vm325, %v4350, 0
    %v4383 = vsel %vm325, %v4352, 0
    %v4385 = vsel %vm325, %v4354, 0
    %v4387 = vsel %vm325, %v4356, 0
    %v4389 = vsel %vm325, %v4358, 0
    %v4391 = vsel %vm325, %v4360, 0
    %v4393 = vsel %vm325, %v4362, 0
    %v4395 = vsel %vm325, %v4364, 0
    %v4397 = vsel %vm325, %v4366, 0
    %v4399 = vsel %vm325, %v4368, 0
    %v4401 = vsel %vm325, %v4370, 0
    %v4403 = vsel %vm325, %v4372, 0
    %v4405 = vsel %vm325, %v4374, 0
    %v4407 = vsel %vm325, %v4376, 0
    %v4409 = vsel %vm325, %v4378, 0
    %4411 = vmatprep.subr.mxu0 0.0
    %4412 = vmatpush1.xpose.msra.mxu0 %v4395
    %4413 = vmatprep.subr.mxu0 0.0
    %4414 = vmatpush1.xpose.msra.mxu0 %v4397
    %4415 = vmatprep.subr.mxu0 0.0
    %4416 = vmatpush1.xpose.msra.mxu0 %v4399
    %4417 = vmatprep.subr.mxu0 0.0
    %4418 = vmatpush1.xpose.msra.mxu0 %v4401
    %4419 = vmatprep.subr.mxu0 0.0
    %4420 = vmatpush1.xpose.msra.mxu0 %v4403
    %4421 = vmatprep.subr.mxu0 0.0
    %4422 = vmatpush1.xpose.msra.mxu0 %v4405
    %4423 = vmatprep.subr.mxu0 0.0
    %4424 = vmatpush1.xpose.msra.mxu0 %v4407
    %4425 = vmatprep.subr.mxu0 0.0
    %4426 = vmatpush1.xpose.msra.mxu0 %v4409
    %4427 = vmatprep.subr.mxu0 0.0
    %4428 = vmatpush1.xpose.msra.mxu0 0.0
    %4429 = vmatprep.subr.mxu0 0.0
    %4430 = vmatpush1.xpose.msra.mxu0 0.0
    %4431 = vmatprep.subr.mxu0 0.0
    %4432 = vmatpush1.xpose.msra.mxu0 0.0
    %4433 = vmatprep.subr.mxu0 0.0
    %4434 = vmatpush1.xpose.msra.mxu0 0.0
    %4435 = vmatprep.subr.mxu0 0.0
    %4436 = vmatpush1.xpose.msra.mxu0 0.0
    %4437 = vmatprep.subr.mxu0 0.0
    %4438 = vmatpush1.xpose.msra.mxu0 0.0
    %4439 = vmatprep.subr.mxu0 0.0
    %4440 = vmatpush1.xpose.msra.mxu0 0.0
    %4441 = vmatprep.subr.mxu0 0.0
    %4442 = vmatpush1.xpose.msra.mxu0 0.0
    %4443 = vmatprep.subr.mxu0 0.0
    %4444 = vmatpush1.xpose.msra.mxu0 0.0
    %4445 = vmatprep.subr.mxu0 0.0
    %4446 = vmatpush1.xpose.msra.mxu0 0.0
    %4447 = vmatprep.subr.mxu0 0.0
    %4448 = vmatpush1.xpose.msra.mxu0 0.0
    %4449 = vmatprep.subr.mxu0 0.0
    %4450 = vmatpush1.xpose.msra.mxu0 0.0
    %4451 = vmatprep.subr.mxu0 0.0
    %4452 = vmatpush1.xpose.msra.mxu0 0.0
    %4453 = vmatprep.subr.mxu0 0.0
    %4454 = vmatpush1.xpose.msra.mxu0 0.0
    %4455 = vmatprep.subr.mxu0 0.0
    %4456 = vmatpush1.xpose.msra.mxu0 0.0
    %4457 = vmatprep.subr.mxu0 0.0
    %4458 = vmatpush1.xpose.msra.mxu0 0.0
    %4459 = vmatprep.subr.mxu0 0.0
    %4460 = vmatpush1.xpose.msra.mxu0 0.0
    %4461 = vmatprep.subr.mxu0 0.0
    %4462 = vmatpush1.xpose.msra.mxu0 0.0
    %4463 = vmatprep.subr.mxu0 0.0
    %4464 = vmatpush1.xpose.msra.mxu0 0.0
    %4465 = vmatprep.subr.mxu0 0.0
    %4466 = vmatpush1.xpose.msra.mxu0 0.0
    %4467 = vmatprep.subr.mxu0 0.0
    %4468 = vmatpush1.xpose.msra.mxu0 0.0
    %4469 = vmatprep.subr.mxu0 0.0
    %4470 = vmatpush1.xpose.msra.mxu0 0.0
    %4471 = vmatprep.subr.mxu0 0.0
    %4472 = vmatpush1.xpose.msra.mxu0 0.0
    %4473 = vmatprep.subr.mxu0 0.0
    %4474 = vmatpush1.xpose.msra.mxu0 0.0
    %4475 = vmatprep.mubr.f32.mxu0 0.0
    %4476 = vmatmul.mubr.f32.gmra.mrb[0].mxu0 %v4379
    %v4477 = vpop.f32.mrb[0].mxu0
    %v4478 = vadd.f32 0.0, %v4477
    %v4479 = vpop.f32.mrb[0].mxu0
    %4480 = vmatprep.mubr.f32.mxu0 0.0
    %4481 = vmatmul.mubr.f32.gmra.mrb[0].mxu0 %v4381
    %v4482 = vpop.f32.mrb[0].mxu0
    %v4483 = vadd.f32 0.0, %v4482
    %v4484 = vpop.f32.mrb[0].mxu0
    %4485 = vmatprep.mubr.f32.mxu0 0.0
    %4486 = vmatmul.mubr.f32.gmra.mrb[0].mxu0 %v4383
    %v4487 = vpop.f32.mrb[0].mxu0
    %v4488 = vadd.f32 0.0, %v4487
    %v4489 = vpop.f32.mrb[0].mxu0
    %4490 = vmatprep.mubr.f32.mxu0 0.0
    %4491 = vmatmul.mubr.f32.gmra.mrb[0].mxu0 %v4385
    %v4492 = vpop.f32.mrb[0].mxu0
    %v4493 = vadd.f32 0.0, %v4492
    %v4494 = vpop.f32.mrb[0].mxu0
    %4495 = vmatprep.mubr.f32.mxu0 0.0
    %4496 = vmatmul.mubr.f32.gmra.mrb[0].mxu0 %v4387
    %v4497 = vpop.f32.mrb[0].mxu0
    %v4498 = vadd.f32 0.0, %v4497
    %v4499 = vpop.f32.mrb[0].mxu0
    %4500 = vmatprep.mubr.f32.mxu0 0.0
    %4501 = vmatmul.mubr.f32.gmra.mrb[0].mxu0 %v4389
    %v4502 = vpop.f32.mrb[0].mxu0
    %v4503 = vadd.f32 0.0, %v4502
    %v4504 = vpop.f32.mrb[0].mxu0
    %4505 = vmatprep.mubr.f32.mxu0 0.0
    %4506 = vmatmul.mubr.f32.gmra.mrb[0].mxu0 %v4391
    %v4507 = vpop.f32.mrb[0].mxu0
    %v4508 = vadd.f32 0.0, %v4507
    %v4509 = vpop.f32.mrb[0].mxu0
    %4510 = vmatprep.mubr.f32.mxu0 0.0
    %4511 = vmatmul.mubr.f32.gmra.mrb[0].mxu0 %v4393
    %v4512 = vpop.f32.mrb[0].mxu0
    %v4513 = vadd.f32 0.0, %v4512
    %v4514 = vpop.f32.mrb[0].mxu0
    %4515 = vdwg.mxu0
    %v4516 = vmul.f32 %v4478, 0.25
    %v4517 = vmul.f32 %v4483, 0.25
    %v4518 = vmul.f32 %v4488, 0.25
    %v4519 = vmul.f32 %v4493, 0.25
    %v4520 = vmul.f32 %v4498, 0.25
    %v4521 = vmul.f32 %v4503, 0.25
    %v4522 = vmul.f32 %v4508, 0.25
    %v4523 = vmul.f32 %v4513, 0.25
    %v4524 = vsel %vm471, %v4516, -inf
    %4525 = vmax.xlane.f32.xlu0 %v4524
    %v4526 = vpop.xlane.xlu0 %4525
    %v4527 = vsel %vm471, %v4517, -inf
    %4528 = vmax.xlane.f32.xlu0 %v4527
    %v4529 = vpop.xlane.xlu0 %4528
    %v4530 = vsel %vm471, %v4518, -inf
    %4531 = vmax.xlane.f32.xlu0 %v4530
    %v4532 = vpop.xlane.xlu0 %4531
    %v4533 = vsel %vm471, %v4519, -inf
    %4534 = vmax.xlane.f32.xlu0 %v4533
    %v4535 = vpop.xlane.xlu0 %4534
    %v4536 = vsel %vm471, %v4520, -inf
    %4537 = vmax.xlane.f32.xlu0 %v4536
    %v4538 = vpop.xlane.xlu0 %4537
    %v4539 = vsel %vm471, %v4521, -inf
    %4540 = vmax.xlane.f32.xlu0 %v4539
    %v4541 = vpop.xlane.xlu0 %4540
    %v4542 = vsel %vm471, %v4522, -inf
    %4543 = vmax.xlane.f32.xlu0 %v4542
    %v4544 = vpop.xlane.xlu0 %4543
    %v4545 = vsel %vm471, %v4523, -inf
    %4546 = vmax.xlane.f32.xlu0 %v4545
    %v4547 = vpop.xlane.xlu0 %4546
    %v4548 = vsub.f32 %v4516, %v4526
    %v4549 = vsub.f32 %v4517, %v4529
    %v4550 = vsub.f32 %v4518, %v4532
    %v4551 = vsub.f32 %v4519, %v4535
    %v4552 = vsub.f32 %v4520, %v4538
    %v4553 = vsub.f32 %v4521, %v4541
    %v4554 = vsub.f32 %v4522, %v4544
    %v4555 = vsub.f32 %v4523, %v4547
    %v4556 = vmul.f32 %v4548, 1.442695
    %v4557 = vpow.pop %v4556
    %v4558 = vmul.f32 %v4549, 1.442695
    %v4559 = vpow.pop %v4558
    %v4560 = vmul.f32 %v4550, 1.442695
    %v4561 = vpow.pop %v4560
    %v4562 = vmul.f32 %v4551, 1.442695
    %v4563 = vpow.pop %v4562
    %v4564 = vmul.f32 %v4552, 1.442695
    %v4565 = vpow.pop %v4564
    %v4566 = vmul.f32 %v4553, 1.442695
    %v4567 = vpow.pop %v4566
    %v4568 = vmul.f32 %v4554, 1.442695
    %v4569 = vpow.pop %v4568
    %v4570 = vmul.f32 %v4555, 1.442695
    %v4571 = vpow.pop %v4570
    %v4572 = vsel %vm471, %v4557, 0.0
    %4573 = vadd.xlane.f32.xlu0 %v4572
    %v4574 = vpop.xlane.xlu0 %4573
    %v4575 = vsel %vm471, %v4559, 0.0
    %4576 = vadd.xlane.f32.xlu0 %v4575
    %v4577 = vpop.xlane.xlu0 %4576
    %v4578 = vsel %vm471, %v4561, 0.0
    %4579 = vadd.xlane.f32.xlu0 %v4578
    %v4580 = vpop.xlane.xlu0 %4579
    %v4581 = vsel %vm471, %v4563, 0.0
    %4582 = vadd.xlane.f32.xlu0 %v4581
    %v4583 = vpop.xlane.xlu0 %4582
    %v4584 = vsel %vm471, %v4565, 0.0
    %4585 = vadd.xlane.f32.xlu0 %v4584
    %v4586 = vpop.xlane.xlu0 %4585
    %v4587 = vsel %vm471, %v4567, 0.0
    %4588 = vadd.xlane.f32.xlu0 %v4587
    %v4589 = vpop.xlane.xlu0 %4588
    %v4590 = vsel %vm471, %v4569, 0.0
    %4591 = vadd.xlane.f32.xlu0 %v4590
    %v4592 = vpop.xlane.xlu0 %4591
    %v4593 = vsel %vm471, %v4571, 0.0
    %4594 = vadd.xlane.f32.xlu0 %v4593
    %v4595 = vpop.xlane.xlu0 %4594
    %v4596 = vrcp.pop %v4574
    %v4597 = vmul.f32 %v4557, %v4596
    %v4598 = vrcp.pop %v4577
    %v4599 = vmul.f32 %v4559, %v4598
    %v4600 = vrcp.pop %v4580
    %v4601 = vmul.f32 %v4561, %v4600
    %v4602 = vrcp.pop %v4583
    %v4603 = vmul.f32 %v4563, %v4602
    %v4604 = vrcp.pop %v4586
    %v4605 = vmul.f32 %v4565, %v4604
    %v4606 = vrcp.pop %v4589
    %v4607 = vmul.f32 %v4567, %v4606
    %v4608 = vrcp.pop %v4592
    %v4609 = vmul.f32 %v4569, %v4608
    %v4610 = vrcp.pop %v4595
    %v4611 = vmul.f32 %v4571, %v4610
    %4612 = vrot.lane.b32.xlu0 %v3031, 48
    %v4613 = vpop.permute.xlu0 %4612
    %4614 = vrot.lane.b32.xlu0 %v3036, 48
    %v4615 = vpop.permute.xlu0 %4614
    %4616 = vrot.lane.b32.xlu0 %v3041, 48
    %v4617 = vpop.permute.xlu0 %4616
    %4618 = vrot.lane.b32.xlu0 %v3046, 48
    %v4619 = vpop.permute.xlu0 %4618
    %4620 = vrot.lane.b32.xlu0 %v3051, 48
    %v4621 = vpop.permute.xlu0 %4620
    %4622 = vrot.lane.b32.xlu0 %v3056, 48
    %v4623 = vpop.permute.xlu0 %4622
    %4624 = vrot.lane.b32.xlu0 %v3061, 48
    %v4625 = vpop.permute.xlu0 %4624
    %4626 = vrot.lane.b32.xlu0 %v3066, 48
    %v4627 = vpop.permute.xlu0 %4626
    %v4637 = vsel %vm471, %v4597, 0
    %v4640 = vsel %vm471, %v4599, 0
    %v4643 = vsel %vm471, %v4601, 0
    %v4646 = vsel %vm471, %v4603, 0
    %v4649 = vsel %vm471, %v4605, 0
    %v4652 = vsel %vm471, %v4607, 0
    %v4655 = vsel %vm471, %v4609, 0
    %v4658 = vsel %vm471, %v4611, 0
    %4660 = vmatprep.subr.mxu0 0.0
    %4661 = vmatpush1.msra.mxu0 %v4613
    %4662 = vmatprep.subr.mxu0 0.0
    %4663 = vmatpush1.msra.mxu0 %v4615
    %4664 = vmatprep.subr.mxu0 0.0
    %4665 = vmatpush1.msra.mxu0 %v4617
    %4666 = vmatprep.subr.mxu0 0.0
    %4667 = vmatpush1.msra.mxu0 %v4619
    %4668 = vmatprep.subr.mxu0 0.0
    %4669 = vmatpush1.msra.mxu0 %v4621
    %4670 = vmatprep.subr.mxu0 0.0
    %4671 = vmatpush1.msra.mxu0 %v4623
    %4672 = vmatprep.subr.mxu0 0.0
    %4673 = vmatpush1.msra.mxu0 %v4625
    %4674 = vmatprep.subr.mxu0 0.0
    %4675 = vmatpush1.msra.mxu0 %v4627
    %4676 = vmatprep.subr.mxu0 0.0
    %4677 = vmatpush1.msra.mxu0 0.0
    %4678 = vmatprep.subr.mxu0 0.0
    %4679 = vmatpush1.msra.mxu0 0.0
    %4680 = vmatprep.subr.mxu0 0.0
    %4681 = vmatpush1.msra.mxu0 0.0
    %4682 = vmatprep.subr.mxu0 0.0
    %4683 = vmatpush1.msra.mxu0 0.0
    %4684 = vmatprep.subr.mxu0 0.0
    %4685 = vmatpush1.msra.mxu0 0.0
    %4686 = vmatprep.subr.mxu0 0.0
    %4687 = vmatpush1.msra.mxu0 0.0
    %4688 = vmatprep.subr.mxu0 0.0
    %4689 = vmatpush1.msra.mxu0 0.0
    %4690 = vmatprep.subr.mxu0 0.0
    %4691 = vmatpush1.msra.mxu0 0.0
    %4692 = vmatprep.subr.mxu0 0.0
    %4693 = vmatpush1.msra.mxu0 0.0
    %4694 = vmatprep.subr.mxu0 0.0
    %4695 = vmatpush1.msra.mxu0 0.0
    %4696 = vmatprep.subr.mxu0 0.0
    %4697 = vmatpush1.msra.mxu0 0.0
    %4698 = vmatprep.subr.mxu0 0.0
    %4699 = vmatpush1.msra.mxu0 0.0
    %4700 = vmatprep.subr.mxu0 0.0
    %4701 = vmatpush1.msra.mxu0 0.0
    %4702 = vmatprep.subr.mxu0 0.0
    %4703 = vmatpush1.msra.mxu0 0.0
    %4704 = vmatprep.subr.mxu0 0.0
    %4705 = vmatpush1.msra.mxu0 0.0
    %4706 = vmatprep.subr.mxu0 0.0
    %4707 = vmatpush1.msra.mxu0 0.0
    %4708 = vmatprep.subr.mxu0 0.0
    %4709 = vmatpush1.msra.mxu0 0.0
    %4710 = vmatprep.subr.mxu0 0.0
    %4711 = vmatpush1.msra.mxu0 0.0
    %4712 = vmatprep.subr.mxu0 0.0
    %4713 = vmatpush1.msra.mxu0 0.0
    %4714 = vmatprep.subr.mxu0 0.0
    %4715 = vmatpush1.msra.mxu0 0.0
    %4716 = vmatprep.subr.mxu0 0.0
    %4717 = vmatpush1.msra.mxu0 0.0
    %4718 = vmatprep.subr.mxu0 0.0
    %4719 = vmatpush1.msra.mxu0 0.0
    %4720 = vmatprep.subr.mxu0 0.0
    %4721 = vmatpush1.msra.mxu0 0.0
    %4722 = vmatprep.subr.mxu0 0.0
    %4723 = vmatpush1.msra.mxu0 0.0
    %4724 = vmatprep.mubr.f32.mxu0 0.0
    %4725 = vmatmul.mubr.f32.gmra.mrb[0].mxu0 %v4637
    %v4726 = vpop.f32.mrb[0].mxu0
    %v4727 = vadd.f32 0.0, %v4726
    %v4728 = vpop.f32.mrb[0].mxu0
    %4729 = vmatprep.mubr.f32.mxu0 0.0
    %4730 = vmatmul.mubr.f32.gmra.mrb[0].mxu0 %v4640
    %v4731 = vpop.f32.mrb[0].mxu0
    %v4732 = vadd.f32 0.0, %v4731
    %v4733 = vpop.f32.mrb[0].mxu0
    %4734 = vmatprep.mubr.f32.mxu0 0.0
    %4735 = vmatmul.mubr.f32.gmra.mrb[0].mxu0 %v4643
    %v4736 = vpop.f32.mrb[0].mxu0
    %v4737 = vadd.f32 0.0, %v4736
    %v4738 = vpop.f32.mrb[0].mxu0
    %4739 = vmatprep.mubr.f32.mxu0 0.0
    %4740 = vmatmul.mubr.f32.gmra.mrb[0].mxu0 %v4646
    %v4741 = vpop.f32.mrb[0].mxu0
    %v4742 = vadd.f32 0.0, %v4741
    %v4743 = vpop.f32.mrb[0].mxu0
    %4744 = vmatprep.mubr.f32.mxu0 0.0
    %4745 = vmatmul.mubr.f32.gmra.mrb[0].mxu0 %v4649
    %v4746 = vpop.f32.mrb[0].mxu0
    %v4747 = vadd.f32 0.0, %v4746
    %v4748 = vpop.f32.mrb[0].mxu0
    %4749 = vmatprep.mubr.f32.mxu0 0.0
    %4750 = vmatmul.mubr.f32.gmra.mrb[0].mxu0 %v4652
    %v4751 = vpop.f32.mrb[0].mxu0
    %v4752 = vadd.f32 0.0, %v4751
    %v4753 = vpop.f32.mrb[0].mxu0
    %4754 = vmatprep.mubr.f32.mxu0 0.0
    %4755 = vmatmul.mubr.f32.gmra.mrb[0].mxu0 %v4655
    %v4756 = vpop.f32.mrb[0].mxu0
    %v4757 = vadd.f32 0.0, %v4756
    %v4758 = vpop.f32.mrb[0].mxu0
    %4759 = vmatprep.mubr.f32.mxu0 0.0
    %4760 = vmatmul.mubr.f32.gmra.mrb[0].mxu0 %v4658
    %v4761 = vpop.f32.mrb[0].mxu0
    %v4762 = vadd.f32 0.0, %v4761
    %v4763 = vpop.f32.mrb[0].mxu0
    %4764 = vdwg.mxu0
    %4773 = vrot.lane.b32.xlu0 %v4727, 16
    %v4774 = vpop.permute.xlu0 %4773
    %4775 = vrot.lane.b32.xlu0 %v4732, 16
    %v4776 = vpop.permute.xlu0 %4775
    %4777 = vrot.lane.b32.xlu0 %v4737, 16
    %v4778 = vpop.permute.xlu0 %4777
    %4779 = vrot.lane.b32.xlu0 %v4742, 16
    %v4780 = vpop.permute.xlu0 %4779
    %4781 = vrot.lane.b32.xlu0 %v4747, 16
    %v4782 = vpop.permute.xlu0 %4781
    %4783 = vrot.lane.b32.xlu0 %v4752, 16
    %v4784 = vpop.permute.xlu0 %4783
    %4785 = vrot.lane.b32.xlu0 %v4757, 16
    %v4786 = vpop.permute.xlu0 %4785
    %4787 = vrot.lane.b32.xlu0 %v4762, 16
    %v4788 = vpop.permute.xlu0 %4787
    %v4797 = vsel %vm325, %v4309, %v4774
    %v4798 = vsel %vm325, %v4314, %v4776
    %v4799 = vsel %vm325, %v4319, %v4778
    %v4800 = vsel %vm325, %v4324, %v4780
    %v4801 = vsel %vm325, %v4329, %v4782
    %v4802 = vsel %vm325, %v4334, %v4784
    %v4803 = vsel %vm325, %v4339, %v4786
    %v4804 = vsel %vm325, %v4344, %v4788
    %s4805 = scalar_lea.vmem [#allocation2], 32
    %v4806 = vld [vmem:[%s4805] sm:$0xff]
    %v4807 = vld [vmem:[%s4805 + $0x8] sm:$0xff]
    %v4808 = vld [vmem:[%s4805 + $0x10] sm:$0xff]
    %v4809 = vld [vmem:[%s4805 + $0x18] sm:$0xff]
    %v4811 = vsel %vm107, %v3929, 0
    %v4814 = vsel %vm107, %v3930, 0
    %v4817 = vsel %vm107, %v3931, 0
    %v4820 = vsel %vm107, %v3932, 0
    %v4823 = vsel %vm107, %v3933, 0
    %v4826 = vsel %vm107, %v3934, 0
    %v4829 = vsel %vm107, %v3935, 0
    %v4832 = vsel %vm107, %v3936, 0
    %v4835 = vsel %vm107, %v4797, 0
    %v4838 = vsel %vm107, %v4798, 0
    %v4841 = vsel %vm107, %v4799, 0
    %v4844 = vsel %vm107, %v4800, 0
    %v4847 = vsel %vm107, %v4801, 0
    %v4850 = vsel %vm107, %v4802, 0
    %v4853 = vsel %vm107, %v4803, 0
    %v4856 = vsel %vm107, %v4804, 0
    %4858 = vmatprep.subr.mxu0 0.0
    %4859 = vmatpush1.msra.mxu0 %v4806
    %4860 = vmatprep.subr.mxu0 0.0
    %4861 = vmatpush1.msra.mxu0 %v4807
    %4862 = vmatprep.subr.mxu0 0.0
    %4863 = vmatpush1.msra.mxu0 %v4808
    %4864 = vmatprep.subr.mxu0 0.0
    %4865 = vmatpush1.msra.mxu0 %v4809
    %4866 = vmatprep.subr.mxu0 0.0
    %4867 = vmatpush1.msra.mxu0 0.0
    %4868 = vmatprep.subr.mxu0 0.0
    %4869 = vmatpush1.msra.mxu0 0.0
    %4870 = vmatprep.subr.mxu0 0.0
    %4871 = vmatpush1.msra.mxu0 0.0
    %4872 = vmatprep.subr.mxu0 0.0
    %4873 = vmatpush1.msra.mxu0 0.0
    %4874 = vmatprep.subr.mxu0 0.0
    %4875 = vmatpush1.msra.mxu0 0.0
    %4876 = vmatprep.subr.mxu0 0.0
    %4877 = vmatpush1.msra.mxu0 0.0
    %4878 = vmatprep.subr.mxu0 0.0
    %4879 = vmatpush1.msra.mxu0 0.0
    %4880 = vmatprep.subr.mxu0 0.0
    %4881 = vmatpush1.msra.mxu0 0.0
    %4882 = vmatprep.subr.mxu0 0.0
    %4883 = vmatpush1.msra.mxu0 0.0
    %4884 = vmatprep.subr.mxu0 0.0
    %4885 = vmatpush1.msra.mxu0 0.0
    %4886 = vmatprep.subr.mxu0 0.0
    %4887 = vmatpush1.msra.mxu0 0.0
    %4888 = vmatprep.subr.mxu0 0.0
    %4889 = vmatpush1.msra.mxu0 0.0
    %4890 = vmatprep.subr.mxu0 0.0
    %4891 = vmatpush1.msra.mxu0 0.0
    %4892 = vmatprep.subr.mxu0 0.0
    %4893 = vmatpush1.msra.mxu0 0.0
    %4894 = vmatprep.subr.mxu0 0.0
    %4895 = vmatpush1.msra.mxu0 0.0
    %4896 = vmatprep.subr.mxu0 0.0
    %4897 = vmatpush1.msra.mxu0 0.0
    %4898 = vmatprep.subr.mxu0 0.0
    %4899 = vmatpush1.msra.mxu0 0.0
    %4900 = vmatprep.subr.mxu0 0.0
    %4901 = vmatpush1.msra.mxu0 0.0
    %4902 = vmatprep.subr.mxu0 0.0
    %4903 = vmatpush1.msra.mxu0 0.0
    %4904 = vmatprep.subr.mxu0 0.0
    %4905 = vmatpush1.msra.mxu0 0.0
    %4906 = vmatprep.subr.mxu0 0.0
    %4907 = vmatpush1.msra.mxu0 0.0
    %4908 = vmatprep.subr.mxu0 0.0
    %4909 = vmatpush1.msra.mxu0 0.0
    %4910 = vmatprep.subr.mxu0 0.0
    %4911 = vmatpush1.msra.mxu0 0.0
    %4912 = vmatprep.subr.mxu0 0.0
    %4913 = vmatpush1.msra.mxu0 0.0
    %4914 = vmatprep.subr.mxu0 0.0
    %4915 = vmatpush1.msra.mxu0 0.0
    %4916 = vmatprep.subr.mxu0 0.0
    %4917 = vmatpush1.msra.mxu0 0.0
    %4918 = vmatprep.subr.mxu0 0.0
    %4919 = vmatpush1.msra.mxu0 0.0
    %4920 = vmatprep.subr.mxu0 0.0
    %4921 = vmatpush1.msra.mxu0 0.0
    %4922 = vmatprep.mubr.f32.mxu0 0.0
    %4923 = vmatmul.mubr.f32.gmra.mrb[0].mxu0 %v4811
    %v4924 = vpop.f32.mrb[0].mxu0
    %v4925 = vadd.f32 0.0, %v4924
    %v4926 = vpop.f32.mrb[0].mxu0
    %4927 = vmatprep.mubr.f32.mxu0 0.0
    %4928 = vmatmul.mubr.f32.gmra.mrb[0].mxu0 %v4814
    %v4929 = vpop.f32.mrb[0].mxu0
    %v4930 = vadd.f32 0.0, %v4929
    %v4931 = vpop.f32.mrb[0].mxu0
    %4932 = vmatprep.mubr.f32.mxu0 0.0
    %4933 = vmatmul.mubr.f32.gmra.mrb[0].mxu0 %v4817
    %v4934 = vpop.f32.mrb[0].mxu0
    %v4935 = vadd.f32 0.0, %v4934
    %v4936 = vpop.f32.mrb[0].mxu0
    %4937 = vmatprep.mubr.f32.mxu0 0.0
    %4938 = vmatmul.mubr.f32.gmra.mrb[0].mxu0 %v4820
    %v4939 = vpop.f32.mrb[0].mxu0
    %v4940 = vadd.f32 0.0, %v4939
    %v4941 = vpop.f32.mrb[0].mxu0
    %4942 = vmatprep.mubr.f32.mxu0 0.0
    %4943 = vmatmul.mubr.f32.gmra.mrb[0].mxu0 %v4823
    %v4944 = vpop.f32.mrb[0].mxu0
    %v4945 = vadd.f32 0.0, %v4944
    %v4946 = vpop.f32.mrb[0].mxu0
    %4947 = vmatprep.mubr.f32.mxu0 0.0
    %4948 = vmatmul.mubr.f32.gmra.mrb[0].mxu0 %v4826
    %v4949 = vpop.f32.mrb[0].mxu0
    %v4950 = vadd.f32 0.0, %v4949
    %v4951 = vpop.f32.mrb[0].mxu0
    %4952 = vmatprep.mubr.f32.mxu0 0.0
    %4953 = vmatmul.mubr.f32.gmra.mrb[0].mxu0 %v4829
    %v4954 = vpop.f32.mrb[0].mxu0
    %v4955 = vadd.f32 0.0, %v4954
    %v4956 = vpop.f32.mrb[0].mxu0
    %4957 = vmatprep.mubr.f32.mxu0 0.0
    %4958 = vmatmul.mubr.f32.gmra.mrb[0].mxu0 %v4832
    %v4959 = vpop.f32.mrb[0].mxu0
    %v4960 = vadd.f32 0.0, %v4959
    %v4961 = vpop.f32.mrb[0].mxu0
    %4962 = vmatprep.mubr.f32.mxu0 0.0
    %4963 = vmatmul.mubr.f32.gmra.mrb[0].mxu0 %v4835
    %v4964 = vpop.f32.mrb[0].mxu0
    %v4965 = vadd.f32 0.0, %v4964
    %v4966 = vpop.f32.mrb[0].mxu0
    %4967 = vmatprep.mubr.f32.mxu0 0.0
    %4968 = vmatmul.mubr.f32.gmra.mrb[0].mxu0 %v4838
    %v4969 = vpop.f32.mrb[0].mxu0
    %v4970 = vadd.f32 0.0, %v4969
    %v4971 = vpop.f32.mrb[0].mxu0
    %4972 = vmatprep.mubr.f32.mxu0 0.0
    %4973 = vmatmul.mubr.f32.gmra.mrb[0].mxu0 %v4841
    %v4974 = vpop.f32.mrb[0].mxu0
    %v4975 = vadd.f32 0.0, %v4974
    %v4976 = vpop.f32.mrb[0].mxu0
    %4977 = vmatprep.mubr.f32.mxu0 0.0
    %4978 = vmatmul.mubr.f32.gmra.mrb[0].mxu0 %v4844
    %v4979 = vpop.f32.mrb[0].mxu0
    %v4980 = vadd.f32 0.0, %v4979
    %v4981 = vpop.f32.mrb[0].mxu0
    %4982 = vmatprep.mubr.f32.mxu0 0.0
    %4983 = vmatmul.mubr.f32.gmra.mrb[0].mxu0 %v4847
    %v4984 = vpop.f32.mrb[0].mxu0
    %v4985 = vadd.f32 0.0, %v4984
    %v4986 = vpop.f32.mrb[0].mxu0
    %4987 = vmatprep.mubr.f32.mxu0 0.0
    %4988 = vmatmul.mubr.f32.gmra.mrb[0].mxu0 %v4850
    %v4989 = vpop.f32.mrb[0].mxu0
    %v4990 = vadd.f32 0.0, %v4989
    %v4991 = vpop.f32.mrb[0].mxu0
    %4992 = vmatprep.mubr.f32.mxu0 0.0
    %4993 = vmatmul.mubr.f32.gmra.mrb[0].mxu0 %v4853
    %v4994 = vpop.f32.mrb[0].mxu0
    %v4995 = vadd.f32 0.0, %v4994
    %v4996 = vpop.f32.mrb[0].mxu0
    %4997 = vmatprep.mubr.f32.mxu0 0.0
    %4998 = vmatmul.mubr.f32.gmra.mrb[0].mxu0 %v4856
    %v4999 = vpop.f32.mrb[0].mxu0
    %v5000 = vadd.f32 0.0, %v4999
    %v5001 = vpop.f32.mrb[0].mxu0
    %5002 = vdwg.mxu0
    %v5003 = vadd.f32 %v2847, %v4925
    %v5004 = vadd.f32 %v2848, %v4930
    %v5005 = vadd.f32 %v2849, %v4935
    %v5006 = vadd.f32 %v2850, %v4940
    %v5007 = vadd.f32 %v2851, %v4945
    %v5008 = vadd.f32 %v2852, %v4950
    %v5009 = vadd.f32 %v2853, %v4955
    %v5010 = vadd.f32 %v2854, %v4960
    %v5011 = vadd.f32 %v2855, %v4965
    %v5012 = vadd.f32 %v2856, %v4970
    %v5013 = vadd.f32 %v2857, %v4975
    %v5014 = vadd.f32 %v2858, %v4980
    %v5015 = vadd.f32 %v2859, %v4985
    %v5016 = vadd.f32 %v2860, %v4990
    %v5017 = vadd.f32 %v2861, %v4995
    %v5018 = vadd.f32 %v2862, %v5000
    %s5019 = scalar_lea.vmem %s4, 1
    %v5020 = vld [vmem:[%s5019] sm:$0x1]
    %v5022 = vlaneseq
    %v5023 = vshrl.u32 %v5022, 7
    %v5024 = vsub.s32 0, %v5023
    %v5025 = vrot.slane %v5020, %v5024
    %v5027 = vadd.f32 %v5003, %v5025
    %v5028 = vadd.f32 %v5004, %v5025
    %v5029 = vadd.f32 %v5005, %v5025
    %v5030 = vadd.f32 %v5006, %v5025
    %v5031 = vadd.f32 %v5007, %v5025
    %v5032 = vadd.f32 %v5008, %v5025
    %v5033 = vadd.f32 %v5009, %v5025
    %v5034 = vadd.f32 %v5010, %v5025
    %v5035 = vadd.f32 %v5011, %v5025
    %v5036 = vadd.f32 %v5012, %v5025
    %v5037 = vadd.f32 %v5013, %v5025
    %v5038 = vadd.f32 %v5014, %v5025
    %v5039 = vadd.f32 %v5015, %v5025
    %v5040 = vadd.f32 %v5016, %v5025
    %v5041 = vadd.f32 %v5017, %v5025
    %v5042 = vadd.f32 %v5018, %v5025
    %s5043 = scalar_lea.vmem [#allocation5], 32
    %v5044 = vld [vmem:[%s5043] sm:$0xff]
    %v5045 = vld [vmem:[%s5043 + $0x8] sm:$0xff]
    %v5046 = vld [vmem:[%s5043 + $0x10] sm:$0xff]
    %v5047 = vld [vmem:[%s5043 + $0x18] sm:$0xff]
    %s5048 = scalar_lea.vmem %s6, 1
    %v5049 = vld [vmem:[%s5048] sm:$0x1]
    %v5051 = vlaneseq
    %v5052 = vshrl.u32 %v5051, 7
    %v5053 = vsub.s32 0, %v5052
    %v5054 = vrot.slane %v5049, %v5053
    %v5057 = vsel %vm107, %v5027, 0
    %v5060 = vsel %vm107, %v5028, 0
    %v5063 = vsel %vm107, %v5029, 0
    %v5066 = vsel %vm107, %v5030, 0
    %v5069 = vsel %vm107, %v5031, 0
    %v5072 = vsel %vm107, %v5032, 0
    %v5075 = vsel %vm107, %v5033, 0
    %v5078 = vsel %vm107, %v5034, 0
    %v5081 = vsel %vm107, %v5035, 0
    %v5084 = vsel %vm107, %v5036, 0
    %v5087 = vsel %vm107, %v5037, 0
    %v5090 = vsel %vm107, %v5038, 0
    %v5093 = vsel %vm107, %v5039, 0
    %v5096 = vsel %vm107, %v5040, 0
    %v5099 = vsel %vm107, %v5041, 0
    %v5102 = vsel %vm107, %v5042, 0
    %5104 = vmatprep.subr.mxu0 0.0
    %5105 = vmatpush1.msra.mxu0 %v5044
    %5106 = vmatprep.subr.mxu0 0.0
    %5107 = vmatpush1.msra.mxu0 %v5045
    %5108 = vmatprep.subr.mxu0 0.0
    %5109 = vmatpush1.msra.mxu0 %v5046
    %5110 = vmatprep.subr.mxu0 0.0
    %5111 = vmatpush1.msra.mxu0 %v5047
    %5112 = vmatprep.subr.mxu0 0.0
    %5113 = vmatpush1.msra.mxu0 0.0
    %5114 = vmatprep.subr.mxu0 0.0
    %5115 = vmatpush1.msra.mxu0 0.0
    %5116 = vmatprep.subr.mxu0 0.0
    %5117 = vmatpush1.msra.mxu0 0.0
    %5118 = vmatprep.subr.mxu0 0.0
    %5119 = vmatpush1.msra.mxu0 0.0
    %5120 = vmatprep.subr.mxu0 0.0
    %5121 = vmatpush1.msra.mxu0 0.0
    %5122 = vmatprep.subr.mxu0 0.0
    %5123 = vmatpush1.msra.mxu0 0.0
    %5124 = vmatprep.subr.mxu0 0.0
    %5125 = vmatpush1.msra.mxu0 0.0
    %5126 = vmatprep.subr.mxu0 0.0
    %5127 = vmatpush1.msra.mxu0 0.0
    %5128 = vmatprep.subr.mxu0 0.0
    %5129 = vmatpush1.msra.mxu0 0.0
    %5130 = vmatprep.subr.mxu0 0.0
    %5131 = vmatpush1.msra.mxu0 0.0
    %5132 = vmatprep.subr.mxu0 0.0
    %5133 = vmatpush1.msra.mxu0 0.0
    %5134 = vmatprep.subr.mxu0 0.0
    %5135 = vmatpush1.msra.mxu0 0.0
    %5136 = vmatprep.subr.mxu0 0.0
    %5137 = vmatpush1.msra.mxu0 0.0
    %5138 = vmatprep.subr.mxu0 0.0
    %5139 = vmatpush1.msra.mxu0 0.0
    %5140 = vmatprep.subr.mxu0 0.0
    %5141 = vmatpush1.msra.mxu0 0.0
    %5142 = vmatprep.subr.mxu0 0.0
    %5143 = vmatpush1.msra.mxu0 0.0
    %5144 = vmatprep.subr.mxu0 0.0
    %5145 = vmatpush1.msra.mxu0 0.0
    %5146 = vmatprep.subr.mxu0 0.0
    %5147 = vmatpush1.msra.mxu0 0.0
    %5148 = vmatprep.subr.mxu0 0.0
    %5149 = vmatpush1.msra.mxu0 0.0
    %5150 = vmatprep.subr.mxu0 0.0
    %5151 = vmatpush1.msra.mxu0 0.0
    %5152 = vmatprep.subr.mxu0 0.0
    %5153 = vmatpush1.msra.mxu0 0.0
    %5154 = vmatprep.subr.mxu0 0.0
    %5155 = vmatpush1.msra.mxu0 0.0
    %5156 = vmatprep.subr.mxu0 0.0
    %5157 = vmatpush1.msra.mxu0 0.0
    %5158 = vmatprep.subr.mxu0 0.0
    %5159 = vmatpush1.msra.mxu0 0.0
    %5160 = vmatprep.subr.mxu0 0.0
    %5161 = vmatpush1.msra.mxu0 0.0
    %5162 = vmatprep.subr.mxu0 0.0
    %5163 = vmatpush1.msra.mxu0 0.0
    %5164 = vmatprep.subr.mxu0 0.0
    %5165 = vmatpush1.msra.mxu0 0.0
    %5166 = vmatprep.subr.mxu0 0.0
    %5167 = vmatpush1.msra.mxu0 0.0
    %5168 = vmatprep.mubr.f32.mxu0 0.0
    %5169 = vmatmul.mubr.f32.gmra.mrb[0].mxu0 %v5057
    %v5170 = vpop.f32.mrb[0].mxu0
    %v5171 = vadd.f32 %v5054, %v5170
    %v5172 = vpop.f32.mrb[0].mxu0
    %5173 = vmatprep.mubr.f32.mxu0 0.0
    %5174 = vmatmul.mubr.f32.gmra.mrb[0].mxu0 %v5060
    %v5175 = vpop.f32.mrb[0].mxu0
    %v5176 = vadd.f32 %v5054, %v5175
    %v5177 = vpop.f32.mrb[0].mxu0
    %5178 = vmatprep.mubr.f32.mxu0 0.0
    %5179 = vmatmul.mubr.f32.gmra.mrb[0].mxu0 %v5063
    %v5180 = vpop.f32.mrb[0].mxu0
    %v5181 = vadd.f32 %v5054, %v5180
    %v5182 = vpop.f32.mrb[0].mxu0
    %5183 = vmatprep.mubr.f32.mxu0 0.0
    %5184 = vmatmul.mubr.f32.gmra.mrb[0].mxu0 %v5066
    %v5185 = vpop.f32.mrb[0].mxu0
    %v5186 = vadd.f32 %v5054, %v5185
    %v5187 = vpop.f32.mrb[0].mxu0
    %5188 = vmatprep.mubr.f32.mxu0 0.0
    %5189 = vmatmul.mubr.f32.gmra.mrb[0].mxu0 %v5069
    %v5190 = vpop.f32.mrb[0].mxu0
    %v5191 = vadd.f32 %v5054, %v5190
    %v5192 = vpop.f32.mrb[0].mxu0
    %5193 = vmatprep.mubr.f32.mxu0 0.0
    %5194 = vmatmul.mubr.f32.gmra.mrb[0].mxu0 %v5072
    %v5195 = vpop.f32.mrb[0].mxu0
    %v5196 = vadd.f32 %v5054, %v5195
    %v5197 = vpop.f32.mrb[0].mxu0
    %5198 = vmatprep.mubr.f32.mxu0 0.0
    %5199 = vmatmul.mubr.f32.gmra.mrb[0].mxu0 %v5075
    %v5200 = vpop.f32.mrb[0].mxu0
    %v5201 = vadd.f32 %v5054, %v5200
    %v5202 = vpop.f32.mrb[0].mxu0
    %5203 = vmatprep.mubr.f32.mxu0 0.0
    %5204 = vmatmul.mubr.f32.gmra.mrb[0].mxu0 %v5078
    %v5205 = vpop.f32.mrb[0].mxu0
    %v5206 = vadd.f32 %v5054, %v5205
    %v5207 = vpop.f32.mrb[0].mxu0
    %5208 = vmatprep.mubr.f32.mxu0 0.0
    %5209 = vmatmul.mubr.f32.gmra.mrb[0].mxu0 %v5081
    %v5210 = vpop.f32.mrb[0].mxu0
    %v5211 = vadd.f32 %v5054, %v5210
    %v5212 = vpop.f32.mrb[0].mxu0
    %5213 = vmatprep.mubr.f32.mxu0 0.0
    %5214 = vmatmul.mubr.f32.gmra.mrb[0].mxu0 %v5084
    %v5215 = vpop.f32.mrb[0].mxu0
    %v5216 = vadd.f32 %v5054, %v5215
    %v5217 = vpop.f32.mrb[0].mxu0
    %5218 = vmatprep.mubr.f32.mxu0 0.0
    %5219 = vmatmul.mubr.f32.gmra.mrb[0].mxu0 %v5087
    %v5220 = vpop.f32.mrb[0].mxu0
    %v5221 = vadd.f32 %v5054, %v5220
    %v5222 = vpop.f32.mrb[0].mxu0
    %5223 = vmatprep.mubr.f32.mxu0 0.0
    %5224 = vmatmul.mubr.f32.gmra.mrb[0].mxu0 %v5090
    %v5225 = vpop.f32.mrb[0].mxu0
    %v5226 = vadd.f32 %v5054, %v5225
    %v5227 = vpop.f32.mrb[0].mxu0
    %5228 = vmatprep.mubr.f32.mxu0 0.0
    %5229 = vmatmul.mubr.f32.gmra.mrb[0].mxu0 %v5093
    %v5230 = vpop.f32.mrb[0].mxu0
    %v5231 = vadd.f32 %v5054, %v5230
    %v5232 = vpop.f32.mrb[0].mxu0
    %5233 = vmatprep.mubr.f32.mxu0 0.0
    %5234 = vmatmul.mubr.f32.gmra.mrb[0].mxu0 %v5096
    %v5235 = vpop.f32.mrb[0].mxu0
    %v5236 = vadd.f32 %v5054, %v5235
    %v5237 = vpop.f32.mrb[0].mxu0
    %5238 = vmatprep.mubr.f32.mxu0 0.0
    %5239 = vmatmul.mubr.f32.gmra.mrb[0].mxu0 %v5099
    %v5240 = vpop.f32.mrb[0].mxu0
    %v5241 = vadd.f32 %v5054, %v5240
    %v5242 = vpop.f32.mrb[0].mxu0
    %5243 = vmatprep.mubr.f32.mxu0 0.0
    %5244 = vmatmul.mubr.f32.gmra.mrb[0].mxu0 %v5102
    %v5245 = vpop.f32.mrb[0].mxu0
    %v5246 = vadd.f32 %v5054, %v5245
    %v5247 = vpop.f32.mrb[0].mxu0
    %5248 = vdwg.mxu0
    %v5249 = vmul.f32 %v5171, %v5171
    %v5250 = vmul.f32 %v5176, %v5176
    %v5251 = vmul.f32 %v5181, %v5181
    %v5252 = vmul.f32 %v5186, %v5186
    %v5253 = vmul.f32 %v5191, %v5191
    %v5254 = vmul.f32 %v5196, %v5196
    %v5255 = vmul.f32 %v5201, %v5201
    %v5256 = vmul.f32 %v5206, %v5206
    %v5257 = vmul.f32 %v5211, %v5211
    %v5258 = vmul.f32 %v5216, %v5216
    %v5259 = vmul.f32 %v5221, %v5221
    %v5260 = vmul.f32 %v5226, %v5226
    %v5261 = vmul.f32 %v5231, %v5231
    %v5262 = vmul.f32 %v5236, %v5236
    %v5263 = vmul.f32 %v5241, %v5241
    %v5264 = vmul.f32 %v5246, %v5246
    %v5265 = vmul.f32 %v5171, %v5249
    %v5266 = vmul.f32 %v5176, %v5250
    %v5267 = vmul.f32 %v5181, %v5251
    %v5268 = vmul.f32 %v5186, %v5252
    %v5269 = vmul.f32 %v5191, %v5253
    %v5270 = vmul.f32 %v5196, %v5254
    %v5271 = vmul.f32 %v5201, %v5255
    %v5272 = vmul.f32 %v5206, %v5256
    %v5273 = vmul.f32 %v5211, %v5257
    %v5274 = vmul.f32 %v5216, %v5258
    %v5275 = vmul.f32 %v5221, %v5259
    %v5276 = vmul.f32 %v5226, %v5260
    %v5277 = vmul.f32 %v5231, %v5261
    %v5278 = vmul.f32 %v5236, %v5262
    %v5279 = vmul.f32 %v5241, %v5263
    %v5280 = vmul.f32 %v5246, %v5264
    %v5281 = vmul.f32 %v5265, 0.044715
    %v5282 = vmul.f32 %v5266, 0.044715
    %v5283 = vmul.f32 %v5267, 0.044715
    %v5284 = vmul.f32 %v5268, 0.044715
    %v5285 = vmul.f32 %v5269, 0.044715
    %v5286 = vmul.f32 %v5270, 0.044715
    %v5287 = vmul.f32 %v5271, 0.044715
    %v5288 = vmul.f32 %v5272, 0.044715
    %v5289 = vmul.f32 %v5273, 0.044715
    %v5290 = vmul.f32 %v5274, 0.044715
    %v5291 = vmul.f32 %v5275, 0.044715
    %v5292 = vmul.f32 %v5276, 0.044715
    %v5293 = vmul.f32 %v5277, 0.044715
    %v5294 = vmul.f32 %v5278, 0.044715
    %v5295 = vmul.f32 %v5279, 0.044715
    %v5296 = vmul.f32 %v5280, 0.044715
    %v5297 = vadd.f32 %v5171, %v5281
    %v5298 = vadd.f32 %v5176, %v5282
    %v5299 = vadd.f32 %v5181, %v5283
    %v5300 = vadd.f32 %v5186, %v5284
    %v5301 = vadd.f32 %v5191, %v5285
    %v5302 = vadd.f32 %v5196, %v5286
    %v5303 = vadd.f32 %v5201, %v5287
    %v5304 = vadd.f32 %v5206, %v5288
    %v5305 = vadd.f32 %v5211, %v5289
    %v5306 = vadd.f32 %v5216, %v5290
    %v5307 = vadd.f32 %v5221, %v5291
    %v5308 = vadd.f32 %v5226, %v5292
    %v5309 = vadd.f32 %v5231, %v5293
    %v5310 = vadd.f32 %v5236, %v5294
    %v5311 = vadd.f32 %v5241, %v5295
    %v5312 = vadd.f32 %v5246, %v5296
    %v5313 = vmul.f32 %v5297, 0.7978846
    %v5314 = vmul.f32 %v5298, 0.7978846
    %v5315 = vmul.f32 %v5299, 0.7978846
    %v5316 = vmul.f32 %v5300, 0.7978846
    %v5317 = vmul.f32 %v5301, 0.7978846
    %v5318 = vmul.f32 %v5302, 0.7978846
    %v5319 = vmul.f32 %v5303, 0.7978846
    %v5320 = vmul.f32 %v5304, 0.7978846
    %v5321 = vmul.f32 %v5305, 0.7978846
    %v5322 = vmul.f32 %v5306, 0.7978846
    %v5323 = vmul.f32 %v5307, 0.7978846
    %v5324 = vmul.f32 %v5308, 0.7978846
    %v5325 = vmul.f32 %v5309, 0.7978846
    %v5326 = vmul.f32 %v5310, 0.7978846
    %v5327 = vmul.f32 %v5311, 0.7978846
    %v5328 = vmul.f32 %v5312, 0.7978846
    %v5329 = vtanh.pop %v5313
    %v5330 = vtanh.pop %v5314
    %v5331 = vtanh.pop %v5315
    %v5332 = vtanh.pop %v5316
    %v5333 = vtanh.pop %v5317
    %v5334 = vtanh.pop %v5318
    %v5335 = vtanh.pop %v5319
    %v5336 = vtanh.pop %v5320
    %v5337 = vtanh.pop %v5321
    %v5338 = vtanh.pop %v5322
    %v5339 = vtanh.pop %v5323
    %v5340 = vtanh.pop %v5324
    %v5341 = vtanh.pop %v5325
    %v5342 = vtanh.pop %v5326
    %v5343 = vtanh.pop %v5327
    %v5344 = vtanh.pop %v5328
    %v5345 = vadd.f32 %v5329, 1.0
    %v5346 = vadd.f32 %v5330, 1.0
    %v5347 = vadd.f32 %v5331, 1.0
    %v5348 = vadd.f32 %v5332, 1.0
    %v5349 = vadd.f32 %v5333, 1.0
    %v5350 = vadd.f32 %v5334, 1.0
    %v5351 = vadd.f32 %v5335, 1.0
    %v5352 = vadd.f32 %v5336, 1.0
    %v5353 = vadd.f32 %v5337, 1.0
    %v5354 = vadd.f32 %v5338, 1.0
    %v5355 = vadd.f32 %v5339, 1.0
    %v5356 = vadd.f32 %v5340, 1.0
    %v5357 = vadd.f32 %v5341, 1.0
    %v5358 = vadd.f32 %v5342, 1.0
    %v5359 = vadd.f32 %v5343, 1.0
    %v5360 = vadd.f32 %v5344, 1.0
    %v5361 = vmul.f32 %v5345, 0.5
    %v5362 = vmul.f32 %v5346, 0.5
    %v5363 = vmul.f32 %v5347, 0.5
    %v5364 = vmul.f32 %v5348, 0.5
    %v5365 = vmul.f32 %v5349, 0.5
    %v5366 = vmul.f32 %v5350, 0.5
    %v5367 = vmul.f32 %v5351, 0.5
    %v5368 = vmul.f32 %v5352, 0.5
    %v5369 = vmul.f32 %v5353, 0.5
    %v5370 = vmul.f32 %v5354, 0.5
    %v5371 = vmul.f32 %v5355, 0.5
    %v5372 = vmul.f32 %v5356, 0.5
    %v5373 = vmul.f32 %v5357, 0.5
    %v5374 = vmul.f32 %v5358, 0.5
    %v5375 = vmul.f32 %v5359, 0.5
    %v5376 = vmul.f32 %v5360, 0.5
    %v5377 = vmul.f32 %v5171, %v5361
    %v5378 = vmul.f32 %v5176, %v5362
    %v5379 = vmul.f32 %v5181, %v5363
    %v5380 = vmul.f32 %v5186, %v5364
    %v5381 = vmul.f32 %v5191, %v5365
    %v5382 = vmul.f32 %v5196, %v5366
    %v5383 = vmul.f32 %v5201, %v5367
    %v5384 = vmul.f32 %v5206, %v5368
    %v5385 = vmul.f32 %v5211, %v5369
    %v5386 = vmul.f32 %v5216, %v5370
    %v5387 = vmul.f32 %v5221, %v5371
    %v5388 = vmul.f32 %v5226, %v5372
    %v5389 = vmul.f32 %v5231, %v5373
    %v5390 = vmul.f32 %v5236, %v5374
    %v5391 = vmul.f32 %v5241, %v5375
    %v5392 = vmul.f32 %v5246, %v5376
    %s5393 = scalar_lea.vmem %s7, 64
    %v5394 = vld [vmem:[%s5393] sm:$0xff]
    %v5395 = vld [vmem:[%s5393 + $0x8] sm:$0xff]
    %v5396 = vld [vmem:[%s5393 + $0x10] sm:$0xff]
    %v5397 = vld [vmem:[%s5393 + $0x18] sm:$0xff]
    %v5398 = vld [vmem:[%s5393 + $0x20] sm:$0xff]
    %v5399 = vld [vmem:[%s5393 + $0x28] sm:$0xff]
    %v5400 = vld [vmem:[%s5393 + $0x30] sm:$0xff]
    %v5401 = vld [vmem:[%s5393 + $0x38] sm:$0xff]
    %v5403 = vsel %vm471, %v5377, 0
    %v5406 = vsel %vm471, %v5378, 0
    %v5409 = vsel %vm471, %v5379, 0
    %v5412 = vsel %vm471, %v5380, 0
    %v5415 = vsel %vm471, %v5381, 0
    %v5418 = vsel %vm471, %v5382, 0
    %v5421 = vsel %vm471, %v5383, 0
    %v5424 = vsel %vm471, %v5384, 0
    %v5427 = vsel %vm471, %v5385, 0
    %v5430 = vsel %vm471, %v5386, 0
    %v5433 = vsel %vm471, %v5387, 0
    %v5436 = vsel %vm471, %v5388, 0
    %v5439 = vsel %vm471, %v5389, 0
    %v5442 = vsel %vm471, %v5390, 0
    %v5445 = vsel %vm471, %v5391, 0
    %v5448 = vsel %vm471, %v5392, 0
    %5450 = vmatprep.subr.mxu0 0.0
    %5451 = vmatpush1.msra.mxu0 %v5394
    %5452 = vmatprep.subr.mxu0 0.0
    %5453 = vmatpush1.msra.mxu0 %v5395
    %5454 = vmatprep.subr.mxu0 0.0
    %5455 = vmatpush1.msra.mxu0 %v5396
    %5456 = vmatprep.subr.mxu0 0.0
    %5457 = vmatpush1.msra.mxu0 %v5397
    %5458 = vmatprep.subr.mxu0 0.0
    %5459 = vmatpush1.msra.mxu0 %v5398
    %5460 = vmatprep.subr.mxu0 0.0
    %5461 = vmatpush1.msra.mxu0 %v5399
    %5462 = vmatprep.subr.mxu0 0.0
    %5463 = vmatpush1.msra.mxu0 %v5400
    %5464 = vmatprep.subr.mxu0 0.0
    %5465 = vmatpush1.msra.mxu0 %v5401
    %5466 = vmatprep.subr.mxu0 0.0
    %5467 = vmatpush1.msra.mxu0 0.0
    %5468 = vmatprep.subr.mxu0 0.0
    %5469 = vmatpush1.msra.mxu0 0.0
    %5470 = vmatprep.subr.mxu0 0.0
    %5471 = vmatpush1.msra.mxu0 0.0
    %5472 = vmatprep.subr.mxu0 0.0
    %5473 = vmatpush1.msra.mxu0 0.0
    %5474 = vmatprep.subr.mxu0 0.0
    %5475 = vmatpush1.msra.mxu0 0.0
    %5476 = vmatprep.subr.mxu0 0.0
    %5477 = vmatpush1.msra.mxu0 0.0
    %5478 = vmatprep.subr.mxu0 0.0
    %5479 = vmatpush1.msra.mxu0 0.0
    %5480 = vmatprep.subr.mxu0 0.0
    %5481 = vmatpush1.msra.mxu0 0.0
    %5482 = vmatprep.subr.mxu0 0.0
    %5483 = vmatpush1.msra.mxu0 0.0
    %5484 = vmatprep.subr.mxu0 0.0
    %5485 = vmatpush1.msra.mxu0 0.0
    %5486 = vmatprep.subr.mxu0 0.0
    %5487 = vmatpush1.msra.mxu0 0.0
    %5488 = vmatprep.subr.mxu0 0.0
    %5489 = vmatpush1.msra.mxu0 0.0
    %5490 = vmatprep.subr.mxu0 0.0
    %5491 = vmatpush1.msra.mxu0 0.0
    %5492 = vmatprep.subr.mxu0 0.0
    %5493 = vmatpush1.msra.mxu0 0.0
    %5494 = vmatprep.subr.mxu0 0.0
    %5495 = vmatpush1.msra.mxu0 0.0
    %5496 = vmatprep.subr.mxu0 0.0
    %5497 = vmatpush1.msra.mxu0 0.0
    %5498 = vmatprep.subr.mxu0 0.0
    %5499 = vmatpush1.msra.mxu0 0.0
    %5500 = vmatprep.subr.mxu0 0.0
    %5501 = vmatpush1.msra.mxu0 0.0
    %5502 = vmatprep.subr.mxu0 0.0
    %5503 = vmatpush1.msra.mxu0 0.0
    %5504 = vmatprep.subr.mxu0 0.0
    %5505 = vmatpush1.msra.mxu0 0.0
    %5506 = vmatprep.subr.mxu0 0.0
    %5507 = vmatpush1.msra.mxu0 0.0
    %5508 = vmatprep.subr.mxu0 0.0
    %5509 = vmatpush1.msra.mxu0 0.0
    %5510 = vmatprep.subr.mxu0 0.0
    %5511 = vmatpush1.msra.mxu0 0.0
    %5512 = vmatprep.subr.mxu0 0.0
    %5513 = vmatpush1.msra.mxu0 0.0
    %5514 = vmatprep.mubr.f32.mxu0 0.0
    %5515 = vmatmul.mubr.f32.gmra.mrb[0].mxu0 %v5403
    %v5516 = vpop.f32.mrb[0].mxu0
    %v5517 = vadd.f32 0.0, %v5516
    %v5518 = vpop.f32.mrb[0].mxu0
    %5519 = vmatprep.mubr.f32.mxu0 0.0
    %5520 = vmatmul.mubr.f32.gmra.mrb[0].mxu0 %v5406
    %v5521 = vpop.f32.mrb[0].mxu0
    %v5522 = vadd.f32 0.0, %v5521
    %v5523 = vpop.f32.mrb[0].mxu0
    %5524 = vmatprep.mubr.f32.mxu0 0.0
    %5525 = vmatmul.mubr.f32.gmra.mrb[0].mxu0 %v5409
    %v5526 = vpop.f32.mrb[0].mxu0
    %v5527 = vadd.f32 0.0, %v5526
    %v5528 = vpop.f32.mrb[0].mxu0
    %5529 = vmatprep.mubr.f32.mxu0 0.0
    %5530 = vmatmul.mubr.f32.gmra.mrb[0].mxu0 %v5412
    %v5531 = vpop.f32.mrb[0].mxu0
    %v5532 = vadd.f32 0.0, %v5531
    %v5533 = vpop.f32.mrb[0].mxu0
    %5534 = vmatprep.mubr.f32.mxu0 0.0
    %5535 = vmatmul.mubr.f32.gmra.mrb[0].mxu0 %v5415
    %v5536 = vpop.f32.mrb[0].mxu0
    %v5537 = vadd.f32 0.0, %v5536
    %v5538 = vpop.f32.mrb[0].mxu0
    %5539 = vmatprep.mubr.f32.mxu0 0.0
    %5540 = vmatmul.mubr.f32.gmra.mrb[0].mxu0 %v5418
    %v5541 = vpop.f32.mrb[0].mxu0
    %v5542 = vadd.f32 0.0, %v5541
    %v5543 = vpop.f32.mrb[0].mxu0
    %5544 = vmatprep.mubr.f32.mxu0 0.0
    %5545 = vmatmul.mubr.f32.gmra.mrb[0].mxu0 %v5421
    %v5546 = vpop.f32.mrb[0].mxu0
    %v5547 = vadd.f32 0.0, %v5546
    %v5548 = vpop.f32.mrb[0].mxu0
    %5549 = vmatprep.mubr.f32.mxu0 0.0
    %5550 = vmatmul.mubr.f32.gmra.mrb[0].mxu0 %v5424
    %v5551 = vpop.f32.mrb[0].mxu0
    %v5552 = vadd.f32 0.0, %v5551
    %v5553 = vpop.f32.mrb[0].mxu0
    %5554 = vmatprep.mubr.f32.mxu0 0.0
    %5555 = vmatmul.mubr.f32.gmra.mrb[0].mxu0 %v5427
    %v5556 = vpop.f32.mrb[0].mxu0
    %v5557 = vadd.f32 0.0, %v5556
    %v5558 = vpop.f32.mrb[0].mxu0
    %5559 = vmatprep.mubr.f32.mxu0 0.0
    %5560 = vmatmul.mubr.f32.gmra.mrb[0].mxu0 %v5430
    %v5561 = vpop.f32.mrb[0].mxu0
    %v5562 = vadd.f32 0.0, %v5561
    %v5563 = vpop.f32.mrb[0].mxu0
    %5564 = vmatprep.mubr.f32.mxu0 0.0
    %5565 = vmatmul.mubr.f32.gmra.mrb[0].mxu0 %v5433
    %v5566 = vpop.f32.mrb[0].mxu0
    %v5567 = vadd.f32 0.0, %v5566
    %v5568 = vpop.f32.mrb[0].mxu0
    %5569 = vmatprep.mubr.f32.mxu0 0.0
    %5570 = vmatmul.mubr.f32.gmra.mrb[0].mxu0 %v5436
    %v5571 = vpop.f32.mrb[0].mxu0
    %v5572 = vadd.f32 0.0, %v5571
    %v5573 = vpop.f32.mrb[0].mxu0
    %5574 = vmatprep.mubr.f32.mxu0 0.0
    %5575 = vmatmul.mubr.f32.gmra.mrb[0].mxu0 %v5439
    %v5576 = vpop.f32.mrb[0].mxu0
    %v5577 = vadd.f32 0.0, %v5576
    %v5578 = vpop.f32.mrb[0].mxu0
    %5579 = vmatprep.mubr.f32.mxu0 0.0
    %5580 = vmatmul.mubr.f32.gmra.mrb[0].mxu0 %v5442
    %v5581 = vpop.f32.mrb[0].mxu0
    %v5582 = vadd.f32 0.0, %v5581
    %v5583 = vpop.f32.mrb[0].mxu0
    %5584 = vmatprep.mubr.f32.mxu0 0.0
    %5585 = vmatmul.mubr.f32.gmra.mrb[0].mxu0 %v5445
    %v5586 = vpop.f32.mrb[0].mxu0
    %v5587 = vadd.f32 0.0, %v5586
    %v5588 = vpop.f32.mrb[0].mxu0
    %5589 = vmatprep.mubr.f32.mxu0 0.0
    %5590 = vmatmul.mubr.f32.gmra.mrb[0].mxu0 %v5448
    %v5591 = vpop.f32.mrb[0].mxu0
    %v5592 = vadd.f32 0.0, %v5591
    %v5593 = vpop.f32.mrb[0].mxu0
    %5594 = vdwg.mxu0
    %v5595 = vadd.f32 %v5027, %v5517
    %v5596 = vadd.f32 %v5028, %v5522
    %v5597 = vadd.f32 %v5029, %v5527
    %v5598 = vadd.f32 %v5030, %v5532
    %v5599 = vadd.f32 %v5031, %v5537
    %v5600 = vadd.f32 %v5032, %v5542
    %v5601 = vadd.f32 %v5033, %v5547
    %v5602 = vadd.f32 %v5034, %v5552
    %v5603 = vadd.f32 %v5035, %v5557
    %v5604 = vadd.f32 %v5036, %v5562
    %v5605 = vadd.f32 %v5037, %v5567
    %v5606 = vadd.f32 %v5038, %v5572
    %v5607 = vadd.f32 %v5039, %v5577
    %v5608 = vadd.f32 %v5040, %v5582
    %v5609 = vadd.f32 %v5041, %v5587
    %v5610 = vadd.f32 %v5042, %v5592
    %s5611 = scalar_lea.vmem %s8, 1
    %v5612 = vld [vmem:[%s5611] sm:$0x1]
    %v5614 = vlaneseq
    %v5615 = vshrl.u32 %v5614, 7
    %v5616 = vsub.s32 0, %v5615
    %v5617 = vrot.slane %v5612, %v5616
    %v5619 = vadd.f32 %v5595, %v5617
    %v5620 = vadd.f32 %v5596, %v5617
    %v5621 = vadd.f32 %v5597, %v5617
    %v5622 = vadd.f32 %v5598, %v5617
    %v5623 = vadd.f32 %v5599, %v5617
    %v5624 = vadd.f32 %v5600, %v5617
    %v5625 = vadd.f32 %v5601, %v5617
    %v5626 = vadd.f32 %v5602, %v5617
    %v5627 = vadd.f32 %v5603, %v5617
    %v5628 = vadd.f32 %v5604, %v5617
    %v5629 = vadd.f32 %v5605, %v5617
    %v5630 = vadd.f32 %v5606, %v5617
    %v5631 = vadd.f32 %v5607, %v5617
    %v5632 = vadd.f32 %v5608, %v5617
    %v5633 = vadd.f32 %v5609, %v5617
    %v5634 = vadd.f32 %v5610, %v5617
    %v5635 = vld [vmem:[#allocation7] sm:$0xff]
    %v5636 = vld [vmem:[#allocation7 + $0x8] sm:$0xff]
    %v5637 = vld [vmem:[#allocation7 + $0x10] sm:$0xff]
    %v5638 = vld [vmem:[#allocation7 + $0x18] sm:$0xff]
    %v5639 = vld [vmem:[#allocation7 + $0x20] sm:$0xff]
    %v5640 = vld [vmem:[#allocation7 + $0x28] sm:$0xff]
    %v5641 = vld [vmem:[#allocation7 + $0x30] sm:$0xff]
    %v5642 = vld [vmem:[#allocation7 + $0x38] sm:$0xff]
    %v5643 = vld [vmem:[#allocation7 + $0x40] sm:$0xff]
    %v5644 = vld [vmem:[#allocation7 + $0x48] sm:$0xff]
    %v5645 = vld [vmem:[#allocation7 + $0x50] sm:$0xff]
    %v5646 = vld [vmem:[#allocation7 + $0x58] sm:$0xff]
    %v5648 = vsel %vm107, %v5619, 0
    %v5651 = vsel %vm107, %v5620, 0
    %v5654 = vsel %vm107, %v5621, 0
    %v5657 = vsel %vm107, %v5622, 0
    %v5660 = vsel %vm107, %v5623, 0
    %v5663 = vsel %vm107, %v5624, 0
    %v5666 = vsel %vm107, %v5625, 0
    %v5669 = vsel %vm107, %v5626, 0
    %v5672 = vsel %vm107, %v5627, 0
    %v5675 = vsel %vm107, %v5628, 0
    %v5678 = vsel %vm107, %v5629, 0
    %v5681 = vsel %vm107, %v5630, 0
    %v5684 = vsel %vm107, %v5631, 0
    %v5687 = vsel %vm107, %v5632, 0
    %v5690 = vsel %vm107, %v5633, 0
    %v5693 = vsel %vm107, %v5634, 0
    %5695 = vmatprep.subr.mxu0 %v5636
    %5696 = vmatpush1.msra.mxu0 %v5635
    %5697 = vmatprep.subr.mxu0 %v5639
    %5698 = vmatpush1.msra.mxu0 %v5638
    %5699 = vmatprep.subr.mxu0 %v5642
    %5700 = vmatpush1.msra.mxu0 %v5641
    %5701 = vmatprep.subr.mxu0 %v5645
    %5702 = vmatpush1.msra.mxu0 %v5644
    %5703 = vmatprep.subr.mxu0 0.0
    %5704 = vmatpush1.msra.mxu0 0.0
    %5705 = vmatprep.subr.mxu0 0.0
    %5706 = vmatpush1.msra.mxu0 0.0
    %5707 = vmatprep.subr.mxu0 0.0
    %5708 = vmatpush1.msra.mxu0 0.0
    %5709 = vmatprep.subr.mxu0 0.0
    %5710 = vmatpush1.msra.mxu0 0.0
    %5711 = vmatprep.subr.mxu0 0.0
    %5712 = vmatpush1.msra.mxu0 0.0
    %5713 = vmatprep.subr.mxu0 0.0
    %5714 = vmatpush1.msra.mxu0 0.0
    %5715 = vmatprep.subr.mxu0 0.0
    %5716 = vmatpush1.msra.mxu0 0.0
    %5717 = vmatprep.subr.mxu0 0.0
    %5718 = vmatpush1.msra.mxu0 0.0
    %5719 = vmatprep.subr.mxu0 0.0
    %5720 = vmatpush1.msra.mxu0 0.0
    %5721 = vmatprep.subr.mxu0 0.0
    %5722 = vmatpush1.msra.mxu0 0.0
    %5723 = vmatprep.subr.mxu0 0.0
    %5724 = vmatpush1.msra.mxu0 0.0
    %5725 = vmatprep.subr.mxu0 0.0
    %5726 = vmatpush1.msra.mxu0 0.0
    %5727 = vmatprep.subr.mxu0 0.0
    %5728 = vmatpush1.msra.mxu0 0.0
    %5729 = vmatprep.subr.mxu0 0.0
    %5730 = vmatpush1.msra.mxu0 0.0
    %5731 = vmatprep.subr.mxu0 0.0
    %5732 = vmatpush1.msra.mxu0 0.0
    %5733 = vmatprep.subr.mxu0 0.0
    %5734 = vmatpush1.msra.mxu0 0.0
    %5735 = vmatprep.subr.mxu0 0.0
    %5736 = vmatpush1.msra.mxu0 0.0
    %5737 = vmatprep.subr.mxu0 0.0
    %5738 = vmatpush1.msra.mxu0 0.0
    %5739 = vmatprep.subr.mxu0 0.0
    %5740 = vmatpush1.msra.mxu0 0.0
    %5741 = vmatprep.subr.mxu0 0.0
    %5742 = vmatpush1.msra.mxu0 0.0
    %5743 = vmatprep.subr.mxu0 0.0
    %5744 = vmatpush1.msra.mxu0 0.0
    %5745 = vmatprep.subr.mxu0 0.0
    %5746 = vmatpush1.msra.mxu0 0.0
    %5747 = vmatprep.subr.mxu0 0.0
    %5748 = vmatpush1.msra.mxu0 0.0
    %5749 = vmatprep.subr.mxu0 0.0
    %5750 = vmatpush1.msra.mxu0 0.0
    %5751 = vmatprep.subr.mxu0 0.0
    %5752 = vmatpush1.msra.mxu0 0.0
    %5753 = vmatprep.subr.mxu0 0.0
    %5754 = vmatpush1.msra.mxu0 0.0
    %5755 = vmatprep.subr.mxu0 0.0
    %5756 = vmatpush1.msra.mxu0 0.0
    %5757 = vmatprep.subr.mxu0 0.0
    %5758 = vmatpush1.msra.mxu0 0.0
    %5759 = vmatprep.mubr.f32.mxu0 0.0
    %5760 = vmatmul.mubr.f32.gmra.mrb[0].mxu0 %v5648
    %v5761 = vpop.f32.mrb[0].mxu0
    %v5762 = vadd.f32 0.0, %v5761
    %v5763 = vpop.f32.mrb[0].mxu0
    %v5764 = vadd.f32 0.0, %v5763
    %5765 = vmatprep.mubr.f32.mxu0 0.0
    %5766 = vmatmul.mubr.f32.gmra.mrb[0].mxu0 %v5651
    %v5767 = vpop.f32.mrb[0].mxu0
    %v5768 = vadd.f32 0.0, %v5767
    %v5769 = vpop.f32.mrb[0].mxu0
    %v5770 = vadd.f32 0.0, %v5769
    %5771 = vmatprep.mubr.f32.mxu0 0.0
    %5772 = vmatmul.mubr.f32.gmra.mrb[0].mxu0 %v5654
    %v5773 = vpop.f32.mrb[0].mxu0
    %v5774 = vadd.f32 0.0, %v5773
    %v5775 = vpop.f32.mrb[0].mxu0
    %v5776 = vadd.f32 0.0, %v5775
    %5777 = vmatprep.mubr.f32.mxu0 0.0
    %5778 = vmatmul.mubr.f32.gmra.mrb[0].mxu0 %v5657
    %v5779 = vpop.f32.mrb[0].mxu0
    %v5780 = vadd.f32 0.0, %v5779
    %v5781 = vpop.f32.mrb[0].mxu0
    %v5782 = vadd.f32 0.0, %v5781
    %5783 = vmatprep.mubr.f32.mxu0 0.0
    %5784 = vmatmul.mubr.f32.gmra.mrb[0].mxu0 %v5660
    %v5785 = vpop.f32.mrb[0].mxu0
    %v5786 = vadd.f32 0.0, %v5785
    %v5787 = vpop.f32.mrb[0].mxu0
    %v5788 = vadd.f32 0.0, %v5787
    %5789 = vmatprep.mubr.f32.mxu0 0.0
    %5790 = vmatmul.mubr.f32.gmra.mrb[0].mxu0 %v5663
    %v5791 = vpop.f32.mrb[0].mxu0
    %v5792 = vadd.f32 0.0, %v5791
    %v5793 = vpop.f32.mrb[0].mxu0
    %v5794 = vadd.f32 0.0, %v5793
    %5795 = vmatprep.mubr.f32.mxu0 0.0
    %5796 = vmatmul.mubr.f32.gmra.mrb[0].mxu0 %v5666
    %v5797 = vpop.f32.mrb[0].mxu0
    %v5798 = vadd.f32 0.0, %v5797
    %v5799 = vpop.f32.mrb[0].mxu0
    %v5800 = vadd.f32 0.0, %v5799
    %5801 = vmatprep.mubr.f32.mxu0 0.0
    %5802 = vmatmul.mubr.f32.gmra.mrb[0].mxu0 %v5669
    %v5803 = vpop.f32.mrb[0].mxu0
    %v5804 = vadd.f32 0.0, %v5803
    %v5805 = vpop.f32.mrb[0].mxu0
    %v5806 = vadd.f32 0.0, %v5805
    %5807 = vmatprep.mubr.f32.mxu0 0.0
    %5808 = vmatmul.mubr.f32.gmra.mrb[0].mxu0 %v5672
    %v5809 = vpop.f32.mrb[0].mxu0
    %v5810 = vadd.f32 0.0, %v5809
    %v5811 = vpop.f32.mrb[0].mxu0
    %v5812 = vadd.f32 0.0, %v5811
    %5813 = vmatprep.mubr.f32.mxu0 0.0
    %5814 = vmatmul.mubr.f32.gmra.mrb[0].mxu0 %v5675
    %v5815 = vpop.f32.mrb[0].mxu0
    %v5816 = vadd.f32 0.0, %v5815
    %v5817 = vpop.f32.mrb[0].mxu0
    %v5818 = vadd.f32 0.0, %v5817
    %5819 = vmatprep.mubr.f32.mxu0 0.0
    %5820 = vmatmul.mubr.f32.gmra.mrb[0].mxu0 %v5678
    %v5821 = vpop.f32.mrb[0].mxu0
    %v5822 = vadd.f32 0.0, %v5821
    %v5823 = vpop.f32.mrb[0].mxu0
    %v5824 = vadd.f32 0.0, %v5823
    %5825 = vmatprep.mubr.f32.mxu0 0.0
    %5826 = vmatmul.mubr.f32.gmra.mrb[0].mxu0 %v5681
    %v5827 = vpop.f32.mrb[0].mxu0
    %v5828 = vadd.f32 0.0, %v5827
    %v5829 = vpop.f32.mrb[0].mxu0
    %v5830 = vadd.f32 0.0, %v5829
    %5831 = vmatprep.mubr.f32.mxu0 0.0
    %5832 = vmatmul.mubr.f32.gmra.mrb[0].mxu0 %v5684
    %v5833 = vpop.f32.mrb[0].mxu0
    %v5834 = vadd.f32 0.0, %v5833
    %v5835 = vpop.f32.mrb[0].mxu0
    %v5836 = vadd.f32 0.0, %v5835
    %5837 = vmatprep.mubr.f32.mxu0 0.0
    %5838 = vmatmul.mubr.f32.gmra.mrb[0].mxu0 %v5687
    %v5839 = vpop.f32.mrb[0].mxu0
    %v5840 = vadd.f32 0.0, %v5839
    %v5841 = vpop.f32.mrb[0].mxu0
    %v5842 = vadd.f32 0.0, %v5841
    %5843 = vmatprep.mubr.f32.mxu0 0.0
    %5844 = vmatmul.mubr.f32.gmra.mrb[0].mxu0 %v5690
    %v5845 = vpop.f32.mrb[0].mxu0
    %v5846 = vadd.f32 0.0, %v5845
    %v5847 = vpop.f32.mrb[0].mxu0
    %v5848 = vadd.f32 0.0, %v5847
    %5849 = vmatprep.mubr.f32.mxu0 0.0
    %5850 = vmatmul.mubr.f32.gmra.mrb[0].mxu0 %v5693
    %v5851 = vpop.f32.mrb[0].mxu0
    %v5852 = vadd.f32 0.0, %v5851
    %v5853 = vpop.f32.mrb[0].mxu0
    %v5854 = vadd.f32 0.0, %v5853
    %5855 = vdwg.mxu0
    %5856 = vmatprep.subr.mxu0 0.0
    %5857 = vmatpush1.msra.mxu0 %v5637
    %5858 = vmatprep.subr.mxu0 0.0
    %5859 = vmatpush1.msra.mxu0 %v5640
    %5860 = vmatprep.subr.mxu0 0.0
    %5861 = vmatpush1.msra.mxu0 %v5643
    %5862 = vmatprep.subr.mxu0 0.0
    %5863 = vmatpush1.msra.mxu0 %v5646
    %5864 = vmatprep.subr.mxu0 0.0
    %5865 = vmatpush1.msra.mxu0 0.0
    %5866 = vmatprep.subr.mxu0 0.0
    %5867 = vmatpush1.msra.mxu0 0.0
    %5868 = vmatprep.subr.mxu0 0.0
    %5869 = vmatpush1.msra.mxu0 0.0
    %5870 = vmatprep.subr.mxu0 0.0
    %5871 = vmatpush1.msra.mxu0 0.0
    %5872 = vmatprep.subr.mxu0 0.0
    %5873 = vmatpush1.msra.mxu0 0.0
    %5874 = vmatprep.subr.mxu0 0.0
    %5875 = vmatpush1.msra.mxu0 0.0
    %5876 = vmatprep.subr.mxu0 0.0
    %5877 = vmatpush1.msra.mxu0 0.0
    %5878 = vmatprep.subr.mxu0 0.0
    %5879 = vmatpush1.msra.mxu0 0.0
    %5880 = vmatprep.subr.mxu0 0.0
    %5881 = vmatpush1.msra.mxu0 0.0
    %5882 = vmatprep.subr.mxu0 0.0
    %5883 = vmatpush1.msra.mxu0 0.0
    %5884 = vmatprep.subr.mxu0 0.0
    %5885 = vmatpush1.msra.mxu0 0.0
    %5886 = vmatprep.subr.mxu0 0.0
    %5887 = vmatpush1.msra.mxu0 0.0
    %5888 = vmatprep.subr.mxu0 0.0
    %5889 = vmatpush1.msra.mxu0 0.0
    %5890 = vmatprep.subr.mxu0 0.0
    %5891 = vmatpush1.msra.mxu0 0.0
    %5892 = vmatprep.subr.mxu0 0.0
    %5893 = vmatpush1.msra.mxu0 0.0
    %5894 = vmatprep.subr.mxu0 0.0
    %5895 = vmatpush1.msra.mxu0 0.0
    %5896 = vmatprep.subr.mxu0 0.0
    %5897 = vmatpush1.msra.mxu0 0.0
    %5898 = vmatprep.subr.mxu0 0.0
    %5899 = vmatpush1.msra.mxu0 0.0
    %5900 = vmatprep.subr.mxu0 0.0
    %5901 = vmatpush1.msra.mxu0 0.0
    %5902 = vmatprep.subr.mxu0 0.0
    %5903 = vmatpush1.msra.mxu0 0.0
    %5904 = vmatprep.subr.mxu0 0.0
    %5905 = vmatpush1.msra.mxu0 0.0
    %5906 = vmatprep.subr.mxu0 0.0
    %5907 = vmatpush1.msra.mxu0 0.0
    %5908 = vmatprep.subr.mxu0 0.0
    %5909 = vmatpush1.msra.mxu0 0.0
    %5910 = vmatprep.subr.mxu0 0.0
    %5911 = vmatpush1.msra.mxu0 0.0
    %5912 = vmatprep.subr.mxu0 0.0
    %5913 = vmatpush1.msra.mxu0 0.0
    %5914 = vmatprep.subr.mxu0 0.0
    %5915 = vmatpush1.msra.mxu0 0.0
    %5916 = vmatprep.subr.mxu0 0.0
    %5917 = vmatpush1.msra.mxu0 0.0
    %5918 = vmatprep.subr.mxu0 0.0
    %5919 = vmatpush1.msra.mxu0 0.0
    %5920 = vmatprep.mubr.f32.mxu0 0.0
    %5921 = vmatmul.mubr.f32.gmra.mrb[0].mxu0 %v5648
    %v5922 = vpop.f32.mrb[0].mxu0
    %v5923 = vadd.f32 0.0, %v5922
    %v5924 = vpop.f32.mrb[0].mxu0
    %5925 = vmatprep.mubr.f32.mxu0 0.0
    %5926 = vmatmul.mubr.f32.gmra.mrb[0].mxu0 %v5651
    %v5927 = vpop.f32.mrb[0].mxu0
    %v5928 = vadd.f32 0.0, %v5927
    %v5929 = vpop.f32.mrb[0].mxu0
    %5930 = vmatprep.mubr.f32.mxu0 0.0
    %5931 = vmatmul.mubr.f32.gmra.mrb[0].mxu0 %v5654
    %v5932 = vpop.f32.mrb[0].mxu0
    %v5933 = vadd.f32 0.0, %v5932
    %v5934 = vpop.f32.mrb[0].mxu0
    %5935 = vmatprep.mubr.f32.mxu0 0.0
    %5936 = vmatmul.mubr.f32.gmra.mrb[0].mxu0 %v5657
    %v5937 = vpop.f32.mrb[0].mxu0
    %v5938 = vadd.f32 0.0, %v5937
    %v5939 = vpop.f32.mrb[0].mxu0
    %5940 = vmatprep.mubr.f32.mxu0 0.0
    %5941 = vmatmul.mubr.f32.gmra.mrb[0].mxu0 %v5660
    %v5942 = vpop.f32.mrb[0].mxu0
    %v5943 = vadd.f32 0.0, %v5942
    %v5944 = vpop.f32.mrb[0].mxu0
    %5945 = vmatprep.mubr.f32.mxu0 0.0
    %5946 = vmatmul.mubr.f32.gmra.mrb[0].mxu0 %v5663
    %v5947 = vpop.f32.mrb[0].mxu0
    %v5948 = vadd.f32 0.0, %v5947
    %v5949 = vpop.f32.mrb[0].mxu0
    %5950 = vmatprep.mubr.f32.mxu0 0.0
    %5951 = vmatmul.mubr.f32.gmra.mrb[0].mxu0 %v5666
    %v5952 = vpop.f32.mrb[0].mxu0
    %v5953 = vadd.f32 0.0, %v5952
    %v5954 = vpop.f32.mrb[0].mxu0
    %5955 = vmatprep.mubr.f32.mxu0 0.0
    %5956 = vmatmul.mubr.f32.gmra.mrb[0].mxu0 %v5669
    %v5957 = vpop.f32.mrb[0].mxu0
    %v5958 = vadd.f32 0.0, %v5957
    %v5959 = vpop.f32.mrb[0].mxu0
    %5960 = vmatprep.mubr.f32.mxu0 0.0
    %5961 = vmatmul.mubr.f32.gmra.mrb[0].mxu0 %v5672
    %v5962 = vpop.f32.mrb[0].mxu0
    %v5963 = vadd.f32 0.0, %v5962
    %v5964 = vpop.f32.mrb[0].mxu0
    %5965 = vmatprep.mubr.f32.mxu0 0.0
    %5966 = vmatmul.mubr.f32.gmra.mrb[0].mxu0 %v5675
    %v5967 = vpop.f32.mrb[0].mxu0
    %v5968 = vadd.f32 0.0, %v5967
    %v5969 = vpop.f32.mrb[0].mxu0
    %5970 = vmatprep.mubr.f32.mxu0 0.0
    %5971 = vmatmul.mubr.f32.gmra.mrb[0].mxu0 %v5678
    %v5972 = vpop.f32.mrb[0].mxu0
    %v5973 = vadd.f32 0.0, %v5972
    %v5974 = vpop.f32.mrb[0].mxu0
    %5975 = vmatprep.mubr.f32.mxu0 0.0
    %5976 = vmatmul.mubr.f32.gmra.mrb[0].mxu0 %v5681
    %v5977 = vpop.f32.mrb[0].mxu0
    %v5978 = vadd.f32 0.0, %v5977
    %v5979 = vpop.f32.mrb[0].mxu0
    %5980 = vmatprep.mubr.f32.mxu0 0.0
    %5981 = vmatmul.mubr.f32.gmra.mrb[0].mxu0 %v5684
    %v5982 = vpop.f32.mrb[0].mxu0
    %v5983 = vadd.f32 0.0, %v5982
    %v5984 = vpop.f32.mrb[0].mxu0
    %5985 = vmatprep.mubr.f32.mxu0 0.0
    %5986 = vmatmul.mubr.f32.gmra.mrb[0].mxu0 %v5687
    %v5987 = vpop.f32.mrb[0].mxu0
    %v5988 = vadd.f32 0.0, %v5987
    %v5989 = vpop.f32.mrb[0].mxu0
    %5990 = vmatprep.mubr.f32.mxu0 0.0
    %5991 = vmatmul.mubr.f32.gmra.mrb[0].mxu0 %v5690
    %v5992 = vpop.f32.mrb[0].mxu0
    %v5993 = vadd.f32 0.0, %v5992
    %v5994 = vpop.f32.mrb[0].mxu0
    %5995 = vmatprep.mubr.f32.mxu0 0.0
    %5996 = vmatmul.mubr.f32.gmra.mrb[0].mxu0 %v5693
    %v5997 = vpop.f32.mrb[0].mxu0
    %v5998 = vadd.f32 0.0, %v5997
    %v5999 = vpop.f32.mrb[0].mxu0
    %6000 = vdwg.mxu0
    %v6001 = vlaneseq
    %v6002 = vshrl.u32 %v6001, 7
    %v6003 = vadd.s32 %v6002, 8
    %v6004 = vadd.s32 %v6002, 16
    %v6005 = vadd.s32 %v6002, 24
    %v6006 = vadd.s32 %v6002, 32
    %v6007 = vadd.s32 %v6002, 40
    %v6008 = vadd.s32 %v6002, 48
    %v6009 = vadd.s32 %v6002, 56
    %v6010 = vadd.s32 %v6002, 64
    %v6011 = vadd.s32 %v6002, 72
    %v6012 = vadd.s32 %v6002, 80
    %v6013 = vadd.s32 %v6002, 88
    %v6014 = vadd.s32 %v6002, 96
    %v6015 = vadd.s32 %v6002, 104
    %v6016 = vadd.s32 %v6002, 112
    %v6017 = vadd.s32 %v6002, 120
    %vm6018 = vcmp.lt.s32.totalorder %v6002, 0
    %v6019 = vsub.s32 0, %v6002
    %v6020 = vsel %vm6018, %v6019, %v6002
    %v6021 = vshrl.u32 %v6020, 6
    %v6022 = vand.u32 %v6020, 63
    %v6023 = vsub.s32 0, %v6022
    %v6024 = vsel %vm6018, %v6023, %v6022
    %vm6025 = vcmp.lt.s32.totalorder %v6003, 0
    %v6026 = vsub.s32 0, %v6003
    %v6027 = vsel %vm6025, %v6026, %v6003
    %v6028 = vshrl.u32 %v6027, 6
    %v6029 = vand.u32 %v6027, 63
    %v6030 = vsub.s32 0, %v6029
    %v6031 = vsel %vm6025, %v6030, %v6029
    %vm6032 = vcmp.lt.s32.totalorder %v6004, 0
    %v6033 = vsub.s32 0, %v6004
    %v6034 = vsel %vm6032, %v6033, %v6004
    %v6035 = vshrl.u32 %v6034, 6
    %v6036 = vand.u32 %v6034, 63
    %v6037 = vsub.s32 0, %v6036
    %v6038 = vsel %vm6032, %v6037, %v6036
    %vm6039 = vcmp.lt.s32.totalorder %v6005, 0
    %v6040 = vsub.s32 0, %v6005
    %v6041 = vsel %vm6039, %v6040, %v6005
    %v6042 = vshrl.u32 %v6041, 6
    %v6043 = vand.u32 %v6041, 63
    %v6044 = vsub.s32 0, %v6043
    %v6045 = vsel %vm6039, %v6044, %v6043
    %vm6046 = vcmp.lt.s32.totalorder %v6006, 0
    %v6047 = vsub.s32 0, %v6006
    %v6048 = vsel %vm6046, %v6047, %v6006
    %v6049 = vshrl.u32 %v6048, 6
    %v6050 = vand.u32 %v6048, 63
    %v6051 = vsub.s32 0, %v6050
    %v6052 = vsel %vm6046, %v6051, %v6050
    %vm6053 = vcmp.lt.s32.totalorder %v6007, 0
    %v6054 = vsub.s32 0, %v6007
    %v6055 = vsel %vm6053, %v6054, %v6007
    %v6056 = vshrl.u32 %v6055, 6
    %v6057 = vand.u32 %v6055, 63
    %v6058 = vsub.s32 0, %v6057
    %v6059 = vsel %vm6053, %v6058, %v6057
    %vm6060 = vcmp.lt.s32.totalorder %v6008, 0
    %v6061 = vsub.s32 0, %v6008
    %v6062 = vsel %vm6060, %v6061, %v6008
    %v6063 = vshrl.u32 %v6062, 6
    %v6064 = vand.u32 %v6062, 63
    %v6065 = vsub.s32 0, %v6064
    %v6066 = vsel %vm6060, %v6065, %v6064
    %vm6067 = vcmp.lt.s32.totalorder %v6009, 0
    %v6068 = vsub.s32 0, %v6009
    %v6069 = vsel %vm6067, %v6068, %v6009
    %v6070 = vshrl.u32 %v6069, 6
    %v6071 = vand.u32 %v6069, 63
    %v6072 = vsub.s32 0, %v6071
    %v6073 = vsel %vm6067, %v6072, %v6071
    %vm6074 = vcmp.lt.s32.totalorder %v6010, 0
    %v6075 = vsub.s32 0, %v6010
    %v6076 = vsel %vm6074, %v6075, %v6010
    %v6077 = vshrl.u32 %v6076, 6
    %v6078 = vand.u32 %v6076, 63
    %v6079 = vsub.s32 0, %v6078
    %v6080 = vsel %vm6074, %v6079, %v6078
    %vm6081 = vcmp.lt.s32.totalorder %v6011, 0
    %v6082 = vsub.s32 0, %v6011
    %v6083 = vsel %vm6081, %v6082, %v6011
    %v6084 = vshrl.u32 %v6083, 6
    %v6085 = vand.u32 %v6083, 63
    %v6086 = vsub.s32 0, %v6085
    %v6087 = vsel %vm6081, %v6086, %v6085
    %vm6088 = vcmp.lt.s32.totalorder %v6012, 0
    %v6089 = vsub.s32 0, %v6012
    %v6090 = vsel %vm6088, %v6089, %v6012
    %v6091 = vshrl.u32 %v6090, 6
    %v6092 = vand.u32 %v6090, 63
    %v6093 = vsub.s32 0, %v6092
    %v6094 = vsel %vm6088, %v6093, %v6092
    %vm6095 = vcmp.lt.s32.totalorder %v6013, 0
    %v6096 = vsub.s32 0, %v6013
    %v6097 = vsel %vm6095, %v6096, %v6013
    %v6098 = vshrl.u32 %v6097, 6
    %v6099 = vand.u32 %v6097, 63
    %v6100 = vsub.s32 0, %v6099
    %v6101 = vsel %vm6095, %v6100, %v6099
    %vm6102 = vcmp.lt.s32.totalorder %v6014, 0
    %v6103 = vsub.s32 0, %v6014
    %v6104 = vsel %vm6102, %v6103, %v6014
    %v6105 = vshrl.u32 %v6104, 6
    %v6106 = vand.u32 %v6104, 63
    %v6107 = vsub.s32 0, %v6106
    %v6108 = vsel %vm6102, %v6107, %v6106
    %vm6109 = vcmp.lt.s32.totalorder %v6015, 0
    %v6110 = vsub.s32 0, %v6015
    %v6111 = vsel %vm6109, %v6110, %v6015
    %v6112 = vshrl.u32 %v6111, 6
    %v6113 = vand.u32 %v6111, 63
    %v6114 = vsub.s32 0, %v6113
    %v6115 = vsel %vm6109, %v6114, %v6113
    %vm6116 = vcmp.lt.s32.totalorder %v6016, 0
    %v6117 = vsub.s32 0, %v6016
    %v6118 = vsel %vm6116, %v6117, %v6016
    %v6119 = vshrl.u32 %v6118, 6
    %v6120 = vand.u32 %v6118, 63
    %v6121 = vsub.s32 0, %v6120
    %v6122 = vsel %vm6116, %v6121, %v6120
    %vm6123 = vcmp.lt.s32.totalorder %v6017, 0
    %v6124 = vsub.s32 0, %v6017
    %v6125 = vsel %vm6123, %v6124, %v6017
    %v6126 = vshrl.u32 %v6125, 6
    %v6127 = vand.u32 %v6125, 63
    %v6128 = vsub.s32 0, %v6127
    %v6129 = vsel %vm6123, %v6128, %v6127
    %vm6130 = vcmp.ne.s32.totalorder %v6024, 0
    %vm6131 = vcmp.ne.s32.totalorder %v6031, 0
    %vm6132 = vcmp.ne.s32.totalorder %v6038, 0
    %vm6133 = vcmp.ne.s32.totalorder %v6045, 0
    %vm6134 = vcmp.ne.s32.totalorder %v6052, 0
    %vm6135 = vcmp.ne.s32.totalorder %v6059, 0
    %vm6136 = vcmp.ne.s32.totalorder %v6066, 0
    %vm6137 = vcmp.ne.s32.totalorder %v6073, 0
    %vm6138 = vcmp.ne.s32.totalorder %v6080, 0
    %vm6139 = vcmp.ne.s32.totalorder %v6087, 0
    %vm6140 = vcmp.ne.s32.totalorder %v6094, 0
    %vm6141 = vcmp.ne.s32.totalorder %v6101, 0
    %vm6142 = vcmp.ne.s32.totalorder %v6108, 0
    %vm6143 = vcmp.ne.s32.totalorder %v6115, 0
    %vm6144 = vcmp.ne.s32.totalorder %v6122, 0
    %vm6145 = vcmp.ne.s32.totalorder %v6129, 0
    %vm6146 = vcmp.lt.s32.totalorder %v6024, 0
    %vm6147 = vcmp.lt.s32.totalorder %v6031, 0
    %vm6148 = vcmp.lt.s32.totalorder %v6038, 0
    %vm6149 = vcmp.lt.s32.totalorder %v6045, 0
    %vm6150 = vcmp.lt.s32.totalorder %v6052, 0
    %vm6151 = vcmp.lt.s32.totalorder %v6059, 0
    %vm6152 = vcmp.lt.s32.totalorder %v6066, 0
    %vm6153 = vcmp.lt.s32.totalorder %v6073, 0
    %vm6154 = vcmp.lt.s32.totalorder %v6080, 0
    %vm6155 = vcmp.lt.s32.totalorder %v6087, 0
    %vm6156 = vcmp.lt.s32.totalorder %v6094, 0
    %vm6157 = vcmp.lt.s32.totalorder %v6101, 0
    %vm6158 = vcmp.lt.s32.totalorder %v6108, 0
    %vm6159 = vcmp.lt.s32.totalorder %v6115, 0
    %vm6160 = vcmp.lt.s32.totalorder %v6122, 0
    %vm6161 = vcmp.lt.s32.totalorder %v6129, 0
    %vm6162 = vmand %vm6146, %vm6130
    %vm6163 = vmand %vm6147, %vm6131
    %vm6164 = vmand %vm6148, %vm6132
    %vm6165 = vmand %vm6149, %vm6133
    %vm6166 = vmand %vm6150, %vm6134
    %vm6167 = vmand %vm6151, %vm6135
    %vm6168 = vmand %vm6152, %vm6136
    %vm6169 = vmand %vm6153, %vm6137
    %vm6170 = vmand %vm6154, %vm6138
    %vm6171 = vmand %vm6155, %vm6139
    %vm6172 = vmand %vm6156, %vm6140
    %vm6173 = vmand %vm6157, %vm6141
    %vm6174 = vmand %vm6158, %vm6142
    %vm6175 = vmand %vm6159, %vm6143
    %vm6176 = vmand %vm6160, %vm6144
    %vm6177 = vmand %vm6161, %vm6145
    %v6178 = vadd.s32 %v6024, 64
    %v6179 = vadd.s32 %v6031, 64
    %v6180 = vadd.s32 %v6038, 64
    %v6181 = vadd.s32 %v6045, 64
    %v6182 = vadd.s32 %v6052, 64
    %v6183 = vadd.s32 %v6059, 64
    %v6184 = vadd.s32 %v6066, 64
    %v6185 = vadd.s32 %v6073, 64
    %v6186 = vadd.s32 %v6080, 64
    %v6187 = vadd.s32 %v6087, 64
    %v6188 = vadd.s32 %v6094, 64
    %v6189 = vadd.s32 %v6101, 64
    %v6190 = vadd.s32 %v6108, 64
    %v6191 = vadd.s32 %v6115, 64
    %v6192 = vadd.s32 %v6122, 64
    %v6193 = vadd.s32 %v6129, 64
    %v6194 = vsel %vm6162, %v6178, %v6024
    %v6195 = vsel %vm6163, %v6179, %v6031
    %v6196 = vsel %vm6164, %v6180, %v6038
    %v6197 = vsel %vm6165, %v6181, %v6045
    %v6198 = vsel %vm6166, %v6182, %v6052
    %v6199 = vsel %vm6167, %v6183, %v6059
    %v6200 = vsel %vm6168, %v6184, %v6066
    %v6201 = vsel %vm6169, %v6185, %v6073
    %v6202 = vsel %vm6170, %v6186, %v6080
    %v6203 = vsel %vm6171, %v6187, %v6087
    %v6204 = vsel %vm6172, %v6188, %v6094
    %v6205 = vsel %vm6173, %v6189, %v6101
    %v6206 = vsel %vm6174, %v6190, %v6108
    %v6207 = vsel %vm6175, %v6191, %v6115
    %v6208 = vsel %vm6176, %v6192, %v6122
    %v6209 = vsel %vm6177, %v6193, %v6129
    %vm6210 = vcmp.lt.s32.totalorder %v6002, 0
    %v6211 = vsub.s32 0, %v6002
    %v6212 = vsel %vm6210, %v6211, %v6002
    %v6213 = vshrl.u32 %v6212, 3
    %v6214 = vand.u32 %v6212, 7
    %v6215 = vsub.s32 0, %v6214
    %v6216 = vsel %vm6210, %v6215, %v6214
    %vm6217 = vcmp.lt.s32.totalorder %v6003, 0
    %v6218 = vsub.s32 0, %v6003
    %v6219 = vsel %vm6217, %v6218, %v6003
    %v6220 = vshrl.u32 %v6219, 3
    %v6221 = vand.u32 %v6219, 7
    %v6222 = vsub.s32 0, %v6221
    %v6223 = vsel %vm6217, %v6222, %v6221
    %vm6224 = vcmp.lt.s32.totalorder %v6004, 0
    %v6225 = vsub.s32 0, %v6004
    %v6226 = vsel %vm6224, %v6225, %v6004
    %v6227 = vshrl.u32 %v6226, 3
    %v6228 = vand.u32 %v6226, 7
    %v6229 = vsub.s32 0, %v6228
    %v6230 = vsel %vm6224, %v6229, %v6228
    %vm6231 = vcmp.lt.s32.totalorder %v6005, 0
    %v6232 = vsub.s32 0, %v6005
    %v6233 = vsel %vm6231, %v6232, %v6005
    %v6234 = vshrl.u32 %v6233, 3
    %v6235 = vand.u32 %v6233, 7
    %v6236 = vsub.s32 0, %v6235
    %v6237 = vsel %vm6231, %v6236, %v6235
    %vm6238 = vcmp.lt.s32.totalorder %v6006, 0
    %v6239 = vsub.s32 0, %v6006
    %v6240 = vsel %vm6238, %v6239, %v6006
    %v6241 = vshrl.u32 %v6240, 3
    %v6242 = vand.u32 %v6240, 7
    %v6243 = vsub.s32 0, %v6242
    %v6244 = vsel %vm6238, %v6243, %v6242
    %vm6245 = vcmp.lt.s32.totalorder %v6007, 0
    %v6246 = vsub.s32 0, %v6007
    %v6247 = vsel %vm6245, %v6246, %v6007
    %v6248 = vshrl.u32 %v6247, 3
    %v6249 = vand.u32 %v6247, 7
    %v6250 = vsub.s32 0, %v6249
    %v6251 = vsel %vm6245, %v6250, %v6249
    %vm6252 = vcmp.lt.s32.totalorder %v6008, 0
    %v6253 = vsub.s32 0, %v6008
    %v6254 = vsel %vm6252, %v6253, %v6008
    %v6255 = vshrl.u32 %v6254, 3
    %v6256 = vand.u32 %v6254, 7
    %v6257 = vsub.s32 0, %v6256
    %v6258 = vsel %vm6252, %v6257, %v6256
    %vm6259 = vcmp.lt.s32.totalorder %v6009, 0
    %v6260 = vsub.s32 0, %v6009
    %v6261 = vsel %vm6259, %v6260, %v6009
    %v6262 = vshrl.u32 %v6261, 3
    %v6263 = vand.u32 %v6261, 7
    %v6264 = vsub.s32 0, %v6263
    %v6265 = vsel %vm6259, %v6264, %v6263
    %vm6266 = vcmp.lt.s32.totalorder %v6010, 0
    %v6267 = vsub.s32 0, %v6010
    %v6268 = vsel %vm6266, %v6267, %v6010
    %v6269 = vshrl.u32 %v6268, 3
    %v6270 = vand.u32 %v6268, 7
    %v6271 = vsub.s32 0, %v6270
    %v6272 = vsel %vm6266, %v6271, %v6270
    %vm6273 = vcmp.lt.s32.totalorder %v6011, 0
    %v6274 = vsub.s32 0, %v6011
    %v6275 = vsel %vm6273, %v6274, %v6011
    %v6276 = vshrl.u32 %v6275, 3
    %v6277 = vand.u32 %v6275, 7
    %v6278 = vsub.s32 0, %v6277
    %v6279 = vsel %vm6273, %v6278, %v6277
    %vm6280 = vcmp.lt.s32.totalorder %v6012, 0
    %v6281 = vsub.s32 0, %v6012
    %v6282 = vsel %vm6280, %v6281, %v6012
    %v6283 = vshrl.u32 %v6282, 3
    %v6284 = vand.u32 %v6282, 7
    %v6285 = vsub.s32 0, %v6284
    %v6286 = vsel %vm6280, %v6285, %v6284
    %vm6287 = vcmp.lt.s32.totalorder %v6013, 0
    %v6288 = vsub.s32 0, %v6013
    %v6289 = vsel %vm6287, %v6288, %v6013
    %v6290 = vshrl.u32 %v6289, 3
    %v6291 = vand.u32 %v6289, 7
    %v6292 = vsub.s32 0, %v6291
    %v6293 = vsel %vm6287, %v6292, %v6291
    %vm6294 = vcmp.lt.s32.totalorder %v6014, 0
    %v6295 = vsub.s32 0, %v6014
    %v6296 = vsel %vm6294, %v6295, %v6014
    %v6297 = vshrl.u32 %v6296, 3
    %v6298 = vand.u32 %v6296, 7
    %v6299 = vsub.s32 0, %v6298
    %v6300 = vsel %vm6294, %v6299, %v6298
    %vm6301 = vcmp.lt.s32.totalorder %v6015, 0
    %v6302 = vsub.s32 0, %v6015
    %v6303 = vsel %vm6301, %v6302, %v6015
    %v6304 = vshrl.u32 %v6303, 3
    %v6305 = vand.u32 %v6303, 7
    %v6306 = vsub.s32 0, %v6305
    %v6307 = vsel %vm6301, %v6306, %v6305
    %vm6308 = vcmp.lt.s32.totalorder %v6016, 0
    %v6309 = vsub.s32 0, %v6016
    %v6310 = vsel %vm6308, %v6309, %v6016
    %v6311 = vshrl.u32 %v6310, 3
    %v6312 = vand.u32 %v6310, 7
    %v6313 = vsub.s32 0, %v6312
    %v6314 = vsel %vm6308, %v6313, %v6312
    %vm6315 = vcmp.lt.s32.totalorder %v6017, 0
    %v6316 = vsub.s32 0, %v6017
    %v6317 = vsel %vm6315, %v6316, %v6017
    %v6318 = vshrl.u32 %v6317, 3
    %v6319 = vand.u32 %v6317, 7
    %v6320 = vsub.s32 0, %v6319
    %v6321 = vsel %vm6315, %v6320, %v6319
    %vm6322 = vcmp.ne.s32.totalorder %v6216, 0
    %vm6323 = vcmp.ne.s32.totalorder %v6223, 0
    %vm6324 = vcmp.ne.s32.totalorder %v6230, 0
    %vm6325 = vcmp.ne.s32.totalorder %v6237, 0
    %vm6326 = vcmp.ne.s32.totalorder %v6244, 0
    %vm6327 = vcmp.ne.s32.totalorder %v6251, 0
    %vm6328 = vcmp.ne.s32.totalorder %v6258, 0
    %vm6329 = vcmp.ne.s32.totalorder %v6265, 0
    %vm6330 = vcmp.ne.s32.totalorder %v6272, 0
    %vm6331 = vcmp.ne.s32.totalorder %v6279, 0
    %vm6332 = vcmp.ne.s32.totalorder %v6286, 0
    %vm6333 = vcmp.ne.s32.totalorder %v6293, 0
    %vm6334 = vcmp.ne.s32.totalorder %v6300, 0
    %vm6335 = vcmp.ne.s32.totalorder %v6307, 0
    %vm6336 = vcmp.ne.s32.totalorder %v6314, 0
    %vm6337 = vcmp.ne.s32.totalorder %v6321, 0
    %vm6338 = vcmp.lt.s32.totalorder %v6216, 0
    %vm6339 = vcmp.lt.s32.totalorder %v6223, 0
    %vm6340 = vcmp.lt.s32.totalorder %v6230, 0
    %vm6341 = vcmp.lt.s32.totalorder %v6237, 0
    %vm6342 = vcmp.lt.s32.totalorder %v6244, 0
    %vm6343 = vcmp.lt.s32.totalorder %v6251, 0
    %vm6344 = vcmp.lt.s32.totalorder %v6258, 0
    %vm6345 = vcmp.lt.s32.totalorder %v6265, 0
    %vm6346 = vcmp.lt.s32.totalorder %v6272, 0
    %vm6347 = vcmp.lt.s32.totalorder %v6279, 0
    %vm6348 = vcmp.lt.s32.totalorder %v6286, 0
    %vm6349 = vcmp.lt.s32.totalorder %v6293, 0
    %vm6350 = vcmp.lt.s32.totalorder %v6300, 0
    %vm6351 = vcmp.lt.s32.totalorder %v6307, 0
    %vm6352 = vcmp.lt.s32.totalorder %v6314, 0
    %vm6353 = vcmp.lt.s32.totalorder %v6321, 0
    %vm6354 = vmand %vm6338, %vm6322
    %vm6355 = vmand %vm6339, %vm6323
    %vm6356 = vmand %vm6340, %vm6324
    %vm6357 = vmand %vm6341, %vm6325
    %vm6358 = vmand %vm6342, %vm6326
    %vm6359 = vmand %vm6343, %vm6327
    %vm6360 = vmand %vm6344, %vm6328
    %vm6361 = vmand %vm6345, %vm6329
    %vm6362 = vmand %vm6346, %vm6330
    %vm6363 = vmand %vm6347, %vm6331
    %vm6364 = vmand %vm6348, %vm6332
    %vm6365 = vmand %vm6349, %vm6333
    %vm6366 = vmand %vm6350, %vm6334
    %vm6367 = vmand %vm6351, %vm6335
    %vm6368 = vmand %vm6352, %vm6336
    %vm6369 = vmand %vm6353, %vm6337
    %v6370 = vadd.s32 %v6216, 8
    %v6371 = vadd.s32 %v6223, 8
    %v6372 = vadd.s32 %v6230, 8
    %v6373 = vadd.s32 %v6237, 8
    %v6374 = vadd.s32 %v6244, 8
    %v6375 = vadd.s32 %v6251, 8
    %v6376 = vadd.s32 %v6258, 8
    %v6377 = vadd.s32 %v6265, 8
    %v6378 = vadd.s32 %v6272, 8
    %v6379 = vadd.s32 %v6279, 8
    %v6380 = vadd.s32 %v6286, 8
    %v6381 = vadd.s32 %v6293, 8
    %v6382 = vadd.s32 %v6300, 8
    %v6383 = vadd.s32 %v6307, 8
    %v6384 = vadd.s32 %v6314, 8
    %v6385 = vadd.s32 %v6321, 8
    %v6386 = vsel %vm6354, %v6370, %v6216
    %v6387 = vsel %vm6355, %v6371, %v6223
    %v6388 = vsel %vm6356, %v6372, %v6230
    %v6389 = vsel %vm6357, %v6373, %v6237
    %v6390 = vsel %vm6358, %v6374, %v6244
    %v6391 = vsel %vm6359, %v6375, %v6251
    %v6392 = vsel %vm6360, %v6376, %v6258
    %v6393 = vsel %vm6361, %v6377, %v6265
    %v6394 = vsel %vm6362, %v6378, %v6272
    %v6395 = vsel %vm6363, %v6379, %v6279
    %v6396 = vsel %vm6364, %v6380, %v6286
    %v6397 = vsel %vm6365, %v6381, %v6293
    %v6398 = vsel %vm6366, %v6382, %v6300
    %v6399 = vsel %vm6367, %v6383, %v6307
    %v6400 = vsel %vm6368, %v6384, %v6314
    %v6401 = vsel %vm6369, %v6385, %v6321
    %v6402 = vrot.slane %v5762, 7
    %v6403 = vrot.slane %v5768, 7
    %v6404 = vrot.slane %v5774, 7
    %v6405 = vrot.slane %v5780, 7
    %v6406 = vrot.slane %v5786, 7
    %v6407 = vrot.slane %v5792, 7
    %v6408 = vrot.slane %v5798, 7
    %v6409 = vrot.slane %v5804, 7
    %v6410 = vrot.slane %v5810, 7
    %v6411 = vrot.slane %v5816, 7
    %v6412 = vrot.slane %v5822, 7
    %v6413 = vrot.slane %v5828, 7
    %v6414 = vrot.slane %v5834, 7
    %v6415 = vrot.slane %v5840, 7
    %v6416 = vrot.slane %v5846, 7
    %v6417 = vrot.slane %v5852, 7
    %vm6418 = vcmp.lt.s32.totalorder %v6002, 1
    %v6419 = vsel %vm6418, %v6416, %v6417
    %v6420 = vsel %vm6418, %v6415, %v6416
    %v6421 = vsel %vm6418, %v6414, %v6415
    %v6422 = vsel %vm6418, %v6413, %v6414
    %v6423 = vsel %vm6418, %v6412, %v6413
    %v6424 = vsel %vm6418, %v6411, %v6412
    %v6425 = vsel %vm6418, %v6410, %v6411
    %v6426 = vsel %vm6418, %v6409, %v6410
    %v6427 = vsel %vm6418, %v6408, %v6409
    %v6428 = vsel %vm6418, %v6407, %v6408
    %v6429 = vsel %vm6418, %v6406, %v6407
    %v6430 = vsel %vm6418, %v6405, %v6406
    %v6431 = vsel %vm6418, %v6404, %v6405
    %v6432 = vsel %vm6418, %v6403, %v6404
    %v6433 = vsel %vm6418, %v6402, %v6403
    %v6434 = vsel %vm6418, %v6417, %v6402
    %vm6435 = vcmp.ge.s32.totalorder %v6194, 9
    %vm6436 = vcmp.ge.s32.totalorder %v6195, 9
    %vm6437 = vcmp.ge.s32.totalorder %v6196, 9
    %vm6438 = vcmp.ge.s32.totalorder %v6197, 9
    %vm6439 = vcmp.ge.s32.totalorder %v6198, 9
    %vm6440 = vcmp.ge.s32.totalorder %v6199, 9
    %vm6441 = vcmp.ge.s32.totalorder %v6200, 9
    %vm6442 = vcmp.ge.s32.totalorder %v6201, 9
    %vm6443 = vcmp.ge.s32.totalorder %v6202, 9
    %vm6444 = vcmp.ge.s32.totalorder %v6203, 9
    %vm6445 = vcmp.ge.s32.totalorder %v6204, 9
    %vm6446 = vcmp.ge.s32.totalorder %v6205, 9
    %vm6447 = vcmp.ge.s32.totalorder %v6206, 9
    %vm6448 = vcmp.ge.s32.totalorder %v6207, 9
    %vm6449 = vcmp.ge.s32.totalorder %v6208, 9
    %vm6450 = vcmp.ge.s32.totalorder %v6209, 9
    %vm6451 = vcmp.ge.s32.totalorder %v6386, 1
    %vm6452 = vcmp.ge.s32.totalorder %v6387, 1
    %vm6453 = vcmp.ge.s32.totalorder %v6388, 1
    %vm6454 = vcmp.ge.s32.totalorder %v6389, 1
    %vm6455 = vcmp.ge.s32.totalorder %v6390, 1
    %vm6456 = vcmp.ge.s32.totalorder %v6391, 1
    %vm6457 = vcmp.ge.s32.totalorder %v6392, 1
    %vm6458 = vcmp.ge.s32.totalorder %v6393, 1
    %vm6459 = vcmp.ge.s32.totalorder %v6394, 1
    %vm6460 = vcmp.ge.s32.totalorder %v6395, 1
    %vm6461 = vcmp.ge.s32.totalorder %v6396, 1
    %vm6462 = vcmp.ge.s32.totalorder %v6397, 1
    %vm6463 = vcmp.ge.s32.totalorder %v6398, 1
    %vm6464 = vcmp.ge.s32.totalorder %v6399, 1
    %vm6465 = vcmp.ge.s32.totalorder %v6400, 1
    %vm6466 = vcmp.ge.s32.totalorder %v6401, 1
    %vm6467 = vmand %vm6435, %vm6451
    %vm6468 = vmand %vm6436, %vm6452
    %vm6469 = vmand %vm6437, %vm6453
    %vm6470 = vmand %vm6438, %vm6454
    %vm6471 = vmand %vm6439, %vm6455
    %vm6472 = vmand %vm6440, %vm6456
    %vm6473 = vmand %vm6441, %vm6457
    %vm6474 = vmand %vm6442, %vm6458
    %vm6475 = vmand %vm6443, %vm6459
    %vm6476 = vmand %vm6444, %vm6460
    %vm6477 = vmand %vm6445, %vm6461
    %vm6478 = vmand %vm6446, %vm6462
    %vm6479 = vmand %vm6447, %vm6463
    %vm6480 = vmand %vm6448, %vm6464
    %vm6481 = vmand %vm6449, %vm6465
    %vm6482 = vmand %vm6450, %vm6466
    %v6483 = vsel %vm6467, %v6419, 0.0
    %v6484 = vsel %vm6468, %v6434, 0.0
    %v6485 = vsel %vm6469, %v6433, 0.0
    %v6486 = vsel %vm6470, %v6432, 0.0
    %v6487 = vsel %vm6471, %v6431, 0.0
    %v6488 = vsel %vm6472, %v6430, 0.0
    %v6489 = vsel %vm6473, %v6429, 0.0
    %v6490 = vsel %vm6474, %v6428, 0.0
    %v6491 = vsel %vm6475, %v6427, 0.0
    %v6492 = vsel %vm6476, %v6426, 0.0
    %v6493 = vsel %vm6477, %v6425, 0.0
    %v6494 = vsel %vm6478, %v6424, 0.0
    %v6495 = vsel %vm6479, %v6423, 0.0
    %v6496 = vsel %vm6480, %v6422, 0.0
    %v6497 = vsel %vm6481, %v6421, 0.0
    %v6498 = vsel %vm6482, %v6420, 0.0
    %v6499 = vadd.f32 %v6483, 0.0
    %v6500 = vadd.f32 %v6484, 0.0
    %v6501 = vadd.f32 %v6485, 0.0
    %v6502 = vadd.f32 %v6486, 0.0
    %v6503 = vadd.f32 %v6487, 0.0
    %v6504 = vadd.f32 %v6488, 0.0
    %v6505 = vadd.f32 %v6489, 0.0
    %v6506 = vadd.f32 %v6490, 0.0
    %v6507 = vadd.f32 %v6491, 0.0
    %v6508 = vadd.f32 %v6492, 0.0
    %v6509 = vadd.f32 %v6493, 0.0
    %v6510 = vadd.f32 %v6494, 0.0
    %v6511 = vadd.f32 %v6495, 0.0
    %v6512 = vadd.f32 %v6496, 0.0
    %v6513 = vadd.f32 %v6497, 0.0
    %v6514 = vadd.f32 %v6498, 0.0
    %6531 = vrot.lane.b32.xlu0 %v5762, 96
    %v6532 = vpop.permute.xlu0 %6531
    %6533 = vrot.lane.b32.xlu0 %v5768, 96
    %v6534 = vpop.permute.xlu0 %6533
    %6535 = vrot.lane.b32.xlu0 %v5774, 96
    %v6536 = vpop.permute.xlu0 %6535
    %6537 = vrot.lane.b32.xlu0 %v5780, 96
    %v6538 = vpop.permute.xlu0 %6537
    %6539 = vrot.lane.b32.xlu0 %v5786, 96
    %v6540 = vpop.permute.xlu0 %6539
    %6541 = vrot.lane.b32.xlu0 %v5792, 96
    %v6542 = vpop.permute.xlu0 %6541
    %6543 = vrot.lane.b32.xlu0 %v5798, 96
    %v6544 = vpop.permute.xlu0 %6543
    %6545 = vrot.lane.b32.xlu0 %v5804, 96
    %v6546 = vpop.permute.xlu0 %6545
    %6547 = vrot.lane.b32.xlu0 %v5810, 96
    %v6548 = vpop.permute.xlu0 %6547
    %6549 = vrot.lane.b32.xlu0 %v5816, 96
    %v6550 = vpop.permute.xlu0 %6549
    %6551 = vrot.lane.b32.xlu0 %v5822, 96
    %v6552 = vpop.permute.xlu0 %6551
    %6553 = vrot.lane.b32.xlu0 %v5828, 96
    %v6554 = vpop.permute.xlu0 %6553
    %6555 = vrot.lane.b32.xlu0 %v5834, 96
    %v6556 = vpop.permute.xlu0 %6555
    %6557 = vrot.lane.b32.xlu0 %v5840, 96
    %v6558 = vpop.permute.xlu0 %6557
    %6559 = vrot.lane.b32.xlu0 %v5846, 96
    %v6560 = vpop.permute.xlu0 %6559
    %6561 = vrot.lane.b32.xlu0 %v5852, 96
    %v6562 = vpop.permute.xlu0 %6561
    %vm6579 = vcmp.ge.s32.totalorder %v6194, 8
    %vm6580 = vcmp.ge.s32.totalorder %v6195, 8
    %vm6581 = vcmp.ge.s32.totalorder %v6196, 8
    %vm6582 = vcmp.ge.s32.totalorder %v6197, 8
    %vm6583 = vcmp.ge.s32.totalorder %v6198, 8
    %vm6584 = vcmp.ge.s32.totalorder %v6199, 8
    %vm6585 = vcmp.ge.s32.totalorder %v6200, 8
    %vm6586 = vcmp.ge.s32.totalorder %v6201, 8
    %vm6587 = vcmp.ge.s32.totalorder %v6202, 8
    %vm6588 = vcmp.ge.s32.totalorder %v6203, 8
    %vm6589 = vcmp.ge.s32.totalorder %v6204, 8
    %vm6590 = vcmp.ge.s32.totalorder %v6205, 8
    %vm6591 = vcmp.ge.s32.totalorder %v6206, 8
    %vm6592 = vcmp.ge.s32.totalorder %v6207, 8
    %vm6593 = vcmp.ge.s32.totalorder %v6208, 8
    %vm6594 = vcmp.ge.s32.totalorder %v6209, 8
    %v6595 = vsel %vm6579, %v6562, 0.0
    %v6596 = vsel %vm6580, %v6532, 0.0
    %v6597 = vsel %vm6581, %v6534, 0.0
    %v6598 = vsel %vm6582, %v6536, 0.0
    %v6599 = vsel %vm6583, %v6538, 0.0
    %v6600 = vsel %vm6584, %v6540, 0.0
    %v6601 = vsel %vm6585, %v6542, 0.0
    %v6602 = vsel %vm6586, %v6544, 0.0
    %v6603 = vsel %vm6587, %v6546, 0.0
    %v6604 = vsel %vm6588, %v6548, 0.0
    %v6605 = vsel %vm6589, %v6550, 0.0
    %v6606 = vsel %vm6590, %v6552, 0.0
    %v6607 = vsel %vm6591, %v6554, 0.0
    %v6608 = vsel %vm6592, %v6556, 0.0
    %v6609 = vsel %vm6593, %v6558, 0.0
    %v6610 = vsel %vm6594, %v6560, 0.0
    %v6611 = vadd.f32 %v6499, %v6595
    %v6612 = vadd.f32 %v6500, %v6596
    %v6613 = vadd.f32 %v6501, %v6597
    %v6614 = vadd.f32 %v6502, %v6598
    %v6615 = vadd.f32 %v6503, %v6599
    %v6616 = vadd.f32 %v6504, %v6600
    %v6617 = vadd.f32 %v6505, %v6601
    %v6618 = vadd.f32 %v6506, %v6602
    %v6619 = vadd.f32 %v6507, %v6603
    %v6620 = vadd.f32 %v6508, %v6604
    %v6621 = vadd.f32 %v6509, %v6605
    %v6622 = vadd.f32 %v6510, %v6606
    %v6623 = vadd.f32 %v6511, %v6607
    %v6624 = vadd.f32 %v6512, %v6608
    %v6625 = vadd.f32 %v6513, %v6609
    %v6626 = vadd.f32 %v6514, %v6610
    %6627 = vrot.lane.b32.xlu0 %v5762, 64
    %v6628 = vpop.permute.xlu0 %6627
    %6629 = vrot.lane.b32.xlu0 %v5768, 64
    %v6630 = vpop.permute.xlu0 %6629
    %6631 = vrot.lane.b32.xlu0 %v5774, 64
    %v6632 = vpop.permute.xlu0 %6631
    %6633 = vrot.lane.b32.xlu0 %v5780, 64
    %v6634 = vpop.permute.xlu0 %6633
    %6635 = vrot.lane.b32.xlu0 %v5786, 64
    %v6636 = vpop.permute.xlu0 %6635
    %6637 = vrot.lane.b32.xlu0 %v5792, 64
    %v6638 = vpop.permute.xlu0 %6637
    %6639 = vrot.lane.b32.xlu0 %v5798, 64
    %v6640 = vpop.permute.xlu0 %6639
    %6641 = vrot.lane.b32.xlu0 %v5804, 64
    %v6642 = vpop.permute.xlu0 %6641
    %6643 = vrot.lane.b32.xlu0 %v5810, 64
    %v6644 = vpop.permute.xlu0 %6643
    %6645 = vrot.lane.b32.xlu0 %v5816, 64
    %v6646 = vpop.permute.xlu0 %6645
    %6647 = vrot.lane.b32.xlu0 %v5822, 64
    %v6648 = vpop.permute.xlu0 %6647
    %6649 = vrot.lane.b32.xlu0 %v5828, 64
    %v6650 = vpop.permute.xlu0 %6649
    %6651 = vrot.lane.b32.xlu0 %v5834, 64
    %v6652 = vpop.permute.xlu0 %6651
    %6653 = vrot.lane.b32.xlu0 %v5840, 64
    %v6654 = vpop.permute.xlu0 %6653
    %6655 = vrot.lane.b32.xlu0 %v5846, 64
    %v6656 = vpop.permute.xlu0 %6655
    %6657 = vrot.lane.b32.xlu0 %v5852, 64
    %v6658 = vpop.permute.xlu0 %6657
    %v6675 = vrot.slane %v6628, 1
    %v6676 = vrot.slane %v6630, 1
    %v6677 = vrot.slane %v6632, 1
    %v6678 = vrot.slane %v6634, 1
    %v6679 = vrot.slane %v6636, 1
    %v6680 = vrot.slane %v6638, 1
    %v6681 = vrot.slane %v6640, 1
    %v6682 = vrot.slane %v6642, 1
    %v6683 = vrot.slane %v6644, 1
    %v6684 = vrot.slane %v6646, 1
    %v6685 = vrot.slane %v6648, 1
    %v6686 = vrot.slane %v6650, 1
    %v6687 = vrot.slane %v6652, 1
    %v6688 = vrot.slane %v6654, 1
    %v6689 = vrot.slane %v6656, 1
    %v6690 = vrot.slane %v6658, 1
    %vm6691 = vcmp.lt.s32.totalorder %v6002, 7
    %v6692 = vsel %vm6691, %v6689, %v6690
    %v6693 = vsel %vm6691, %v6688, %v6689
    %v6694 = vsel %vm6691, %v6687, %v6688
    %v6695 = vsel %vm6691, %v6686, %v6687
    %v6696 = vsel %vm6691, %v6685, %v6686
    %v6697 = vsel %vm6691, %v6684, %v6685
    %v6698 = vsel %vm6691, %v6683, %v6684
    %v6699 = vsel %vm6691, %v6682, %v6683
    %v6700 = vsel %vm6691, %v6681, %v6682
    %v6701 = vsel %vm6691, %v6680, %v6681
    %v6702 = vsel %vm6691, %v6679, %v6680
    %v6703 = vsel %vm6691, %v6678, %v6679
    %v6704 = vsel %vm6691, %v6677, %v6678
    %v6705 = vsel %vm6691, %v6676, %v6677
    %v6706 = vsel %vm6691, %v6675, %v6676
    %v6707 = vsel %vm6691, %v6690, %v6675
    %vm6708 = vcmp.ge.s32.totalorder %v6194, 7
    %vm6709 = vcmp.ge.s32.totalorder %v6195, 7
    %vm6710 = vcmp.ge.s32.totalorder %v6196, 7
    %vm6711 = vcmp.ge.s32.totalorder %v6197, 7
    %vm6712 = vcmp.ge.s32.totalorder %v6198, 7
    %vm6713 = vcmp.ge.s32.totalorder %v6199, 7
    %vm6714 = vcmp.ge.s32.totalorder %v6200, 7
    %vm6715 = vcmp.ge.s32.totalorder %v6201, 7
    %vm6716 = vcmp.ge.s32.totalorder %v6202, 7
    %vm6717 = vcmp.ge.s32.totalorder %v6203, 7
    %vm6718 = vcmp.ge.s32.totalorder %v6204, 7
    %vm6719 = vcmp.ge.s32.totalorder %v6205, 7
    %vm6720 = vcmp.ge.s32.totalorder %v6206, 7
    %vm6721 = vcmp.ge.s32.totalorder %v6207, 7
    %vm6722 = vcmp.ge.s32.totalorder %v6208, 7
    %vm6723 = vcmp.ge.s32.totalorder %v6209, 7
    %vm6724 = vcmp.lt.s32.totalorder %v6386, 7
    %vm6725 = vcmp.lt.s32.totalorder %v6387, 7
    %vm6726 = vcmp.lt.s32.totalorder %v6388, 7
    %vm6727 = vcmp.lt.s32.totalorder %v6389, 7
    %vm6728 = vcmp.lt.s32.totalorder %v6390, 7
    %vm6729 = vcmp.lt.s32.totalorder %v6391, 7
    %vm6730 = vcmp.lt.s32.totalorder %v6392, 7
    %vm6731 = vcmp.lt.s32.totalorder %v6393, 7
    %vm6732 = vcmp.lt.s32.totalorder %v6394, 7
    %vm6733 = vcmp.lt.s32.totalorder %v6395, 7
    %vm6734 = vcmp.lt.s32.totalorder %v6396, 7
    %vm6735 = vcmp.lt.s32.totalorder %v6397, 7
    %vm6736 = vcmp.lt.s32.totalorder %v6398, 7
    %vm6737 = vcmp.lt.s32.totalorder %v6399, 7
    %vm6738 = vcmp.lt.s32.totalorder %v6400, 7
    %vm6739 = vcmp.lt.s32.totalorder %v6401, 7
    %vm6740 = vmand %vm6708, %vm6724
    %vm6741 = vmand %vm6709, %vm6725
    %vm6742 = vmand %vm6710, %vm6726
    %vm6743 = vmand %vm6711, %vm6727
    %vm6744 = vmand %vm6712, %vm6728
    %vm6745 = vmand %vm6713, %vm6729
    %vm6746 = vmand %vm6714, %vm6730
    %vm6747 = vmand %vm6715, %vm6731
    %vm6748 = vmand %vm6716, %vm6732
    %vm6749 = vmand %vm6717, %vm6733
    %vm6750 = vmand %vm6718, %vm6734
    %vm6751 = vmand %vm6719, %vm6735
    %vm6752 = vmand %vm6720, %vm6736
    %vm6753 = vmand %vm6721, %vm6737
    %vm6754 = vmand %vm6722, %vm6738
    %vm6755 = vmand %vm6723, %vm6739
    %v6756 = vsel %vm6740, %v6707, 0.0
    %v6757 = vsel %vm6741, %v6706, 0.0
    %v6758 = vsel %vm6742, %v6705, 0.0
    %v6759 = vsel %vm6743, %v6704, 0.0
    %v6760 = vsel %vm6744, %v6703, 0.0
    %v6761 = vsel %vm6745, %v6702, 0.0
    %v6762 = vsel %vm6746, %v6701, 0.0
    %v6763 = vsel %vm6747, %v6700, 0.0
    %v6764 = vsel %vm6748, %v6699, 0.0
    %v6765 = vsel %vm6749, %v6698, 0.0
    %v6766 = vsel %vm6750, %v6697, 0.0
    %v6767 = vsel %vm6751, %v6696, 0.0
    %v6768 = vsel %vm6752, %v6695, 0.0
    %v6769 = vsel %vm6753, %v6694, 0.0
    %v6770 = vsel %vm6754, %v6693, 0.0
    %v6771 = vsel %vm6755, %v6692, 0.0
    %v6772 = vadd.f32 %v6611, %v6756
    %v6773 = vadd.f32 %v6612, %v6757
    %v6774 = vadd.f32 %v6613, %v6758
    %v6775 = vadd.f32 %v6614, %v6759
    %v6776 = vadd.f32 %v6615, %v6760
    %v6777 = vadd.f32 %v6616, %v6761
    %v6778 = vadd.f32 %v6617, %v6762
    %v6779 = vadd.f32 %v6618, %v6763
    %v6780 = vadd.f32 %v6619, %v6764
    %v6781 = vadd.f32 %v6620, %v6765
    %v6782 = vadd.f32 %v6621, %v6766
    %v6783 = vadd.f32 %v6622, %v6767
    %v6784 = vadd.f32 %v6623, %v6768
    %v6785 = vadd.f32 %v6624, %v6769
    %v6786 = vadd.f32 %v6625, %v6770
    %v6787 = vadd.f32 %v6626, %v6771
    %6788 = vrot.lane.b32.xlu0 %v5762, 32
    %v6789 = vpop.permute.xlu0 %6788
    %6790 = vrot.lane.b32.xlu0 %v5768, 32
    %v6791 = vpop.permute.xlu0 %6790
    %6792 = vrot.lane.b32.xlu0 %v5774, 32
    %v6793 = vpop.permute.xlu0 %6792
    %6794 = vrot.lane.b32.xlu0 %v5780, 32
    %v6795 = vpop.permute.xlu0 %6794
    %6796 = vrot.lane.b32.xlu0 %v5786, 32
    %v6797 = vpop.permute.xlu0 %6796
    %6798 = vrot.lane.b32.xlu0 %v5792, 32
    %v6799 = vpop.permute.xlu0 %6798
    %6800 = vrot.lane.b32.xlu0 %v5798, 32
    %v6801 = vpop.permute.xlu0 %6800
    %6802 = vrot.lane.b32.xlu0 %v5804, 32
    %v6803 = vpop.permute.xlu0 %6802
    %6804 = vrot.lane.b32.xlu0 %v5810, 32
    %v6805 = vpop.permute.xlu0 %6804
    %6806 = vrot.lane.b32.xlu0 %v5816, 32
    %v6807 = vpop.permute.xlu0 %6806
    %6808 = vrot.lane.b32.xlu0 %v5822, 32
    %v6809 = vpop.permute.xlu0 %6808
    %6810 = vrot.lane.b32.xlu0 %v5828, 32
    %v6811 = vpop.permute.xlu0 %6810
    %6812 = vrot.lane.b32.xlu0 %v5834, 32
    %v6813 = vpop.permute.xlu0 %6812
    %6814 = vrot.lane.b32.xlu0 %v5840, 32
    %v6815 = vpop.permute.xlu0 %6814
    %6816 = vrot.lane.b32.xlu0 %v5846, 32
    %v6817 = vpop.permute.xlu0 %6816
    %6818 = vrot.lane.b32.xlu0 %v5852, 32
    %v6819 = vpop.permute.xlu0 %6818
    %v6836 = vrot.slane %v6789, 7
    %v6837 = vrot.slane %v6791, 7
    %v6838 = vrot.slane %v6793, 7
    %v6839 = vrot.slane %v6795, 7
    %v6840 = vrot.slane %v6797, 7
    %v6841 = vrot.slane %v6799, 7
    %v6842 = vrot.slane %v6801, 7
    %v6843 = vrot.slane %v6803, 7
    %v6844 = vrot.slane %v6805, 7
    %v6845 = vrot.slane %v6807, 7
    %v6846 = vrot.slane %v6809, 7
    %v6847 = vrot.slane %v6811, 7
    %v6848 = vrot.slane %v6813, 7
    %v6849 = vrot.slane %v6815, 7
    %v6850 = vrot.slane %v6817, 7
    %v6851 = vrot.slane %v6819, 7
    %v6852 = vsel %vm6418, %v6850, %v6851
    %v6853 = vsel %vm6418, %v6849, %v6850
    %v6854 = vsel %vm6418, %v6848, %v6849
    %v6855 = vsel %vm6418, %v6847, %v6848
    %v6856 = vsel %vm6418, %v6846, %v6847
    %v6857 = vsel %vm6418, %v6845, %v6846
    %v6858 = vsel %vm6418, %v6844, %v6845
    %v6859 = vsel %vm6418, %v6843, %v6844
    %v6860 = vsel %vm6418, %v6842, %v6843
    %v6861 = vsel %vm6418, %v6841, %v6842
    %v6862 = vsel %vm6418, %v6840, %v6841
    %v6863 = vsel %vm6418, %v6839, %v6840
    %v6864 = vsel %vm6418, %v6838, %v6839
    %v6865 = vsel %vm6418, %v6837, %v6838
    %v6866 = vsel %vm6418, %v6836, %v6837
    %v6867 = vsel %vm6418, %v6851, %v6836
    %vm6868 = vcmp.ge.s32.totalorder %v6194, 1
    %vm6869 = vcmp.ge.s32.totalorder %v6195, 1
    %vm6870 = vcmp.ge.s32.totalorder %v6196, 1
    %vm6871 = vcmp.ge.s32.totalorder %v6197, 1
    %vm6872 = vcmp.ge.s32.totalorder %v6198, 1
    %vm6873 = vcmp.ge.s32.totalorder %v6199, 1
    %vm6874 = vcmp.ge.s32.totalorder %v6200, 1
    %vm6875 = vcmp.ge.s32.totalorder %v6201, 1
    %vm6876 = vcmp.ge.s32.totalorder %v6202, 1
    %vm6877 = vcmp.ge.s32.totalorder %v6203, 1
    %vm6878 = vcmp.ge.s32.totalorder %v6204, 1
    %vm6879 = vcmp.ge.s32.totalorder %v6205, 1
    %vm6880 = vcmp.ge.s32.totalorder %v6206, 1
    %vm6881 = vcmp.ge.s32.totalorder %v6207, 1
    %vm6882 = vcmp.ge.s32.totalorder %v6208, 1
    %vm6883 = vcmp.ge.s32.totalorder %v6209, 1
    %vm6884 = vmand %vm6868, %vm6451
    %vm6885 = vmand %vm6869, %vm6452
    %vm6886 = vmand %vm6870, %vm6453
    %vm6887 = vmand %vm6871, %vm6454
    %vm6888 = vmand %vm6872, %vm6455
    %vm6889 = vmand %vm6873, %vm6456
    %vm6890 = vmand %vm6874, %vm6457
    %vm6891 = vmand %vm6875, %vm6458
    %vm6892 = vmand %vm6876, %vm6459
    %vm6893 = vmand %vm6877, %vm6460
    %vm6894 = vmand %vm6878, %vm6461
    %vm6895 = vmand %vm6879, %vm6462
    %vm6896 = vmand %vm6880, %vm6463
    %vm6897 = vmand %vm6881, %vm6464
    %vm6898 = vmand %vm6882, %vm6465
    %vm6899 = vmand %vm6883, %vm6466
    %v6900 = vsel %vm6884, %v6867, 0.0
    %v6901 = vsel %vm6885, %v6866, 0.0
    %v6902 = vsel %vm6886, %v6865, 0.0
    %v6903 = vsel %vm6887, %v6864, 0.0
    %v6904 = vsel %vm6888, %v6863, 0.0
    %v6905 = vsel %vm6889, %v6862, 0.0
    %v6906 = vsel %vm6890, %v6861, 0.0
    %v6907 = vsel %vm6891, %v6860, 0.0
    %v6908 = vsel %vm6892, %v6859, 0.0
    %v6909 = vsel %vm6893, %v6858, 0.0
    %v6910 = vsel %vm6894, %v6857, 0.0
    %v6911 = vsel %vm6895, %v6856, 0.0
    %v6912 = vsel %vm6896, %v6855, 0.0
    %v6913 = vsel %vm6897, %v6854, 0.0
    %v6914 = vsel %vm6898, %v6853, 0.0
    %v6915 = vsel %vm6899, %v6852, 0.0
    %v6916 = vadd.f32 %v6772, %v6900
    %v6917 = vadd.f32 %v6773, %v6901
    %v6918 = vadd.f32 %v6774, %v6902
    %v6919 = vadd.f32 %v6775, %v6903
    %v6920 = vadd.f32 %v6776, %v6904
    %v6921 = vadd.f32 %v6777, %v6905
    %v6922 = vadd.f32 %v6778, %v6906
    %v6923 = vadd.f32 %v6779, %v6907
    %v6924 = vadd.f32 %v6780, %v6908
    %v6925 = vadd.f32 %v6781, %v6909
    %v6926 = vadd.f32 %v6782, %v6910
    %v6927 = vadd.f32 %v6783, %v6911
    %v6928 = vadd.f32 %v6784, %v6912
    %v6929 = vadd.f32 %v6785, %v6913
    %v6930 = vadd.f32 %v6786, %v6914
    %v6931 = vadd.f32 %v6787, %v6915
    %v6932 = vadd.f32 %v6916, %v5764
    %v6933 = vadd.f32 %v6917, %v5770
    %v6934 = vadd.f32 %v6918, %v5776
    %v6935 = vadd.f32 %v6919, %v5782
    %v6936 = vadd.f32 %v6920, %v5788
    %v6937 = vadd.f32 %v6921, %v5794
    %v6938 = vadd.f32 %v6922, %v5800
    %v6939 = vadd.f32 %v6923, %v5806
    %v6940 = vadd.f32 %v6924, %v5812
    %v6941 = vadd.f32 %v6925, %v5818
    %v6942 = vadd.f32 %v6926, %v5824
    %v6943 = vadd.f32 %v6927, %v5830
    %v6944 = vadd.f32 %v6928, %v5836
    %v6945 = vadd.f32 %v6929, %v5842
    %v6946 = vadd.f32 %v6930, %v5848
    %v6947 = vadd.f32 %v6931, %v5854
    %6964 = vrot.lane.b32.xlu0 %v5764, 96
    %v6965 = vpop.permute.xlu0 %6964
    %6966 = vrot.lane.b32.xlu0 %v5770, 96
    %v6967 = vpop.permute.xlu0 %6966
    %6968 = vrot.lane.b32.xlu0 %v5776, 96
    %v6969 = vpop.permute.xlu0 %6968
    %6970 = vrot.lane.b32.xlu0 %v5782, 96
    %v6971 = vpop.permute.xlu0 %6970
    %6972 = vrot.lane.b32.xlu0 %v5788, 96
    %v6973 = vpop.permute.xlu0 %6972
    %6974 = vrot.lane.b32.xlu0 %v5794, 96
    %v6975 = vpop.permute.xlu0 %6974
    %6976 = vrot.lane.b32.xlu0 %v5800, 96
    %v6977 = vpop.permute.xlu0 %6976
    %6978 = vrot.lane.b32.xlu0 %v5806, 96
    %v6979 = vpop.permute.xlu0 %6978
    %6980 = vrot.lane.b32.xlu0 %v5812, 96
    %v6981 = vpop.permute.xlu0 %6980
    %6982 = vrot.lane.b32.xlu0 %v5818, 96
    %v6983 = vpop.permute.xlu0 %6982
    %6984 = vrot.lane.b32.xlu0 %v5824, 96
    %v6985 = vpop.permute.xlu0 %6984
    %6986 = vrot.lane.b32.xlu0 %v5830, 96
    %v6987 = vpop.permute.xlu0 %6986
    %6988 = vrot.lane.b32.xlu0 %v5836, 96
    %v6989 = vpop.permute.xlu0 %6988
    %6990 = vrot.lane.b32.xlu0 %v5842, 96
    %v6991 = vpop.permute.xlu0 %6990
    %6992 = vrot.lane.b32.xlu0 %v5848, 96
    %v6993 = vpop.permute.xlu0 %6992
    %6994 = vrot.lane.b32.xlu0 %v5854, 96
    %v6995 = vpop.permute.xlu0 %6994
    %v7012 = vrot.slane %v6965, 1
    %v7013 = vrot.slane %v6967, 1
    %v7014 = vrot.slane %v6969, 1
    %v7015 = vrot.slane %v6971, 1
    %v7016 = vrot.slane %v6973, 1
    %v7017 = vrot.slane %v6975, 1
    %v7018 = vrot.slane %v6977, 1
    %v7019 = vrot.slane %v6979, 1
    %v7020 = vrot.slane %v6981, 1
    %v7021 = vrot.slane %v6983, 1
    %v7022 = vrot.slane %v6985, 1
    %v7023 = vrot.slane %v6987, 1
    %v7024 = vrot.slane %v6989, 1
    %v7025 = vrot.slane %v6991, 1
    %v7026 = vrot.slane %v6993, 1
    %v7027 = vrot.slane %v6995, 1
    %v7028 = vsel %vm6691, %v7026, %v7027
    %v7029 = vsel %vm6691, %v7025, %v7026
    %v7030 = vsel %vm6691, %v7024, %v7025
    %v7031 = vsel %vm6691, %v7023, %v7024
    %v7032 = vsel %vm6691, %v7022, %v7023
    %v7033 = vsel %vm6691, %v7021, %v7022
    %v7034 = vsel %vm6691, %v7020, %v7021
    %v7035 = vsel %vm6691, %v7019, %v7020
    %v7036 = vsel %vm6691, %v7018, %v7019
    %v7037 = vsel %vm6691, %v7017, %v7018
    %v7038 = vsel %vm6691, %v7016, %v7017
    %v7039 = vsel %vm6691, %v7015, %v7016
    %v7040 = vsel %vm6691, %v7014, %v7015
    %v7041 = vsel %vm6691, %v7013, %v7014
    %v7042 = vsel %vm6691, %v7012, %v7013
    %v7043 = vsel %vm6691, %v7027, %v7012
    %vm7044 = vcmp.lt.s32.totalorder %v6194, 63
    %vm7045 = vcmp.lt.s32.totalorder %v6195, 63
    %vm7046 = vcmp.lt.s32.totalorder %v6196, 63
    %vm7047 = vcmp.lt.s32.totalorder %v6197, 63
    %vm7048 = vcmp.lt.s32.totalorder %v6198, 63
    %vm7049 = vcmp.lt.s32.totalorder %v6199, 63
    %vm7050 = vcmp.lt.s32.totalorder %v6200, 63
    %vm7051 = vcmp.lt.s32.totalorder %v6201, 63
    %vm7052 = vcmp.lt.s32.totalorder %v6202, 63
    %vm7053 = vcmp.lt.s32.totalorder %v6203, 63
    %vm7054 = vcmp.lt.s32.totalorder %v6204, 63
    %vm7055 = vcmp.lt.s32.totalorder %v6205, 63
    %vm7056 = vcmp.lt.s32.totalorder %v6206, 63
    %vm7057 = vcmp.lt.s32.totalorder %v6207, 63
    %vm7058 = vcmp.lt.s32.totalorder %v6208, 63
    %vm7059 = vcmp.lt.s32.totalorder %v6209, 63
    %vm7060 = vmand %vm7044, %vm6724
    %vm7061 = vmand %vm7045, %vm6725
    %vm7062 = vmand %vm7046, %vm6726
    %vm7063 = vmand %vm7047, %vm6727
    %vm7064 = vmand %vm7048, %vm6728
    %vm7065 = vmand %vm7049, %vm6729
    %vm7066 = vmand %vm7050, %vm6730
    %vm7067 = vmand %vm7051, %vm6731
    %vm7068 = vmand %vm7052, %vm6732
    %vm7069 = vmand %vm7053, %vm6733
    %vm7070 = vmand %vm7054, %vm6734
    %vm7071 = vmand %vm7055, %vm6735
    %vm7072 = vmand %vm7056, %vm6736
    %vm7073 = vmand %vm7057, %vm6737
    %vm7074 = vmand %vm7058, %vm6738
    %vm7075 = vmand %vm7059, %vm6739
    %v7076 = vsel %vm7060, %v7042, 0.0
    %v7077 = vsel %vm7061, %v7041, 0.0
    %v7078 = vsel %vm7062, %v7040, 0.0
    %v7079 = vsel %vm7063, %v7039, 0.0
    %v7080 = vsel %vm7064, %v7038, 0.0
    %v7081 = vsel %vm7065, %v7037, 0.0
    %v7082 = vsel %vm7066, %v7036, 0.0
    %v7083 = vsel %vm7067, %v7035, 0.0
    %v7084 = vsel %vm7068, %v7034, 0.0
    %v7085 = vsel %vm7069, %v7033, 0.0
    %v7086 = vsel %vm7070, %v7032, 0.0
    %v7087 = vsel %vm7071, %v7031, 0.0
    %v7088 = vsel %vm7072, %v7030, 0.0
    %v7089 = vsel %vm7073, %v7029, 0.0
    %v7090 = vsel %vm7074, %v7028, 0.0
    %v7091 = vsel %vm7075, %v7043, 0.0
    %v7092 = vadd.f32 %v6932, %v7076
    %v7093 = vadd.f32 %v6933, %v7077
    %v7094 = vadd.f32 %v6934, %v7078
    %v7095 = vadd.f32 %v6935, %v7079
    %v7096 = vadd.f32 %v6936, %v7080
    %v7097 = vadd.f32 %v6937, %v7081
    %v7098 = vadd.f32 %v6938, %v7082
    %v7099 = vadd.f32 %v6939, %v7083
    %v7100 = vadd.f32 %v6940, %v7084
    %v7101 = vadd.f32 %v6941, %v7085
    %v7102 = vadd.f32 %v6942, %v7086
    %v7103 = vadd.f32 %v6943, %v7087
    %v7104 = vadd.f32 %v6944, %v7088
    %v7105 = vadd.f32 %v6945, %v7089
    %v7106 = vadd.f32 %v6946, %v7090
    %v7107 = vadd.f32 %v6947, %v7091
    %7108 = vrot.lane.b32.xlu0 %v5764, 64
    %v7109 = vpop.permute.xlu0 %7108
    %7110 = vrot.lane.b32.xlu0 %v5770, 64
    %v7111 = vpop.permute.xlu0 %7110
    %7112 = vrot.lane.b32.xlu0 %v5776, 64
    %v7113 = vpop.permute.xlu0 %7112
    %7114 = vrot.lane.b32.xlu0 %v5782, 64
    %v7115 = vpop.permute.xlu0 %7114
    %7116 = vrot.lane.b32.xlu0 %v5788, 64
    %v7117 = vpop.permute.xlu0 %7116
    %7118 = vrot.lane.b32.xlu0 %v5794, 64
    %v7119 = vpop.permute.xlu0 %7118
    %7120 = vrot.lane.b32.xlu0 %v5800, 64
    %v7121 = vpop.permute.xlu0 %7120
    %7122 = vrot.lane.b32.xlu0 %v5806, 64
    %v7123 = vpop.permute.xlu0 %7122
    %7124 = vrot.lane.b32.xlu0 %v5812, 64
    %v7125 = vpop.permute.xlu0 %7124
    %7126 = vrot.lane.b32.xlu0 %v5818, 64
    %v7127 = vpop.permute.xlu0 %7126
    %7128 = vrot.lane.b32.xlu0 %v5824, 64
    %v7129 = vpop.permute.xlu0 %7128
    %7130 = vrot.lane.b32.xlu0 %v5830, 64
    %v7131 = vpop.permute.xlu0 %7130
    %7132 = vrot.lane.b32.xlu0 %v5836, 64
    %v7133 = vpop.permute.xlu0 %7132
    %7134 = vrot.lane.b32.xlu0 %v5842, 64
    %v7135 = vpop.permute.xlu0 %7134
    %7136 = vrot.lane.b32.xlu0 %v5848, 64
    %v7137 = vpop.permute.xlu0 %7136
    %7138 = vrot.lane.b32.xlu0 %v5854, 64
    %v7139 = vpop.permute.xlu0 %7138
    %v7156 = vrot.slane %v7109, 7
    %v7157 = vrot.slane %v7111, 7
    %v7158 = vrot.slane %v7113, 7
    %v7159 = vrot.slane %v7115, 7
    %v7160 = vrot.slane %v7117, 7
    %v7161 = vrot.slane %v7119, 7
    %v7162 = vrot.slane %v7121, 7
    %v7163 = vrot.slane %v7123, 7
    %v7164 = vrot.slane %v7125, 7
    %v7165 = vrot.slane %v7127, 7
    %v7166 = vrot.slane %v7129, 7
    %v7167 = vrot.slane %v7131, 7
    %v7168 = vrot.slane %v7133, 7
    %v7169 = vrot.slane %v7135, 7
    %v7170 = vrot.slane %v7137, 7
    %v7171 = vrot.slane %v7139, 7
    %v7172 = vsel %vm6418, %v7170, %v7171
    %v7173 = vsel %vm6418, %v7169, %v7170
    %v7174 = vsel %vm6418, %v7168, %v7169
    %v7175 = vsel %vm6418, %v7167, %v7168
    %v7176 = vsel %vm6418, %v7166, %v7167
    %v7177 = vsel %vm6418, %v7165, %v7166
    %v7178 = vsel %vm6418, %v7164, %v7165
    %v7179 = vsel %vm6418, %v7163, %v7164
    %v7180 = vsel %vm6418, %v7162, %v7163
    %v7181 = vsel %vm6418, %v7161, %v7162
    %v7182 = vsel %vm6418, %v7160, %v7161
    %v7183 = vsel %vm6418, %v7159, %v7160
    %v7184 = vsel %vm6418, %v7158, %v7159
    %v7185 = vsel %vm6418, %v7157, %v7158
    %v7186 = vsel %vm6418, %v7156, %v7157
    %v7187 = vsel %vm6418, %v7171, %v7156
    %vm7188 = vcmp.lt.s32.totalorder %v6194, 57
    %vm7189 = vcmp.lt.s32.totalorder %v6195, 57
    %vm7190 = vcmp.lt.s32.totalorder %v6196, 57
    %vm7191 = vcmp.lt.s32.totalorder %v6197, 57
    %vm7192 = vcmp.lt.s32.totalorder %v6198, 57
    %vm7193 = vcmp.lt.s32.totalorder %v6199, 57
    %vm7194 = vcmp.lt.s32.totalorder %v6200, 57
    %vm7195 = vcmp.lt.s32.totalorder %v6201, 57
    %vm7196 = vcmp.lt.s32.totalorder %v6202, 57
    %vm7197 = vcmp.lt.s32.totalorder %v6203, 57
    %vm7198 = vcmp.lt.s32.totalorder %v6204, 57
    %vm7199 = vcmp.lt.s32.totalorder %v6205, 57
    %vm7200 = vcmp.lt.s32.totalorder %v6206, 57
    %vm7201 = vcmp.lt.s32.totalorder %v6207, 57
    %vm7202 = vcmp.lt.s32.totalorder %v6208, 57
    %vm7203 = vcmp.lt.s32.totalorder %v6209, 57
    %vm7204 = vmand %vm7188, %vm6451
    %vm7205 = vmand %vm7189, %vm6452
    %vm7206 = vmand %vm7190, %vm6453
    %vm7207 = vmand %vm7191, %vm6454
    %vm7208 = vmand %vm7192, %vm6455
    %vm7209 = vmand %vm7193, %vm6456
    %vm7210 = vmand %vm7194, %vm6457
    %vm7211 = vmand %vm7195, %vm6458
    %vm7212 = vmand %vm7196, %vm6459
    %vm7213 = vmand %vm7197, %vm6460
    %vm7214 = vmand %vm7198, %vm6461
    %vm7215 = vmand %vm7199, %vm6462
    %vm7216 = vmand %vm7200, %vm6463
    %vm7217 = vmand %vm7201, %vm6464
    %vm7218 = vmand %vm7202, %vm6465
    %vm7219 = vmand %vm7203, %vm6466
    %v7220 = vsel %vm7204, %v7186, 0.0
    %v7221 = vsel %vm7205, %v7185, 0.0
    %v7222 = vsel %vm7206, %v7184, 0.0
    %v7223 = vsel %vm7207, %v7183, 0.0
    %v7224 = vsel %vm7208, %v7182, 0.0
    %v7225 = vsel %vm7209, %v7181, 0.0
    %v7226 = vsel %vm7210, %v7180, 0.0
    %v7227 = vsel %vm7211, %v7179, 0.0
    %v7228 = vsel %vm7212, %v7178, 0.0
    %v7229 = vsel %vm7213, %v7177, 0.0
    %v7230 = vsel %vm7214, %v7176, 0.0
    %v7231 = vsel %vm7215, %v7175, 0.0
    %v7232 = vsel %vm7216, %v7174, 0.0
    %v7233 = vsel %vm7217, %v7173, 0.0
    %v7234 = vsel %vm7218, %v7172, 0.0
    %v7235 = vsel %vm7219, %v7187, 0.0
    %v7236 = vadd.f32 %v7092, %v7220
    %v7237 = vadd.f32 %v7093, %v7221
    %v7238 = vadd.f32 %v7094, %v7222
    %v7239 = vadd.f32 %v7095, %v7223
    %v7240 = vadd.f32 %v7096, %v7224
    %v7241 = vadd.f32 %v7097, %v7225
    %v7242 = vadd.f32 %v7098, %v7226
    %v7243 = vadd.f32 %v7099, %v7227
    %v7244 = vadd.f32 %v7100, %v7228
    %v7245 = vadd.f32 %v7101, %v7229
    %v7246 = vadd.f32 %v7102, %v7230
    %v7247 = vadd.f32 %v7103, %v7231
    %v7248 = vadd.f32 %v7104, %v7232
    %v7249 = vadd.f32 %v7105, %v7233
    %v7250 = vadd.f32 %v7106, %v7234
    %v7251 = vadd.f32 %v7107, %v7235
    %7252 = vrot.lane.b32.xlu0 %v5764, 32
    %v7253 = vpop.permute.xlu0 %7252
    %7254 = vrot.lane.b32.xlu0 %v5770, 32
    %v7255 = vpop.permute.xlu0 %7254
    %7256 = vrot.lane.b32.xlu0 %v5776, 32
    %v7257 = vpop.permute.xlu0 %7256
    %7258 = vrot.lane.b32.xlu0 %v5782, 32
    %v7259 = vpop.permute.xlu0 %7258
    %7260 = vrot.lane.b32.xlu0 %v5788, 32
    %v7261 = vpop.permute.xlu0 %7260
    %7262 = vrot.lane.b32.xlu0 %v5794, 32
    %v7263 = vpop.permute.xlu0 %7262
    %7264 = vrot.lane.b32.xlu0 %v5800, 32
    %v7265 = vpop.permute.xlu0 %7264
    %7266 = vrot.lane.b32.xlu0 %v5806, 32
    %v7267 = vpop.permute.xlu0 %7266
    %7268 = vrot.lane.b32.xlu0 %v5812, 32
    %v7269 = vpop.permute.xlu0 %7268
    %7270 = vrot.lane.b32.xlu0 %v5818, 32
    %v7271 = vpop.permute.xlu0 %7270
    %7272 = vrot.lane.b32.xlu0 %v5824, 32
    %v7273 = vpop.permute.xlu0 %7272
    %7274 = vrot.lane.b32.xlu0 %v5830, 32
    %v7275 = vpop.permute.xlu0 %7274
    %7276 = vrot.lane.b32.xlu0 %v5836, 32
    %v7277 = vpop.permute.xlu0 %7276
    %7278 = vrot.lane.b32.xlu0 %v5842, 32
    %v7279 = vpop.permute.xlu0 %7278
    %7280 = vrot.lane.b32.xlu0 %v5848, 32
    %v7281 = vpop.permute.xlu0 %7280
    %7282 = vrot.lane.b32.xlu0 %v5854, 32
    %v7283 = vpop.permute.xlu0 %7282
    %vm7300 = vcmp.lt.s32.totalorder %v6194, 56
    %vm7301 = vcmp.lt.s32.totalorder %v6195, 56
    %vm7302 = vcmp.lt.s32.totalorder %v6196, 56
    %vm7303 = vcmp.lt.s32.totalorder %v6197, 56
    %vm7304 = vcmp.lt.s32.totalorder %v6198, 56
    %vm7305 = vcmp.lt.s32.totalorder %v6199, 56
    %vm7306 = vcmp.lt.s32.totalorder %v6200, 56
    %vm7307 = vcmp.lt.s32.totalorder %v6201, 56
    %vm7308 = vcmp.lt.s32.totalorder %v6202, 56
    %vm7309 = vcmp.lt.s32.totalorder %v6203, 56
    %vm7310 = vcmp.lt.s32.totalorder %v6204, 56
    %vm7311 = vcmp.lt.s32.totalorder %v6205, 56
    %vm7312 = vcmp.lt.s32.totalorder %v6206, 56
    %vm7313 = vcmp.lt.s32.totalorder %v6207, 56
    %vm7314 = vcmp.lt.s32.totalorder %v6208, 56
    %vm7315 = vcmp.lt.s32.totalorder %v6209, 56
    %v7316 = vsel %vm7300, %v7255, 0.0
    %v7317 = vsel %vm7301, %v7257, 0.0
    %v7318 = vsel %vm7302, %v7259, 0.0
    %v7319 = vsel %vm7303, %v7261, 0.0
    %v7320 = vsel %vm7304, %v7263, 0.0
    %v7321 = vsel %vm7305, %v7265, 0.0
    %v7322 = vsel %vm7306, %v7267, 0.0
    %v7323 = vsel %vm7307, %v7269, 0.0
    %v7324 = vsel %vm7308, %v7271, 0.0
    %v7325 = vsel %vm7309, %v7273, 0.0
    %v7326 = vsel %vm7310, %v7275, 0.0
    %v7327 = vsel %vm7311, %v7277, 0.0
    %v7328 = vsel %vm7312, %v7279, 0.0
    %v7329 = vsel %vm7313, %v7281, 0.0
    %v7330 = vsel %vm7314, %v7283, 0.0
    %v7331 = vsel %vm7315, %v7253, 0.0
    %v7332 = vadd.f32 %v7236, %v7316
    %v7333 = vadd.f32 %v7237, %v7317
    %v7334 = vadd.f32 %v7238, %v7318
    %v7335 = vadd.f32 %v7239, %v7319
    %v7336 = vadd.f32 %v7240, %v7320
    %v7337 = vadd.f32 %v7241, %v7321
    %v7338 = vadd.f32 %v7242, %v7322
    %v7339 = vadd.f32 %v7243, %v7323
    %v7340 = vadd.f32 %v7244, %v7324
    %v7341 = vadd.f32 %v7245, %v7325
    %v7342 = vadd.f32 %v7246, %v7326
    %v7343 = vadd.f32 %v7247, %v7327
    %v7344 = vadd.f32 %v7248, %v7328
    %v7345 = vadd.f32 %v7249, %v7329
    %v7346 = vadd.f32 %v7250, %v7330
    %v7347 = vadd.f32 %v7251, %v7331
    %v7348 = vrot.slane %v5923, 1
    %v7349 = vrot.slane %v5928, 1
    %v7350 = vrot.slane %v5933, 1
    %v7351 = vrot.slane %v5938, 1
    %v7352 = vrot.slane %v5943, 1
    %v7353 = vrot.slane %v5948, 1
    %v7354 = vrot.slane %v5953, 1
    %v7355 = vrot.slane %v5958, 1
    %v7356 = vrot.slane %v5963, 1
    %v7357 = vrot.slane %v5968, 1
    %v7358 = vrot.slane %v5973, 1
    %v7359 = vrot.slane %v5978, 1
    %v7360 = vrot.slane %v5983, 1
    %v7361 = vrot.slane %v5988, 1
    %v7362 = vrot.slane %v5993, 1
    %v7363 = vrot.slane %v5998, 1
    %v7364 = vsel %vm6691, %v7362, %v7363
    %v7365 = vsel %vm6691, %v7361, %v7362
    %v7366 = vsel %vm6691, %v7360, %v7361
    %v7367 = vsel %vm6691, %v7359, %v7360
    %v7368 = vsel %vm6691, %v7358, %v7359
    %v7369 = vsel %vm6691, %v7357, %v7358
    %v7370 = vsel %vm6691, %v7356, %v7357
    %v7371 = vsel %vm6691, %v7355, %v7356
    %v7372 = vsel %vm6691, %v7354, %v7355
    %v7373 = vsel %vm6691, %v7353, %v7354
    %v7374 = vsel %vm6691, %v7352, %v7353
    %v7375 = vsel %vm6691, %v7351, %v7352
    %v7376 = vsel %vm6691, %v7350, %v7351
    %v7377 = vsel %vm6691, %v7349, %v7350
    %v7378 = vsel %vm6691, %v7348, %v7349
    %v7379 = vsel %vm6691, %v7363, %v7348
    %vm7380 = vcmp.lt.s32.totalorder %v6194, 55
    %vm7381 = vcmp.lt.s32.totalorder %v6195, 55
    %vm7382 = vcmp.lt.s32.totalorder %v6196, 55
    %vm7383 = vcmp.lt.s32.totalorder %v6197, 55
    %vm7384 = vcmp.lt.s32.totalorder %v6198, 55
    %vm7385 = vcmp.lt.s32.totalorder %v6199, 55
    %vm7386 = vcmp.lt.s32.totalorder %v6200, 55
    %vm7387 = vcmp.lt.s32.totalorder %v6201, 55
    %vm7388 = vcmp.lt.s32.totalorder %v6202, 55
    %vm7389 = vcmp.lt.s32.totalorder %v6203, 55
    %vm7390 = vcmp.lt.s32.totalorder %v6204, 55
    %vm7391 = vcmp.lt.s32.totalorder %v6205, 55
    %vm7392 = vcmp.lt.s32.totalorder %v6206, 55
    %vm7393 = vcmp.lt.s32.totalorder %v6207, 55
    %vm7394 = vcmp.lt.s32.totalorder %v6208, 55
    %vm7395 = vcmp.lt.s32.totalorder %v6209, 55
    %vm7396 = vmand %vm7380, %vm6724
    %vm7397 = vmand %vm7381, %vm6725
    %vm7398 = vmand %vm7382, %vm6726
    %vm7399 = vmand %vm7383, %vm6727
    %vm7400 = vmand %vm7384, %vm6728
    %vm7401 = vmand %vm7385, %vm6729
    %vm7402 = vmand %vm7386, %vm6730
    %vm7403 = vmand %vm7387, %vm6731
    %vm7404 = vmand %vm7388, %vm6732
    %vm7405 = vmand %vm7389, %vm6733
    %vm7406 = vmand %vm7390, %vm6734
    %vm7407 = vmand %vm7391, %vm6735
    %vm7408 = vmand %vm7392, %vm6736
    %vm7409 = vmand %vm7393, %vm6737
    %vm7410 = vmand %vm7394, %vm6738
    %vm7411 = vmand %vm7395, %vm6739
    %v7412 = vsel %vm7396, %v7377, 0.0
    %v7413 = vsel %vm7397, %v7376, 0.0
    %v7414 = vsel %vm7398, %v7375, 0.0
    %v7415 = vsel %vm7399, %v7374, 0.0
    %v7416 = vsel %vm7400, %v7373, 0.0
    %v7417 = vsel %vm7401, %v7372, 0.0
    %v7418 = vsel %vm7402, %v7371, 0.0
    %v7419 = vsel %vm7403, %v7370, 0.0
    %v7420 = vsel %vm7404, %v7369, 0.0
    %v7421 = vsel %vm7405, %v7368, 0.0
    %v7422 = vsel %vm7406, %v7367, 0.0
    %v7423 = vsel %vm7407, %v7366, 0.0
    %v7424 = vsel %vm7408, %v7365, 0.0
    %v7425 = vsel %vm7409, %v7364, 0.0
    %v7426 = vsel %vm7410, %v7379, 0.0
    %v7427 = vsel %vm7411, %v7378, 0.0
    %v7428 = vadd.f32 %v7332, %v7412
    %v7429 = vadd.f32 %v7333, %v7413
    %v7430 = vadd.f32 %v7334, %v7414
    %v7431 = vadd.f32 %v7335, %v7415
    %v7432 = vadd.f32 %v7336, %v7416
    %v7433 = vadd.f32 %v7337, %v7417
    %v7434 = vadd.f32 %v7338, %v7418
    %v7435 = vadd.f32 %v7339, %v7419
    %v7436 = vadd.f32 %v7340, %v7420
    %v7437 = vadd.f32 %v7341, %v7421
    %v7438 = vadd.f32 %v7342, %v7422
    %v7439 = vadd.f32 %v7343, %v7423
    %v7440 = vadd.f32 %v7344, %v7424
    %v7441 = vadd.f32 %v7345, %v7425
    %v7442 = vadd.f32 %v7346, %v7426
    %v7443 = vadd.f32 %v7347, %v7427
    %v7444 = vld [vmem:[%s10] sm:$0x1]
    %v7446 = vlaneseq
    %v7447 = vshrl.u32 %v7446, 7
    %v7448 = vsub.s32 0, %v7447
    %v7449 = vrot.slane %v7444, %v7448
    %v7451 = vadd.f32 %v7428, %v7449
    %v7452 = vadd.f32 %v7429, %v7449
    %v7453 = vadd.f32 %v7430, %v7449
    %v7454 = vadd.f32 %v7431, %v7449
    %v7455 = vadd.f32 %v7432, %v7449
    %v7456 = vadd.f32 %v7433, %v7449
    %v7457 = vadd.f32 %v7434, %v7449
    %v7458 = vadd.f32 %v7435, %v7449
    %v7459 = vadd.f32 %v7436, %v7449
    %v7460 = vadd.f32 %v7437, %v7449
    %v7461 = vadd.f32 %v7438, %v7449
    %v7462 = vadd.f32 %v7439, %v7449
    %v7463 = vadd.f32 %v7440, %v7449
    %v7464 = vadd.f32 %v7441, %v7449
    %v7465 = vadd.f32 %v7442, %v7449
    %v7466 = vadd.f32 %v7443, %v7449
    %7467 = vst.msk [vmem:[#allocation8] sm:$0xff] %vm107, %v7451
    %7468 = vst.msk [vmem:[#allocation8 + $0x8] sm:$0xff] %vm107, %v7452
    %7469 = vst.msk [vmem:[#allocation8 + $0x10] sm:$0xff] %vm107, %v7453
    %7470 = vst.msk [vmem:[#allocation8 + $0x18] sm:$0xff] %vm107, %v7454
    %7471 = vst.msk [vmem:[#allocation8 + $0x20] sm:$0xff] %vm107, %v7455
    %7472 = vst.msk [vmem:[#allocation8 + $0x28] sm:$0xff] %vm107, %v7456
    %7473 = vst.msk [vmem:[#allocation8 + $0x30] sm:$0xff] %vm107, %v7457
    %7474 = vst.msk [vmem:[#allocation8 + $0x38] sm:$0xff] %vm107, %v7458
    %7475 = vst.msk [vmem:[#allocation8 + $0x40] sm:$0xff] %vm107, %v7459
    %7476 = vst.msk [vmem:[#allocation8 + $0x48] sm:$0xff] %vm107, %v7460
    %7477 = vst.msk [vmem:[#allocation8 + $0x50] sm:$0xff] %vm107, %v7461
    %7478 = vst.msk [vmem:[#allocation8 + $0x58] sm:$0xff] %vm107, %v7462
    %7479 = vst.msk [vmem:[#allocation8 + $0x60] sm:$0xff] %vm107, %v7463
    %7480 = vst.msk [vmem:[#allocation8 + $0x68] sm:$0xff] %vm107, %v7464
    %7481 = vst.msk [vmem:[#allocation8 + $0x70] sm:$0xff] %vm107, %v7465
    %7482 = vst.msk [vmem:[#allocation8 + $0x78] sm:$0xff] %vm107, %v7466
    // Predicated region
    $region58: #{transformer_group_forward.1} parent=1 // pred_check
      _
    $region59: #{transformer_group_forward.1} parent=1 // pred_check_branch
      %7484 = sbr.rel (0) target = $region61
    $region60: #{transformer_group_forward.1} parent=1 // pred_region
      %s7486 = ssub.s32 2048, 2048
      %7487 = vsyncadd [#allocation4], %s7486
      %s7488 = sshll.u32 [#allocation8], 4
      %s7489 = int_to_ptr.vmem [resolvable:$true] %s7488
      %7494 = dma.vmem_to_hbm [thread:$0]  %s7489, 2048, %s11, [#allocation4], 128, 128, 8
    $region61: #{transformer_group_forward.1} parent=1 // pred_fallthru
      _
    // Predicated region
    $region62: #{transformer_group_forward.1} parent=1 // pred_check
      _
    $region63: #{transformer_group_forward.1} parent=1 // pred_check_branch
      %7496 = sbr.rel (0) target = $region65
    $region64: #{transformer_group_forward.1} parent=1 // pred_region
      %7497 = dma.done [#allocation4], 2048
    $region65: #{transformer_group_forward.1} parent=1 // pred_fallthru
      _
    %7498 = vsyncpa [#allocation3], 1
    %7499 = vsyncpa [#allocation6], 1
    %7500 = vsyncpa [#allocation4], 1

</llo_original>
